<compile_context>
chip_gen: v6e
topology: v6e:2x2x1
jax: 0.10.0
libtpu: 0.0.40
codegen_flags: <defaults>
</compile_context>

<pallas_src>
import math
from functools import partial

import jax
import jax.numpy as jnp
from jax import lax
from jax.experimental import pallas as pl
from jax.experimental.pallas import tpu as pltpu


_OUT_PAD = 128   # lane-dense padded output width (out_channels padded up)


# --------------------------------- kernel -----------------------------------

def _f0_decoder_kernel(n_layers, n_heads, ffn_kernel, seq_len,
                       x_ref, f0_ref, mask_ref, spk_ref, t_ref,
                       cond_w, f0p_w, pre_w, pre_b3,
                       qkv_w, qkv_b, o_w, o_b, ln,
                       f1_w, f1_b, f2_w, f2_b, proj_w, proj_b,
                       out_ref):
    f32, bf16 = jnp.float32, jnp.bfloat16
    N, H = x_ref.shape                    # N = batch_block * T
    T = seq_len
    BB = N // T
    K = ffn_kernel
    nh = n_heads
    dk_pad = qkv_w.shape[-1] // (3 * nh)  # per-head width, padded to 128 lanes

    x = x_ref[...]                        # (N, H)   torch.detach -> no-op
    mask = mask_ref[...]                  # (N, 1)
    f0 = f0_ref[...]                      # (N, 1)
    t_row = t_ref[...]                    # (N, 1) int32 per-batch time index

    # ---- hoisted masks (computed once, reused by every layer) ----
    causal = (lax.broadcasted_iota(jnp.int32, (1, T, T), 1)
              >= lax.broadcasted_iota(jnp.int32, (1, T, T), 2))
    dmask = {s: t_row >= s for s in range(1, max(K, 2))}   # shift-down preds
    umask1 = t_row < (T - 1)                                # shift-up-by-1 pred

    def shift_down(a, s):        # y[b,t] = a[b,t-s], 0 for t < s   (batch-safe)
        return jnp.where(dmask[s], pltpu.roll(a, s, axis=0), 0.0)

    def shift_up1(a):            # y[b,t] = a[b,t+1], 0 for t == T-1 (batch-safe)
        return jnp.where(umask1, pltpu.roll(a, (N - 1) % N, axis=0), 0.0)

    def conv3_same(a, w_fused, b):        # Conv1d(k=3, padding=1), fused taps
        a3 = jnp.concatenate([shift_down(a, 1), a, shift_up1(a)], axis=-1)
        return jnp.dot(a3.astype(bf16), w_fused,
                       preferred_element_type=f32) + b

    def conv_causal(a, w_fused, b):       # FFN conv, left pad K-1, fused taps
        taps = [shift_down(a, K - 1 - k) for k in range(K - 1)] + [a]
        ak = taps[0] if K == 1 else jnp.concatenate(taps, axis=-1)
        return jnp.dot(ak.astype(bf16), w_fused,
                       preferred_element_type=f32) + b

    def layer_norm(a, g, b, eps=1e-5):
        m = jnp.mean(a, axis=-1, keepdims=True)
        v = jnp.mean(jnp.square(a - m), axis=-1, keepdims=True)
        return (a - m) * lax.rsqrt(v + eps) * g + b

    pb = pre_b3[...]                      # (3, H): [cond_b, f0p_b, pre_b]
    f0w = f0p_w[...]                      # (3, H): f0_prenet taps [t-1, t, t+1]

    # x = x + cond(spk_emb)                         (1x1 conv == matmul)
    x = x + jnp.dot(spk_ref[...].astype(bf16), cond_w[...],
                    preferred_element_type=f32) + pb[0:1]
    # x += f0_prenet(norm_f0)          (Ci == 1 -> broadcast-mult taps, no MXU)
    x = x + (shift_down(f0 * f0w[0:1], 1) + f0 * f0w[1:2]
             + shift_up1(f0 * f0w[2:3]) + pb[1:2])
    # x = prenet(x) * x_mask
    x = conv3_same(x, pre_w[...], pb[2:3]) * mask

    # decoder = attentions.FFT (causal MHA + causal-conv FFN + LayerNorm)
    # nn.Dropout(p_dropout) omitted — identity at inference.
    x = x * mask
    for l in range(n_layers):
        # fused, head-major, lane-padded QKV projection: one bf16 matmul.
        # 1/sqrt(dk) is folded into the Q weights/bias at pack time.
        qkv = (jnp.dot(x.astype(bf16), qkv_w[l], preferred_element_type=f32)
               + qkv_b[l]).reshape(BB, T, 3 * nh * dk_pad)
        o_wl = o_w[l]                     # (nh*dk_pad, H) bf16, zero pad rows
        y = o_b[l]                        # (1, H)
        for h in range(nh):
            base = 3 * h * dk_pad         # 128-aligned lane offsets -> views
            qh = qkv[..., base:base + dk_pad].astype(bf16)
            kh = qkv[..., base + dk_pad:base + 2 * dk_pad].astype(bf16)
            vh = qkv[..., base + 2 * dk_pad:base + 3 * dk_pad].astype(bf16)
            # contraction folds the K transpose (no explicit kh.T)
            s = jnp.einsum('bqd,bkd->bqk', qh, kh, preferred_element_type=f32)
            s = jnp.where(causal, s, -1e4)                 # masked_fill(-1e4)
            s = s - jnp.max(s, axis=-1, keepdims=True)
            e = jnp.exp(s)
            p = (e * pl.reciprocal(jnp.sum(e, axis=-1, keepdims=True),
                                   approx=True)).astype(bf16)
            oh = jnp.einsum('bqk,bkd->bqd', p, vh, preferred_element_type=f32)
            # per-head row-slice of Wo, summed == concat(heads) @ Wo
            y = y + jnp.dot(oh.reshape(N, dk_pad).astype(bf16),
                            o_wl[h * dk_pad:(h + 1) * dk_pad],
                            preferred_element_type=f32)
        ln_l = ln[l]                      # (4, 1, H): n0_g, n0_b, n1_g, n1_b
        x = layer_norm(x + y, ln_l[0], ln_l[1])
        h1 = conv_causal(x * mask, f1_w[l], f1_b[l])
        h1 = jnp.maximum(h1, 0.0)                          # relu
        h2 = conv_causal(h1 * mask, f2_w[l], f2_b[l])
        x = layer_norm(x + h2 * mask, ln_l[2], ln_l[3])
    x = x * mask

    # x = proj(x) * x_mask   (padded to 128 lanes, stored bf16 -> half the vst)
    out = (jnp.dot(x.astype(bf16), proj_w[...],
                   preferred_element_type=f32) + proj_b[...]) * mask
    out_ref[...] = out.astype(out_ref.dtype)


# ------------------------------ param packing --------------------------------

_PACKED_ORDER = ('cond_w', 'f0p_w', 'pre_w', 'pre_b3', 'qkv_w', 'qkv_b',
                 'o_w', 'o_b', 'ln', 'f1_w', 'f1_b', 'f2_w', 'f2_b',
                 'proj_w', 'proj_b')


def _pack_params(p, K, n_heads):
    """Fuse / reshape / pre-cast PyTorch-style params for the kernel.

    - conv taps fused into (K*Ci, Co) weights (one matmul per conv), bf16
    - q/k/v fused head-major into one (H, nh*3*dk_pad) projection, each per-head
      Q/K/V block zero-padded to a 128-lane multiple (lane-aligned slices);
      1/sqrt(dk) folded into the Q weights/bias
    - o_w padded to (nh*dk_pad, H) with zero rows matching the padded V lanes
    - all LayerNorm gammas/betas packed into one (L, 4, 1, H) array
    - proj padded to 128 output lanes for dense stores
    """
    bf = jnp.bfloat16
    L, H, _ = p['q_w'].shape
    nh = n_heads
    dk = H // nh
    dk_pad = -(-dk // 128) * 128
    F_ch = p['f1_w'].shape[-1]
    O = p['proj_w'].shape[-1]
    scale = 1.0 / math.sqrt(dk)

    def heads_w(w):                         # (L,H,H) -> (L,H,nh,dk_pad)
        w = w.reshape(L, H, nh, dk)
        return jnp.pad(w, ((0, 0), (0, 0), (0, 0), (0, dk_pad - dk)))

    def heads_b(b):                         # (L,1,H) -> (L,1,nh,dk_pad)
        b = b.reshape(L, 1, nh, dk)
        return jnp.pad(b, ((0, 0), (0, 0), (0, 0), (0, dk_pad - dk)))

    qkv_w = jnp.stack([heads_w(p['q_w'] * scale), heads_w(p['k_w']),
                       heads_w(p['v_w'])], axis=3)        # (L,H,nh,3,dk_pad)
    qkv_b = jnp.stack([heads_b(p['q_b'] * scale), heads_b(p['k_b']),
                       heads_b(p['v_b'])], axis=3)        # (L,1,nh,3,dk_pad)
    o_w = jnp.pad(p['o_w'].reshape(L, nh, dk, H),
                  ((0, 0), (0, 0), (0, dk_pad - dk), (0, 0)))

    return {
        'cond_w': p['cond_w'].astype(bf),
        'f0p_w': p['f0p_w'].reshape(3, H),                 # Ci == 1, f32
        'pre_w': p['pre_w'].reshape(3 * H, H).astype(bf),
        'pre_b3': jnp.concatenate([p['cond_b'], p['f0p_b'], p['pre_b']], 0),
        'qkv_w': qkv_w.reshape(L, H, nh * 3 * dk_pad).astype(bf),
        'qkv_b': qkv_b.reshape(L, 1, nh * 3 * dk_pad),
        'o_w': o_w.reshape(L, nh * dk_pad, H).astype(bf),
        'o_b': p['o_b'],
        'ln': jnp.stack([p['n0_g'], p['n0_b'], p['n1_g'], p['n1_b']], 1),
        'f1_w': p['f1_w'].reshape(L, K * H, F_ch).astype(bf),
        'f1_b': p['f1_b'],
        'f2_w': p['f2_w'].reshape(L, K * F_ch, H).astype(bf),
        'f2_b': p['f2_b'],
        'proj_w': jnp.pad(p['proj_w'], ((0, 0), (0, _OUT_PAD - O))).astype(bf),
        'proj_b': jnp.pad(p['proj_b'], ((0, 0), (0, _OUT_PAD - O))),
    }


def f0_decoder_forward(params, x, norm_f0, x_mask, spk_emb,
                       *, n_layers, n_heads, ffn_kernel):
    B, T, H = x.shape
    S = spk_emb.shape[-1]
    O = params['proj_w'].shape[-1]
    packed = _pack_params(params, ffn_kernel, n_heads)
    param_arrays = [packed[n] for n in _PACKED_ORDER]

    # Stack batches on the sublane axis (better MXU M-fill, fewer grid steps).
    # Split into 2 grid steps only when each step still has plenty of rows, so
    # v7x's two TensorCores both get work on large batches.
    BB = B
    if B % 2 == 0 and ((B // 2) * T) % 8 == 0 and (B // 2) * T >= 256:
        BB = B // 2
    G = B // BB
    N = B * T

    x2 = x.reshape(N, H)
    f02 = norm_f0.reshape(N, 1)
    m2 = x_mask.reshape(N, 1)
    spk2 = spk_emb.reshape(N, S)
    # per-batch time index (drives the batch-safe conv shift masks in-kernel)
    t_idx = jnp.tile(jnp.arange(T, dtype=jnp.int32), B).reshape(N, 1)

    kern = partial(_f0_decoder_kernel, n_layers, n_heads, ffn_kernel, T)

    def run(single_buffer_weights):
        def act_spec(c):
            return pl.BlockSpec((BB * T, c), lambda g: (g, 0))

        def w_spec(arr):
            nd = arr.ndim
            if single_buffer_weights:
                # weights are grid-invariant -> single-buffer (halves their
                # VMEM footprint; matters at production sizes on v5e / v7x).
                return pl.BlockSpec(arr.shape, lambda g, _nd=nd: (0,) * _nd,
                                    pipeline_mode=pl.Buffered(1))
            return pl.BlockSpec(arr.shape, lambda g, _nd=nd: (0,) * _nd)

        in_specs = ([act_spec(H), act_spec(1), act_spec(1), act_spec(S),
                     act_spec(1)] + [w_spec(a) for a in param_arrays])
        out_spec = pl.BlockSpec((BB * T, _OUT_PAD), lambda g: (g, 0))
        return pl.pallas_call(
            kern,
            out_shape=jax.ShapeDtypeStruct((N, _OUT_PAD), jnp.bfloat16),
            grid_spec=pltpu.PrefetchScalarGridSpec(
                num_scalar_prefetch=0, grid=(G,),
                in_specs=in_specs, out_specs=out_spec),
            compiler_params=pltpu.CompilerParams(
                dimension_semantics=("parallel",),
                vmem_limit_bytes=64 * 1024 * 1024),
        )(x2, f02, m2, spk2, t_idx, *param_arrays)

    try:
        out = run(True)
    except Exception:
        # Fallback for jax versions without BlockSpec(pipeline_mode=...).
        out = run(False)

    return out.reshape(B, T, _OUT_PAD)[..., :O].astype(jnp.float32)


# ------------------------- deterministic parameter init ---------------------
# Weight layout note (vs PyTorch): Conv1d weight (Co, Ci, K) maps to our
# (K, Ci, Co) via w.permute(2, 1, 0); 1x1 conv / Linear (Co, Ci) maps to
# (Ci, Co) via transpose.  Biases are stored as (1, Co) rows.

def init_params(key, H, F_ch, O, S, L, K):
    ks = jax.random.split(key, 20)

    def rnd(k, shape, scale=0.1):
        return scale * jax.random.normal(k, shape, jnp.float32)

    p = {}
    p['cond_w'] = rnd(ks[0], (S, H))            # Conv1d(S, H, 1)
    p['cond_b'] = rnd(ks[1], (1, H), 0.01)
    p['f0p_w'] = rnd(ks[2], (3, 1, H))          # Conv1d(1, H, 3, pad=1)
    p['f0p_b'] = rnd(ks[3], (1, H), 0.01)
    p['pre_w'] = rnd(ks[4], (3, H, H))          # Conv1d(H, H, 3, pad=1)
    p['pre_b'] = rnd(ks[5], (1, H), 0.01)
    p['q_w'] = rnd(ks[6], (L, H, H))
    p['q_b'] = rnd(ks[7], (L, 1, H), 0.01)
    p['k_w'] = p['q_w']                         # proximal_init=True: k <- q
    p['k_b'] = p['q_b']
    p['v_w'] = rnd(ks[8], (L, H, H))
    p['v_b'] = rnd(ks[9], (L, 1, H), 0.01)
    p['o_w'] = rnd(ks[10], (L, H, H))
    p['o_b'] = rnd(ks[11], (L, 1, H), 0.01)
    p['n0_g'] = jnp.ones((L, 1, H), jnp.float32)
    p['n0_b'] = jnp.zeros((L, 1, H), jnp.float32)
    p['f1_w'] = rnd(ks[12], (L, K, H, F_ch))    # FFN conv_1 (causal)
    p['f1_b'] = rnd(ks[13], (L, 1, F_ch), 0.01)
    p['f2_w'] = rnd(ks[14], (L, K, F_ch, H))    # FFN conv_2 (causal)
    p['f2_b'] = rnd(ks[15], (L, 1, H), 0.01)
    p['n1_g'] = jnp.ones((L, 1, H), jnp.float32)
    p['n1_b'] = jnp.zeros((L, 1, H), jnp.float32)
    p['proj_w'] = rnd(ks[16], (H, O))           # Conv1d(H, out_channels, 1)
    p['proj_b'] = rnd(ks[17], (1, O), 0.01)
    return p


# -------------------------------- reference ---------------------------------
# Independent f32 implementation (pad-based shifts, per-tap matmuls, exact
# softmax) — deliberately does NOT share the kernel's helpers.

def reference_forward(params, x, norm_f0, x_mask, spk_emb,
                      *, n_layers, n_heads, ffn_kernel):
    def shift(a, s):                      # y[t] = a[t-s] (zero padded)
        T = a.shape[0]
        z = jnp.zeros((abs(s),) + a.shape[1:], a.dtype)
        if s > 0:
            return jnp.concatenate([z, a[:T - s]], 0)
        if s < 0:
            return jnp.concatenate([a[-s:], z], 0)
        return a

    def conv_same3(a, w, b):              # w: (3, Ci, Co), padding=1
        return shift(a, 1) @ w[0] + a @ w[1] + shift(a, -1) @ w[2] + b

    def conv_causal(a, w, b, K):          # left pad K-1
        y = b
        for k in range(K):
            y = y + shift(a, K - 1 - k) @ w[k]
        return y

    def layer_norm(a, g, bb, eps=1e-5):
        m = a.mean(-1, keepdims=True)
        v = ((a - m) ** 2).mean(-1, keepdims=True)
        return (a - m) / jnp.sqrt(v + eps) * g + bb

    T = x.shape[1]
    causal = jnp.tril(jnp.ones((T, T), bool))
    outs = []
    for b in range(x.shape[0]):
        xb, mb = x[b], x_mask[b]
        xb = xb + spk_emb[b] @ params['cond_w'] + params['cond_b']
        xb = xb + conv_same3(norm_f0[b], params['f0p_w'], params['f0p_b'])
        xb = conv_same3(xb, params['pre_w'], params['pre_b']) * mb
        xb = xb * mb
        H = xb.shape[-1]
        dk = H // n_heads
        for l in range(n_layers):
            q = xb @ params['q_w'][l] + params['q_b'][l]
            k = xb @ params['k_w'][l] + params['k_b'][l]
            v = xb @ params['v_w'][l] + params['v_b'][l]
            heads = []
            for h in range(n_heads):
                sl = slice(h * dk, (h + 1) * dk)
                s = (q[:, sl] / math.sqrt(dk)) @ k[:, sl].T
                s = jnp.where(causal, s, -1e4)
                heads.append(jax.nn.softmax(s, axis=-1) @ v[:, sl])
            y = jnp.concatenate(heads, -1) @ params['o_w'][l] + params['o_b'][l]
            xb = layer_norm(xb + y, params['n0_g'][l], params['n0_b'][l])
            h1 = jnp.maximum(conv_causal(xb * mb, params['f1_w'][l],
                                         params['f1_b'][l], ffn_kernel), 0.0)
            h2 = conv_causal(h1 * mb, params['f2_w'][l], params['f2_b'][l],
                             ffn_kernel)
            xb = layer_norm(xb + h2 * mb, params['n1_g'][l], params['n1_b'][l])
        xb = xb * mb
        outs.append((xb @ params['proj_w'] + params['proj_b']) * mb)
    return jnp.stack(outs, 0)


# ----------------------------------- main ------------------------------------

if __name__ == "__main__":
    B, T = 2, 16
    hidden_channels, filter_channels, out_channels, spk_channels = 32, 64, 1, 8
    n_heads, n_layers, kernel_size = 2, 2, 3

    key = jax.random.PRNGKey(0)
    k1, k2, k3, kp = jax.random.split(key, 4)
    x = jax.random.normal(k1, (B, T, hidden_channels), jnp.float32)
    norm_f0 = jax.random.normal(k2, (B, T, 1), jnp.float32)
    lengths = jnp.array([T, T - 4])
    x_mask = (jnp.arange(T)[None, :, None]
              < lengths[:, None, None]).astype(jnp.float32)      # (B, T, 1)
    spk_emb = jax.random.normal(k3, (B, T, spk_channels), jnp.float32)

    params = init_params(kp, hidden_channels, filter_channels,
                         out_channels, spk_channels, n_layers, kernel_size)

    out = f0_decoder_forward(params, x, norm_f0, x_mask, spk_emb,
                             n_layers=n_layers, n_heads=n_heads,
                             ffn_kernel=kernel_size)
    out = jax.block_until_ready(out)

    ref = reference_forward(params, x, norm_f0, x_mask, spk_emb,
                            n_layers=n_layers, n_heads=n_heads,
                            ffn_kernel=kernel_size)
    assert out.shape == (B, T, out_channels)
    err = float(jnp.max(jnp.abs(out - ref)))
    # bf16 weight + bf16 attention-activation matmuls, approx-reciprocal
    # softmax, bf16 output store vs exact-f32 reference
    assert err < 4e-2, err
    print("KERNEL_OK")
</pallas_src>

<mosaic_0001>
module attributes {stable_mosaic.version = 11 : i64} {
  func.func @_f0_decoder_kernel(%arg0: i32, %arg1: memref<32x32xf32, #tpu.memory_space<vmem>>, %arg2: memref<32x1xf32, #tpu.memory_space<vmem>>, %arg3: memref<32x1xf32, #tpu.memory_space<vmem>>, %arg4: memref<32x8xf32, #tpu.memory_space<vmem>>, %arg5: memref<32x1xi32, #tpu.memory_space<vmem>>, %arg6: memref<8x32xbf16, #tpu.memory_space<vmem>>, %arg7: memref<3x32xf32, #tpu.memory_space<vmem>>, %arg8: memref<96x32xbf16, #tpu.memory_space<vmem>>, %arg9: memref<3x32xf32, #tpu.memory_space<vmem>>, %arg10: memref<2x32x768xbf16, #tpu.memory_space<vmem>>, %arg11: memref<2x1x768xf32, #tpu.memory_space<vmem>>, %arg12: memref<2x256x32xbf16, #tpu.memory_space<vmem>>, %arg13: memref<2x1x32xf32, #tpu.memory_space<vmem>>, %arg14: memref<2x4x1x32xf32, #tpu.memory_space<vmem>>, %arg15: memref<2x96x64xbf16, #tpu.memory_space<vmem>>, %arg16: memref<2x1x64xf32, #tpu.memory_space<vmem>>, %arg17: memref<2x192x32xbf16, #tpu.memory_space<vmem>>, %arg18: memref<2x1x32xf32, #tpu.memory_space<vmem>>, %arg19: memref<32x128xbf16, #tpu.memory_space<vmem>>, %arg20: memref<1x128xf32, #tpu.memory_space<vmem>>, %arg21: memref<32x128xbf16, #tpu.memory_space<vmem>>) attributes {dimension_semantics = [#tpu.dimension_semantics<parallel>], iteration_bounds = array<i64: 1>, scalar_prefetch = 0 : i64, scratch_operands = 0 : i64, tpu.core_type = #tpu.core_type<tc>, window_params = [{transform_indices = @transform_0, window_bounds = array<i64: 32, 32>}, {transform_indices = @transform_1, window_bounds = array<i64: 32, 1>}, {transform_indices = @transform_2, window_bounds = array<i64: 32, 1>}, {transform_indices = @transform_3, window_bounds = array<i64: 32, 8>}, {transform_indices = @transform_4, window_bounds = array<i64: 32, 1>}, {pipeline_mode = #tpu.pipeline_mode<synchronous>, transform_indices = @transform_5, window_bounds = array<i64: 8, 32>}, {pipeline_mode = #tpu.pipeline_mode<synchronous>, transform_indices = @transform_6, window_bounds = array<i64: 3, 32>}, {pipeline_mode = #tpu.pipeline_mode<synchronous>, transform_indices = @transform_7, window_bounds = array<i64: 96, 32>}, {pipeline_mode = #tpu.pipeline_mode<synchronous>, transform_indices = @transform_8, window_bounds = array<i64: 3, 32>}, {pipeline_mode = #tpu.pipeline_mode<synchronous>, transform_indices = @transform_9, window_bounds = array<i64: 2, 32, 768>}, {pipeline_mode = #tpu.pipeline_mode<synchronous>, transform_indices = @transform_10, window_bounds = array<i64: 2, 1, 768>}, {pipeline_mode = #tpu.pipeline_mode<synchronous>, transform_indices = @transform_11, window_bounds = array<i64: 2, 256, 32>}, {pipeline_mode = #tpu.pipeline_mode<synchronous>, transform_indices = @transform_12, window_bounds = array<i64: 2, 1, 32>}, {pipeline_mode = #tpu.pipeline_mode<synchronous>, transform_indices = @transform_13, window_bounds = array<i64: 2, 4, 1, 32>}, {pipeline_mode = #tpu.pipeline_mode<synchronous>, transform_indices = @transform_14, window_bounds = array<i64: 2, 96, 64>}, {pipeline_mode = #tpu.pipeline_mode<synchronous>, transform_indices = @transform_15, window_bounds = array<i64: 2, 1, 64>}, {pipeline_mode = #tpu.pipeline_mode<synchronous>, transform_indices = @transform_16, window_bounds = array<i64: 2, 192, 32>}, {pipeline_mode = #tpu.pipeline_mode<synchronous>, transform_indices = @transform_17, window_bounds = array<i64: 2, 1, 32>}, {pipeline_mode = #tpu.pipeline_mode<synchronous>, transform_indices = @transform_18, window_bounds = array<i64: 32, 128>}, {pipeline_mode = #tpu.pipeline_mode<synchronous>, transform_indices = @transform_19, window_bounds = array<i64: 1, 128>}, {transform_indices = @transform_20, window_bounds = array<i64: 32, 128>}]} {
    %c0 = arith.constant 0 : index
    %c0_0 = arith.constant 0 : index
    %0 = vector.load %arg1[%c0, %c0_0] : memref<32x32xf32, #tpu.memory_space<vmem>>, vector<32x32xf32>
    %c0_1 = arith.constant 0 : index
    %c0_2 = arith.constant 0 : index
    %1 = vector.load %arg3[%c0_1, %c0_2] : memref<32x1xf32, #tpu.memory_space<vmem>>, vector<32x1xf32>
    %c0_3 = arith.constant 0 : index
    %c0_4 = arith.constant 0 : index
    %2 = vector.load %arg2[%c0_3, %c0_4] : memref<32x1xf32, #tpu.memory_space<vmem>>, vector<32x1xf32>
    %c0_5 = arith.constant 0 : index
    %c0_6 = arith.constant 0 : index
    %3 = vector.load %arg5[%c0_5, %c0_6] : memref<32x1xi32, #tpu.memory_space<vmem>>, vector<32x1xi32>
    %4 = tpu.iota {dimensions = array<i32: 1>} : vector<1x16x16xi32>
    %5 = tpu.iota {dimensions = array<i32: 2>} : vector<1x16x16xi32>
    %6 = arith.cmpi sge, %4, %5 : vector<1x16x16xi32>
    %c1_i32 = arith.constant 1 : i32
    %7 = vector.broadcast %c1_i32 : i32 to vector<32x1xi32>
    %8 = arith.cmpi sge, %3, %7 : vector<32x1xi32>
    %c2_i32 = arith.constant 2 : i32
    %9 = vector.broadcast %c2_i32 : i32 to vector<32x1xi32>
    %10 = arith.cmpi sge, %3, %9 : vector<32x1xi32>
    %c15_i32 = arith.constant 15 : i32
    %11 = vector.broadcast %c15_i32 : i32 to vector<32x1xi32>
    %12 = arith.cmpi slt, %3, %11 : vector<32x1xi32>
    %c0_7 = arith.constant 0 : index
    %c0_8 = arith.constant 0 : index
    %13 = vector.load %arg9[%c0_7, %c0_8] : memref<3x32xf32, #tpu.memory_space<vmem>>, vector<3x32xf32>
    %c0_9 = arith.constant 0 : index
    %c0_10 = arith.constant 0 : index
    %14 = vector.load %arg7[%c0_9, %c0_10] : memref<3x32xf32, #tpu.memory_space<vmem>>, vector<3x32xf32>
    %c0_11 = arith.constant 0 : index
    %c0_12 = arith.constant 0 : index
    %15 = vector.load %arg4[%c0_11, %c0_12] : memref<32x8xf32, #tpu.memory_space<vmem>>, vector<32x8xf32>
    %16 = arith.truncf %15 : vector<32x8xf32> to vector<32x8xbf16>
    %c0_13 = arith.constant 0 : index
    %c0_14 = arith.constant 0 : index
    %17 = vector.load %arg6[%c0_13, %c0_14] : memref<8x32xbf16, #tpu.memory_space<vmem>>, vector<8x32xbf16>
    %cst = arith.constant dense<0.000000e+00> : vector<32x32xf32>
    %18 = tpu.matmul %16, %17, %cst {dimension_numbers = #tpu.dot_dimension_numbers<[1], [0], [0], [1], [0, 0, 1, 1], [], []>} : vector<32x8xbf16>, vector<8x32xbf16>, vector<32x32xf32> -> vector<32x32xf32>
    %19 = arith.addf %0, %18 : vector<32x32xf32>
    %20 = vector.extract_strided_slice %13 {offsets = [0, 0], sizes = [1, 32], strides = [1, 1]} : vector<3x32xf32> to vector<1x32xf32>
    %21 = vector.broadcast %20 : vector<1x32xf32> to vector<32x32xf32>
    %22 = arith.addf %19, %21 : vector<32x32xf32>
    %23 = vector.extract_strided_slice %14 {offsets = [0, 0], sizes = [1, 32], strides = [1, 1]} : vector<3x32xf32> to vector<1x32xf32>
    %24 = vector.broadcast %2 : vector<32x1xf32> to vector<32x32xf32>
    %25 = vector.broadcast %23 : vector<1x32xf32> to vector<32x32xf32>
    %26 = arith.mulf %24, %25 : vector<32x32xf32>
    %c1_i32_15 = arith.constant 1 : i32
    %27 = tpu.dynamic_rotate %26 by %c1_i32_15 dim 0 : vector<32x32xf32>, i32 -> vector<32x32xf32>
    %cst_16 = arith.constant 0.000000e+00 : f32
    %28 = vector.shape_cast %8 : vector<32x1xi1> to vector<32x1xi1>
    %29 = vector.broadcast %28 : vector<32x1xi1> to vector<32x32xi1>
    %30 = vector.broadcast %cst_16 : f32 to vector<32x32xf32>
    %31 = arith.select %29, %27, %30 : vector<32x32xi1>, vector<32x32xf32>
    %32 = vector.extract_strided_slice %14 {offsets = [1, 0], sizes = [1, 32], strides = [1, 1]} : vector<3x32xf32> to vector<1x32xf32>
    %33 = vector.broadcast %2 : vector<32x1xf32> to vector<32x32xf32>
    %34 = vector.broadcast %32 : vector<1x32xf32> to vector<32x32xf32>
    %35 = arith.mulf %33, %34 : vector<32x32xf32>
    %36 = arith.addf %31, %35 : vector<32x32xf32>
    %37 = vector.extract_strided_slice %14 {offsets = [2, 0], sizes = [1, 32], strides = [1, 1]} : vector<3x32xf32> to vector<1x32xf32>
    %38 = vector.broadcast %2 : vector<32x1xf32> to vector<32x32xf32>
    %39 = vector.broadcast %37 : vector<1x32xf32> to vector<32x32xf32>
    %40 = arith.mulf %38, %39 : vector<32x32xf32>
    %c31_i32 = arith.constant 31 : i32
    %41 = tpu.dynamic_rotate %40 by %c31_i32 dim 0 : vector<32x32xf32>, i32 -> vector<32x32xf32>
    %cst_17 = arith.constant 0.000000e+00 : f32
    %42 = vector.shape_cast %12 : vector<32x1xi1> to vector<32x1xi1>
    %43 = vector.broadcast %42 : vector<32x1xi1> to vector<32x32xi1>
    %44 = vector.broadcast %cst_17 : f32 to vector<32x32xf32>
    %45 = arith.select %43, %41, %44 : vector<32x32xi1>, vector<32x32xf32>
    %46 = arith.addf %36, %45 : vector<32x32xf32>
    %47 = vector.extract_strided_slice %13 {offsets = [1, 0], sizes = [1, 32], strides = [1, 1]} : vector<3x32xf32> to vector<1x32xf32>
    %48 = vector.broadcast %47 : vector<1x32xf32> to vector<32x32xf32>
    %49 = arith.addf %46, %48 : vector<32x32xf32>
    %50 = arith.addf %22, %49 : vector<32x32xf32>
    %c0_18 = arith.constant 0 : index
    %c0_19 = arith.constant 0 : index
    %51 = vector.load %arg8[%c0_18, %c0_19] : memref<96x32xbf16, #tpu.memory_space<vmem>>, vector<96x32xbf16>
    %52 = vector.extract_strided_slice %13 {offsets = [2, 0], sizes = [1, 32], strides = [1, 1]} : vector<3x32xf32> to vector<1x32xf32>
    %c1_i32_20 = arith.constant 1 : i32
    %53 = tpu.dynamic_rotate %50 by %c1_i32_20 dim 0 : vector<32x32xf32>, i32 -> vector<32x32xf32>
    %cst_21 = arith.constant 0.000000e+00 : f32
    %54 = vector.shape_cast %8 : vector<32x1xi1> to vector<32x1xi1>
    %55 = vector.broadcast %54 : vector<32x1xi1> to vector<32x32xi1>
    %56 = vector.broadcast %cst_21 : f32 to vector<32x32xf32>
    %57 = arith.select %55, %53, %56 : vector<32x32xi1>, vector<32x32xf32>
    %c31_i32_22 = arith.constant 31 : i32
    %58 = tpu.dynamic_rotate %50 by %c31_i32_22 dim 0 : vector<32x32xf32>, i32 -> vector<32x32xf32>
    %cst_23 = arith.constant 0.000000e+00 : f32
    %59 = vector.shape_cast %12 : vector<32x1xi1> to vector<32x1xi1>
    %60 = vector.broadcast %59 : vector<32x1xi1> to vector<32x32xi1>
    %61 = vector.broadcast %cst_23 : f32 to vector<32x32xf32>
    %62 = arith.select %60, %58, %61 : vector<32x32xi1>, vector<32x32xf32>
    %63 = tpu.concatenate %57, %50, %62 in 1 : vector<32x32xf32>, vector<32x32xf32>, vector<32x32xf32> -> vector<32x96xf32>
    %64 = arith.truncf %63 : vector<32x96xf32> to vector<32x96xbf16>
    %cst_24 = arith.constant dense<0.000000e+00> : vector<32x32xf32>
    %65 = tpu.matmul %64, %51, %cst_24 {dimension_numbers = #tpu.dot_dimension_numbers<[1], [0], [0], [1], [0, 0, 1, 1], [], []>} : vector<32x96xbf16>, vector<96x32xbf16>, vector<32x32xf32> -> vector<32x32xf32>
    %66 = vector.broadcast %52 : vector<1x32xf32> to vector<32x32xf32>
    %67 = arith.addf %65, %66 : vector<32x32xf32>
    %68 = vector.broadcast %1 : vector<32x1xf32> to vector<32x32xf32>
    %69 = arith.mulf %67, %68 : vector<32x32xf32>
    %70 = vector.broadcast %1 : vector<32x1xf32> to vector<32x32xf32>
    %71 = arith.mulf %69, %70 : vector<32x32xf32>
    %72 = arith.truncf %71 : vector<32x32xf32> to vector<32x32xbf16>
    %c0_25 = arith.constant 0 : index
    %c0_26 = arith.constant 0 : index
    %c0_27 = arith.constant 0 : index
    %73 = vector.load %arg10[%c0_25, %c0_26, %c0_27] : memref<2x32x768xbf16, #tpu.memory_space<vmem>>, vector<1x32x768xbf16>
    %74 = vector.shape_cast %73 : vector<1x32x768xbf16> to vector<32x768xbf16>
    %cst_28 = arith.constant dense<0.000000e+00> : vector<32x768xf32>
    %75 = tpu.matmul %72, %74, %cst_28 {dimension_numbers = #tpu.dot_dimension_numbers<[1], [0], [0], [1], [0, 0, 1, 1], [], []>} : vector<32x32xbf16>, vector<32x768xbf16>, vector<32x768xf32> -> vector<32x768xf32>
    %c0_29 = arith.constant 0 : index
    %c0_30 = arith.constant 0 : index
    %c0_31 = arith.constant 0 : index
    %76 = vector.load %arg11[%c0_29, %c0_30, %c0_31] : memref<2x1x768xf32, #tpu.memory_space<vmem>>, vector<1x1x768xf32>
    %77 = vector.shape_cast %76 : vector<1x1x768xf32> to vector<1x768xf32>
    %78 = vector.broadcast %77 : vector<1x768xf32> to vector<32x768xf32>
    %79 = arith.addf %75, %78 : vector<32x768xf32>
    %80 = vector.shape_cast %79 : vector<32x768xf32> to vector<2x16x768xf32>
    %c0_32 = arith.constant 0 : index
    %c0_33 = arith.constant 0 : index
    %c0_34 = arith.constant 0 : index
    %81 = vector.load %arg12[%c0_32, %c0_33, %c0_34] : memref<2x256x32xbf16, #tpu.memory_space<vmem>>, vector<1x256x32xbf16>
    %82 = vector.shape_cast %81 : vector<1x256x32xbf16> to vector<256x32xbf16>
    %c0_35 = arith.constant 0 : index
    %c0_36 = arith.constant 0 : index
    %c0_37 = arith.constant 0 : index
    %83 = vector.load %arg13[%c0_35, %c0_36, %c0_37] : memref<2x1x32xf32, #tpu.memory_space<vmem>>, vector<1x1x32xf32>
    %84 = vector.shape_cast %83 : vector<1x1x32xf32> to vector<1x32xf32>
    %85 = vector.extract_strided_slice %80 {offsets = [0, 0, 0], sizes = [2, 16, 128], strides = [1, 1, 1]} : vector<2x16x768xf32> to vector<2x16x128xf32>
    %86 = arith.truncf %85 : vector<2x16x128xf32> to vector<2x16x128xbf16>
    %87 = vector.extract_strided_slice %80 {offsets = [0, 0, 128], sizes = [2, 16, 128], strides = [1, 1, 1]} : vector<2x16x768xf32> to vector<2x16x128xf32>
    %88 = arith.truncf %87 : vector<2x16x128xf32> to vector<2x16x128xbf16>
    %89 = vector.extract_strided_slice %80 {offsets = [0, 0, 256], sizes = [2, 16, 128], strides = [1, 1, 1]} : vector<2x16x768xf32> to vector<2x16x128xf32>
    %90 = arith.truncf %89 : vector<2x16x128xf32> to vector<2x16x128xbf16>
    "tpu.trace_start"() <{level = 10 : i32, message = "bqd,bkd->bqk"}> : () -> ()
    %cst_38 = arith.constant dense<0.000000e+00> : vector<2x16x16xf32>
    %91 = tpu.matmul %86, %88, %cst_38 {dimension_numbers = #tpu.dot_dimension_numbers<[2], [2], [1], [1], [0, 0, 0, 1, 1, 1], [0], [0]>} : vector<2x16x128xbf16>, vector<2x16x128xbf16>, vector<2x16x16xf32> -> vector<2x16x16xf32>
    %cst_39 = arith.constant -1.000000e+04 : f32
    "tpu.trace_stop"() : () -> ()
    %92 = vector.shape_cast %6 : vector<1x16x16xi1> to vector<1x16x16xi1>
    %93 = vector.broadcast %92 : vector<1x16x16xi1> to vector<2x16x16xi1>
    %94 = vector.broadcast %cst_39 : f32 to vector<2x16x16xf32>
    %95 = arith.select %93, %91, %94 : vector<2x16x16xi1>, vector<2x16x16xf32>
    %cst_40 = arith.constant dense<0xFF800000> : vector<2x16xf32>
    %96 = vector.multi_reduction <maximumf>, %95, %cst_40 [2] : vector<2x16x16xf32> to vector<2x16xf32>
    %97 = vector.shape_cast %96 : vector<2x16xf32> to vector<2x16x1xf32>
    %98 = vector.broadcast %97 : vector<2x16x1xf32> to vector<2x16x16xf32>
    %99 = arith.subf %95, %98 : vector<2x16x16xf32>
    %100 = math.exp %99 : vector<2x16x16xf32>
    %cst_41 = arith.constant dense<0.000000e+00> : vector<2x16xf32>
    %101 = vector.multi_reduction <add>, %100, %cst_41 [2] : vector<2x16x16xf32> to vector<2x16xf32>
    %102 = vector.shape_cast %101 : vector<2x16xf32> to vector<2x16x1xf32>
    %103 = tpu.reciprocal %102 {approx = true} : vector<2x16x1xf32> -> vector<2x16x1xf32>
    %104 = vector.broadcast %103 : vector<2x16x1xf32> to vector<2x16x16xf32>
    %105 = arith.mulf %100, %104 : vector<2x16x16xf32>
    %106 = arith.truncf %105 : vector<2x16x16xf32> to vector<2x16x16xbf16>
    "tpu.trace_start"() <{level = 10 : i32, message = "bqk,bkd->bqd"}> : () -> ()
    %cst_42 = arith.constant dense<0.000000e+00> : vector<2x16x128xf32>
    %107 = tpu.matmul %106, %90, %cst_42 {dimension_numbers = #tpu.dot_dimension_numbers<[2], [1], [1], [2], [0, 0, 0, 1, 1, 2], [0], [0]>} : vector<2x16x16xbf16>, vector<2x16x128xbf16>, vector<2x16x128xf32> -> vector<2x16x128xf32>
    "tpu.trace_stop"() : () -> ()
    %108 = vector.shape_cast %107 : vector<2x16x128xf32> to vector<32x128xf32>
    %109 = arith.truncf %108 : vector<32x128xf32> to vector<32x128xbf16>
    %110 = vector.extract_strided_slice %82 {offsets = [0, 0], sizes = [128, 32], strides = [1, 1]} : vector<256x32xbf16> to vector<128x32xbf16>
    %cst_43 = arith.constant dense<0.000000e+00> : vector<32x32xf32>
    %111 = tpu.matmul %109, %110, %cst_43 {dimension_numbers = #tpu.dot_dimension_numbers<[1], [0], [0], [1], [0, 0, 1, 1], [], []>} : vector<32x128xbf16>, vector<128x32xbf16>, vector<32x32xf32> -> vector<32x32xf32>
    %112 = vector.broadcast %84 : vector<1x32xf32> to vector<32x32xf32>
    %113 = arith.addf %112, %111 : vector<32x32xf32>
    %114 = vector.extract_strided_slice %80 {offsets = [0, 0, 384], sizes = [2, 16, 128], strides = [1, 1, 1]} : vector<2x16x768xf32> to vector<2x16x128xf32>
    %115 = arith.truncf %114 : vector<2x16x128xf32> to vector<2x16x128xbf16>
    %116 = vector.extract_strided_slice %80 {offsets = [0, 0, 512], sizes = [2, 16, 128], strides = [1, 1, 1]} : vector<2x16x768xf32> to vector<2x16x128xf32>
    %117 = arith.truncf %116 : vector<2x16x128xf32> to vector<2x16x128xbf16>
    %118 = vector.extract_strided_slice %80 {offsets = [0, 0, 640], sizes = [2, 16, 128], strides = [1, 1, 1]} : vector<2x16x768xf32> to vector<2x16x128xf32>
    %119 = arith.truncf %118 : vector<2x16x128xf32> to vector<2x16x128xbf16>
    "tpu.trace_start"() <{level = 10 : i32, message = "bqd,bkd->bqk"}> : () -> ()
    %cst_44 = arith.constant dense<0.000000e+00> : vector<2x16x16xf32>
    %120 = tpu.matmul %115, %117, %cst_44 {dimension_numbers = #tpu.dot_dimension_numbers<[2], [2], [1], [1], [0, 0, 0, 1, 1, 1], [0], [0]>} : vector<2x16x128xbf16>, vector<2x16x128xbf16>, vector<2x16x16xf32> -> vector<2x16x16xf32>
    %cst_45 = arith.constant -1.000000e+04 : f32
    "tpu.trace_stop"() : () -> ()
    %121 = vector.shape_cast %6 : vector<1x16x16xi1> to vector<1x16x16xi1>
    %122 = vector.broadcast %121 : vector<1x16x16xi1> to vector<2x16x16xi1>
    %123 = vector.broadcast %cst_45 : f32 to vector<2x16x16xf32>
    %124 = arith.select %122, %120, %123 : vector<2x16x16xi1>, vector<2x16x16xf32>
    %cst_46 = arith.constant dense<0xFF800000> : vector<2x16xf32>
    %125 = vector.multi_reduction <maximumf>, %124, %cst_46 [2] : vector<2x16x16xf32> to vector<2x16xf32>
    %126 = vector.shape_cast %125 : vector<2x16xf32> to vector<2x16x1xf32>
    %127 = vector.broadcast %126 : vector<2x16x1xf32> to vector<2x16x16xf32>
    %128 = arith.subf %124, %127 : vector<2x16x16xf32>
    %129 = math.exp %128 : vector<2x16x16xf32>
    %cst_47 = arith.constant dense<0.000000e+00> : vector<2x16xf32>
    %130 = vector.multi_reduction <add>, %129, %cst_47 [2] : vector<2x16x16xf32> to vector<2x16xf32>
    %131 = vector.shape_cast %130 : vector<2x16xf32> to vector<2x16x1xf32>
    %132 = tpu.reciprocal %131 {approx = true} : vector<2x16x1xf32> -> vector<2x16x1xf32>
    %133 = vector.broadcast %132 : vector<2x16x1xf32> to vector<2x16x16xf32>
    %134 = arith.mulf %129, %133 : vector<2x16x16xf32>
    %135 = arith.truncf %134 : vector<2x16x16xf32> to vector<2x16x16xbf16>
    "tpu.trace_start"() <{level = 10 : i32, message = "bqk,bkd->bqd"}> : () -> ()
    %cst_48 = arith.constant dense<0.000000e+00> : vector<2x16x128xf32>
    %136 = tpu.matmul %135, %119, %cst_48 {dimension_numbers = #tpu.dot_dimension_numbers<[2], [1], [1], [2], [0, 0, 0, 1, 1, 2], [0], [0]>} : vector<2x16x16xbf16>, vector<2x16x128xbf16>, vector<2x16x128xf32> -> vector<2x16x128xf32>
    "tpu.trace_stop"() : () -> ()
    %137 = vector.shape_cast %136 : vector<2x16x128xf32> to vector<32x128xf32>
    %138 = arith.truncf %137 : vector<32x128xf32> to vector<32x128xbf16>
    %139 = vector.extract_strided_slice %82 {offsets = [128, 0], sizes = [128, 32], strides = [1, 1]} : vector<256x32xbf16> to vector<128x32xbf16>
    %cst_49 = arith.constant dense<0.000000e+00> : vector<32x32xf32>
    %140 = tpu.matmul %138, %139, %cst_49 {dimension_numbers = #tpu.dot_dimension_numbers<[1], [0], [0], [1], [0, 0, 1, 1], [], []>} : vector<32x128xbf16>, vector<128x32xbf16>, vector<32x32xf32> -> vector<32x32xf32>
    %141 = arith.addf %113, %140 : vector<32x32xf32>
    %c0_50 = arith.constant 0 : index
    %c0_51 = arith.constant 0 : index
    %c0_52 = arith.constant 0 : index
    %c0_53 = arith.constant 0 : index
    %142 = vector.load %arg14[%c0_50, %c0_51, %c0_52, %c0_53] : memref<2x4x1x32xf32, #tpu.memory_space<vmem>>, vector<1x4x1x32xf32>
    %143 = vector.shape_cast %142 : vector<1x4x1x32xf32> to vector<4x1x32xf32>
    %144 = arith.addf %71, %141 : vector<32x32xf32>
    %145 = vector.extract_strided_slice %143 {offsets = [0, 0, 0], sizes = [1, 1, 32], strides = [1, 1, 1]} : vector<4x1x32xf32> to vector<1x1x32xf32>
    %146 = vector.shape_cast %145 : vector<1x1x32xf32> to vector<1x32xf32>
    %147 = vector.extract_strided_slice %143 {offsets = [1, 0, 0], sizes = [1, 1, 32], strides = [1, 1, 1]} : vector<4x1x32xf32> to vector<1x1x32xf32>
    %148 = vector.shape_cast %147 : vector<1x1x32xf32> to vector<1x32xf32>
    %cst_54 = arith.constant dense<0.000000e+00> : vector<32xf32>
    %149 = vector.multi_reduction <add>, %144, %cst_54 [1] : vector<32x32xf32> to vector<32xf32>
    %150 = vector.shape_cast %149 : vector<32xf32> to vector<32x1xf32>
    %cst_55 = arith.constant 3.200000e+01 : f32
    %151 = vector.broadcast %cst_55 : f32 to vector<32x1xf32>
    %152 = arith.divf %150, %151 : vector<32x1xf32>
    %153 = vector.broadcast %152 : vector<32x1xf32> to vector<32x32xf32>
    %154 = arith.subf %144, %153 : vector<32x32xf32>
    %155 = arith.mulf %154, %154 : vector<32x32xf32>
    %cst_56 = arith.constant dense<0.000000e+00> : vector<32xf32>
    %156 = vector.multi_reduction <add>, %155, %cst_56 [1] : vector<32x32xf32> to vector<32xf32>
    %157 = vector.shape_cast %156 : vector<32xf32> to vector<32x1xf32>
    %cst_57 = arith.constant 3.200000e+01 : f32
    %158 = vector.broadcast %cst_57 : f32 to vector<32x1xf32>
    %159 = arith.divf %157, %158 : vector<32x1xf32>
    %160 = vector.broadcast %152 : vector<32x1xf32> to vector<32x32xf32>
    %161 = arith.subf %144, %160 : vector<32x32xf32>
    %cst_58 = arith.constant 9.99999974E-6 : f32
    %162 = vector.broadcast %cst_58 : f32 to vector<32x1xf32>
    %163 = arith.addf %159, %162 : vector<32x1xf32>
    %164 = math.rsqrt %163 : vector<32x1xf32>
    %165 = vector.broadcast %164 : vector<32x1xf32> to vector<32x32xf32>
    %166 = arith.mulf %161, %165 : vector<32x32xf32>
    %167 = vector.broadcast %146 : vector<1x32xf32> to vector<32x32xf32>
    %168 = arith.mulf %166, %167 : vector<32x32xf32>
    %169 = vector.broadcast %148 : vector<1x32xf32> to vector<32x32xf32>
    %170 = arith.addf %168, %169 : vector<32x32xf32>
    %171 = vector.broadcast %1 : vector<32x1xf32> to vector<32x32xf32>
    %172 = arith.mulf %170, %171 : vector<32x32xf32>
    %c0_59 = arith.constant 0 : index
    %c0_60 = arith.constant 0 : index
    %c0_61 = arith.constant 0 : index
    %173 = vector.load %arg15[%c0_59, %c0_60, %c0_61] : memref<2x96x64xbf16, #tpu.memory_space<vmem>>, vector<1x96x64xbf16>
    %174 = vector.shape_cast %173 : vector<1x96x64xbf16> to vector<96x64xbf16>
    %c0_62 = arith.constant 0 : index
    %c0_63 = arith.constant 0 : index
    %c0_64 = arith.constant 0 : index
    %175 = vector.load %arg16[%c0_62, %c0_63, %c0_64] : memref<2x1x64xf32, #tpu.memory_space<vmem>>, vector<1x1x64xf32>
    %176 = vector.shape_cast %175 : vector<1x1x64xf32> to vector<1x64xf32>
    %c2_i32_65 = arith.constant 2 : i32
    %177 = tpu.dynamic_rotate %172 by %c2_i32_65 dim 0 : vector<32x32xf32>, i32 -> vector<32x32xf32>
    %cst_66 = arith.constant 0.000000e+00 : f32
    %178 = vector.shape_cast %10 : vector<32x1xi1> to vector<32x1xi1>
    %179 = vector.broadcast %178 : vector<32x1xi1> to vector<32x32xi1>
    %180 = vector.broadcast %cst_66 : f32 to vector<32x32xf32>
    %181 = arith.select %179, %177, %180 : vector<32x32xi1>, vector<32x32xf32>
    %c1_i32_67 = arith.constant 1 : i32
    %182 = tpu.dynamic_rotate %172 by %c1_i32_67 dim 0 : vector<32x32xf32>, i32 -> vector<32x32xf32>
    %cst_68 = arith.constant 0.000000e+00 : f32
    %183 = vector.shape_cast %8 : vector<32x1xi1> to vector<32x1xi1>
    %184 = vector.broadcast %183 : vector<32x1xi1> to vector<32x32xi1>
    %185 = vector.broadcast %cst_68 : f32 to vector<32x32xf32>
    %186 = arith.select %184, %182, %185 : vector<32x32xi1>, vector<32x32xf32>
    %187 = tpu.concatenate %181, %186, %172 in 1 : vector<32x32xf32>, vector<32x32xf32>, vector<32x32xf32> -> vector<32x96xf32>
    %188 = arith.truncf %187 : vector<32x96xf32> to vector<32x96xbf16>
    %cst_69 = arith.constant dense<0.000000e+00> : vector<32x64xf32>
    %189 = tpu.matmul %188, %174, %cst_69 {dimension_numbers = #tpu.dot_dimension_numbers<[1], [0], [0], [1], [0, 0, 1, 1], [], []>} : vector<32x96xbf16>, vector<96x64xbf16>, vector<32x64xf32> -> vector<32x64xf32>
    %190 = vector.broadcast %176 : vector<1x64xf32> to vector<32x64xf32>
    %191 = arith.addf %189, %190 : vector<32x64xf32>
    %cst_70 = arith.constant 0.000000e+00 : f32
    %192 = vector.broadcast %cst_70 : f32 to vector<32x64xf32>
    %193 = arith.maximumf %191, %192 : vector<32x64xf32>
    %194 = vector.broadcast %1 : vector<32x1xf32> to vector<32x64xf32>
    %195 = arith.mulf %193, %194 : vector<32x64xf32>
    %c0_71 = arith.constant 0 : index
    %c0_72 = arith.constant 0 : index
    %c0_73 = arith.constant 0 : index
    %196 = vector.load %arg17[%c0_71, %c0_72, %c0_73] : memref<2x192x32xbf16, #tpu.memory_space<vmem>>, vector<1x192x32xbf16>
    %197 = vector.shape_cast %196 : vector<1x192x32xbf16> to vector<192x32xbf16>
    %c0_74 = arith.constant 0 : index
    %c0_75 = arith.constant 0 : index
    %c0_76 = arith.constant 0 : index
    %198 = vector.load %arg18[%c0_74, %c0_75, %c0_76] : memref<2x1x32xf32, #tpu.memory_space<vmem>>, vector<1x1x32xf32>
    %199 = vector.shape_cast %198 : vector<1x1x32xf32> to vector<1x32xf32>
    %c2_i32_77 = arith.constant 2 : i32
    %200 = tpu.dynamic_rotate %195 by %c2_i32_77 dim 0 : vector<32x64xf32>, i32 -> vector<32x64xf32>
    %cst_78 = arith.constant 0.000000e+00 : f32
    %201 = vector.shape_cast %10 : vector<32x1xi1> to vector<32x1xi1>
    %202 = vector.broadcast %201 : vector<32x1xi1> to vector<32x64xi1>
    %203 = vector.broadcast %cst_78 : f32 to vector<32x64xf32>
    %204 = arith.select %202, %200, %203 : vector<32x64xi1>, vector<32x64xf32>
    %c1_i32_79 = arith.constant 1 : i32
    %205 = tpu.dynamic_rotate %195 by %c1_i32_79 dim 0 : vector<32x64xf32>, i32 -> vector<32x64xf32>
    %cst_80 = arith.constant 0.000000e+00 : f32
    %206 = vector.shape_cast %8 : vector<32x1xi1> to vector<32x1xi1>
    %207 = vector.broadcast %206 : vector<32x1xi1> to vector<32x64xi1>
    %208 = vector.broadcast %cst_80 : f32 to vector<32x64xf32>
    %209 = arith.select %207, %205, %208 : vector<32x64xi1>, vector<32x64xf32>
    %210 = tpu.concatenate %204, %209, %195 in 1 : vector<32x64xf32>, vector<32x64xf32>, vector<32x64xf32> -> vector<32x192xf32>
    %211 = arith.truncf %210 : vector<32x192xf32> to vector<32x192xbf16>
    %cst_81 = arith.constant dense<0.000000e+00> : vector<32x32xf32>
    %212 = tpu.matmul %211, %197, %cst_81 {dimension_numbers = #tpu.dot_dimension_numbers<[1], [0], [0], [1], [0, 0, 1, 1], [], []>} : vector<32x192xbf16>, vector<192x32xbf16>, vector<32x32xf32> -> vector<32x32xf32>
    %213 = vector.broadcast %199 : vector<1x32xf32> to vector<32x32xf32>
    %214 = arith.addf %212, %213 : vector<32x32xf32>
    %215 = vector.broadcast %1 : vector<32x1xf32> to vector<32x32xf32>
    %216 = arith.mulf %214, %215 : vector<32x32xf32>
    %217 = arith.addf %170, %216 : vector<32x32xf32>
    %218 = vector.extract_strided_slice %143 {offsets = [2, 0, 0], sizes = [1, 1, 32], strides = [1, 1, 1]} : vector<4x1x32xf32> to vector<1x1x32xf32>
    %219 = vector.shape_cast %218 : vector<1x1x32xf32> to vector<1x32xf32>
    %220 = vector.extract_strided_slice %143 {offsets = [3, 0, 0], sizes = [1, 1, 32], strides = [1, 1, 1]} : vector<4x1x32xf32> to vector<1x1x32xf32>
    %221 = vector.shape_cast %220 : vector<1x1x32xf32> to vector<1x32xf32>
    %cst_82 = arith.constant dense<0.000000e+00> : vector<32xf32>
    %222 = vector.multi_reduction <add>, %217, %cst_82 [1] : vector<32x32xf32> to vector<32xf32>
    %223 = vector.shape_cast %222 : vector<32xf32> to vector<32x1xf32>
    %cst_83 = arith.constant 3.200000e+01 : f32
    %224 = vector.broadcast %cst_83 : f32 to vector<32x1xf32>
    %225 = arith.divf %223, %224 : vector<32x1xf32>
    %226 = vector.broadcast %225 : vector<32x1xf32> to vector<32x32xf32>
    %227 = arith.subf %217, %226 : vector<32x32xf32>
    %228 = arith.mulf %227, %227 : vector<32x32xf32>
    %cst_84 = arith.constant dense<0.000000e+00> : vector<32xf32>
    %229 = vector.multi_reduction <add>, %228, %cst_84 [1] : vector<32x32xf32> to vector<32xf32>
    %230 = vector.shape_cast %229 : vector<32xf32> to vector<32x1xf32>
    %cst_85 = arith.constant 3.200000e+01 : f32
    %231 = vector.broadcast %cst_85 : f32 to vector<32x1xf32>
    %232 = arith.divf %230, %231 : vector<32x1xf32>
    %233 = vector.broadcast %225 : vector<32x1xf32> to vector<32x32xf32>
    %234 = arith.subf %217, %233 : vector<32x32xf32>
    %cst_86 = arith.constant 9.99999974E-6 : f32
    %235 = vector.broadcast %cst_86 : f32 to vector<32x1xf32>
    %236 = arith.addf %232, %235 : vector<32x1xf32>
    %237 = math.rsqrt %236 : vector<32x1xf32>
    %238 = vector.broadcast %237 : vector<32x1xf32> to vector<32x32xf32>
    %239 = arith.mulf %234, %238 : vector<32x32xf32>
    %240 = vector.broadcast %219 : vector<1x32xf32> to vector<32x32xf32>
    %241 = arith.mulf %239, %240 : vector<32x32xf32>
    %242 = vector.broadcast %221 : vector<1x32xf32> to vector<32x32xf32>
    %243 = arith.addf %241, %242 : vector<32x32xf32>
    %244 = arith.truncf %243 : vector<32x32xf32> to vector<32x32xbf16>
    %c1 = arith.constant 1 : index
    %c0_87 = arith.constant 0 : index
    %c0_88 = arith.constant 0 : index
    %245 = vector.load %arg10[%c1, %c0_87, %c0_88] : memref<2x32x768xbf16, #tpu.memory_space<vmem>>, vector<1x32x768xbf16>
    %246 = vector.shape_cast %245 : vector<1x32x768xbf16> to vector<32x768xbf16>
    %cst_89 = arith.constant dense<0.000000e+00> : vector<32x768xf32>
    %247 = tpu.matmul %244, %246, %cst_89 {dimension_numbers = #tpu.dot_dimension_numbers<[1], [0], [0], [1], [0, 0, 1, 1], [], []>} : vector<32x32xbf16>, vector<32x768xbf16>, vector<32x768xf32> -> vector<32x768xf32>
    %c1_90 = arith.constant 1 : index
    %c0_91 = arith.constant 0 : index
    %c0_92 = arith.constant 0 : index
    %248 = vector.load %arg11[%c1_90, %c0_91, %c0_92] : memref<2x1x768xf32, #tpu.memory_space<vmem>>, vector<1x1x768xf32>
    %249 = vector.shape_cast %248 : vector<1x1x768xf32> to vector<1x768xf32>
    %250 = vector.broadcast %249 : vector<1x768xf32> to vector<32x768xf32>
    %251 = arith.addf %247, %250 : vector<32x768xf32>
    %252 = vector.shape_cast %251 : vector<32x768xf32> to vector<2x16x768xf32>
    %c1_93 = arith.constant 1 : index
    %c0_94 = arith.constant 0 : index
    %c0_95 = arith.constant 0 : index
    %253 = vector.load %arg12[%c1_93, %c0_94, %c0_95] : memref<2x256x32xbf16, #tpu.memory_space<vmem>>, vector<1x256x32xbf16>
    %254 = vector.shape_cast %253 : vector<1x256x32xbf16> to vector<256x32xbf16>
    %c1_96 = arith.constant 1 : index
    %c0_97 = arith.constant 0 : index
    %c0_98 = arith.constant 0 : index
    %255 = vector.load %arg13[%c1_96, %c0_97, %c0_98] : memref<2x1x32xf32, #tpu.memory_space<vmem>>, vector<1x1x32xf32>
    %256 = vector.shape_cast %255 : vector<1x1x32xf32> to vector<1x32xf32>
    %257 = vector.extract_strided_slice %252 {offsets = [0, 0, 0], sizes = [2, 16, 128], strides = [1, 1, 1]} : vector<2x16x768xf32> to vector<2x16x128xf32>
    %258 = arith.truncf %257 : vector<2x16x128xf32> to vector<2x16x128xbf16>
    %259 = vector.extract_strided_slice %252 {offsets = [0, 0, 128], sizes = [2, 16, 128], strides = [1, 1, 1]} : vector<2x16x768xf32> to vector<2x16x128xf32>
    %260 = arith.truncf %259 : vector<2x16x128xf32> to vector<2x16x128xbf16>
    %261 = vector.extract_strided_slice %252 {offsets = [0, 0, 256], sizes = [2, 16, 128], strides = [1, 1, 1]} : vector<2x16x768xf32> to vector<2x16x128xf32>
    %262 = arith.truncf %261 : vector<2x16x128xf32> to vector<2x16x128xbf16>
    "tpu.trace_start"() <{level = 10 : i32, message = "bqd,bkd->bqk"}> : () -> ()
    %cst_99 = arith.constant dense<0.000000e+00> : vector<2x16x16xf32>
    %263 = tpu.matmul %258, %260, %cst_99 {dimension_numbers = #tpu.dot_dimension_numbers<[2], [2], [1], [1], [0, 0, 0, 1, 1, 1], [0], [0]>} : vector<2x16x128xbf16>, vector<2x16x128xbf16>, vector<2x16x16xf32> -> vector<2x16x16xf32>
    %cst_100 = arith.constant -1.000000e+04 : f32
    "tpu.trace_stop"() : () -> ()
    %264 = vector.shape_cast %6 : vector<1x16x16xi1> to vector<1x16x16xi1>
    %265 = vector.broadcast %264 : vector<1x16x16xi1> to vector<2x16x16xi1>
    %266 = vector.broadcast %cst_100 : f32 to vector<2x16x16xf32>
    %267 = arith.select %265, %263, %266 : vector<2x16x16xi1>, vector<2x16x16xf32>
    %cst_101 = arith.constant dense<0xFF800000> : vector<2x16xf32>
    %268 = vector.multi_reduction <maximumf>, %267, %cst_101 [2] : vector<2x16x16xf32> to vector<2x16xf32>
    %269 = vector.shape_cast %268 : vector<2x16xf32> to vector<2x16x1xf32>
    %270 = vector.broadcast %269 : vector<2x16x1xf32> to vector<2x16x16xf32>
    %271 = arith.subf %267, %270 : vector<2x16x16xf32>
    %272 = math.exp %271 : vector<2x16x16xf32>
    %cst_102 = arith.constant dense<0.000000e+00> : vector<2x16xf32>
    %273 = vector.multi_reduction <add>, %272, %cst_102 [2] : vector<2x16x16xf32> to vector<2x16xf32>
    %274 = vector.shape_cast %273 : vector<2x16xf32> to vector<2x16x1xf32>
    %275 = tpu.reciprocal %274 {approx = true} : vector<2x16x1xf32> -> vector<2x16x1xf32>
    %276 = vector.broadcast %275 : vector<2x16x1xf32> to vector<2x16x16xf32>
    %277 = arith.mulf %272, %276 : vector<2x16x16xf32>
    %278 = arith.truncf %277 : vector<2x16x16xf32> to vector<2x16x16xbf16>
    "tpu.trace_start"() <{level = 10 : i32, message = "bqk,bkd->bqd"}> : () -> ()
    %cst_103 = arith.constant dense<0.000000e+00> : vector<2x16x128xf32>
    %279 = tpu.matmul %278, %262, %cst_103 {dimension_numbers = #tpu.dot_dimension_numbers<[2], [1], [1], [2], [0, 0, 0, 1, 1, 2], [0], [0]>} : vector<2x16x16xbf16>, vector<2x16x128xbf16>, vector<2x16x128xf32> -> vector<2x16x128xf32>
    "tpu.trace_stop"() : () -> ()
    %280 = vector.shape_cast %279 : vector<2x16x128xf32> to vector<32x128xf32>
    %281 = arith.truncf %280 : vector<32x128xf32> to vector<32x128xbf16>
    %282 = vector.extract_strided_slice %254 {offsets = [0, 0], sizes = [128, 32], strides = [1, 1]} : vector<256x32xbf16> to vector<128x32xbf16>
    %cst_104 = arith.constant dense<0.000000e+00> : vector<32x32xf32>
    %283 = tpu.matmul %281, %282, %cst_104 {dimension_numbers = #tpu.dot_dimension_numbers<[1], [0], [0], [1], [0, 0, 1, 1], [], []>} : vector<32x128xbf16>, vector<128x32xbf16>, vector<32x32xf32> -> vector<32x32xf32>
    %284 = vector.broadcast %256 : vector<1x32xf32> to vector<32x32xf32>
    %285 = arith.addf %284, %283 : vector<32x32xf32>
    %286 = vector.extract_strided_slice %252 {offsets = [0, 0, 384], sizes = [2, 16, 128], strides = [1, 1, 1]} : vector<2x16x768xf32> to vector<2x16x128xf32>
    %287 = arith.truncf %286 : vector<2x16x128xf32> to vector<2x16x128xbf16>
    %288 = vector.extract_strided_slice %252 {offsets = [0, 0, 512], sizes = [2, 16, 128], strides = [1, 1, 1]} : vector<2x16x768xf32> to vector<2x16x128xf32>
    %289 = arith.truncf %288 : vector<2x16x128xf32> to vector<2x16x128xbf16>
    %290 = vector.extract_strided_slice %252 {offsets = [0, 0, 640], sizes = [2, 16, 128], strides = [1, 1, 1]} : vector<2x16x768xf32> to vector<2x16x128xf32>
    %291 = arith.truncf %290 : vector<2x16x128xf32> to vector<2x16x128xbf16>
    "tpu.trace_start"() <{level = 10 : i32, message = "bqd,bkd->bqk"}> : () -> ()
    %cst_105 = arith.constant dense<0.000000e+00> : vector<2x16x16xf32>
    %292 = tpu.matmul %287, %289, %cst_105 {dimension_numbers = #tpu.dot_dimension_numbers<[2], [2], [1], [1], [0, 0, 0, 1, 1, 1], [0], [0]>} : vector<2x16x128xbf16>, vector<2x16x128xbf16>, vector<2x16x16xf32> -> vector<2x16x16xf32>
    %cst_106 = arith.constant -1.000000e+04 : f32
    "tpu.trace_stop"() : () -> ()
    %293 = vector.shape_cast %6 : vector<1x16x16xi1> to vector<1x16x16xi1>
    %294 = vector.broadcast %293 : vector<1x16x16xi1> to vector<2x16x16xi1>
    %295 = vector.broadcast %cst_106 : f32 to vector<2x16x16xf32>
    %296 = arith.select %294, %292, %295 : vector<2x16x16xi1>, vector<2x16x16xf32>
    %cst_107 = arith.constant dense<0xFF800000> : vector<2x16xf32>
    %297 = vector.multi_reduction <maximumf>, %296, %cst_107 [2] : vector<2x16x16xf32> to vector<2x16xf32>
    %298 = vector.shape_cast %297 : vector<2x16xf32> to vector<2x16x1xf32>
    %299 = vector.broadcast %298 : vector<2x16x1xf32> to vector<2x16x16xf32>
    %300 = arith.subf %296, %299 : vector<2x16x16xf32>
    %301 = math.exp %300 : vector<2x16x16xf32>
    %cst_108 = arith.constant dense<0.000000e+00> : vector<2x16xf32>
    %302 = vector.multi_reduction <add>, %301, %cst_108 [2] : vector<2x16x16xf32> to vector<2x16xf32>
    %303 = vector.shape_cast %302 : vector<2x16xf32> to vector<2x16x1xf32>
    %304 = tpu.reciprocal %303 {approx = true} : vector<2x16x1xf32> -> vector<2x16x1xf32>
    %305 = vector.broadcast %304 : vector<2x16x1xf32> to vector<2x16x16xf32>
    %306 = arith.mulf %301, %305 : vector<2x16x16xf32>
    %307 = arith.truncf %306 : vector<2x16x16xf32> to vector<2x16x16xbf16>
    "tpu.trace_start"() <{level = 10 : i32, message = "bqk,bkd->bqd"}> : () -> ()
    %cst_109 = arith.constant dense<0.000000e+00> : vector<2x16x128xf32>
    %308 = tpu.matmul %307, %291, %cst_109 {dimension_numbers = #tpu.dot_dimension_numbers<[2], [1], [1], [2], [0, 0, 0, 1, 1, 2], [0], [0]>} : vector<2x16x16xbf16>, vector<2x16x128xbf16>, vector<2x16x128xf32> -> vector<2x16x128xf32>
    "tpu.trace_stop"() : () -> ()
    %309 = vector.shape_cast %308 : vector<2x16x128xf32> to vector<32x128xf32>
    %310 = arith.truncf %309 : vector<32x128xf32> to vector<32x128xbf16>
    %311 = vector.extract_strided_slice %254 {offsets = [128, 0], sizes = [128, 32], strides = [1, 1]} : vector<256x32xbf16> to vector<128x32xbf16>
    %cst_110 = arith.constant dense<0.000000e+00> : vector<32x32xf32>
    %312 = tpu.matmul %310, %311, %cst_110 {dimension_numbers = #tpu.dot_dimension_numbers<[1], [0], [0], [1], [0, 0, 1, 1], [], []>} : vector<32x128xbf16>, vector<128x32xbf16>, vector<32x32xf32> -> vector<32x32xf32>
    %313 = arith.addf %285, %312 : vector<32x32xf32>
    %c1_111 = arith.constant 1 : index
    %c0_112 = arith.constant 0 : index
    %c0_113 = arith.constant 0 : index
    %c0_114 = arith.constant 0 : index
    %314 = vector.load %arg14[%c1_111, %c0_112, %c0_113, %c0_114] : memref<2x4x1x32xf32, #tpu.memory_space<vmem>>, vector<1x4x1x32xf32>
    %315 = vector.shape_cast %314 : vector<1x4x1x32xf32> to vector<4x1x32xf32>
    %316 = arith.addf %243, %313 : vector<32x32xf32>
    %317 = vector.extract_strided_slice %315 {offsets = [0, 0, 0], sizes = [1, 1, 32], strides = [1, 1, 1]} : vector<4x1x32xf32> to vector<1x1x32xf32>
    %318 = vector.shape_cast %317 : vector<1x1x32xf32> to vector<1x32xf32>
    %319 = vector.extract_strided_slice %315 {offsets = [1, 0, 0], sizes = [1, 1, 32], strides = [1, 1, 1]} : vector<4x1x32xf32> to vector<1x1x32xf32>
    %320 = vector.shape_cast %319 : vector<1x1x32xf32> to vector<1x32xf32>
    %cst_115 = arith.constant dense<0.000000e+00> : vector<32xf32>
    %321 = vector.multi_reduction <add>, %316, %cst_115 [1] : vector<32x32xf32> to vector<32xf32>
    %322 = vector.shape_cast %321 : vector<32xf32> to vector<32x1xf32>
    %cst_116 = arith.constant 3.200000e+01 : f32
    %323 = vector.broadcast %cst_116 : f32 to vector<32x1xf32>
    %324 = arith.divf %322, %323 : vector<32x1xf32>
    %325 = vector.broadcast %324 : vector<32x1xf32> to vector<32x32xf32>
    %326 = arith.subf %316, %325 : vector<32x32xf32>
    %327 = arith.mulf %326, %326 : vector<32x32xf32>
    %cst_117 = arith.constant dense<0.000000e+00> : vector<32xf32>
    %328 = vector.multi_reduction <add>, %327, %cst_117 [1] : vector<32x32xf32> to vector<32xf32>
    %329 = vector.shape_cast %328 : vector<32xf32> to vector<32x1xf32>
    %cst_118 = arith.constant 3.200000e+01 : f32
    %330 = vector.broadcast %cst_118 : f32 to vector<32x1xf32>
    %331 = arith.divf %329, %330 : vector<32x1xf32>
    %332 = vector.broadcast %324 : vector<32x1xf32> to vector<32x32xf32>
    %333 = arith.subf %316, %332 : vector<32x32xf32>
    %cst_119 = arith.constant 9.99999974E-6 : f32
    %334 = vector.broadcast %cst_119 : f32 to vector<32x1xf32>
    %335 = arith.addf %331, %334 : vector<32x1xf32>
    %336 = math.rsqrt %335 : vector<32x1xf32>
    %337 = vector.broadcast %336 : vector<32x1xf32> to vector<32x32xf32>
    %338 = arith.mulf %333, %337 : vector<32x32xf32>
    %339 = vector.broadcast %318 : vector<1x32xf32> to vector<32x32xf32>
    %340 = arith.mulf %338, %339 : vector<32x32xf32>
    %341 = vector.broadcast %320 : vector<1x32xf32> to vector<32x32xf32>
    %342 = arith.addf %340, %341 : vector<32x32xf32>
    %343 = vector.broadcast %1 : vector<32x1xf32> to vector<32x32xf32>
    %344 = arith.mulf %342, %343 : vector<32x32xf32>
    %c1_120 = arith.constant 1 : index
    %c0_121 = arith.constant 0 : index
    %c0_122 = arith.constant 0 : index
    %345 = vector.load %arg15[%c1_120, %c0_121, %c0_122] : memref<2x96x64xbf16, #tpu.memory_space<vmem>>, vector<1x96x64xbf16>
    %346 = vector.shape_cast %345 : vector<1x96x64xbf16> to vector<96x64xbf16>
    %c1_123 = arith.constant 1 : index
    %c0_124 = arith.constant 0 : index
    %c0_125 = arith.constant 0 : index
    %347 = vector.load %arg16[%c1_123, %c0_124, %c0_125] : memref<2x1x64xf32, #tpu.memory_space<vmem>>, vector<1x1x64xf32>
    %348 = vector.shape_cast %347 : vector<1x1x64xf32> to vector<1x64xf32>
    %c2_i32_126 = arith.constant 2 : i32
    %349 = tpu.dynamic_rotate %344 by %c2_i32_126 dim 0 : vector<32x32xf32>, i32 -> vector<32x32xf32>
    %cst_127 = arith.constant 0.000000e+00 : f32
    %350 = vector.shape_cast %10 : vector<32x1xi1> to vector<32x1xi1>
    %351 = vector.broadcast %350 : vector<32x1xi1> to vector<32x32xi1>
    %352 = vector.broadcast %cst_127 : f32 to vector<32x32xf32>
    %353 = arith.select %351, %349, %352 : vector<32x32xi1>, vector<32x32xf32>
    %c1_i32_128 = arith.constant 1 : i32
    %354 = tpu.dynamic_rotate %344 by %c1_i32_128 dim 0 : vector<32x32xf32>, i32 -> vector<32x32xf32>
    %cst_129 = arith.constant 0.000000e+00 : f32
    %355 = vector.shape_cast %8 : vector<32x1xi1> to vector<32x1xi1>
    %356 = vector.broadcast %355 : vector<32x1xi1> to vector<32x32xi1>
    %357 = vector.broadcast %cst_129 : f32 to vector<32x32xf32>
    %358 = arith.select %356, %354, %357 : vector<32x32xi1>, vector<32x32xf32>
    %359 = tpu.concatenate %353, %358, %344 in 1 : vector<32x32xf32>, vector<32x32xf32>, vector<32x32xf32> -> vector<32x96xf32>
    %360 = arith.truncf %359 : vector<32x96xf32> to vector<32x96xbf16>
    %cst_130 = arith.constant dense<0.000000e+00> : vector<32x64xf32>
    %361 = tpu.matmul %360, %346, %cst_130 {dimension_numbers = #tpu.dot_dimension_numbers<[1], [0], [0], [1], [0, 0, 1, 1], [], []>} : vector<32x96xbf16>, vector<96x64xbf16>, vector<32x64xf32> -> vector<32x64xf32>
    %362 = vector.broadcast %348 : vector<1x64xf32> to vector<32x64xf32>
    %363 = arith.addf %361, %362 : vector<32x64xf32>
    %cst_131 = arith.constant 0.000000e+00 : f32
    %364 = vector.broadcast %cst_131 : f32 to vector<32x64xf32>
    %365 = arith.maximumf %363, %364 : vector<32x64xf32>
    %366 = vector.broadcast %1 : vector<32x1xf32> to vector<32x64xf32>
    %367 = arith.mulf %365, %366 : vector<32x64xf32>
    %c1_132 = arith.constant 1 : index
    %c0_133 = arith.constant 0 : index
    %c0_134 = arith.constant 0 : index
    %368 = vector.load %arg17[%c1_132, %c0_133, %c0_134] : memref<2x192x32xbf16, #tpu.memory_space<vmem>>, vector<1x192x32xbf16>
    %369 = vector.shape_cast %368 : vector<1x192x32xbf16> to vector<192x32xbf16>
    %c1_135 = arith.constant 1 : index
    %c0_136 = arith.constant 0 : index
    %c0_137 = arith.constant 0 : index
    %370 = vector.load %arg18[%c1_135, %c0_136, %c0_137] : memref<2x1x32xf32, #tpu.memory_space<vmem>>, vector<1x1x32xf32>
    %371 = vector.shape_cast %370 : vector<1x1x32xf32> to vector<1x32xf32>
    %c2_i32_138 = arith.constant 2 : i32
    %372 = tpu.dynamic_rotate %367 by %c2_i32_138 dim 0 : vector<32x64xf32>, i32 -> vector<32x64xf32>
    %cst_139 = arith.constant 0.000000e+00 : f32
    %373 = vector.shape_cast %10 : vector<32x1xi1> to vector<32x1xi1>
    %374 = vector.broadcast %373 : vector<32x1xi1> to vector<32x64xi1>
    %375 = vector.broadcast %cst_139 : f32 to vector<32x64xf32>
    %376 = arith.select %374, %372, %375 : vector<32x64xi1>, vector<32x64xf32>
    %c1_i32_140 = arith.constant 1 : i32
    %377 = tpu.dynamic_rotate %367 by %c1_i32_140 dim 0 : vector<32x64xf32>, i32 -> vector<32x64xf32>
    %cst_141 = arith.constant 0.000000e+00 : f32
    %378 = vector.shape_cast %8 : vector<32x1xi1> to vector<32x1xi1>
    %379 = vector.broadcast %378 : vector<32x1xi1> to vector<32x64xi1>
    %380 = vector.broadcast %cst_141 : f32 to vector<32x64xf32>
    %381 = arith.select %379, %377, %380 : vector<32x64xi1>, vector<32x64xf32>
    %382 = tpu.concatenate %376, %381, %367 in 1 : vector<32x64xf32>, vector<32x64xf32>, vector<32x64xf32> -> vector<32x192xf32>
    %383 = arith.truncf %382 : vector<32x192xf32> to vector<32x192xbf16>
    %cst_142 = arith.constant dense<0.000000e+00> : vector<32x32xf32>
    %384 = tpu.matmul %383, %369, %cst_142 {dimension_numbers = #tpu.dot_dimension_numbers<[1], [0], [0], [1], [0, 0, 1, 1], [], []>} : vector<32x192xbf16>, vector<192x32xbf16>, vector<32x32xf32> -> vector<32x32xf32>
    %385 = vector.broadcast %371 : vector<1x32xf32> to vector<32x32xf32>
    %386 = arith.addf %384, %385 : vector<32x32xf32>
    %387 = vector.broadcast %1 : vector<32x1xf32> to vector<32x32xf32>
    %388 = arith.mulf %386, %387 : vector<32x32xf32>
    %389 = arith.addf %342, %388 : vector<32x32xf32>
    %390 = vector.extract_strided_slice %315 {offsets = [2, 0, 0], sizes = [1, 1, 32], strides = [1, 1, 1]} : vector<4x1x32xf32> to vector<1x1x32xf32>
    %391 = vector.shape_cast %390 : vector<1x1x32xf32> to vector<1x32xf32>
    %392 = vector.extract_strided_slice %315 {offsets = [3, 0, 0], sizes = [1, 1, 32], strides = [1, 1, 1]} : vector<4x1x32xf32> to vector<1x1x32xf32>
    %393 = vector.shape_cast %392 : vector<1x1x32xf32> to vector<1x32xf32>
    %cst_143 = arith.constant dense<0.000000e+00> : vector<32xf32>
    %394 = vector.multi_reduction <add>, %389, %cst_143 [1] : vector<32x32xf32> to vector<32xf32>
    %395 = vector.shape_cast %394 : vector<32xf32> to vector<32x1xf32>
    %cst_144 = arith.constant 3.200000e+01 : f32
    %396 = vector.broadcast %cst_144 : f32 to vector<32x1xf32>
    %397 = arith.divf %395, %396 : vector<32x1xf32>
    %398 = vector.broadcast %397 : vector<32x1xf32> to vector<32x32xf32>
    %399 = arith.subf %389, %398 : vector<32x32xf32>
    %400 = arith.mulf %399, %399 : vector<32x32xf32>
    %cst_145 = arith.constant dense<0.000000e+00> : vector<32xf32>
    %401 = vector.multi_reduction <add>, %400, %cst_145 [1] : vector<32x32xf32> to vector<32xf32>
    %402 = vector.shape_cast %401 : vector<32xf32> to vector<32x1xf32>
    %cst_146 = arith.constant 3.200000e+01 : f32
    %403 = vector.broadcast %cst_146 : f32 to vector<32x1xf32>
    %404 = arith.divf %402, %403 : vector<32x1xf32>
    %405 = vector.broadcast %397 : vector<32x1xf32> to vector<32x32xf32>
    %406 = arith.subf %389, %405 : vector<32x32xf32>
    %cst_147 = arith.constant 9.99999974E-6 : f32
    %407 = vector.broadcast %cst_147 : f32 to vector<32x1xf32>
    %408 = arith.addf %404, %407 : vector<32x1xf32>
    %409 = math.rsqrt %408 : vector<32x1xf32>
    %410 = vector.broadcast %409 : vector<32x1xf32> to vector<32x32xf32>
    %411 = arith.mulf %406, %410 : vector<32x32xf32>
    %412 = vector.broadcast %391 : vector<1x32xf32> to vector<32x32xf32>
    %413 = arith.mulf %411, %412 : vector<32x32xf32>
    %414 = vector.broadcast %393 : vector<1x32xf32> to vector<32x32xf32>
    %415 = arith.addf %413, %414 : vector<32x32xf32>
    %416 = vector.broadcast %1 : vector<32x1xf32> to vector<32x32xf32>
    %417 = arith.mulf %415, %416 : vector<32x32xf32>
    %418 = arith.truncf %417 : vector<32x32xf32> to vector<32x32xbf16>
    %c0_148 = arith.constant 0 : index
    %c0_149 = arith.constant 0 : index
    %419 = vector.load %arg19[%c0_148, %c0_149] : memref<32x128xbf16, #tpu.memory_space<vmem>>, vector<32x128xbf16>
    %cst_150 = arith.constant dense<0.000000e+00> : vector<32x128xf32>
    %420 = tpu.matmul %418, %419, %cst_150 {dimension_numbers = #tpu.dot_dimension_numbers<[1], [0], [0], [1], [0, 0, 1, 1], [], []>} : vector<32x32xbf16>, vector<32x128xbf16>, vector<32x128xf32> -> vector<32x128xf32>
    %c0_151 = arith.constant 0 : index
    %c0_152 = arith.constant 0 : index
    %421 = vector.load %arg20[%c0_151, %c0_152] : memref<1x128xf32, #tpu.memory_space<vmem>>, vector<1x128xf32>
    %422 = vector.broadcast %421 : vector<1x128xf32> to vector<32x128xf32>
    %423 = arith.addf %420, %422 : vector<32x128xf32>
    %424 = vector.broadcast %1 : vector<32x1xf32> to vector<32x128xf32>
    %425 = arith.mulf %423, %424 : vector<32x128xf32>
    %426 = arith.truncf %425 : vector<32x128xf32> to vector<32x128xbf16>
    %c0_153 = arith.constant 0 : index
    %c0_154 = arith.constant 0 : index
    %427 = vector.load %arg21[%c0_153, %c0_154] : memref<32x128xbf16, #tpu.memory_space<vmem>>, vector<32x128xbf16>
    tpu.vector_store %arg21[%c0_153, %c0_154], %426 {strides = array<i32>} : memref<32x128xbf16, #tpu.memory_space<vmem>>, vector<32x128xbf16>,
    return
  }
  func.func @transform_0(%arg0: i32) -> (i32, i32) {
    %c0_i32 = arith.constant 0 : i32
    %c0_i32_0 = arith.constant 0 : i32
    return %arg0, %c0_i32 : i32, i32
  }
  func.func @transform_1(%arg0: i32) -> (i32, i32) {
    %c0_i32 = arith.constant 0 : i32
    %c0_i32_0 = arith.constant 0 : i32
    return %arg0, %c0_i32 : i32, i32
  }
  func.func @transform_2(%arg0: i32) -> (i32, i32) {
    %c0_i32 = arith.constant 0 : i32
    %c0_i32_0 = arith.constant 0 : i32
    return %arg0, %c0_i32 : i32, i32
  }
  func.func @transform_3(%arg0: i32) -> (i32, i32) {
    %c0_i32 = arith.constant 0 : i32
    %c0_i32_0 = arith.constant 0 : i32
    return %arg0, %c0_i32 : i32, i32
  }
  func.func @transform_4(%arg0: i32) -> (i32, i32) {
    %c0_i32 = arith.constant 0 : i32
    %c0_i32_0 = arith.constant 0 : i32
    return %arg0, %c0_i32 : i32, i32
  }
  func.func @transform_5(%arg0: i32) -> (i32, i32) {
    %c0_i32 = arith.constant 0 : i32
    %c0_i32_0 = arith.constant 0 : i32
    %c0_i32_1 = arith.constant 0 : i32
    return %c0_i32, %c0_i32_0 : i32, i32
  }
  func.func @transform_6(%arg0: i32) -> (i32, i32) {
    %c0_i32 = arith.constant 0 : i32
    %c0_i32_0 = arith.constant 0 : i32
    %c0_i32_1 = arith.constant 0 : i32
    return %c0_i32, %c0_i32_0 : i32, i32
  }
  func.func @transform_7(%arg0: i32) -> (i32, i32) {
    %c0_i32 = arith.constant 0 : i32
    %c0_i32_0 = arith.constant 0 : i32
    %c0_i32_1 = arith.constant 0 : i32
    return %c0_i32, %c0_i32_0 : i32, i32
  }
  func.func @transform_8(%arg0: i32) -> (i32, i32) {
    %c0_i32 = arith.constant 0 : i32
    %c0_i32_0 = arith.constant 0 : i32
    %c0_i32_1 = arith.constant 0 : i32
    return %c0_i32, %c0_i32_0 : i32, i32
  }
  func.func @transform_9(%arg0: i32) -> (i32, i32, i32) {
    %c0_i32 = arith.constant 0 : i32
    %c0_i32_0 = arith.constant 0 : i32
    %c0_i32_1 = arith.constant 0 : i32
    %c0_i32_2 = arith.constant 0 : i32
    return %c0_i32, %c0_i32_0, %c0_i32_1 : i32, i32, i32
  }
  func.func @transform_10(%arg0: i32) -> (i32, i32, i32) {
    %c0_i32 = arith.constant 0 : i32
    %c0_i32_0 = arith.constant 0 : i32
    %c0_i32_1 = arith.constant 0 : i32
    %c0_i32_2 = arith.constant 0 : i32
    return %c0_i32, %c0_i32_0, %c0_i32_1 : i32, i32, i32
  }
  func.func @transform_11(%arg0: i32) -> (i32, i32, i32) {
    %c0_i32 = arith.constant 0 : i32
    %c0_i32_0 = arith.constant 0 : i32
    %c0_i32_1 = arith.constant 0 : i32
    %c0_i32_2 = arith.constant 0 : i32
    return %c0_i32, %c0_i32_0, %c0_i32_1 : i32, i32, i32
  }
  func.func @transform_12(%arg0: i32) -> (i32, i32, i32) {
    %c0_i32 = arith.constant 0 : i32
    %c0_i32_0 = arith.constant 0 : i32
    %c0_i32_1 = arith.constant 0 : i32
    %c0_i32_2 = arith.constant 0 : i32
    return %c0_i32, %c0_i32_0, %c0_i32_1 : i32, i32, i32
  }
  func.func @transform_13(%arg0: i32) -> (i32, i32, i32, i32) {
    %c0_i32 = arith.constant 0 : i32
    %c0_i32_0 = arith.constant 0 : i32
    %c0_i32_1 = arith.constant 0 : i32
    %c0_i32_2 = arith.constant 0 : i32
    %c0_i32_3 = arith.constant 0 : i32
    return %c0_i32, %c0_i32_0, %c0_i32_1, %c0_i32_2 : i32, i32, i32, i32
  }
  func.func @transform_14(%arg0: i32) -> (i32, i32, i32) {
    %c0_i32 = arith.constant 0 : i32
    %c0_i32_0 = arith.constant 0 : i32
    %c0_i32_1 = arith.constant 0 : i32
    %c0_i32_2 = arith.constant 0 : i32
    return %c0_i32, %c0_i32_0, %c0_i32_1 : i32, i32, i32
  }
  func.func @transform_15(%arg0: i32) -> (i32, i32, i32) {
    %c0_i32 = arith.constant 0 : i32
    %c0_i32_0 = arith.constant 0 : i32
    %c0_i32_1 = arith.constant 0 : i32
    %c0_i32_2 = arith.constant 0 : i32
    return %c0_i32, %c0_i32_0, %c0_i32_1 : i32, i32, i32
  }
  func.func @transform_16(%arg0: i32) -> (i32, i32, i32) {
    %c0_i32 = arith.constant 0 : i32
    %c0_i32_0 = arith.constant 0 : i32
    %c0_i32_1 = arith.constant 0 : i32
    %c0_i32_2 = arith.constant 0 : i32
    return %c0_i32, %c0_i32_0, %c0_i32_1 : i32, i32, i32
  }
  func.func @transform_17(%arg0: i32) -> (i32, i32, i32) {
    %c0_i32 = arith.constant 0 : i32
    %c0_i32_0 = arith.constant 0 : i32
    %c0_i32_1 = arith.constant 0 : i32
    %c0_i32_2 = arith.constant 0 : i32
    return %c0_i32, %c0_i32_0, %c0_i32_1 : i32, i32, i32
  }
  func.func @transform_18(%arg0: i32) -> (i32, i32) {
    %c0_i32 = arith.constant 0 : i32
    %c0_i32_0 = arith.constant 0 : i32
    %c0_i32_1 = arith.constant 0 : i32
    return %c0_i32, %c0_i32_0 : i32, i32
  }
  func.func @transform_19(%arg0: i32) -> (i32, i32) {
    %c0_i32 = arith.constant 0 : i32
    %c0_i32_0 = arith.constant 0 : i32
    %c0_i32_1 = arith.constant 0 : i32
    return %c0_i32, %c0_i32_0 : i32, i32
  }
  func.func @transform_20(%arg0: i32) -> (i32, i32) {
    %c0_i32 = arith.constant 0 : i32
    %c0_i32_0 = arith.constant 0 : i32
    return %arg0, %c0_i32 : i32, i32
  }
}

module attributes {stable_mosaic.version = 11 : i64} {
  func.func @_f0_decoder_kernel(%arg0: i32, %arg1: memref<32x32xf32, #tpu.memory_space<vmem>>, %arg2: memref<32x1xf32, #tpu.memory_space<vmem>>, %arg3: memref<32x1xf32, #tpu.memory_space<vmem>>, %arg4: memref<32x8xf32, #tpu.memory_space<vmem>>, %arg5: memref<32x1xi32, #tpu.memory_space<vmem>>, %arg6: memref<8x32xbf16, #tpu.memory_space<vmem>>, %arg7: memref<3x32xf32, #tpu.memory_space<vmem>>, %arg8: memref<96x32xbf16, #tpu.memory_space<vmem>>, %arg9: memref<3x32xf32, #tpu.memory_space<vmem>>, %arg10: memref<2x32x768xbf16, #tpu.memory_space<vmem>>, %arg11: memref<2x1x768xf32, #tpu.memory_space<vmem>>, %arg12: memref<2x256x32xbf16, #tpu.memory_space<vmem>>, %arg13: memref<2x1x32xf32, #tpu.memory_space<vmem>>, %arg14: memref<2x4x1x32xf32, #tpu.memory_space<vmem>>, %arg15: memref<2x96x64xbf16, #tpu.memory_space<vmem>>, %arg16: memref<2x1x64xf32, #tpu.memory_space<vmem>>, %arg17: memref<2x192x32xbf16, #tpu.memory_space<vmem>>, %arg18: memref<2x1x32xf32, #tpu.memory_space<vmem>>, %arg19: memref<32x128xbf16, #tpu.memory_space<vmem>>, %arg20: memref<1x128xf32, #tpu.memory_space<vmem>>, %arg21: memref<32x128xbf16, #tpu.memory_space<vmem>>) attributes {dimension_semantics = [#tpu.dimension_semantics<parallel>], iteration_bounds = array<i64: 1>, scalar_prefetch = 0 : i64, scratch_operands = 0 : i64, tpu.core_type = #tpu.core_type<tc>, window_params = [{transform_indices = @transform_0, window_bounds = array<i64: 32, 32>}, {transform_indices = @transform_1, window_bounds = array<i64: 32, 1>}, {transform_indices = @transform_2, window_bounds = array<i64: 32, 1>}, {transform_indices = @transform_3, window_bounds = array<i64: 32, 8>}, {transform_indices = @transform_4, window_bounds = array<i64: 32, 1>}, {pipeline_mode = #tpu.pipeline_mode<synchronous>, transform_indices = @transform_5, window_bounds = array<i64: 8, 32>}, {pipeline_mode = #tpu.pipeline_mode<synchronous>, transform_indices = @transform_6, window_bounds = array<i64: 3, 32>}, {pipeline_mode = #tpu.pipeline_mode<synchronous>, transform_indices = @transform_7, window_bounds = array<i64: 96, 32>}, {pipeline_mode = #tpu.pipeline_mode<synchronous>, transform_indices = @transform_8, window_bounds = array<i64: 3, 32>}, {pipeline_mode = #tpu.pipeline_mode<synchronous>, transform_indices = @transform_9, window_bounds = array<i64: 2, 32, 768>}, {pipeline_mode = #tpu.pipeline_mode<synchronous>, transform_indices = @transform_10, window_bounds = array<i64: 2, 1, 768>}, {pipeline_mode = #tpu.pipeline_mode<synchronous>, transform_indices = @transform_11, window_bounds = array<i64: 2, 256, 32>}, {pipeline_mode = #tpu.pipeline_mode<synchronous>, transform_indices = @transform_12, window_bounds = array<i64: 2, 1, 32>}, {pipeline_mode = #tpu.pipeline_mode<synchronous>, transform_indices = @transform_13, window_bounds = array<i64: 2, 4, 1, 32>}, {pipeline_mode = #tpu.pipeline_mode<synchronous>, transform_indices = @transform_14, window_bounds = array<i64: 2, 96, 64>}, {pipeline_mode = #tpu.pipeline_mode<synchronous>, transform_indices = @transform_15, window_bounds = array<i64: 2, 1, 64>}, {pipeline_mode = #tpu.pipeline_mode<synchronous>, transform_indices = @transform_16, window_bounds = array<i64: 2, 192, 32>}, {pipeline_mode = #tpu.pipeline_mode<synchronous>, transform_indices = @transform_17, window_bounds = array<i64: 2, 1, 32>}, {pipeline_mode = #tpu.pipeline_mode<synchronous>, transform_indices = @transform_18, window_bounds = array<i64: 32, 128>}, {pipeline_mode = #tpu.pipeline_mode<synchronous>, transform_indices = @transform_19, window_bounds = array<i64: 1, 128>}, {transform_indices = @transform_20, window_bounds = array<i64: 32, 128>}]} {
    %c0 = arith.constant 0 : index
    %c0_0 = arith.constant 0 : index
    %0 = vector.load %arg1[%c0, %c0_0] : memref<32x32xf32, #tpu.memory_space<vmem>>, vector<32x32xf32>
    %c0_1 = arith.constant 0 : index
    %c0_2 = arith.constant 0 : index
    %1 = vector.load %arg3[%c0_1, %c0_2] : memref<32x1xf32, #tpu.memory_space<vmem>>, vector<32x1xf32>
    %c0_3 = arith.constant 0 : index
    %c0_4 = arith.constant 0 : index
    %2 = vector.load %arg2[%c0_3, %c0_4] : memref<32x1xf32, #tpu.memory_space<vmem>>, vector<32x1xf32>
    %c0_5 = arith.constant 0 : index
    %c0_6 = arith.constant 0 : index
    %3 = vector.load %arg5[%c0_5, %c0_6] : memref<32x1xi32, #tpu.memory_space<vmem>>, vector<32x1xi32>
    %4 = tpu.iota {dimensions = array<i32: 1>} : vector<1x16x16xi32>
    %5 = tpu.iota {dimensions = array<i32: 2>} : vector<1x16x16xi32>
    %6 = arith.cmpi sge, %4, %5 : vector<1x16x16xi32>
    %c1_i32 = arith.constant 1 : i32
    %7 = vector.broadcast %c1_i32 : i32 to vector<32x1xi32>
    %8 = arith.cmpi sge, %3, %7 : vector<32x1xi32>
    %c2_i32 = arith.constant 2 : i32
    %9 = vector.broadcast %c2_i32 : i32 to vector<32x1xi32>
    %10 = arith.cmpi sge, %3, %9 : vector<32x1xi32>
    %c15_i32 = arith.constant 15 : i32
    %11 = vector.broadcast %c15_i32 : i32 to vector<32x1xi32>
    %12 = arith.cmpi slt, %3, %11 : vector<32x1xi32>
    %c0_7 = arith.constant 0 : index
    %c0_8 = arith.constant 0 : index
    %13 = vector.load %arg9[%c0_7, %c0_8] : memref<3x32xf32, #tpu.memory_space<vmem>>, vector<3x32xf32>
    %c0_9 = arith.constant 0 : index
    %c0_10 = arith.constant 0 : index
    %14 = vector.load %arg7[%c0_9, %c0_10] : memref<3x32xf32, #tpu.memory_space<vmem>>, vector<3x32xf32>
    %c0_11 = arith.constant 0 : index
    %c0_12 = arith.constant 0 : index
    %15 = vector.load %arg4[%c0_11, %c0_12] : memref<32x8xf32, #tpu.memory_space<vmem>>, vector<32x8xf32>
    %16 = arith.truncf %15 : vector<32x8xf32> to vector<32x8xbf16>
    %c0_13 = arith.constant 0 : index
    %c0_14 = arith.constant 0 : index
    %17 = vector.load %arg6[%c0_13, %c0_14] : memref<8x32xbf16, #tpu.memory_space<vmem>>, vector<8x32xbf16>
    %cst = arith.constant dense<0.000000e+00> : vector<32x32xf32>
    %18 = tpu.matmul %16, %17, %cst {dimension_numbers = #tpu.dot_dimension_numbers<[1], [0], [0], [1], [0, 0, 1, 1], [], []>} : vector<32x8xbf16>, vector<8x32xbf16>, vector<32x32xf32> -> vector<32x32xf32>
    %19 = arith.addf %0, %18 : vector<32x32xf32>
    %20 = vector.extract_strided_slice %13 {offsets = [0, 0], sizes = [1, 32], strides = [1, 1]} : vector<3x32xf32> to vector<1x32xf32>
    %21 = vector.broadcast %20 : vector<1x32xf32> to vector<32x32xf32>
    %22 = arith.addf %19, %21 : vector<32x32xf32>
    %23 = vector.extract_strided_slice %14 {offsets = [0, 0], sizes = [1, 32], strides = [1, 1]} : vector<3x32xf32> to vector<1x32xf32>
    %24 = vector.broadcast %2 : vector<32x1xf32> to vector<32x32xf32>
    %25 = vector.broadcast %23 : vector<1x32xf32> to vector<32x32xf32>
    %26 = arith.mulf %24, %25 : vector<32x32xf32>
    %c1_i32_15 = arith.constant 1 : i32
    %27 = tpu.dynamic_rotate %26 by %c1_i32_15 dim 0 : vector<32x32xf32>, i32 -> vector<32x32xf32>
    %cst_16 = arith.constant 0.000000e+00 : f32
    %28 = vector.shape_cast %8 : vector<32x1xi1> to vector<32x1xi1>
    %29 = vector.broadcast %28 : vector<32x1xi1> to vector<32x32xi1>
    %30 = vector.broadcast %cst_16 : f32 to vector<32x32xf32>
    %31 = arith.select %29, %27, %30 : vector<32x32xi1>, vector<32x32xf32>
    %32 = vector.extract_strided_slice %14 {offsets = [1, 0], sizes = [1, 32], strides = [1, 1]} : vector<3x32xf32> to vector<1x32xf32>
    %33 = vector.broadcast %2 : vector<32x1xf32> to vector<32x32xf32>
    %34 = vector.broadcast %32 : vector<1x32xf32> to vector<32x32xf32>
    %35 = arith.mulf %33, %34 : vector<32x32xf32>
    %36 = arith.addf %31, %35 : vector<32x32xf32>
    %37 = vector.extract_strided_slice %14 {offsets = [2, 0], sizes = [1, 32], strides = [1, 1]} : vector<3x32xf32> to vector<1x32xf32>
    %38 = vector.broadcast %2 : vector<32x1xf32> to vector<32x32xf32>
    %39 = vector.broadcast %37 : vector<1x32xf32> to vector<32x32xf32>
    %40 = arith.mulf %38, %39 : vector<32x32xf32>
    %c31_i32 = arith.constant 31 : i32
    %41 = tpu.dynamic_rotate %40 by %c31_i32 dim 0 : vector<32x32xf32>, i32 -> vector<32x32xf32>
    %cst_17 = arith.constant 0.000000e+00 : f32
    %42 = vector.shape_cast %12 : vector<32x1xi1> to vector<32x1xi1>
    %43 = vector.broadcast %42 : vector<32x1xi1> to vector<32x32xi1>
    %44 = vector.broadcast %cst_17 : f32 to vector<32x32xf32>
    %45 = arith.select %43, %41, %44 : vector<32x32xi1>, vector<32x32xf32>
    %46 = arith.addf %36, %45 : vector<32x32xf32>
    %47 = vector.extract_strided_slice %13 {offsets = [1, 0], sizes = [1, 32], strides = [1, 1]} : vector<3x32xf32> to vector<1x32xf32>
    %48 = vector.broadcast %47 : vector<1x32xf32> to vector<32x32xf32>
    %49 = arith.addf %46, %48 : vector<32x32xf32>
    %50 = arith.addf %22, %49 : vector<32x32xf32>
    %c0_18 = arith.constant 0 : index
    %c0_19 = arith.constant 0 : index
    %51 = vector.load %arg8[%c0_18, %c0_19] : memref<96x32xbf16, #tpu.memory_space<vmem>>, vector<96x32xbf16>
    %52 = vector.extract_strided_slice %13 {offsets = [2, 0], sizes = [1, 32], strides = [1, 1]} : vector<3x32xf32> to vector<1x32xf32>
    %c1_i32_20 = arith.constant 1 : i32
    %53 = tpu.dynamic_rotate %50 by %c1_i32_20 dim 0 : vector<32x32xf32>, i32 -> vector<32x32xf32>
    %cst_21 = arith.constant 0.000000e+00 : f32
    %54 = vector.shape_cast %8 : vector<32x1xi1> to vector<32x1xi1>
    %55 = vector.broadcast %54 : vector<32x1xi1> to vector<32x32xi1>
    %56 = vector.broadcast %cst_21 : f32 to vector<32x32xf32>
    %57 = arith.select %55, %53, %56 : vector<32x32xi1>, vector<32x32xf32>
    %c31_i32_22 = arith.constant 31 : i32
    %58 = tpu.dynamic_rotate %50 by %c31_i32_22 dim 0 : vector<32x32xf32>, i32 -> vector<32x32xf32>
    %cst_23 = arith.constant 0.000000e+00 : f32
    %59 = vector.shape_cast %12 : vector<32x1xi1> to vector<32x1xi1>
    %60 = vector.broadcast %59 : vector<32x1xi1> to vector<32x32xi1>
    %61 = vector.broadcast %cst_23 : f32 to vector<32x32xf32>
    %62 = arith.select %60, %58, %61 : vector<32x32xi1>, vector<32x32xf32>
    %63 = tpu.concatenate %57, %50, %62 in 1 : vector<32x32xf32>, vector<32x32xf32>, vector<32x32xf32> -> vector<32x96xf32>
    %64 = arith.truncf %63 : vector<32x96xf32> to vector<32x96xbf16>
    %cst_24 = arith.constant dense<0.000000e+00> : vector<32x32xf32>
    %65 = tpu.matmul %64, %51, %cst_24 {dimension_numbers = #tpu.dot_dimension_numbers<[1], [0], [0], [1], [0, 0, 1, 1], [], []>} : vector<32x96xbf16>, vector<96x32xbf16>, vector<32x32xf32> -> vector<32x32xf32>
    %66 = vector.broadcast %52 : vector<1x32xf32> to vector<32x32xf32>
    %67 = arith.addf %65, %66 : vector<32x32xf32>
    %68 = vector.broadcast %1 : vector<32x1xf32> to vector<32x32xf32>
    %69 = arith.mulf %67, %68 : vector<32x32xf32>
    %70 = vector.broadcast %1 : vector<32x1xf32> to vector<32x32xf32>
    %71 = arith.mulf %69, %70 : vector<32x32xf32>
    %72 = arith.truncf %71 : vector<32x32xf32> to vector<32x32xbf16>
    %c0_25 = arith.constant 0 : index
    %c0_26 = arith.constant 0 : index
    %c0_27 = arith.constant 0 : index
    %73 = vector.load %arg10[%c0_25, %c0_26, %c0_27] : memref<2x32x768xbf16, #tpu.memory_space<vmem>>, vector<1x32x768xbf16>
    %74 = vector.shape_cast %73 : vector<1x32x768xbf16> to vector<32x768xbf16>
    %cst_28 = arith.constant dense<0.000000e+00> : vector<32x768xf32>
    %75 = tpu.matmul %72, %74, %cst_28 {dimension_numbers = #tpu.dot_dimension_numbers<[1], [0], [0], [1], [0, 0, 1, 1], [], []>} : vector<32x32xbf16>, vector<32x768xbf16>, vector<32x768xf32> -> vector<32x768xf32>
    %c0_29 = arith.constant 0 : index
    %c0_30 = arith.constant 0 : index
    %c0_31 = arith.constant 0 : index
    %76 = vector.load %arg11[%c0_29, %c0_30, %c0_31] : memref<2x1x768xf32, #tpu.memory_space<vmem>>, vector<1x1x768xf32>
    %77 = vector.shape_cast %76 : vector<1x1x768xf32> to vector<1x768xf32>
    %78 = vector.broadcast %77 : vector<1x768xf32> to vector<32x768xf32>
    %79 = arith.addf %75, %78 : vector<32x768xf32>
    %80 = vector.shape_cast %79 : vector<32x768xf32> to vector<2x16x768xf32>
    %c0_32 = arith.constant 0 : index
    %c0_33 = arith.constant 0 : index
    %c0_34 = arith.constant 0 : index
    %81 = vector.load %arg12[%c0_32, %c0_33, %c0_34] : memref<2x256x32xbf16, #tpu.memory_space<vmem>>, vector<1x256x32xbf16>
    %82 = vector.shape_cast %81 : vector<1x256x32xbf16> to vector<256x32xbf16>
    %c0_35 = arith.constant 0 : index
    %c0_36 = arith.constant 0 : index
    %c0_37 = arith.constant 0 : index
    %83 = vector.load %arg13[%c0_35, %c0_36, %c0_37] : memref<2x1x32xf32, #tpu.memory_space<vmem>>, vector<1x1x32xf32>
    %84 = vector.shape_cast %83 : vector<1x1x32xf32> to vector<1x32xf32>
    %85 = vector.extract_strided_slice %80 {offsets = [0, 0, 0], sizes = [2, 16, 128], strides = [1, 1, 1]} : vector<2x16x768xf32> to vector<2x16x128xf32>
    %86 = arith.truncf %85 : vector<2x16x128xf32> to vector<2x16x128xbf16>
    %87 = vector.extract_strided_slice %80 {offsets = [0, 0, 128], sizes = [2, 16, 128], strides = [1, 1, 1]} : vector<2x16x768xf32> to vector<2x16x128xf32>
    %88 = arith.truncf %87 : vector<2x16x128xf32> to vector<2x16x128xbf16>
    %89 = vector.extract_strided_slice %80 {offsets = [0, 0, 256], sizes = [2, 16, 128], strides = [1, 1, 1]} : vector<2x16x768xf32> to vector<2x16x128xf32>
    %90 = arith.truncf %89 : vector<2x16x128xf32> to vector<2x16x128xbf16>
    "tpu.trace_start"() <{level = 10 : i32, message = "bqd,bkd->bqk"}> : () -> ()
    %cst_38 = arith.constant dense<0.000000e+00> : vector<2x16x16xf32>
    %91 = tpu.matmul %86, %88, %cst_38 {dimension_numbers = #tpu.dot_dimension_numbers<[2], [2], [1], [1], [0, 0, 0, 1, 1, 1], [0], [0]>} : vector<2x16x128xbf16>, vector<2x16x128xbf16>, vector<2x16x16xf32> -> vector<2x16x16xf32>
    %cst_39 = arith.constant -1.000000e+04 : f32
    "tpu.trace_stop"() : () -> ()
    %92 = vector.shape_cast %6 : vector<1x16x16xi1> to vector<1x16x16xi1>
    %93 = vector.broadcast %92 : vector<1x16x16xi1> to vector<2x16x16xi1>
    %94 = vector.broadcast %cst_39 : f32 to vector<2x16x16xf32>
    %95 = arith.select %93, %91, %94 : vector<2x16x16xi1>, vector<2x16x16xf32>
    %cst_40 = arith.constant dense<0xFF800000> : vector<2x16xf32>
    %96 = vector.multi_reduction <maximumf>, %95, %cst_40 [2] : vector<2x16x16xf32> to vector<2x16xf32>
    %97 = vector.shape_cast %96 : vector<2x16xf32> to vector<2x16x1xf32>
    %98 = vector.broadcast %97 : vector<2x16x1xf32> to vector<2x16x16xf32>
    %99 = arith.subf %95, %98 : vector<2x16x16xf32>
    %100 = math.exp %99 : vector<2x16x16xf32>
    %cst_41 = arith.constant dense<0.000000e+00> : vector<2x16xf32>
    %101 = vector.multi_reduction <add>, %100, %cst_41 [2] : vector<2x16x16xf32> to vector<2x16xf32>
    %102 = vector.shape_cast %101 : vector<2x16xf32> to vector<2x16x1xf32>
    %103 = tpu.reciprocal %102 {approx = true} : vector<2x16x1xf32> -> vector<2x16x1xf32>
    %104 = vector.broadcast %103 : vector<2x16x1xf32> to vector<2x16x16xf32>
    %105 = arith.mulf %100, %104 : vector<2x16x16xf32>
    %106 = arith.truncf %105 : vector<2x16x16xf32> to vector<2x16x16xbf16>
    "tpu.trace_start"() <{level = 10 : i32, message = "bqk,bkd->bqd"}> : () -> ()
    %cst_42 = arith.constant dense<0.000000e+00> : vector<2x16x128xf32>
    %107 = tpu.matmul %106, %90, %cst_42 {dimension_numbers = #tpu.dot_dimension_numbers<[2], [1], [1], [2], [0, 0, 0, 1, 1, 2], [0], [0]>} : vector<2x16x16xbf16>, vector<2x16x128xbf16>, vector<2x16x128xf32> -> vector<2x16x128xf32>
    "tpu.trace_stop"() : () -> ()
    %108 = vector.shape_cast %107 : vector<2x16x128xf32> to vector<32x128xf32>
    %109 = arith.truncf %108 : vector<32x128xf32> to vector<32x128xbf16>
    %110 = vector.extract_strided_slice %82 {offsets = [0, 0], sizes = [128, 32], strides = [1, 1]} : vector<256x32xbf16> to vector<128x32xbf16>
    %cst_43 = arith.constant dense<0.000000e+00> : vector<32x32xf32>
    %111 = tpu.matmul %109, %110, %cst_43 {dimension_numbers = #tpu.dot_dimension_numbers<[1], [0], [0], [1], [0, 0, 1, 1], [], []>} : vector<32x128xbf16>, vector<128x32xbf16>, vector<32x32xf32> -> vector<32x32xf32>
    %112 = vector.broadcast %84 : vector<1x32xf32> to vector<32x32xf32>
    %113 = arith.addf %112, %111 : vector<32x32xf32>
    %114 = vector.extract_strided_slice %80 {offsets = [0, 0, 384], sizes = [2, 16, 128], strides = [1, 1, 1]} : vector<2x16x768xf32> to vector<2x16x128xf32>
    %115 = arith.truncf %114 : vector<2x16x128xf32> to vector<2x16x128xbf16>
    %116 = vector.extract_strided_slice %80 {offsets = [0, 0, 512], sizes = [2, 16, 128], strides = [1, 1, 1]} : vector<2x16x768xf32> to vector<2x16x128xf32>
    %117 = arith.truncf %116 : vector<2x16x128xf32> to vector<2x16x128xbf16>
    %118 = vector.extract_strided_slice %80 {offsets = [0, 0, 640], sizes = [2, 16, 128], strides = [1, 1, 1]} : vector<2x16x768xf32> to vector<2x16x128xf32>
    %119 = arith.truncf %118 : vector<2x16x128xf32> to vector<2x16x128xbf16>
    "tpu.trace_start"() <{level = 10 : i32, message = "bqd,bkd->bqk"}> : () -> ()
    %cst_44 = arith.constant dense<0.000000e+00> : vector<2x16x16xf32>
    %120 = tpu.matmul %115, %117, %cst_44 {dimension_numbers = #tpu.dot_dimension_numbers<[2], [2], [1], [1], [0, 0, 0, 1, 1, 1], [0], [0]>} : vector<2x16x128xbf16>, vector<2x16x128xbf16>, vector<2x16x16xf32> -> vector<2x16x16xf32>
    %cst_45 = arith.constant -1.000000e+04 : f32
    "tpu.trace_stop"() : () -> ()
    %121 = vector.shape_cast %6 : vector<1x16x16xi1> to vector<1x16x16xi1>
    %122 = vector.broadcast %121 : vector<1x16x16xi1> to vector<2x16x16xi1>
    %123 = vector.broadcast %cst_45 : f32 to vector<2x16x16xf32>
    %124 = arith.select %122, %120, %123 : vector<2x16x16xi1>, vector<2x16x16xf32>
    %cst_46 = arith.constant dense<0xFF800000> : vector<2x16xf32>
    %125 = vector.multi_reduction <maximumf>, %124, %cst_46 [2] : vector<2x16x16xf32> to vector<2x16xf32>
    %126 = vector.shape_cast %125 : vector<2x16xf32> to vector<2x16x1xf32>
    %127 = vector.broadcast %126 : vector<2x16x1xf32> to vector<2x16x16xf32>
    %128 = arith.subf %124, %127 : vector<2x16x16xf32>
    %129 = math.exp %128 : vector<2x16x16xf32>
    %cst_47 = arith.constant dense<0.000000e+00> : vector<2x16xf32>
    %130 = vector.multi_reduction <add>, %129, %cst_47 [2] : vector<2x16x16xf32> to vector<2x16xf32>
    %131 = vector.shape_cast %130 : vector<2x16xf32> to vector<2x16x1xf32>
    %132 = tpu.reciprocal %131 {approx = true} : vector<2x16x1xf32> -> vector<2x16x1xf32>
    %133 = vector.broadcast %132 : vector<2x16x1xf32> to vector<2x16x16xf32>
    %134 = arith.mulf %129, %133 : vector<2x16x16xf32>
    %135 = arith.truncf %134 : vector<2x16x16xf32> to vector<2x16x16xbf16>
    "tpu.trace_start"() <{level = 10 : i32, message = "bqk,bkd->bqd"}> : () -> ()
    %cst_48 = arith.constant dense<0.000000e+00> : vector<2x16x128xf32>
    %136 = tpu.matmul %135, %119, %cst_48 {dimension_numbers = #tpu.dot_dimension_numbers<[2], [1], [1], [2], [0, 0, 0, 1, 1, 2], [0], [0]>} : vector<2x16x16xbf16>, vector<2x16x128xbf16>, vector<2x16x128xf32> -> vector<2x16x128xf32>
    "tpu.trace_stop"() : () -> ()
    %137 = vector.shape_cast %136 : vector<2x16x128xf32> to vector<32x128xf32>
    %138 = arith.truncf %137 : vector<32x128xf32> to vector<32x128xbf16>
    %139 = vector.extract_strided_slice %82 {offsets = [128, 0], sizes = [128, 32], strides = [1, 1]} : vector<256x32xbf16> to vector<128x32xbf16>
    %cst_49 = arith.constant dense<0.000000e+00> : vector<32x32xf32>
    %140 = tpu.matmul %138, %139, %cst_49 {dimension_numbers = #tpu.dot_dimension_numbers<[1], [0], [0], [1], [0, 0, 1, 1], [], []>} : vector<32x128xbf16>, vector<128x32xbf16>, vector<32x32xf32> -> vector<32x32xf32>
    %141 = arith.addf %113, %140 : vector<32x32xf32>
    %c0_50 = arith.constant 0 : index
    %c0_51 = arith.constant 0 : index
    %c0_52 = arith.constant 0 : index
    %c0_53 = arith.constant 0 : index
    %142 = vector.load %arg14[%c0_50, %c0_51, %c0_52, %c0_53] : memref<2x4x1x32xf32, #tpu.memory_space<vmem>>, vector<1x4x1x32xf32>
    %143 = vector.shape_cast %142 : vector<1x4x1x32xf32> to vector<4x1x32xf32>
    %144 = arith.addf %71, %141 : vector<32x32xf32>
    %145 = vector.extract_strided_slice %143 {offsets = [0, 0, 0], sizes = [1, 1, 32], strides = [1, 1, 1]} : vector<4x1x32xf32> to vector<1x1x32xf32>
    %146 = vector.shape_cast %145 : vector<1x1x32xf32> to vector<1x32xf32>
    %147 = vector.extract_strided_slice %143 {offsets = [1, 0, 0], sizes = [1, 1, 32], strides = [1, 1, 1]} : vector<4x1x32xf32> to vector<1x1x32xf32>
    %148 = vector.shape_cast %147 : vector<1x1x32xf32> to vector<1x32xf32>
    %cst_54 = arith.constant dense<0.000000e+00> : vector<32xf32>
    %149 = vector.multi_reduction <add>, %144, %cst_54 [1] : vector<32x32xf32> to vector<32xf32>
    %150 = vector.shape_cast %149 : vector<32xf32> to vector<32x1xf32>
    %cst_55 = arith.constant 3.200000e+01 : f32
    %151 = vector.broadcast %cst_55 : f32 to vector<32x1xf32>
    %152 = arith.divf %150, %151 : vector<32x1xf32>
    %153 = vector.broadcast %152 : vector<32x1xf32> to vector<32x32xf32>
    %154 = arith.subf %144, %153 : vector<32x32xf32>
    %155 = arith.mulf %154, %154 : vector<32x32xf32>
    %cst_56 = arith.constant dense<0.000000e+00> : vector<32xf32>
    %156 = vector.multi_reduction <add>, %155, %cst_56 [1] : vector<32x32xf32> to vector<32xf32>
    %157 = vector.shape_cast %156 : vector<32xf32> to vector<32x1xf32>
    %cst_57 = arith.constant 3.200000e+01 : f32
    %158 = vector.broadcast %cst_57 : f32 to vector<32x1xf32>
    %159 = arith.divf %157, %158 : vector<32x1xf32>
    %160 = vector.broadcast %152 : vector<32x1xf32> to vector<32x32xf32>
    %161 = arith.subf %144, %160 : vector<32x32xf32>
    %cst_58 = arith.constant 9.99999974E-6 : f32
    %162 = vector.broadcast %cst_58 : f32 to vector<32x1xf32>
    %163 = arith.addf %159, %162 : vector<32x1xf32>
    %164 = math.rsqrt %163 : vector<32x1xf32>
    %165 = vector.broadcast %164 : vector<32x1xf32> to vector<32x32xf32>
    %166 = arith.mulf %161, %165 : vector<32x32xf32>
    %167 = vector.broadcast %146 : vector<1x32xf32> to vector<32x32xf32>
    %168 = arith.mulf %166, %167 : vector<32x32xf32>
    %169 = vector.broadcast %148 : vector<1x32xf32> to vector<32x32xf32>
    %170 = arith.addf %168, %169 : vector<32x32xf32>
    %171 = vector.broadcast %1 : vector<32x1xf32> to vector<32x32xf32>
    %172 = arith.mulf %170, %171 : vector<32x32xf32>
    %c0_59 = arith.constant 0 : index
    %c0_60 = arith.constant 0 : index
    %c0_61 = arith.constant 0 : index
    %173 = vector.load %arg15[%c0_59, %c0_60, %c0_61] : memref<2x96x64xbf16, #tpu.memory_space<vmem>>, vector<1x96x64xbf16>
    %174 = vector.shape_cast %173 : vector<1x96x64xbf16> to vector<96x64xbf16>
    %c0_62 = arith.constant 0 : index
    %c0_63 = arith.constant 0 : index
    %c0_64 = arith.constant 0 : index
    %175 = vector.load %arg16[%c0_62, %c0_63, %c0_64] : memref<2x1x64xf32, #tpu.memory_space<vmem>>, vector<1x1x64xf32>
    %176 = vector.shape_cast %175 : vector<1x1x64xf32> to vector<1x64xf32>
    %c2_i32_65 = arith.constant 2 : i32
    %177 = tpu.dynamic_rotate %172 by %c2_i32_65 dim 0 : vector<32x32xf32>, i32 -> vector<32x32xf32>
    %cst_66 = arith.constant 0.000000e+00 : f32
    %178 = vector.shape_cast %10 : vector<32x1xi1> to vector<32x1xi1>
    %179 = vector.broadcast %178 : vector<32x1xi1> to vector<32x32xi1>
    %180 = vector.broadcast %cst_66 : f32 to vector<32x32xf32>
    %181 = arith.select %179, %177, %180 : vector<32x32xi1>, vector<32x32xf32>
    %c1_i32_67 = arith.constant 1 : i32
    %182 = tpu.dynamic_rotate %172 by %c1_i32_67 dim 0 : vector<32x32xf32>, i32 -> vector<32x32xf32>
    %cst_68 = arith.constant 0.000000e+00 : f32
    %183 = vector.shape_cast %8 : vector<32x1xi1> to vector<32x1xi1>
    %184 = vector.broadcast %183 : vector<32x1xi1> to vector<32x32xi1>
    %185 = vector.broadcast %cst_68 : f32 to vector<32x32xf32>
    %186 = arith.select %184, %182, %185 : vector<32x32xi1>, vector<32x32xf32>
    %187 = tpu.concatenate %181, %186, %172 in 1 : vector<32x32xf32>, vector<32x32xf32>, vector<32x32xf32> -> vector<32x96xf32>
    %188 = arith.truncf %187 : vector<32x96xf32> to vector<32x96xbf16>
    %cst_69 = arith.constant dense<0.000000e+00> : vector<32x64xf32>
    %189 = tpu.matmul %188, %174, %cst_69 {dimension_numbers = #tpu.dot_dimension_numbers<[1], [0], [0], [1], [0, 0, 1, 1], [], []>} : vector<32x96xbf16>, vector<96x64xbf16>, vector<32x64xf32> -> vector<32x64xf32>
    %190 = vector.broadcast %176 : vector<1x64xf32> to vector<32x64xf32>
    %191 = arith.addf %189, %190 : vector<32x64xf32>
    %cst_70 = arith.constant 0.000000e+00 : f32
    %192 = vector.broadcast %cst_70 : f32 to vector<32x64xf32>
    %193 = arith.maximumf %191, %192 : vector<32x64xf32>
    %194 = vector.broadcast %1 : vector<32x1xf32> to vector<32x64xf32>
    %195 = arith.mulf %193, %194 : vector<32x64xf32>
    %c0_71 = arith.constant 0 : index
    %c0_72 = arith.constant 0 : index
    %c0_73 = arith.constant 0 : index
    %196 = vector.load %arg17[%c0_71, %c0_72, %c0_73] : memref<2x192x32xbf16, #tpu.memory_space<vmem>>, vector<1x192x32xbf16>
    %197 = vector.shape_cast %196 : vector<1x192x32xbf16> to vector<192x32xbf16>
    %c0_74 = arith.constant 0 : index
    %c0_75 = arith.constant 0 : index
    %c0_76 = arith.constant 0 : index
    %198 = vector.load %arg18[%c0_74, %c0_75, %c0_76] : memref<2x1x32xf32, #tpu.memory_space<vmem>>, vector<1x1x32xf32>
    %199 = vector.shape_cast %198 : vector<1x1x32xf32> to vector<1x32xf32>
    %c2_i32_77 = arith.constant 2 : i32
    %200 = tpu.dynamic_rotate %195 by %c2_i32_77 dim 0 : vector<32x64xf32>, i32 -> vector<32x64xf32>
    %cst_78 = arith.constant 0.000000e+00 : f32
    %201 = vector.shape_cast %10 : vector<32x1xi1> to vector<32x1xi1>
    %202 = vector.broadcast %201 : vector<32x1xi1> to vector<32x64xi1>
    %203 = vector.broadcast %cst_78 : f32 to vector<32x64xf32>
    %204 = arith.select %202, %200, %203 : vector<32x64xi1>, vector<32x64xf32>
    %c1_i32_79 = arith.constant 1 : i32
    %205 = tpu.dynamic_rotate %195 by %c1_i32_79 dim 0 : vector<32x64xf32>, i32 -> vector<32x64xf32>
    %cst_80 = arith.constant 0.000000e+00 : f32
    %206 = vector.shape_cast %8 : vector<32x1xi1> to vector<32x1xi1>
    %207 = vector.broadcast %206 : vector<32x1xi1> to vector<32x64xi1>
    %208 = vector.broadcast %cst_80 : f32 to vector<32x64xf32>
    %209 = arith.select %207, %205, %208 : vector<32x64xi1>, vector<32x64xf32>
    %210 = tpu.concatenate %204, %209, %195 in 1 : vector<32x64xf32>, vector<32x64xf32>, vector<32x64xf32> -> vector<32x192xf32>
    %211 = arith.truncf %210 : vector<32x192xf32> to vector<32x192xbf16>
    %cst_81 = arith.constant dense<0.000000e+00> : vector<32x32xf32>
    %212 = tpu.matmul %211, %197, %cst_81 {dimension_numbers = #tpu.dot_dimension_numbers<[1], [0], [0], [1], [0, 0, 1, 1], [], []>} : vector<32x192xbf16>, vector<192x32xbf16>, vector<32x32xf32> -> vector<32x32xf32>
    %213 = vector.broadcast %199 : vector<1x32xf32> to vector<32x32xf32>
    %214 = arith.addf %212, %213 : vector<32x32xf32>
    %215 = vector.broadcast %1 : vector<32x1xf32> to vector<32x32xf32>
    %216 = arith.mulf %214, %215 : vector<32x32xf32>
    %217 = arith.addf %170, %216 : vector<32x32xf32>
    %218 = vector.extract_strided_slice %143 {offsets = [2, 0, 0], sizes = [1, 1, 32], strides = [1, 1, 1]} : vector<4x1x32xf32> to vector<1x1x32xf32>
    %219 = vector.shape_cast %218 : vector<1x1x32xf32> to vector<1x32xf32>
    %220 = vector.extract_strided_slice %143 {offsets = [3, 0, 0], sizes = [1, 1, 32], strides = [1, 1, 1]} : vector<4x1x32xf32> to vector<1x1x32xf32>
    %221 = vector.shape_cast %220 : vector<1x1x32xf32> to vector<1x32xf32>
    %cst_82 = arith.constant dense<0.000000e+00> : vector<32xf32>
    %222 = vector.multi_reduction <add>, %217, %cst_82 [1] : vector<32x32xf32> to vector<32xf32>
    %223 = vector.shape_cast %222 : vector<32xf32> to vector<32x1xf32>
    %cst_83 = arith.constant 3.200000e+01 : f32
    %224 = vector.broadcast %cst_83 : f32 to vector<32x1xf32>
    %225 = arith.divf %223, %224 : vector<32x1xf32>
    %226 = vector.broadcast %225 : vector<32x1xf32> to vector<32x32xf32>
    %227 = arith.subf %217, %226 : vector<32x32xf32>
    %228 = arith.mulf %227, %227 : vector<32x32xf32>
    %cst_84 = arith.constant dense<0.000000e+00> : vector<32xf32>
    %229 = vector.multi_reduction <add>, %228, %cst_84 [1] : vector<32x32xf32> to vector<32xf32>
    %230 = vector.shape_cast %229 : vector<32xf32> to vector<32x1xf32>
    %cst_85 = arith.constant 3.200000e+01 : f32
    %231 = vector.broadcast %cst_85 : f32 to vector<32x1xf32>
    %232 = arith.divf %230, %231 : vector<32x1xf32>
    %233 = vector.broadcast %225 : vector<32x1xf32> to vector<32x32xf32>
    %234 = arith.subf %217, %233 : vector<32x32xf32>
    %cst_86 = arith.constant 9.99999974E-6 : f32
    %235 = vector.broadcast %cst_86 : f32 to vector<32x1xf32>
    %236 = arith.addf %232, %235 : vector<32x1xf32>
    %237 = math.rsqrt %236 : vector<32x1xf32>
    %238 = vector.broadcast %237 : vector<32x1xf32> to vector<32x32xf32>
    %239 = arith.mulf %234, %238 : vector<32x32xf32>
    %240 = vector.broadcast %219 : vector<1x32xf32> to vector<32x32xf32>
    %241 = arith.mulf %239, %240 : vector<32x32xf32>
    %242 = vector.broadcast %221 : vector<1x32xf32> to vector<32x32xf32>
    %243 = arith.addf %241, %242 : vector<32x32xf32>
    %244 = arith.truncf %243 : vector<32x32xf32> to vector<32x32xbf16>
    %c1 = arith.constant 1 : index
    %c0_87 = arith.constant 0 : index
    %c0_88 = arith.constant 0 : index
    %245 = vector.load %arg10[%c1, %c0_87, %c0_88] : memref<2x32x768xbf16, #tpu.memory_space<vmem>>, vector<1x32x768xbf16>
    %246 = vector.shape_cast %245 : vector<1x32x768xbf16> to vector<32x768xbf16>
    %cst_89 = arith.constant dense<0.000000e+00> : vector<32x768xf32>
    %247 = tpu.matmul %244, %246, %cst_89 {dimension_numbers = #tpu.dot_dimension_numbers<[1], [0], [0], [1], [0, 0, 1, 1], [], []>} : vector<32x32xbf16>, vector<32x768xbf16>, vector<32x768xf32> -> vector<32x768xf32>
    %c1_90 = arith.constant 1 : index
    %c0_91 = arith.constant 0 : index
    %c0_92 = arith.constant 0 : index
    %248 = vector.load %arg11[%c1_90, %c0_91, %c0_92] : memref<2x1x768xf32, #tpu.memory_space<vmem>>, vector<1x1x768xf32>
    %249 = vector.shape_cast %248 : vector<1x1x768xf32> to vector<1x768xf32>
    %250 = vector.broadcast %249 : vector<1x768xf32> to vector<32x768xf32>
    %251 = arith.addf %247, %250 : vector<32x768xf32>
    %252 = vector.shape_cast %251 : vector<32x768xf32> to vector<2x16x768xf32>
    %c1_93 = arith.constant 1 : index
    %c0_94 = arith.constant 0 : index
    %c0_95 = arith.constant 0 : index
    %253 = vector.load %arg12[%c1_93, %c0_94, %c0_95] : memref<2x256x32xbf16, #tpu.memory_space<vmem>>, vector<1x256x32xbf16>
    %254 = vector.shape_cast %253 : vector<1x256x32xbf16> to vector<256x32xbf16>
    %c1_96 = arith.constant 1 : index
    %c0_97 = arith.constant 0 : index
    %c0_98 = arith.constant 0 : index
    %255 = vector.load %arg13[%c1_96, %c0_97, %c0_98] : memref<2x1x32xf32, #tpu.memory_space<vmem>>, vector<1x1x32xf32>
    %256 = vector.shape_cast %255 : vector<1x1x32xf32> to vector<1x32xf32>
    %257 = vector.extract_strided_slice %252 {offsets = [0, 0, 0], sizes = [2, 16, 128], strides = [1, 1, 1]} : vector<2x16x768xf32> to vector<2x16x128xf32>
    %258 = arith.truncf %257 : vector<2x16x128xf32> to vector<2x16x128xbf16>
    %259 = vector.extract_strided_slice %252 {offsets = [0, 0, 128], sizes = [2, 16, 128], strides = [1, 1, 1]} : vector<2x16x768xf32> to vector<2x16x128xf32>
    %260 = arith.truncf %259 : vector<2x16x128xf32> to vector<2x16x128xbf16>
    %261 = vector.extract_strided_slice %252 {offsets = [0, 0, 256], sizes = [2, 16, 128], strides = [1, 1, 1]} : vector<2x16x768xf32> to vector<2x16x128xf32>
    %262 = arith.truncf %261 : vector<2x16x128xf32> to vector<2x16x128xbf16>
    "tpu.trace_start"() <{level = 10 : i32, message = "bqd,bkd->bqk"}> : () -> ()
    %cst_99 = arith.constant dense<0.000000e+00> : vector<2x16x16xf32>
    %263 = tpu.matmul %258, %260, %cst_99 {dimension_numbers = #tpu.dot_dimension_numbers<[2], [2], [1], [1], [0, 0, 0, 1, 1, 1], [0], [0]>} : vector<2x16x128xbf16>, vector<2x16x128xbf16>, vector<2x16x16xf32> -> vector<2x16x16xf32>
    %cst_100 = arith.constant -1.000000e+04 : f32
    "tpu.trace_stop"() : () -> ()
    %264 = vector.shape_cast %6 : vector<1x16x16xi1> to vector<1x16x16xi1>
    %265 = vector.broadcast %264 : vector<1x16x16xi1> to vector<2x16x16xi1>
    %266 = vector.broadcast %cst_100 : f32 to vector<2x16x16xf32>
    %267 = arith.select %265, %263, %266 : vector<2x16x16xi1>, vector<2x16x16xf32>
    %cst_101 = arith.constant dense<0xFF800000> : vector<2x16xf32>
    %268 = vector.multi_reduction <maximumf>, %267, %cst_101 [2] : vector<2x16x16xf32> to vector<2x16xf32>
    %269 = vector.shape_cast %268 : vector<2x16xf32> to vector<2x16x1xf32>
    %270 = vector.broadcast %269 : vector<2x16x1xf32> to vector<2x16x16xf32>
    %271 = arith.subf %267, %270 : vector<2x16x16xf32>
    %272 = math.exp %271 : vector<2x16x16xf32>
    %cst_102 = arith.constant dense<0.000000e+00> : vector<2x16xf32>
    %273 = vector.multi_reduction <add>, %272, %cst_102 [2] : vector<2x16x16xf32> to vector<2x16xf32>
    %274 = vector.shape_cast %273 : vector<2x16xf32> to vector<2x16x1xf32>
    %275 = tpu.reciprocal %274 {approx = true} : vector<2x16x1xf32> -> vector<2x16x1xf32>
    %276 = vector.broadcast %275 : vector<2x16x1xf32> to vector<2x16x16xf32>
    %277 = arith.mulf %272, %276 : vector<2x16x16xf32>
    %278 = arith.truncf %277 : vector<2x16x16xf32> to vector<2x16x16xbf16>
    "tpu.trace_start"() <{level = 10 : i32, message = "bqk,bkd->bqd"}> : () -> ()
    %cst_103 = arith.constant dense<0.000000e+00> : vector<2x16x128xf32>
    %279 = tpu.matmul %278, %262, %cst_103 {dimension_numbers = #tpu.dot_dimension_numbers<[2], [1], [1], [2], [0, 0, 0, 1, 1, 2], [0], [0]>} : vector<2x16x16xbf16>, vector<2x16x128xbf16>, vector<2x16x128xf32> -> vector<2x16x128xf32>
    "tpu.trace_stop"() : () -> ()
    %280 = vector.shape_cast %279 : vector<2x16x128xf32> to vector<32x128xf32>
    %281 = arith.truncf %280 : vector<32x128xf32> to vector<32x128xbf16>
    %282 = vector.extract_strided_slice %254 {offsets = [0, 0], sizes = [128, 32], strides = [1, 1]} : vector<256x32xbf16> to vector<128x32xbf16>
    %cst_104 = arith.constant dense<0.000000e+00> : vector<32x32xf32>
    %283 = tpu.matmul %281, %282, %cst_104 {dimension_numbers = #tpu.dot_dimension_numbers<[1], [0], [0], [1], [0, 0, 1, 1], [], []>} : vector<32x128xbf16>, vector<128x32xbf16>, vector<32x32xf32> -> vector<32x32xf32>
    %284 = vector.broadcast %256 : vector<1x32xf32> to vector<32x32xf32>
    %285 = arith.addf %284, %283 : vector<32x32xf32>
    %286 = vector.extract_strided_slice %252 {offsets = [0, 0, 384], sizes = [2, 16, 128], strides = [1, 1, 1]} : vector<2x16x768xf32> to vector<2x16x128xf32>
    %287 = arith.truncf %286 : vector<2x16x128xf32> to vector<2x16x128xbf16>
    %288 = vector.extract_strided_slice %252 {offsets = [0, 0, 512], sizes = [2, 16, 128], strides = [1, 1, 1]} : vector<2x16x768xf32> to vector<2x16x128xf32>
    %289 = arith.truncf %288 : vector<2x16x128xf32> to vector<2x16x128xbf16>
    %290 = vector.extract_strided_slice %252 {offsets = [0, 0, 640], sizes = [2, 16, 128], strides = [1, 1, 1]} : vector<2x16x768xf32> to vector<2x16x128xf32>
    %291 = arith.truncf %290 : vector<2x16x128xf32> to vector<2x16x128xbf16>
    "tpu.trace_start"() <{level = 10 : i32, message = "bqd,bkd->bqk"}> : () -> ()
    %cst_105 = arith.constant dense<0.000000e+00> : vector<2x16x16xf32>
    %292 = tpu.matmul %287, %289, %cst_105 {dimension_numbers = #tpu.dot_dimension_numbers<[2], [2], [1], [1], [0, 0, 0, 1, 1, 1], [0], [0]>} : vector<2x16x128xbf16>, vector<2x16x128xbf16>, vector<2x16x16xf32> -> vector<2x16x16xf32>
    %cst_106 = arith.constant -1.000000e+04 : f32
    "tpu.trace_stop"() : () -> ()
    %293 = vector.shape_cast %6 : vector<1x16x16xi1> to vector<1x16x16xi1>
    %294 = vector.broadcast %293 : vector<1x16x16xi1> to vector<2x16x16xi1>
    %295 = vector.broadcast %cst_106 : f32 to vector<2x16x16xf32>
    %296 = arith.select %294, %292, %295 : vector<2x16x16xi1>, vector<2x16x16xf32>
    %cst_107 = arith.constant dense<0xFF800000> : vector<2x16xf32>
    %297 = vector.multi_reduction <maximumf>, %296, %cst_107 [2] : vector<2x16x16xf32> to vector<2x16xf32>
    %298 = vector.shape_cast %297 : vector<2x16xf32> to vector<2x16x1xf32>
    %299 = vector.broadcast %298 : vector<2x16x1xf32> to vector<2x16x16xf32>
    %300 = arith.subf %296, %299 : vector<2x16x16xf32>
    %301 = math.exp %300 : vector<2x16x16xf32>
    %cst_108 = arith.constant dense<0.000000e+00> : vector<2x16xf32>
    %302 = vector.multi_reduction <add>, %301, %cst_108 [2] : vector<2x16x16xf32> to vector<2x16xf32>
    %303 = vector.shape_cast %302 : vector<2x16xf32> to vector<2x16x1xf32>
    %304 = tpu.reciprocal %303 {approx = true} : vector<2x16x1xf32> -> vector<2x16x1xf32>
    %305 = vector.broadcast %304 : vector<2x16x1xf32> to vector<2x16x16xf32>
    %306 = arith.mulf %301, %305 : vector<2x16x16xf32>
    %307 = arith.truncf %306 : vector<2x16x16xf32> to vector<2x16x16xbf16>
    "tpu.trace_start"() <{level = 10 : i32, message = "bqk,bkd->bqd"}> : () -> ()
    %cst_109 = arith.constant dense<0.000000e+00> : vector<2x16x128xf32>
    %308 = tpu.matmul %307, %291, %cst_109 {dimension_numbers = #tpu.dot_dimension_numbers<[2], [1], [1], [2], [0, 0, 0, 1, 1, 2], [0], [0]>} : vector<2x16x16xbf16>, vector<2x16x128xbf16>, vector<2x16x128xf32> -> vector<2x16x128xf32>
    "tpu.trace_stop"() : () -> ()
    %309 = vector.shape_cast %308 : vector<2x16x128xf32> to vector<32x128xf32>
    %310 = arith.truncf %309 : vector<32x128xf32> to vector<32x128xbf16>
    %311 = vector.extract_strided_slice %254 {offsets = [128, 0], sizes = [128, 32], strides = [1, 1]} : vector<256x32xbf16> to vector<128x32xbf16>
    %cst_110 = arith.constant dense<0.000000e+00> : vector<32x32xf32>
    %312 = tpu.matmul %310, %311, %cst_110 {dimension_numbers = #tpu.dot_dimension_numbers<[1], [0], [0], [1], [0, 0, 1, 1], [], []>} : vector<32x128xbf16>, vector<128x32xbf16>, vector<32x32xf32> -> vector<32x32xf32>
    %313 = arith.addf %285, %312 : vector<32x32xf32>
    %c1_111 = arith.constant 1 : index
    %c0_112 = arith.constant 0 : index
    %c0_113 = arith.constant 0 : index
    %c0_114 = arith.constant 0 : index
    %314 = vector.load %arg14[%c1_111, %c0_112, %c0_113, %c0_114] : memref<2x4x1x32xf32, #tpu.memory_space<vmem>>, vector<1x4x1x32xf32>
    %315 = vector.shape_cast %314 : vector<1x4x1x32xf32> to vector<4x1x32xf32>
    %316 = arith.addf %243, %313 : vector<32x32xf32>
    %317 = vector.extract_strided_slice %315 {offsets = [0, 0, 0], sizes = [1, 1, 32], strides = [1, 1, 1]} : vector<4x1x32xf32> to vector<1x1x32xf32>
    %318 = vector.shape_cast %317 : vector<1x1x32xf32> to vector<1x32xf32>
    %319 = vector.extract_strided_slice %315 {offsets = [1, 0, 0], sizes = [1, 1, 32], strides = [1, 1, 1]} : vector<4x1x32xf32> to vector<1x1x32xf32>
    %320 = vector.shape_cast %319 : vector<1x1x32xf32> to vector<1x32xf32>
    %cst_115 = arith.constant dense<0.000000e+00> : vector<32xf32>
    %321 = vector.multi_reduction <add>, %316, %cst_115 [1] : vector<32x32xf32> to vector<32xf32>
    %322 = vector.shape_cast %321 : vector<32xf32> to vector<32x1xf32>
    %cst_116 = arith.constant 3.200000e+01 : f32
    %323 = vector.broadcast %cst_116 : f32 to vector<32x1xf32>
    %324 = arith.divf %322, %323 : vector<32x1xf32>
    %325 = vector.broadcast %324 : vector<32x1xf32> to vector<32x32xf32>
    %326 = arith.subf %316, %325 : vector<32x32xf32>
    %327 = arith.mulf %326, %326 : vector<32x32xf32>
    %cst_117 = arith.constant dense<0.000000e+00> : vector<32xf32>
    %328 = vector.multi_reduction <add>, %327, %cst_117 [1] : vector<32x32xf32> to vector<32xf32>
    %329 = vector.shape_cast %328 : vector<32xf32> to vector<32x1xf32>
    %cst_118 = arith.constant 3.200000e+01 : f32
    %330 = vector.broadcast %cst_118 : f32 to vector<32x1xf32>
    %331 = arith.divf %329, %330 : vector<32x1xf32>
    %332 = vector.broadcast %324 : vector<32x1xf32> to vector<32x32xf32>
    %333 = arith.subf %316, %332 : vector<32x32xf32>
    %cst_119 = arith.constant 9.99999974E-6 : f32
    %334 = vector.broadcast %cst_119 : f32 to vector<32x1xf32>
    %335 = arith.addf %331, %334 : vector<32x1xf32>
    %336 = math.rsqrt %335 : vector<32x1xf32>
    %337 = vector.broadcast %336 : vector<32x1xf32> to vector<32x32xf32>
    %338 = arith.mulf %333, %337 : vector<32x32xf32>
    %339 = vector.broadcast %318 : vector<1x32xf32> to vector<32x32xf32>
    %340 = arith.mulf %338, %339 : vector<32x32xf32>
    %341 = vector.broadcast %320 : vector<1x32xf32> to vector<32x32xf32>
    %342 = arith.addf %340, %341 : vector<32x32xf32>
    %343 = vector.broadcast %1 : vector<32x1xf32> to vector<32x32xf32>
    %344 = arith.mulf %342, %343 : vector<32x32xf32>
    %c1_120 = arith.constant 1 : index
    %c0_121 = arith.constant 0 : index
    %c0_122 = arith.constant 0 : index
    %345 = vector.load %arg15[%c1_120, %c0_121, %c0_122] : memref<2x96x64xbf16, #tpu.memory_space<vmem>>, vector<1x96x64xbf16>
    %346 = vector.shape_cast %345 : vector<1x96x64xbf16> to vector<96x64xbf16>
    %c1_123 = arith.constant 1 : index
    %c0_124 = arith.constant 0 : index
    %c0_125 = arith.constant 0 : index
    %347 = vector.load %arg16[%c1_123, %c0_124, %c0_125] : memref<2x1x64xf32, #tpu.memory_space<vmem>>, vector<1x1x64xf32>
    %348 = vector.shape_cast %347 : vector<1x1x64xf32> to vector<1x64xf32>
    %c2_i32_126 = arith.constant 2 : i32
    %349 = tpu.dynamic_rotate %344 by %c2_i32_126 dim 0 : vector<32x32xf32>, i32 -> vector<32x32xf32>
    %cst_127 = arith.constant 0.000000e+00 : f32
    %350 = vector.shape_cast %10 : vector<32x1xi1> to vector<32x1xi1>
    %351 = vector.broadcast %350 : vector<32x1xi1> to vector<32x32xi1>
    %352 = vector.broadcast %cst_127 : f32 to vector<32x32xf32>
    %353 = arith.select %351, %349, %352 : vector<32x32xi1>, vector<32x32xf32>
    %c1_i32_128 = arith.constant 1 : i32
    %354 = tpu.dynamic_rotate %344 by %c1_i32_128 dim 0 : vector<32x32xf32>, i32 -> vector<32x32xf32>
    %cst_129 = arith.constant 0.000000e+00 : f32
    %355 = vector.shape_cast %8 : vector<32x1xi1> to vector<32x1xi1>
    %356 = vector.broadcast %355 : vector<32x1xi1> to vector<32x32xi1>
    %357 = vector.broadcast %cst_129 : f32 to vector<32x32xf32>
    %358 = arith.select %356, %354, %357 : vector<32x32xi1>, vector<32x32xf32>
    %359 = tpu.concatenate %353, %358, %344 in 1 : vector<32x32xf32>, vector<32x32xf32>, vector<32x32xf32> -> vector<32x96xf32>
    %360 = arith.truncf %359 : vector<32x96xf32> to vector<32x96xbf16>
    %cst_130 = arith.constant dense<0.000000e+00> : vector<32x64xf32>
    %361 = tpu.matmul %360, %346, %cst_130 {dimension_numbers = #tpu.dot_dimension_numbers<[1], [0], [0], [1], [0, 0, 1, 1], [], []>} : vector<32x96xbf16>, vector<96x64xbf16>, vector<32x64xf32> -> vector<32x64xf32>
    %362 = vector.broadcast %348 : vector<1x64xf32> to vector<32x64xf32>
    %363 = arith.addf %361, %362 : vector<32x64xf32>
    %cst_131 = arith.constant 0.000000e+00 : f32
    %364 = vector.broadcast %cst_131 : f32 to vector<32x64xf32>
    %365 = arith.maximumf %363, %364 : vector<32x64xf32>
    %366 = vector.broadcast %1 : vector<32x1xf32> to vector<32x64xf32>
    %367 = arith.mulf %365, %366 : vector<32x64xf32>
    %c1_132 = arith.constant 1 : index
    %c0_133 = arith.constant 0 : index
    %c0_134 = arith.constant 0 : index
    %368 = vector.load %arg17[%c1_132, %c0_133, %c0_134] : memref<2x192x32xbf16, #tpu.memory_space<vmem>>, vector<1x192x32xbf16>
    %369 = vector.shape_cast %368 : vector<1x192x32xbf16> to vector<192x32xbf16>
    %c1_135 = arith.constant 1 : index
    %c0_136 = arith.constant 0 : index
    %c0_137 = arith.constant 0 : index
    %370 = vector.load %arg18[%c1_135, %c0_136, %c0_137] : memref<2x1x32xf32, #tpu.memory_space<vmem>>, vector<1x1x32xf32>
    %371 = vector.shape_cast %370 : vector<1x1x32xf32> to vector<1x32xf32>
    %c2_i32_138 = arith.constant 2 : i32
    %372 = tpu.dynamic_rotate %367 by %c2_i32_138 dim 0 : vector<32x64xf32>, i32 -> vector<32x64xf32>
    %cst_139 = arith.constant 0.000000e+00 : f32
    %373 = vector.shape_cast %10 : vector<32x1xi1> to vector<32x1xi1>
    %374 = vector.broadcast %373 : vector<32x1xi1> to vector<32x64xi1>
    %375 = vector.broadcast %cst_139 : f32 to vector<32x64xf32>
    %376 = arith.select %374, %372, %375 : vector<32x64xi1>, vector<32x64xf32>
    %c1_i32_140 = arith.constant 1 : i32
    %377 = tpu.dynamic_rotate %367 by %c1_i32_140 dim 0 : vector<32x64xf32>, i32 -> vector<32x64xf32>
    %cst_141 = arith.constant 0.000000e+00 : f32
    %378 = vector.shape_cast %8 : vector<32x1xi1> to vector<32x1xi1>
    %379 = vector.broadcast %378 : vector<32x1xi1> to vector<32x64xi1>
    %380 = vector.broadcast %cst_141 : f32 to vector<32x64xf32>
    %381 = arith.select %379, %377, %380 : vector<32x64xi1>, vector<32x64xf32>
    %382 = tpu.concatenate %376, %381, %367 in 1 : vector<32x64xf32>, vector<32x64xf32>, vector<32x64xf32> -> vector<32x192xf32>
    %383 = arith.truncf %382 : vector<32x192xf32> to vector<32x192xbf16>
    %cst_142 = arith.constant dense<0.000000e+00> : vector<32x32xf32>
    %384 = tpu.matmul %383, %369, %cst_142 {dimension_numbers = #tpu.dot_dimension_numbers<[1], [0], [0], [1], [0, 0, 1, 1], [], []>} : vector<32x192xbf16>, vector<192x32xbf16>, vector<32x32xf32> -> vector<32x32xf32>
    %385 = vector.broadcast %371 : vector<1x32xf32> to vector<32x32xf32>
    %386 = arith.addf %384, %385 : vector<32x32xf32>
    %387 = vector.broadcast %1 : vector<32x1xf32> to vector<32x32xf32>
    %388 = arith.mulf %386, %387 : vector<32x32xf32>
    %389 = arith.addf %342, %388 : vector<32x32xf32>
    %390 = vector.extract_strided_slice %315 {offsets = [2, 0, 0], sizes = [1, 1, 32], strides = [1, 1, 1]} : vector<4x1x32xf32> to vector<1x1x32xf32>
    %391 = vector.shape_cast %390 : vector<1x1x32xf32> to vector<1x32xf32>
    %392 = vector.extract_strided_slice %315 {offsets = [3, 0, 0], sizes = [1, 1, 32], strides = [1, 1, 1]} : vector<4x1x32xf32> to vector<1x1x32xf32>
    %393 = vector.shape_cast %392 : vector<1x1x32xf32> to vector<1x32xf32>
    %cst_143 = arith.constant dense<0.000000e+00> : vector<32xf32>
    %394 = vector.multi_reduction <add>, %389, %cst_143 [1] : vector<32x32xf32> to vector<32xf32>
    %395 = vector.shape_cast %394 : vector<32xf32> to vector<32x1xf32>
    %cst_144 = arith.constant 3.200000e+01 : f32
    %396 = vector.broadcast %cst_144 : f32 to vector<32x1xf32>
    %397 = arith.divf %395, %396 : vector<32x1xf32>
    %398 = vector.broadcast %397 : vector<32x1xf32> to vector<32x32xf32>
    %399 = arith.subf %389, %398 : vector<32x32xf32>
    %400 = arith.mulf %399, %399 : vector<32x32xf32>
    %cst_145 = arith.constant dense<0.000000e+00> : vector<32xf32>
    %401 = vector.multi_reduction <add>, %400, %cst_145 [1] : vector<32x32xf32> to vector<32xf32>
    %402 = vector.shape_cast %401 : vector<32xf32> to vector<32x1xf32>
    %cst_146 = arith.constant 3.200000e+01 : f32
    %403 = vector.broadcast %cst_146 : f32 to vector<32x1xf32>
    %404 = arith.divf %402, %403 : vector<32x1xf32>
    %405 = vector.broadcast %397 : vector<32x1xf32> to vector<32x32xf32>
    %406 = arith.subf %389, %405 : vector<32x32xf32>
    %cst_147 = arith.constant 9.99999974E-6 : f32
    %407 = vector.broadcast %cst_147 : f32 to vector<32x1xf32>
    %408 = arith.addf %404, %407 : vector<32x1xf32>
    %409 = math.rsqrt %408 : vector<32x1xf32>
    %410 = vector.broadcast %409 : vector<32x1xf32> to vector<32x32xf32>
    %411 = arith.mulf %406, %410 : vector<32x32xf32>
    %412 = vector.broadcast %391 : vector<1x32xf32> to vector<32x32xf32>
    %413 = arith.mulf %411, %412 : vector<32x32xf32>
    %414 = vector.broadcast %393 : vector<1x32xf32> to vector<32x32xf32>
    %415 = arith.addf %413, %414 : vector<32x32xf32>
    %416 = vector.broadcast %1 : vector<32x1xf32> to vector<32x32xf32>
    %417 = arith.mulf %415, %416 : vector<32x32xf32>
    %418 = arith.truncf %417 : vector<32x32xf32> to vector<32x32xbf16>
    %c0_148 = arith.constant 0 : index
    %c0_149 = arith.constant 0 : index
    %419 = vector.load %arg19[%c0_148, %c0_149] : memref<32x128xbf16, #tpu.memory_space<vmem>>, vector<32x128xbf16>
    %cst_150 = arith.constant dense<0.000000e+00> : vector<32x128xf32>
    %420 = tpu.matmul %418, %419, %cst_150 {dimension_numbers = #tpu.dot_dimension_numbers<[1], [0], [0], [1], [0, 0, 1, 1], [], []>} : vector<32x32xbf16>, vector<32x128xbf16>, vector<32x128xf32> -> vector<32x128xf32>
    %c0_151 = arith.constant 0 : index
    %c0_152 = arith.constant 0 : index
    %421 = vector.load %arg20[%c0_151, %c0_152] : memref<1x128xf32, #tpu.memory_space<vmem>>, vector<1x128xf32>
    %422 = vector.broadcast %421 : vector<1x128xf32> to vector<32x128xf32>
    %423 = arith.addf %420, %422 : vector<32x128xf32>
    %424 = vector.broadcast %1 : vector<32x1xf32> to vector<32x128xf32>
    %425 = arith.mulf %423, %424 : vector<32x128xf32>
    %426 = arith.truncf %425 : vector<32x128xf32> to vector<32x128xbf16>
    %c0_153 = arith.constant 0 : index
    %c0_154 = arith.constant 0 : index
    %427 = vector.load %arg21[%c0_153, %c0_154] : memref<32x128xbf16, #tpu.memory_space<vmem>>, vector<32x128xbf16>
    tpu.vector_store %arg21[%c0_153, %c0_154], %426 {strides = array<i32>} : memref<32x128xbf16, #tpu.memory_space<vmem>>, vector<32x128xbf16>,
    return
  }
  func.func @transform_0(%arg0: i32) -> (i32, i32) {
    %c0_i32 = arith.constant 0 : i32
    %c0_i32_0 = arith.constant 0 : i32
    return %arg0, %c0_i32 : i32, i32
  }
  func.func @transform_1(%arg0: i32) -> (i32, i32) {
    %c0_i32 = arith.constant 0 : i32
    %c0_i32_0 = arith.constant 0 : i32
    return %arg0, %c0_i32 : i32, i32
  }
  func.func @transform_2(%arg0: i32) -> (i32, i32) {
    %c0_i32 = arith.constant 0 : i32
    %c0_i32_0 = arith.constant 0 : i32
    return %arg0, %c0_i32 : i32, i32
  }
  func.func @transform_3(%arg0: i32) -> (i32, i32) {
    %c0_i32 = arith.constant 0 : i32
    %c0_i32_0 = arith.constant 0 : i32
    return %arg0, %c0_i32 : i32, i32
  }
  func.func @transform_4(%arg0: i32) -> (i32, i32) {
    %c0_i32 = arith.constant 0 : i32
    %c0_i32_0 = arith.constant 0 : i32
    return %arg0, %c0_i32 : i32, i32
  }
  func.func @transform_5(%arg0: i32) -> (i32, i32) {
    %c0_i32 = arith.constant 0 : i32
    %c0_i32_0 = arith.constant 0 : i32
    %c0_i32_1 = arith.constant 0 : i32
    return %c0_i32, %c0_i32_0 : i32, i32
  }
  func.func @transform_6(%arg0: i32) -> (i32, i32) {
    %c0_i32 = arith.constant 0 : i32
    %c0_i32_0 = arith.constant 0 : i32
    %c0_i32_1 = arith.constant 0 : i32
    return %c0_i32, %c0_i32_0 : i32, i32
  }
  func.func @transform_7(%arg0: i32) -> (i32, i32) {
    %c0_i32 = arith.constant 0 : i32
    %c0_i32_0 = arith.constant 0 : i32
    %c0_i32_1 = arith.constant 0 : i32
    return %c0_i32, %c0_i32_0 : i32, i32
  }
  func.func @transform_8(%arg0: i32) -> (i32, i32) {
    %c0_i32 = arith.constant 0 : i32
    %c0_i32_0 = arith.constant 0 : i32
    %c0_i32_1 = arith.constant 0 : i32
    return %c0_i32, %c0_i32_0 : i32, i32
  }
  func.func @transform_9(%arg0: i32) -> (i32, i32, i32) {
    %c0_i32 = arith.constant 0 : i32
    %c0_i32_0 = arith.constant 0 : i32
    %c0_i32_1 = arith.constant 0 : i32
    %c0_i32_2 = arith.constant 0 : i32
    return %c0_i32, %c0_i32_0, %c0_i32_1 : i32, i32, i32
  }
  func.func @transform_10(%arg0: i32) -> (i32, i32, i32) {
    %c0_i32 = arith.constant 0 : i32
    %c0_i32_0 = arith.constant 0 : i32
    %c0_i32_1 = arith.constant 0 : i32
    %c0_i32_2 = arith.constant 0 : i32
    return %c0_i32, %c0_i32_0, %c0_i32_1 : i32, i32, i32
  }
  func.func @transform_11(%arg0: i32) -> (i32, i32, i32) {
    %c0_i32 = arith.constant 0 : i32
    %c0_i32_0 = arith.constant 0 : i32
    %c0_i32_1 = arith.constant 0 : i32
    %c0_i32_2 = arith.constant 0 : i32
    return %c0_i32, %c0_i32_0, %c0_i32_1 : i32, i32, i32
  }
  func.func @transform_12(%arg0: i32) -> (i32, i32, i32) {
    %c0_i32 = arith.constant 0 : i32
    %c0_i32_0 = arith.constant 0 : i32
    %c0_i32_1 = arith.constant 0 : i32
    %c0_i32_2 = arith.constant 0 : i32
    return %c0_i32, %c0_i32_0, %c0_i32_1 : i32, i32, i32
  }
  func.func @transform_13(%arg0: i32) -> (i32, i32, i32, i32) {
    %c0_i32 = arith.constant 0 : i32
    %c0_i32_0 = arith.constant 0 : i32
    %c0_i32_1 = arith.constant 0 : i32
    %c0_i32_2 = arith.constant 0 : i32
    %c0_i32_3 = arith.constant 0 : i32
    return %c0_i32, %c0_i32_0, %c0_i32_1, %c0_i32_2 : i32, i32, i32, i32
  }
  func.func @transform_14(%arg0: i32) -> (i32, i32, i32) {
    %c0_i32 = arith.constant 0 : i32
    %c0_i32_0 = arith.constant 0 : i32
    %c0_i32_1 = arith.constant 0 : i32
    %c0_i32_2 = arith.constant 0 : i32
    return %c0_i32, %c0_i32_0, %c0_i32_1 : i32, i32, i32
  }
  func.func @transform_15(%arg0: i32) -> (i32, i32, i32) {
    %c0_i32 = arith.constant 0 : i32
    %c0_i32_0 = arith.constant 0 : i32
    %c0_i32_1 = arith.constant 0 : i32
    %c0_i32_2 = arith.constant 0 : i32
    return %c0_i32, %c0_i32_0, %c0_i32_1 : i32, i32, i32
  }
  func.func @transform_16(%arg0: i32) -> (i32, i32, i32) {
    %c0_i32 = arith.constant 0 : i32
    %c0_i32_0 = arith.constant 0 : i32
    %c0_i32_1 = arith.constant 0 : i32
    %c0_i32_2 = arith.constant 0 : i32
    return %c0_i32, %c0_i32_0, %c0_i32_1 : i32, i32, i32
  }
  func.func @transform_17(%arg0: i32) -> (i32, i32, i32) {
    %c0_i32 = arith.constant 0 : i32
    %c0_i32_0 = arith.constant 0 : i32
    %c0_i32_1 = arith.constant 0 : i32
    %c0_i32_2 = arith.constant 0 : i32
    return %c0_i32, %c0_i32_0, %c0_i32_1 : i32, i32, i32
  }
  func.func @transform_18(%arg0: i32) -> (i32, i32) {
    %c0_i32 = arith.constant 0 : i32
    %c0_i32_0 = arith.constant 0 : i32
    %c0_i32_1 = arith.constant 0 : i32
    return %c0_i32, %c0_i32_0 : i32, i32
  }
  func.func @transform_19(%arg0: i32) -> (i32, i32) {
    %c0_i32 = arith.constant 0 : i32
    %c0_i32_0 = arith.constant 0 : i32
    %c0_i32_1 = arith.constant 0 : i32
    return %c0_i32, %c0_i32_0 : i32, i32
  }
  func.func @transform_20(%arg0: i32) -> (i32, i32) {
    %c0_i32 = arith.constant 0 : i32
    %c0_i32_0 = arith.constant 0 : i32
    return %arg0, %c0_i32 : i32, i32
  }
}

</mosaic_0001>

<llo_original>
// kernel: tpu_custom_call.1
$region0: #{tpu_custom_call.1}
  #allocation0 [shape = 'u32[]', space=smem, size = 0x4, offset = 0x4, fixed_abs, tag = 'smem constant byte address 0x4 - core index']
  #allocation1 [shape = 'u32[144,128]{1,0:T(1,128)}', space=vmem, size = 0x12000, scoped, tag = 'internal scratch']
  %s0 = inlined_call_operand.vmem [shape: f32[32,32], index: 0, kind: input, shape index: {}]
  %s1 = inlined_call_operand.vmem [shape: f32[32,1], index: 1, kind: input, shape index: {}]
  %s2 = inlined_call_operand.vmem [shape: f32[32,1], index: 2, kind: input, shape index: {}]
  %s3 = inlined_call_operand.vmem [shape: f32[32,8], index: 3, kind: input, shape index: {}]
  %s4 = inlined_call_operand.vmem [shape: s32[32,1], index: 4, kind: input, shape index: {}]
  %s5 = inlined_call_operand.vmem [shape: bf16[8,32], index: 5, kind: input, shape index: {}]
  %s6 = inlined_call_operand.vmem [shape: f32[3,32], index: 6, kind: input, shape index: {}]
  %s7 = inlined_call_operand.vmem [shape: bf16[96,32], index: 7, kind: input, shape index: {}]
  %s8 = inlined_call_operand.vmem [shape: f32[3,32], index: 8, kind: input, shape index: {}]
  %s9 = inlined_call_operand.vmem [shape: bf16[2,32,768], index: 9, kind: input, shape index: {}]
  %s10 = inlined_call_operand.vmem [shape: f32[2,1,768], index: 10, kind: input, shape index: {}]
  %s11 = inlined_call_operand.vmem [shape: bf16[2,256,32], index: 11, kind: input, shape index: {}]
  %s12 = inlined_call_operand.vmem [shape: f32[2,1,32], index: 12, kind: input, shape index: {}]
  %s13 = inlined_call_operand.vmem [shape: f32[2,4,1,32], index: 13, kind: input, shape index: {}]
  %s14 = inlined_call_operand.vmem [shape: bf16[2,96,64], index: 14, kind: input, shape index: {}]
  %s15 = inlined_call_operand.vmem [shape: f32[2,1,64], index: 15, kind: input, shape index: {}]
  %s16 = inlined_call_operand.vmem [shape: bf16[2,192,32], index: 16, kind: input, shape index: {}]
  %s17 = inlined_call_operand.vmem [shape: f32[2,1,32], index: 17, kind: input, shape index: {}]
  %s18 = inlined_call_operand.vmem [shape: bf16[32,128], index: 18, kind: input, shape index: {}]
  %s19 = inlined_call_operand.vmem [shape: f32[1,128], index: 19, kind: input, shape index: {}]
  %s20 = inlined_call_operand.hbm [shape: bf16[32,128], index: 20, kind: output, shape index: {}]
  %s21 = sld [smem:[#allocation0]]
  $region90: #{tpu_custom_call.1} parent=0
    _
  %s23 = ssub.s32 1, %s21
  %s24 = scalar_select 0, %s23, %s21
  $region1: #{tpu_custom_call.1} parent=0
    #allocation2 [shape = 'u8[8192]{0}', space=vmem, size = 0x2000, scoped, tag = 'output window, operand 0, single buffered']
    #allocation3 [shape = 's32[1]{0}', space=sflag, size = 0x4, scoped, tag = 'scoped memory for tpu_custom_call.1']
    %25 = vsyncpa [#allocation3], 0
    // Predicated region
    $region2: #{tpu_custom_call.1} parent=1 // pred_check
      _
    $region3: #{tpu_custom_call.1} parent=1 // pred_check_branch
      %27 = sbr.rel (0) target = $region5
    $region4: #{tpu_custom_call.1} parent=1 // pred_region
      _
    $region5: #{tpu_custom_call.1} parent=1 // pred_fallthru
      _
    // Predicated region
    $region6: #{tpu_custom_call.1} parent=1 // pred_check
      _
    $region7: #{tpu_custom_call.1} parent=1 // pred_check_branch
      %29 = sbr.rel (0) target = $region9
    $region8: #{tpu_custom_call.1} parent=1 // pred_region
      _
    $region9: #{tpu_custom_call.1} parent=1 // pred_fallthru
      _
    // Predicated region
    $region10: #{tpu_custom_call.1} parent=1 // pred_check
      _
    $region11: #{tpu_custom_call.1} parent=1 // pred_check_branch
      %31 = sbr.rel (0) target = $region13
    $region12: #{tpu_custom_call.1} parent=1 // pred_region
      _
    $region13: #{tpu_custom_call.1} parent=1 // pred_fallthru
      _
    // Predicated region
    $region14: #{tpu_custom_call.1} parent=1 // pred_check
      _
    $region15: #{tpu_custom_call.1} parent=1 // pred_check_branch
      %33 = sbr.rel (0) target = $region17
    $region16: #{tpu_custom_call.1} parent=1 // pred_region
      _
    $region17: #{tpu_custom_call.1} parent=1 // pred_fallthru
      _
    // Predicated region
    $region18: #{tpu_custom_call.1} parent=1 // pred_check
      _
    $region19: #{tpu_custom_call.1} parent=1 // pred_check_branch
      %35 = sbr.rel (0) target = $region21
    $region20: #{tpu_custom_call.1} parent=1 // pred_region
      _
    $region21: #{tpu_custom_call.1} parent=1 // pred_fallthru
      _
    // Predicated region
    $region22: #{tpu_custom_call.1} parent=1 // pred_check
      _
    $region23: #{tpu_custom_call.1} parent=1 // pred_check_branch
      %37 = sbr.rel (0) target = $region25
    $region24: #{tpu_custom_call.1} parent=1 // pred_region
      _
    $region25: #{tpu_custom_call.1} parent=1 // pred_fallthru
      _
    // Predicated region
    $region26: #{tpu_custom_call.1} parent=1 // pred_check
      _
    $region27: #{tpu_custom_call.1} parent=1 // pred_check_branch
      %39 = sbr.rel (0) target = $region29
    $region28: #{tpu_custom_call.1} parent=1 // pred_region
      _
    $region29: #{tpu_custom_call.1} parent=1 // pred_fallthru
      _
    // Predicated region
    $region30: #{tpu_custom_call.1} parent=1 // pred_check
      _
    $region31: #{tpu_custom_call.1} parent=1 // pred_check_branch
      %41 = sbr.rel (0) target = $region33
    $region32: #{tpu_custom_call.1} parent=1 // pred_region
      _
    $region33: #{tpu_custom_call.1} parent=1 // pred_fallthru
      _
    // Predicated region
    $region34: #{tpu_custom_call.1} parent=1 // pred_check
      _
    $region35: #{tpu_custom_call.1} parent=1 // pred_check_branch
      %43 = sbr.rel (0) target = $region37
    $region36: #{tpu_custom_call.1} parent=1 // pred_region
      _
    $region37: #{tpu_custom_call.1} parent=1 // pred_fallthru
      _
    // Predicated region
    $region38: #{tpu_custom_call.1} parent=1 // pred_check
      _
    $region39: #{tpu_custom_call.1} parent=1 // pred_check_branch
      %45 = sbr.rel (0) target = $region41
    $region40: #{tpu_custom_call.1} parent=1 // pred_region
      _
    $region41: #{tpu_custom_call.1} parent=1 // pred_fallthru
      _
    // Predicated region
    $region42: #{tpu_custom_call.1} parent=1 // pred_check
      _
    $region43: #{tpu_custom_call.1} parent=1 // pred_check_branch
      %47 = sbr.rel (0) target = $region45
    $region44: #{tpu_custom_call.1} parent=1 // pred_region
      _
    $region45: #{tpu_custom_call.1} parent=1 // pred_fallthru
      _
    // Predicated region
    $region46: #{tpu_custom_call.1} parent=1 // pred_check
      _
    $region47: #{tpu_custom_call.1} parent=1 // pred_check_branch
      %49 = sbr.rel (0) target = $region49
    $region48: #{tpu_custom_call.1} parent=1 // pred_region
      _
    $region49: #{tpu_custom_call.1} parent=1 // pred_fallthru
      _
    // Predicated region
    $region50: #{tpu_custom_call.1} parent=1 // pred_check
      _
    $region51: #{tpu_custom_call.1} parent=1 // pred_check_branch
      %51 = sbr.rel (0) target = $region53
    $region52: #{tpu_custom_call.1} parent=1 // pred_region
      _
    $region53: #{tpu_custom_call.1} parent=1 // pred_fallthru
      _
    // Predicated region
    $region54: #{tpu_custom_call.1} parent=1 // pred_check
      _
    $region55: #{tpu_custom_call.1} parent=1 // pred_check_branch
      %53 = sbr.rel (0) target = $region57
    $region56: #{tpu_custom_call.1} parent=1 // pred_region
      _
    $region57: #{tpu_custom_call.1} parent=1 // pred_fallthru
      _
    // Predicated region
    $region58: #{tpu_custom_call.1} parent=1 // pred_check
      _
    $region59: #{tpu_custom_call.1} parent=1 // pred_check_branch
      %55 = sbr.rel (0) target = $region61
    $region60: #{tpu_custom_call.1} parent=1 // pred_region
      _
    $region61: #{tpu_custom_call.1} parent=1 // pred_fallthru
      _
    // Predicated region
    $region62: #{tpu_custom_call.1} parent=1 // pred_check
      _
    $region63: #{tpu_custom_call.1} parent=1 // pred_check_branch
      %57 = sbr.rel (0) target = $region65
    $region64: #{tpu_custom_call.1} parent=1 // pred_region
      _
    $region65: #{tpu_custom_call.1} parent=1 // pred_fallthru
      _
    // Predicated region
    $region66: #{tpu_custom_call.1} parent=1 // pred_check
      _
    $region67: #{tpu_custom_call.1} parent=1 // pred_check_branch
      %59 = sbr.rel (0) target = $region69
    $region68: #{tpu_custom_call.1} parent=1 // pred_region
      _
    $region69: #{tpu_custom_call.1} parent=1 // pred_fallthru
      _
    // Predicated region
    $region70: #{tpu_custom_call.1} parent=1 // pred_check
      _
    $region71: #{tpu_custom_call.1} parent=1 // pred_check_branch
      %61 = sbr.rel (0) target = $region73
    $region72: #{tpu_custom_call.1} parent=1 // pred_region
      _
    $region73: #{tpu_custom_call.1} parent=1 // pred_fallthru
      _
    // Predicated region
    $region74: #{tpu_custom_call.1} parent=1 // pred_check
      _
    $region75: #{tpu_custom_call.1} parent=1 // pred_check_branch
      %63 = sbr.rel (0) target = $region77
    $region76: #{tpu_custom_call.1} parent=1 // pred_region
      _
    $region77: #{tpu_custom_call.1} parent=1 // pred_fallthru
      _
    // Predicated region
    $region78: #{tpu_custom_call.1} parent=1 // pred_check
      _
    $region79: #{tpu_custom_call.1} parent=1 // pred_check_branch
      %65 = sbr.rel (0) target = $region81
    $region80: #{tpu_custom_call.1} parent=1 // pred_region
      _
    $region81: #{tpu_custom_call.1} parent=1 // pred_fallthru
      _
    %v67 = vld [vmem:[%s0] sm:$0xff]
    %v68 = vld [vmem:[%s0 + $0x8] sm:$0xff]
    %v69 = vld [vmem:[%s0 + $0x10] sm:$0xff]
    %v70 = vld [vmem:[%s0 + $0x18] sm:$0xff]
    %v71 = vld [vmem:[%s2] sm:$0xff]
    %v72 = vld [vmem:[%s2 + $0x8] sm:$0xff]
    %v73 = vld [vmem:[%s2 + $0x10] sm:$0xff]
    %v74 = vld [vmem:[%s2 + $0x18] sm:$0xff]
    %v75 = vld [vmem:[%s1] sm:$0xff]
    %v76 = vld [vmem:[%s1 + $0x8] sm:$0xff]
    %v77 = vld [vmem:[%s1 + $0x10] sm:$0xff]
    %v78 = vld [vmem:[%s1 + $0x18] sm:$0xff]
    %v79 = vld [vmem:[%s4] sm:$0xff]
    %v80 = vld [vmem:[%s4 + $0x8] sm:$0xff]
    %v81 = vld [vmem:[%s4 + $0x10] sm:$0xff]
    %v82 = vld [vmem:[%s4 + $0x18] sm:$0xff]
    %v83 = vlaneseq
    %v84 = vshrl.u32 %v83, 7
    %v85 = vadd.s32 %v84, 8
    %v86 = vlaneseq
    %v87 = vand.u32 %v86, 127
    %vm88 = vcmp.ge.s32.totalorder %v84, %v87
    %vm89 = vcmp.ge.s32.totalorder %v85, %v87
    %vm90 = vcmp.ge.s32.totalorder %v79, 1
    %vm91 = vcmp.ge.s32.totalorder %v80, 1
    %vm92 = vcmp.ge.s32.totalorder %v81, 1
    %vm93 = vcmp.ge.s32.totalorder %v82, 1
    %vm94 = vcmp.ge.s32.totalorder %v79, 2
    %vm95 = vcmp.ge.s32.totalorder %v80, 2
    %vm96 = vcmp.ge.s32.totalorder %v81, 2
    %vm97 = vcmp.ge.s32.totalorder %v82, 2
    %vm98 = vcmp.lt.s32.totalorder %v79, 15
    %vm99 = vcmp.lt.s32.totalorder %v80, 15
    %vm100 = vcmp.lt.s32.totalorder %v81, 15
    %vm101 = vcmp.lt.s32.totalorder %v82, 15
    %v102 = vld [vmem:[%s8] sm:$0x7]
    %v103 = vld [vmem:[%s6] sm:$0x7]
    %v104 = vld [vmem:[%s3] sm:$0xff]
    %v105 = vld [vmem:[%s3 + $0x8] sm:$0xff]
    %v106 = vld [vmem:[%s3 + $0x10] sm:$0xff]
    %v107 = vld [vmem:[%s3 + $0x18] sm:$0xff]
    %v108 = vpack.c.bf16 %v105, %v104
    %v109 = vpack.c.bf16 %v107, %v106
    %v110 = vld [vmem:[%s5] sm:$0xf]
    %vm111 = vcmask 64512
    %v113 = vsel %vm111, %v108, 0
    %v116 = vsel %vm111, %v109, 0
    %vm118 = vcmask 1043456
    %v120 = vsel %vm118, %v110, 0
    %122 = vmatprep.subr.bf16.mxu0 0
    %123 = vmatpush1.bf16.msra.mxu0 0
    %124 = vmatprep.subr.bf16.mxu0 0
    %125 = vmatpush1.bf16.msra.mxu0 0
    %126 = vmatprep.subr.bf16.mxu0 0
    %127 = vmatpush1.bf16.msra.mxu0 0
    %128 = vmatprep.subr.bf16.mxu0 0
    %129 = vmatpush1.bf16.msra.mxu0 0
    %130 = vmatprep.subr.bf16.mxu0 0
    %131 = vmatpush1.bf16.msra.mxu0 0
    %132 = vmatprep.subr.bf16.mxu0 0
    %133 = vmatpush1.bf16.msra.mxu0 0
    %134 = vmatprep.subr.bf16.mxu0 0
    %135 = vmatpush1.bf16.msra.mxu0 0
    %136 = vmatprep.subr.bf16.mxu0 0
    %137 = vmatpush1.bf16.msra.mxu0 %v120
    %138 = vmatprep.subr.bf16.mxu0 0
    %139 = vmatpush2.bf16.msra.mxu0 0
    %140 = vmatprep.subr.bf16.mxu0 0
    %141 = vmatpush2.bf16.msra.mxu0 0
    %142 = vmatprep.subr.bf16.mxu0 0
    %143 = vmatpush2.bf16.msra.mxu0 0
    %144 = vmatprep.subr.bf16.mxu0 0
    %145 = vmatpush2.bf16.msra.mxu0 0
    %146 = vmatprep.subr.bf16.mxu0 0
    %147 = vmatpush2.bf16.msra.mxu0 0
    %148 = vmatprep.subr.bf16.mxu0 0
    %149 = vmatpush2.bf16.msra.mxu0 0
    %150 = vmatprep.subr.bf16.mxu0 0
    %151 = vmatpush2.bf16.msra.mxu0 0
    %152 = vmatprep.subr.bf16.mxu0 0
    %153 = vmatpush2.bf16.msra.mxu0 0
    %154 = vmatprep.mubr.bf16.mxu0 0
    %155 = vmatmul.mubr.bf16.gmra.mxu0 %v113
    %v156 = vpop.f32.mrf.mxu0
    %v157 = vadd.f32 0.0, %v156
    %v158 = vpop.f32.mrf.mxu0
    %v159 = vpop.f32.mrf.mxu0
    %v160 = vadd.f32 0.0, %v159
    %v161 = vpop.f32.mrf.mxu0
    %162 = vmatprep.mubr.bf16.mxu0 0
    %163 = vmatmul.mubr.bf16.gmra.mxu0 %v116
    %v164 = vpop.f32.mrf.mxu0
    %v165 = vadd.f32 0.0, %v164
    %v166 = vpop.f32.mrf.mxu0
    %v167 = vpop.f32.mrf.mxu0
    %v168 = vadd.f32 0.0, %v167
    %v169 = vpop.f32.mrf.mxu0
    %170 = vdwg.mxu0
    %v171 = vadd.f32 %v67, %v157
    %v172 = vadd.f32 %v68, %v160
    %v173 = vadd.f32 %v69, %v165
    %v174 = vadd.f32 %v70, %v168
    %v175 = vlaneseq
    %v176 = vshrl.u32 %v175, 7
    %v177 = vsub.s32 0, %v176
    %v178 = vrot.slane %v102, %v177
    %v179 = vadd.f32 %v171, %v178
    %v180 = vadd.f32 %v172, %v178
    %v181 = vadd.f32 %v173, %v178
    %v182 = vadd.f32 %v174, %v178
    %184 = vset.pattern.permute.xlu0 0
    %185 = vperm.xlu0 %184, %v75
    %v186 = vpop.permute.xlu0 %185
    %189 = vset.pattern.permute.xlu0 0
    %190 = vperm.xlu0 %189, %v76
    %v191 = vpop.permute.xlu0 %190
    %194 = vset.pattern.permute.xlu0 0
    %195 = vperm.xlu0 %194, %v77
    %v196 = vpop.permute.xlu0 %195
    %199 = vset.pattern.permute.xlu0 0
    %200 = vperm.xlu0 %199, %v78
    %v201 = vpop.permute.xlu0 %200
    %v203 = vlaneseq
    %v204 = vshrl.u32 %v203, 7
    %v205 = vsub.s32 0, %v204
    %v206 = vrot.slane %v103, %v205
    %v207 = vmul.f32 %v186, %v206
    %v208 = vmul.f32 %v191, %v206
    %v209 = vmul.f32 %v196, %v206
    %v210 = vmul.f32 %v201, %v206
    %v211 = vrot.slane %v207, 7
    %v212 = vrot.slane %v208, 7
    %v213 = vrot.slane %v209, 7
    %v214 = vrot.slane %v210, 7
    %vm215 = vcmp.lt.s32.totalorder %v84, 1
    %v216 = vsel %vm215, %v213, %v214
    %v217 = vsel %vm215, %v212, %v213
    %v218 = vsel %vm215, %v211, %v212
    %v219 = vsel %vm215, %v214, %v211
    %v220 = vsel %vm90, 1, 0
    %v221 = vsel %vm91, 1, 0
    %v222 = vsel %vm92, 1, 0
    %v223 = vsel %vm93, 1, 0
    %224 = vset.pattern.permute.xlu0 0
    %225 = vperm.xlu0 %224, %v220
    %v226 = vpop.permute.xlu0 %225
    %227 = vset.pattern.permute.xlu0 0
    %228 = vperm.xlu0 %227, %v221
    %v229 = vpop.permute.xlu0 %228
    %230 = vset.pattern.permute.xlu0 0
    %231 = vperm.xlu0 %230, %v222
    %v232 = vpop.permute.xlu0 %231
    %233 = vset.pattern.permute.xlu0 0
    %234 = vperm.xlu0 %233, %v223
    %v235 = vpop.permute.xlu0 %234
    %vm236 = vcmp.eq.s32.totalorder %v226, 1
    %vm237 = vcmp.eq.s32.totalorder %v229, 1
    %vm238 = vcmp.eq.s32.totalorder %v232, 1
    %vm239 = vcmp.eq.s32.totalorder %v235, 1
    %v240 = vsel %vm236, %v219, 0.0
    %v241 = vsel %vm237, %v218, 0.0
    %v242 = vsel %vm238, %v217, 0.0
    %v243 = vsel %vm239, %v216, 0.0
    %v244 = vlaneseq
    %v245 = vshrl.u32 %v244, 7
    %v246 = vsub.s32 1, %v245
    %v247 = vrot.slane %v103, %v246
    %v248 = vmul.f32 %v186, %v247
    %v249 = vmul.f32 %v191, %v247
    %v250 = vmul.f32 %v196, %v247
    %v251 = vmul.f32 %v201, %v247
    %v252 = vadd.f32 %v240, %v248
    %v253 = vadd.f32 %v241, %v249
    %v254 = vadd.f32 %v242, %v250
    %v255 = vadd.f32 %v243, %v251
    %v256 = vlaneseq
    %v257 = vshrl.u32 %v256, 7
    %v258 = vsub.s32 2, %v257
    %v259 = vrot.slane %v103, %v258
    %v260 = vmul.f32 %v186, %v259
    %v261 = vmul.f32 %v191, %v259
    %v262 = vmul.f32 %v196, %v259
    %v263 = vmul.f32 %v201, %v259
    %v264 = vrot.slane %v260, 1
    %v265 = vrot.slane %v261, 1
    %v266 = vrot.slane %v262, 1
    %v267 = vrot.slane %v263, 1
    %vm268 = vcmp.lt.s32.totalorder %v84, 7
    %v269 = vsel %vm268, %v266, %v267
    %v270 = vsel %vm268, %v265, %v266
    %v271 = vsel %vm268, %v264, %v265
    %v272 = vsel %vm268, %v267, %v264
    %v273 = vsel %vm98, 1, 0
    %v274 = vsel %vm99, 1, 0
    %v275 = vsel %vm100, 1, 0
    %v276 = vsel %vm101, 1, 0
    %277 = vset.pattern.permute.xlu0 0
    %278 = vperm.xlu0 %277, %v273
    %v279 = vpop.permute.xlu0 %278
    %280 = vset.pattern.permute.xlu0 0
    %281 = vperm.xlu0 %280, %v274
    %v282 = vpop.permute.xlu0 %281
    %283 = vset.pattern.permute.xlu0 0
    %284 = vperm.xlu0 %283, %v275
    %v285 = vpop.permute.xlu0 %284
    %286 = vset.pattern.permute.xlu0 0
    %287 = vperm.xlu0 %286, %v276
    %v288 = vpop.permute.xlu0 %287
    %vm289 = vcmp.eq.s32.totalorder %v279, 1
    %vm290 = vcmp.eq.s32.totalorder %v282, 1
    %vm291 = vcmp.eq.s32.totalorder %v285, 1
    %vm292 = vcmp.eq.s32.totalorder %v288, 1
    %v293 = vsel %vm289, %v271, 0.0
    %v294 = vsel %vm290, %v270, 0.0
    %v295 = vsel %vm291, %v269, 0.0
    %v296 = vsel %vm292, %v272, 0.0
    %v297 = vadd.f32 %v252, %v293
    %v298 = vadd.f32 %v253, %v294
    %v299 = vadd.f32 %v254, %v295
    %v300 = vadd.f32 %v255, %v296
    %v301 = vlaneseq
    %v302 = vshrl.u32 %v301, 7
    %v303 = vsub.s32 1, %v302
    %v304 = vrot.slane %v102, %v303
    %v305 = vadd.f32 %v297, %v304
    %v306 = vadd.f32 %v298, %v304
    %v307 = vadd.f32 %v299, %v304
    %v308 = vadd.f32 %v300, %v304
    %v309 = vadd.f32 %v179, %v305
    %v310 = vadd.f32 %v180, %v306
    %v311 = vadd.f32 %v181, %v307
    %v312 = vadd.f32 %v182, %v308
    %v313 = vld [vmem:[%s7] sm:$0xf]
    %v314 = vld [vmem:[%s7 + $0x4] sm:$0xf]
    %v315 = vld [vmem:[%s7 + $0x8] sm:$0xf]
    %v316 = vld [vmem:[%s7 + $0xc] sm:$0xf]
    %v317 = vld [vmem:[%s7 + $0x10] sm:$0xf]
    %v318 = vld [vmem:[%s7 + $0x14] sm:$0xf]
    %v319 = vld [vmem:[%s7 + $0x18] sm:$0xf]
    %v320 = vld [vmem:[%s7 + $0x1c] sm:$0xf]
    %v321 = vld [vmem:[%s7 + $0x20] sm:$0xf]
    %v322 = vld [vmem:[%s7 + $0x24] sm:$0xf]
    %v323 = vld [vmem:[%s7 + $0x28] sm:$0xf]
    %v324 = vld [vmem:[%s7 + $0x2c] sm:$0xf]
    %v325 = vrot.slane %v309, 7
    %v326 = vrot.slane %v310, 7
    %v327 = vrot.slane %v311, 7
    %v328 = vrot.slane %v312, 7
    %v329 = vsel %vm215, %v327, %v328
    %v330 = vsel %vm215, %v326, %v327
    %v331 = vsel %vm215, %v325, %v326
    %v332 = vsel %vm215, %v328, %v325
    %v333 = vsel %vm236, %v332, 0.0
    %v334 = vsel %vm237, %v331, 0.0
    %v335 = vsel %vm238, %v330, 0.0
    %v336 = vsel %vm239, %v329, 0.0
    %v337 = vrot.slane %v309, 1
    %v338 = vrot.slane %v310, 1
    %v339 = vrot.slane %v311, 1
    %v340 = vrot.slane %v312, 1
    %v341 = vsel %vm268, %v339, %v340
    %v342 = vsel %vm268, %v338, %v339
    %v343 = vsel %vm268, %v337, %v338
    %v344 = vsel %vm268, %v340, %v337
    %v345 = vsel %vm289, %v343, 0.0
    %v346 = vsel %vm290, %v342, 0.0
    %v347 = vsel %vm291, %v341, 0.0
    %v348 = vsel %vm292, %v344, 0.0
    %353 = vrot.lane.b32.xlu0 %v309, 32
    %v354 = vpop.permute.xlu0 %353
    %355 = vrot.lane.b32.xlu0 %v310, 32
    %v356 = vpop.permute.xlu0 %355
    %357 = vrot.lane.b32.xlu0 %v311, 32
    %v358 = vpop.permute.xlu0 %357
    %359 = vrot.lane.b32.xlu0 %v312, 32
    %v360 = vpop.permute.xlu0 %359
    %369 = vrot.lane.b32.xlu0 %v345, 64
    %v370 = vpop.permute.xlu0 %369
    %371 = vrot.lane.b32.xlu0 %v346, 64
    %v372 = vpop.permute.xlu0 %371
    %373 = vrot.lane.b32.xlu0 %v347, 64
    %v374 = vpop.permute.xlu0 %373
    %375 = vrot.lane.b32.xlu0 %v348, 64
    %v376 = vpop.permute.xlu0 %375
    %vm381 = vcmask 261120
    %v382 = vsel %vm381, %v333, %v354
    %v383 = vsel %vm381, %v334, %v356
    %v384 = vsel %vm381, %v335, %v358
    %v385 = vsel %vm381, %v336, %v360
    %vm386 = vcmask 523264
    %v387 = vsel %vm386, %v382, %v370
    %v388 = vsel %vm386, %v383, %v372
    %v389 = vsel %vm386, %v384, %v374
    %v390 = vsel %vm386, %v385, %v376
    %v391 = vpack.c.bf16 %v388, %v387
    %v392 = vpack.c.bf16 %v390, %v389
    %v393 = vlaneseq
    %v394 = vshrl.u32 %v393, 7
    %v395 = vsub.s32 2, %v394
    %v396 = vrot.slane %v102, %v395
    %v409 = vunpack.c.l.b16 %v313
    %v410 = vunpack.c.l.b16 %v314
    %v411 = vunpack.c.l.b16 %v315
    %v412 = vunpack.c.l.b16 %v316
    %v413 = vunpack.c.l.b16 %v317
    %v414 = vunpack.c.l.b16 %v318
    %v415 = vunpack.c.l.b16 %v319
    %v416 = vunpack.c.l.b16 %v320
    %v417 = vunpack.c.l.b16 %v321
    %v418 = vunpack.c.l.b16 %v322
    %v419 = vunpack.c.l.b16 %v323
    %v420 = vunpack.c.l.b16 %v324
    %v421 = vpack.c.b16 %v410, %v409
    %v422 = vpack.c.b16 %v412, %v411
    %v423 = vpack.c.b16 %v414, %v413
    %v424 = vpack.c.b16 %v416, %v415
    %v425 = vpack.c.b16 %v418, %v417
    %v426 = vpack.c.b16 %v420, %v419
    %vm433 = vcmask 785408
    %v435 = vsel %vm433, %v391, 0
    %v438 = vsel %vm433, %v392, 0
    %440 = vmatprep.subr.bf16.mxu0 0
    %441 = vmatpush1.bf16.msra.mxu0 0
    %442 = vmatprep.subr.bf16.mxu0 0
    %443 = vmatpush1.bf16.msra.mxu0 0
    %444 = vmatprep.subr.bf16.mxu0 0
    %445 = vmatpush1.bf16.msra.mxu0 %v426
    %446 = vmatprep.subr.bf16.mxu0 0
    %447 = vmatpush1.bf16.msra.mxu0 %v425
    %448 = vmatprep.subr.bf16.mxu0 0
    %449 = vmatpush1.bf16.msra.mxu0 %v424
    %450 = vmatprep.subr.bf16.mxu0 0
    %451 = vmatpush1.bf16.msra.mxu0 %v423
    %452 = vmatprep.subr.bf16.mxu0 0
    %453 = vmatpush1.bf16.msra.mxu0 %v422
    %454 = vmatprep.subr.bf16.mxu0 0
    %455 = vmatpush1.bf16.msra.mxu0 %v421
    %456 = vmatprep.subr.bf16.mxu0 0
    %457 = vmatpush2.bf16.msra.mxu0 0
    %458 = vmatprep.subr.bf16.mxu0 0
    %459 = vmatpush2.bf16.msra.mxu0 0
    %460 = vmatprep.subr.bf16.mxu0 0
    %461 = vmatpush2.bf16.msra.mxu0 0
    %462 = vmatprep.subr.bf16.mxu0 0
    %463 = vmatpush2.bf16.msra.mxu0 0
    %464 = vmatprep.subr.bf16.mxu0 0
    %465 = vmatpush2.bf16.msra.mxu0 0
    %466 = vmatprep.subr.bf16.mxu0 0
    %467 = vmatpush2.bf16.msra.mxu0 0
    %468 = vmatprep.subr.bf16.mxu0 0
    %469 = vmatpush2.bf16.msra.mxu0 0
    %470 = vmatprep.subr.bf16.mxu0 0
    %471 = vmatpush2.bf16.msra.mxu0 0
    %472 = vmatprep.mubr.bf16.mxu0 0
    %473 = vmatmul.mubr.bf16.gmra.mxu0 %v435
    %v474 = vpop.f32.mrf.mxu0
    %v475 = vadd.f32 %v396, %v474
    %v476 = vpop.f32.mrf.mxu0
    %v477 = vpop.f32.mrf.mxu0
    %v478 = vadd.f32 %v396, %v477
    %v479 = vpop.f32.mrf.mxu0
    %480 = vmatprep.mubr.bf16.mxu0 0
    %481 = vmatmul.mubr.bf16.gmra.mxu0 %v438
    %v482 = vpop.f32.mrf.mxu0
    %v483 = vadd.f32 %v396, %v482
    %v484 = vpop.f32.mrf.mxu0
    %v485 = vpop.f32.mrf.mxu0
    %v486 = vadd.f32 %v396, %v485
    %v487 = vpop.f32.mrf.mxu0
    %488 = vdwg.mxu0
    %490 = vset.pattern.permute.xlu0 0
    %491 = vperm.xlu0 %490, %v71
    %v492 = vpop.permute.xlu0 %491
    %495 = vset.pattern.permute.xlu0 0
    %496 = vperm.xlu0 %495, %v72
    %v497 = vpop.permute.xlu0 %496
    %500 = vset.pattern.permute.xlu0 0
    %501 = vperm.xlu0 %500, %v73
    %v502 = vpop.permute.xlu0 %501
    %505 = vset.pattern.permute.xlu0 0
    %506 = vperm.xlu0 %505, %v74
    %v507 = vpop.permute.xlu0 %506
    %v509 = vmul.f32 %v475, %v492
    %v510 = vmul.f32 %v478, %v497
    %v511 = vmul.f32 %v483, %v502
    %v512 = vmul.f32 %v486, %v507
    %v513 = vmul.f32 %v509, %v492
    %v514 = vmul.f32 %v510, %v497
    %v515 = vmul.f32 %v511, %v502
    %v516 = vmul.f32 %v512, %v507
    %v517 = vpack.c.bf16 %v514, %v513
    %v518 = vpack.c.bf16 %v516, %v515
    %v519 = vld [vmem:[%s9] sm:$0xff]
    %v520 = vld [vmem:[%s9 + $0x8] sm:$0xff]
    %v521 = vld [vmem:[%s9 + $0x10] sm:$0xff]
    %v522 = vld [vmem:[%s9 + $0x18] sm:$0xff]
    %v523 = vld [vmem:[%s9 + $0x20] sm:$0xff]
    %v524 = vld [vmem:[%s9 + $0x28] sm:$0xff]
    %v525 = vld [vmem:[%s9 + $0x30] sm:$0xff]
    %v526 = vld [vmem:[%s9 + $0x38] sm:$0xff]
    %v527 = vld [vmem:[%s9 + $0x40] sm:$0xff]
    %v528 = vld [vmem:[%s9 + $0x48] sm:$0xff]
    %v529 = vld [vmem:[%s9 + $0x50] sm:$0xff]
    %v530 = vld [vmem:[%s9 + $0x58] sm:$0xff]
    %v531 = vld [vmem:[%s10] sm:$0x3f]
    %v533 = vlaneseq
    %v534 = vshrl.u32 %v533, 7
    %v535 = vsub.s32 0, %v534
    %v536 = vrot.slane %v531, %v535
    %v537 = vlaneseq
    %v538 = vshrl.u32 %v537, 7
    %v539 = vsub.s32 1, %v538
    %v540 = vrot.slane %v531, %v539
    %v541 = vlaneseq
    %v542 = vshrl.u32 %v541, 7
    %v543 = vsub.s32 2, %v542
    %v544 = vrot.slane %v531, %v543
    %v545 = vlaneseq
    %v546 = vshrl.u32 %v545, 7
    %v547 = vsub.s32 3, %v546
    %v548 = vrot.slane %v531, %v547
    %v549 = vlaneseq
    %v550 = vshrl.u32 %v549, 7
    %v551 = vsub.s32 4, %v550
    %v552 = vrot.slane %v531, %v551
    %v553 = vlaneseq
    %v554 = vshrl.u32 %v553, 7
    %v555 = vsub.s32 5, %v554
    %v556 = vrot.slane %v531, %v555
    %v575 = vunpack.c.l.b16 %v519
    %v576 = vunpack.c.h.b16 %v519
    %v577 = vunpack.c.l.b16 %v520
    %v578 = vunpack.c.h.b16 %v520
    %v579 = vunpack.c.l.b16 %v521
    %v580 = vunpack.c.h.b16 %v521
    %v581 = vunpack.c.l.b16 %v522
    %v582 = vunpack.c.h.b16 %v522
    %v583 = vunpack.c.l.b16 %v523
    %v584 = vunpack.c.h.b16 %v523
    %v585 = vunpack.c.l.b16 %v524
    %v586 = vunpack.c.h.b16 %v524
    %v587 = vunpack.c.l.b16 %v525
    %v588 = vunpack.c.h.b16 %v525
    %v589 = vunpack.c.l.b16 %v526
    %v590 = vunpack.c.h.b16 %v526
    %v591 = vunpack.c.l.b16 %v527
    %v592 = vunpack.c.h.b16 %v527
    %v593 = vunpack.c.l.b16 %v528
    %v594 = vunpack.c.h.b16 %v528
    %v595 = vunpack.c.l.b16 %v529
    %v596 = vunpack.c.h.b16 %v529
    %v597 = vunpack.c.l.b16 %v530
    %v598 = vunpack.c.h.b16 %v530
    %v599 = vpack.c.b16 %v581, %v575
    %v600 = vpack.c.b16 %v582, %v576
    %v601 = vpack.c.b16 %v583, %v577
    %v602 = vpack.c.b16 %v584, %v578
    %v603 = vpack.c.b16 %v585, %v579
    %v604 = vpack.c.b16 %v586, %v580
    %v605 = vpack.c.b16 %v593, %v587
    %v606 = vpack.c.b16 %v594, %v588
    %v607 = vpack.c.b16 %v595, %v589
    %v608 = vpack.c.b16 %v596, %v590
    %v609 = vpack.c.b16 %v597, %v591
    %v610 = vpack.c.b16 %v598, %v592
    %v624 = vsel %vm381, %v517, 0
    %v627 = vsel %vm381, %v518, 0
    %629 = vmatprep.subr.bf16.mxu0 0
    %630 = vmatpush1.bf16.msra.mxu0 0
    %631 = vmatprep.subr.bf16.mxu0 0
    %632 = vmatpush1.bf16.msra.mxu0 0
    %633 = vmatprep.subr.bf16.mxu0 0
    %634 = vmatpush1.bf16.msra.mxu0 0
    %635 = vmatprep.subr.bf16.mxu0 0
    %636 = vmatpush1.bf16.msra.mxu0 0
    %637 = vmatprep.subr.bf16.mxu0 0
    %638 = vmatpush1.bf16.msra.mxu0 0
    %639 = vmatprep.subr.bf16.mxu0 0
    %640 = vmatpush1.bf16.msra.mxu0 0
    %641 = vmatprep.subr.bf16.mxu0 %v606
    %642 = vmatpush1.bf16.msra.mxu0 %v605
    %643 = vmatprep.subr.bf16.mxu0 %v600
    %644 = vmatpush1.bf16.msra.mxu0 %v599
    %645 = vmatprep.subr.bf16.mxu0 0
    %646 = vmatpush2.bf16.msra.mxu0 0
    %647 = vmatprep.subr.bf16.mxu0 0
    %648 = vmatpush2.bf16.msra.mxu0 0
    %649 = vmatprep.subr.bf16.mxu0 0
    %650 = vmatpush2.bf16.msra.mxu0 0
    %651 = vmatprep.subr.bf16.mxu0 0
    %652 = vmatpush2.bf16.msra.mxu0 0
    %653 = vmatprep.subr.bf16.mxu0 0
    %654 = vmatpush2.bf16.msra.mxu0 0
    %655 = vmatprep.subr.bf16.mxu0 0
    %656 = vmatpush2.bf16.msra.mxu0 0
    %657 = vmatprep.subr.bf16.mxu0 0
    %658 = vmatpush2.bf16.msra.mxu0 0
    %659 = vmatprep.subr.bf16.mxu0 0
    %660 = vmatpush2.bf16.msra.mxu0 0
    %661 = vmatprep.mubr.bf16.mxu0 0
    %662 = vmatmul.mubr.bf16.gmra.mxu0 %v624
    %v663 = vpop.f32.mrf.mxu0
    %v664 = vadd.f32 %v536, %v663
    %v665 = vpop.f32.mrf.mxu0
    %v666 = vadd.f32 %v540, %v665
    %v667 = vpop.f32.mrf.mxu0
    %v668 = vadd.f32 %v536, %v667
    %v669 = vpop.f32.mrf.mxu0
    %v670 = vadd.f32 %v540, %v669
    %671 = vmatprep.mubr.bf16.mxu0 0
    %672 = vmatmul.mubr.bf16.gmra.mxu0 %v627
    %v673 = vpop.f32.mrf.mxu0
    %v674 = vadd.f32 %v536, %v673
    %v675 = vpop.f32.mrf.mxu0
    %v676 = vadd.f32 %v540, %v675
    %v677 = vpop.f32.mrf.mxu0
    %v678 = vadd.f32 %v536, %v677
    %v679 = vpop.f32.mrf.mxu0
    %v680 = vadd.f32 %v540, %v679
    %681 = vdwg.mxu0
    %682 = vmatprep.subr.bf16.mxu0 0
    %683 = vmatpush1.bf16.msra.mxu0 0
    %684 = vmatprep.subr.bf16.mxu0 0
    %685 = vmatpush1.bf16.msra.mxu0 0
    %686 = vmatprep.subr.bf16.mxu0 0
    %687 = vmatpush1.bf16.msra.mxu0 0
    %688 = vmatprep.subr.bf16.mxu0 0
    %689 = vmatpush1.bf16.msra.mxu0 0
    %690 = vmatprep.subr.bf16.mxu0 0
    %691 = vmatpush1.bf16.msra.mxu0 0
    %692 = vmatprep.subr.bf16.mxu0 0
    %693 = vmatpush1.bf16.msra.mxu0 0
    %694 = vmatprep.subr.bf16.mxu0 %v608
    %695 = vmatpush1.bf16.msra.mxu0 %v607
    %696 = vmatprep.subr.bf16.mxu0 %v602
    %697 = vmatpush1.bf16.msra.mxu0 %v601
    %698 = vmatprep.subr.bf16.mxu0 0
    %699 = vmatpush2.bf16.msra.mxu0 0
    %700 = vmatprep.subr.bf16.mxu0 0
    %701 = vmatpush2.bf16.msra.mxu0 0
    %702 = vmatprep.subr.bf16.mxu0 0
    %703 = vmatpush2.bf16.msra.mxu0 0
    %704 = vmatprep.subr.bf16.mxu0 0
    %705 = vmatpush2.bf16.msra.mxu0 0
    %706 = vmatprep.subr.bf16.mxu0 0
    %707 = vmatpush2.bf16.msra.mxu0 0
    %708 = vmatprep.subr.bf16.mxu0 0
    %709 = vmatpush2.bf16.msra.mxu0 0
    %710 = vmatprep.subr.bf16.mxu0 0
    %711 = vmatpush2.bf16.msra.mxu0 0
    %712 = vmatprep.subr.bf16.mxu0 0
    %713 = vmatpush2.bf16.msra.mxu0 0
    %714 = vmatprep.mubr.bf16.mxu0 0
    %715 = vmatmul.mubr.bf16.gmra.mxu0 %v624
    %v716 = vpop.f32.mrf.mxu0
    %v717 = vadd.f32 %v544, %v716
    %v718 = vpop.f32.mrf.mxu0
    %v719 = vadd.f32 %v548, %v718
    %v720 = vpop.f32.mrf.mxu0
    %v721 = vadd.f32 %v544, %v720
    %v722 = vpop.f32.mrf.mxu0
    %v723 = vadd.f32 %v548, %v722
    %724 = vmatprep.mubr.bf16.mxu0 0
    %725 = vmatmul.mubr.bf16.gmra.mxu0 %v627
    %v726 = vpop.f32.mrf.mxu0
    %v727 = vadd.f32 %v544, %v726
    %v728 = vpop.f32.mrf.mxu0
    %v729 = vadd.f32 %v548, %v728
    %v730 = vpop.f32.mrf.mxu0
    %v731 = vadd.f32 %v544, %v730
    %v732 = vpop.f32.mrf.mxu0
    %v733 = vadd.f32 %v548, %v732
    %734 = vdwg.mxu0
    %735 = vmatprep.subr.bf16.mxu0 0
    %736 = vmatpush1.bf16.msra.mxu0 0
    %737 = vmatprep.subr.bf16.mxu0 0
    %738 = vmatpush1.bf16.msra.mxu0 0
    %739 = vmatprep.subr.bf16.mxu0 0
    %740 = vmatpush1.bf16.msra.mxu0 0
    %741 = vmatprep.subr.bf16.mxu0 0
    %742 = vmatpush1.bf16.msra.mxu0 0
    %743 = vmatprep.subr.bf16.mxu0 0
    %744 = vmatpush1.bf16.msra.mxu0 0
    %745 = vmatprep.subr.bf16.mxu0 0
    %746 = vmatpush1.bf16.msra.mxu0 0
    %747 = vmatprep.subr.bf16.mxu0 %v610
    %748 = vmatpush1.bf16.msra.mxu0 %v609
    %749 = vmatprep.subr.bf16.mxu0 %v604
    %750 = vmatpush1.bf16.msra.mxu0 %v603
    %751 = vmatprep.subr.bf16.mxu0 0
    %752 = vmatpush2.bf16.msra.mxu0 0
    %753 = vmatprep.subr.bf16.mxu0 0
    %754 = vmatpush2.bf16.msra.mxu0 0
    %755 = vmatprep.subr.bf16.mxu0 0
    %756 = vmatpush2.bf16.msra.mxu0 0
    %757 = vmatprep.subr.bf16.mxu0 0
    %758 = vmatpush2.bf16.msra.mxu0 0
    %759 = vmatprep.subr.bf16.mxu0 0
    %760 = vmatpush2.bf16.msra.mxu0 0
    %761 = vmatprep.subr.bf16.mxu0 0
    %762 = vmatpush2.bf16.msra.mxu0 0
    %763 = vmatprep.subr.bf16.mxu0 0
    %764 = vmatpush2.bf16.msra.mxu0 0
    %765 = vmatprep.subr.bf16.mxu0 0
    %766 = vmatpush2.bf16.msra.mxu0 0
    %767 = vmatprep.mubr.bf16.mxu0 0
    %768 = vmatmul.mubr.bf16.gmra.mxu0 %v624
    %v769 = vpop.f32.mrf.mxu0
    %v770 = vadd.f32 %v552, %v769
    %v771 = vpop.f32.mrf.mxu0
    %v772 = vadd.f32 %v556, %v771
    %v773 = vpop.f32.mrf.mxu0
    %v774 = vadd.f32 %v552, %v773
    %v775 = vpop.f32.mrf.mxu0
    %v776 = vadd.f32 %v556, %v775
    %777 = vmatprep.mubr.bf16.mxu0 0
    %778 = vmatmul.mubr.bf16.gmra.mxu0 %v627
    %v779 = vpop.f32.mrf.mxu0
    %v780 = vadd.f32 %v552, %v779
    %v781 = vpop.f32.mrf.mxu0
    %v782 = vadd.f32 %v556, %v781
    %v783 = vpop.f32.mrf.mxu0
    %v784 = vadd.f32 %v552, %v783
    %v785 = vpop.f32.mrf.mxu0
    %v786 = vadd.f32 %v556, %v785
    %787 = vdwg.mxu0
    %v788 = vld [vmem:[%s11] sm:$0xf]
    %v789 = vld [vmem:[%s11 + $0x4] sm:$0xf]
    %v790 = vld [vmem:[%s11 + $0x8] sm:$0xf]
    %v791 = vld [vmem:[%s11 + $0xc] sm:$0xf]
    %v792 = vld [vmem:[%s11 + $0x10] sm:$0xf]
    %v793 = vld [vmem:[%s11 + $0x14] sm:$0xf]
    %v794 = vld [vmem:[%s11 + $0x18] sm:$0xf]
    %v795 = vld [vmem:[%s11 + $0x1c] sm:$0xf]
    %v796 = vld [vmem:[%s11 + $0x20] sm:$0xf]
    %v797 = vld [vmem:[%s11 + $0x24] sm:$0xf]
    %v798 = vld [vmem:[%s11 + $0x28] sm:$0xf]
    %v799 = vld [vmem:[%s11 + $0x2c] sm:$0xf]
    %v800 = vld [vmem:[%s11 + $0x30] sm:$0xf]
    %v801 = vld [vmem:[%s11 + $0x34] sm:$0xf]
    %v802 = vld [vmem:[%s11 + $0x38] sm:$0xf]
    %v803 = vld [vmem:[%s11 + $0x3c] sm:$0xf]
    %v804 = vld [vmem:[%s11 + $0x40] sm:$0xf]
    %v805 = vld [vmem:[%s11 + $0x44] sm:$0xf]
    %v806 = vld [vmem:[%s11 + $0x48] sm:$0xf]
    %v807 = vld [vmem:[%s11 + $0x4c] sm:$0xf]
    %v808 = vld [vmem:[%s11 + $0x50] sm:$0xf]
    %v809 = vld [vmem:[%s11 + $0x54] sm:$0xf]
    %v810 = vld [vmem:[%s11 + $0x58] sm:$0xf]
    %v811 = vld [vmem:[%s11 + $0x5c] sm:$0xf]
    %v812 = vld [vmem:[%s11 + $0x60] sm:$0xf]
    %v813 = vld [vmem:[%s11 + $0x64] sm:$0xf]
    %v814 = vld [vmem:[%s11 + $0x68] sm:$0xf]
    %v815 = vld [vmem:[%s11 + $0x6c] sm:$0xf]
    %v816 = vld [vmem:[%s11 + $0x70] sm:$0xf]
    %v817 = vld [vmem:[%s11 + $0x74] sm:$0xf]
    %v818 = vld [vmem:[%s11 + $0x78] sm:$0xf]
    %v819 = vld [vmem:[%s11 + $0x7c] sm:$0xf]
    %v820 = vld [vmem:[%s12] sm:$0x1]
    %v821 = vpack.c.bf16 %v668, %v664
    %v822 = vpack.c.bf16 %v678, %v674
    %v823 = vpack.c.bf16 %v670, %v666
    %v824 = vpack.c.bf16 %v680, %v676
    %v825 = vpack.c.bf16 %v721, %v717
    %v826 = vpack.c.bf16 %v731, %v727
    %827 = vmatprep.subr.bf16.mxu0 0
    %828 = vmatpush1.bf16.xpose.msra.mxu0 0
    %829 = vmatprep.subr.bf16.mxu0 0
    %830 = vmatpush1.bf16.xpose.msra.mxu0 0
    %831 = vmatprep.subr.bf16.mxu0 0
    %832 = vmatpush1.bf16.xpose.msra.mxu0 0
    %833 = vmatprep.subr.bf16.mxu0 0
    %834 = vmatpush1.bf16.xpose.msra.mxu0 0
    %835 = vmatprep.subr.bf16.mxu0 0
    %836 = vmatpush1.bf16.xpose.msra.mxu0 0
    %837 = vmatprep.subr.bf16.mxu0 0
    %838 = vmatpush1.bf16.xpose.msra.mxu0 0
    %839 = vmatprep.subr.bf16.mxu0 0
    %840 = vmatpush1.bf16.xpose.msra.mxu0 0
    %841 = vmatprep.subr.bf16.mxu0 0
    %842 = vmatpush1.bf16.xpose.msra.mxu0 %v823
    %843 = vmatprep.subr.bf16.mxu0 0
    %844 = vmatpush2.bf16.xpose.msra.mxu0 0
    %845 = vmatprep.subr.bf16.mxu0 0
    %846 = vmatpush2.bf16.xpose.msra.mxu0 0
    %847 = vmatprep.subr.bf16.mxu0 0
    %848 = vmatpush2.bf16.xpose.msra.mxu0 0
    %849 = vmatprep.subr.bf16.mxu0 0
    %850 = vmatpush2.bf16.xpose.msra.mxu0 0
    %851 = vmatprep.subr.bf16.mxu0 0
    %852 = vmatpush2.bf16.xpose.msra.mxu0 0
    %853 = vmatprep.subr.bf16.mxu0 0
    %854 = vmatpush2.bf16.xpose.msra.mxu0 0
    %855 = vmatprep.subr.bf16.mxu0 0
    %856 = vmatpush2.bf16.xpose.msra.mxu0 0
    %857 = vmatprep.subr.bf16.mxu0 0
    %858 = vmatpush2.bf16.xpose.msra.mxu0 0
    %859 = vmatprep.mubr.bf16.mxu0 0
    %860 = vmatmul.mubr.bf16.gmra.mxu0 %v821
    %v861 = vpop.f32.mrf.mxu0
    %v862 = vadd.f32 0.0, %v861
    %v863 = vpop.f32.mrf.mxu0
    %v864 = vpop.f32.mrf.mxu0
    %v865 = vadd.f32 0.0, %v864
    %v866 = vpop.f32.mrf.mxu0
    %867 = vdwg.mxu0
    %868 = vmatprep.subr.bf16.mxu0 0
    %869 = vmatpush1.bf16.xpose.msra.mxu0 0
    %870 = vmatprep.subr.bf16.mxu0 0
    %871 = vmatpush1.bf16.xpose.msra.mxu0 0
    %872 = vmatprep.subr.bf16.mxu0 0
    %873 = vmatpush1.bf16.xpose.msra.mxu0 0
    %874 = vmatprep.subr.bf16.mxu0 0
    %875 = vmatpush1.bf16.xpose.msra.mxu0 0
    %876 = vmatprep.subr.bf16.mxu0 0
    %877 = vmatpush1.bf16.xpose.msra.mxu0 0
    %878 = vmatprep.subr.bf16.mxu0 0
    %879 = vmatpush1.bf16.xpose.msra.mxu0 0
    %880 = vmatprep.subr.bf16.mxu0 0
    %881 = vmatpush1.bf16.xpose.msra.mxu0 0
    %882 = vmatprep.subr.bf16.mxu0 0
    %883 = vmatpush1.bf16.xpose.msra.mxu0 %v824
    %884 = vmatprep.subr.bf16.mxu0 0
    %885 = vmatpush2.bf16.xpose.msra.mxu0 0
    %886 = vmatprep.subr.bf16.mxu0 0
    %887 = vmatpush2.bf16.xpose.msra.mxu0 0
    %888 = vmatprep.subr.bf16.mxu0 0
    %889 = vmatpush2.bf16.xpose.msra.mxu0 0
    %890 = vmatprep.subr.bf16.mxu0 0
    %891 = vmatpush2.bf16.xpose.msra.mxu0 0
    %892 = vmatprep.subr.bf16.mxu0 0
    %893 = vmatpush2.bf16.xpose.msra.mxu0 0
    %894 = vmatprep.subr.bf16.mxu0 0
    %895 = vmatpush2.bf16.xpose.msra.mxu0 0
    %896 = vmatprep.subr.bf16.mxu0 0
    %897 = vmatpush2.bf16.xpose.msra.mxu0 0
    %898 = vmatprep.subr.bf16.mxu0 0
    %899 = vmatpush2.bf16.xpose.msra.mxu0 0
    %900 = vmatprep.mubr.bf16.mxu0 0
    %901 = vmatmul.mubr.bf16.gmra.mxu0 %v822
    %v902 = vpop.f32.mrf.mxu0
    %v903 = vadd.f32 0.0, %v902
    %v904 = vpop.f32.mrf.mxu0
    %v905 = vpop.f32.mrf.mxu0
    %v906 = vadd.f32 0.0, %v905
    %v907 = vpop.f32.mrf.mxu0
    %908 = vdwg.mxu0
    %v909 = vsel %vm88, 1, 0
    %v910 = vsel %vm89, 1, 0
    %vm911 = vcmp.eq.s32.totalorder %v909, 1
    %vm912 = vcmp.eq.s32.totalorder %v910, 1
    %v913 = vsel %vm911, %v862, -10000.0
    %v914 = vsel %vm912, %v865, -10000.0
    %v915 = vsel %vm911, %v903, -10000.0
    %v916 = vsel %vm912, %v906, -10000.0
    %vm917 = vcmask 130048
    %v918 = vsel %vm917, %v913, -inf
    %919 = vmax.xlane.f32.xlu0 %v918
    %v920 = vpop.xlane.xlu0 %919
    %v921 = vsel %vm917, %v914, -inf
    %922 = vmax.xlane.f32.xlu0 %v921
    %v923 = vpop.xlane.xlu0 %922
    %v924 = vsel %vm917, %v915, -inf
    %925 = vmax.xlane.f32.xlu0 %v924
    %v926 = vpop.xlane.xlu0 %925
    %v927 = vsel %vm917, %v916, -inf
    %928 = vmax.xlane.f32.xlu0 %v927
    %v929 = vpop.xlane.xlu0 %928
    %v930 = vsub.f32 %v913, %v920
    %v931 = vsub.f32 %v914, %v923
    %v932 = vsub.f32 %v915, %v926
    %v933 = vsub.f32 %v916, %v929
    %v934 = vmul.f32 %v930, 1.442695
    %v935 = vpow.pop %v934
    %v936 = vmul.f32 %v931, 1.442695
    %v937 = vpow.pop %v936
    %v938 = vmul.f32 %v932, 1.442695
    %v939 = vpow.pop %v938
    %v940 = vmul.f32 %v933, 1.442695
    %v941 = vpow.pop %v940
    %v942 = vsel %vm917, %v935, 0.0
    %943 = vadd.xlane.f32.xlu0 %v942
    %v944 = vpop.xlane.xlu0 %943
    %v945 = vsel %vm917, %v937, 0.0
    %946 = vadd.xlane.f32.xlu0 %v945
    %v947 = vpop.xlane.xlu0 %946
    %v948 = vsel %vm917, %v939, 0.0
    %949 = vadd.xlane.f32.xlu0 %v948
    %v950 = vpop.xlane.xlu0 %949
    %v951 = vsel %vm917, %v941, 0.0
    %952 = vadd.xlane.f32.xlu0 %v951
    %v953 = vpop.xlane.xlu0 %952
    %v954 = vrcp.pop %v944
    %v955 = vrcp.pop %v947
    %v956 = vrcp.pop %v950
    %v957 = vrcp.pop %v953
    %v958 = vmul.f32 %v935, %v954
    %v959 = vmul.f32 %v937, %v955
    %v960 = vmul.f32 %v939, %v956
    %v961 = vmul.f32 %v941, %v957
    %v962 = vpack.c.bf16 %v959, %v958
    %v963 = vpack.c.bf16 %v961, %v960
    %v965 = vsel %vm917, %v962, 0
    %967 = vmatprep.subr.bf16.mxu0 0
    %968 = vmatpush1.bf16.msra.mxu0 0
    %969 = vmatprep.subr.bf16.mxu0 0
    %970 = vmatpush1.bf16.msra.mxu0 0
    %971 = vmatprep.subr.bf16.mxu0 0
    %972 = vmatpush1.bf16.msra.mxu0 0
    %973 = vmatprep.subr.bf16.mxu0 0
    %974 = vmatpush1.bf16.msra.mxu0 0
    %975 = vmatprep.subr.bf16.mxu0 0
    %976 = vmatpush1.bf16.msra.mxu0 0
    %977 = vmatprep.subr.bf16.mxu0 0
    %978 = vmatpush1.bf16.msra.mxu0 0
    %979 = vmatprep.subr.bf16.mxu0 0
    %980 = vmatpush1.bf16.msra.mxu0 0
    %981 = vmatprep.subr.bf16.mxu0 0
    %982 = vmatpush1.bf16.msra.mxu0 %v825
    %983 = vmatprep.subr.bf16.mxu0 0
    %984 = vmatpush2.bf16.msra.mxu0 0
    %985 = vmatprep.subr.bf16.mxu0 0
    %986 = vmatpush2.bf16.msra.mxu0 0
    %987 = vmatprep.subr.bf16.mxu0 0
    %988 = vmatpush2.bf16.msra.mxu0 0
    %989 = vmatprep.subr.bf16.mxu0 0
    %990 = vmatpush2.bf16.msra.mxu0 0
    %991 = vmatprep.subr.bf16.mxu0 0
    %992 = vmatpush2.bf16.msra.mxu0 0
    %993 = vmatprep.subr.bf16.mxu0 0
    %994 = vmatpush2.bf16.msra.mxu0 0
    %995 = vmatprep.subr.bf16.mxu0 0
    %996 = vmatpush2.bf16.msra.mxu0 0
    %997 = vmatprep.subr.bf16.mxu0 0
    %998 = vmatpush2.bf16.msra.mxu0 0
    %999 = vmatprep.mubr.bf16.mxu0 0
    %1000 = vmatmul.mubr.bf16.gmra.mxu0 %v965
    %v1001 = vpop.f32.mrf.mxu0
    %v1002 = vadd.f32 0.0, %v1001
    %v1003 = vpop.f32.mrf.mxu0
    %v1004 = vpop.f32.mrf.mxu0
    %v1005 = vadd.f32 0.0, %v1004
    %v1006 = vpop.f32.mrf.mxu0
    %1007 = vdwg.mxu0
    %v1009 = vsel %vm917, %v963, 0
    %1011 = vmatprep.subr.bf16.mxu0 0
    %1012 = vmatpush1.bf16.msra.mxu0 0
    %1013 = vmatprep.subr.bf16.mxu0 0
    %1014 = vmatpush1.bf16.msra.mxu0 0
    %1015 = vmatprep.subr.bf16.mxu0 0
    %1016 = vmatpush1.bf16.msra.mxu0 0
    %1017 = vmatprep.subr.bf16.mxu0 0
    %1018 = vmatpush1.bf16.msra.mxu0 0
    %1019 = vmatprep.subr.bf16.mxu0 0
    %1020 = vmatpush1.bf16.msra.mxu0 0
    %1021 = vmatprep.subr.bf16.mxu0 0
    %1022 = vmatpush1.bf16.msra.mxu0 0
    %1023 = vmatprep.subr.bf16.mxu0 0
    %1024 = vmatpush1.bf16.msra.mxu0 0
    %1025 = vmatprep.subr.bf16.mxu0 0
    %1026 = vmatpush1.bf16.msra.mxu0 %v826
    %1027 = vmatprep.subr.bf16.mxu0 0
    %1028 = vmatpush2.bf16.msra.mxu0 0
    %1029 = vmatprep.subr.bf16.mxu0 0
    %1030 = vmatpush2.bf16.msra.mxu0 0
    %1031 = vmatprep.subr.bf16.mxu0 0
    %1032 = vmatpush2.bf16.msra.mxu0 0
    %1033 = vmatprep.subr.bf16.mxu0 0
    %1034 = vmatpush2.bf16.msra.mxu0 0
    %1035 = vmatprep.subr.bf16.mxu0 0
    %1036 = vmatpush2.bf16.msra.mxu0 0
    %1037 = vmatprep.subr.bf16.mxu0 0
    %1038 = vmatpush2.bf16.msra.mxu0 0
    %1039 = vmatprep.subr.bf16.mxu0 0
    %1040 = vmatpush2.bf16.msra.mxu0 0
    %1041 = vmatprep.subr.bf16.mxu0 0
    %1042 = vmatpush2.bf16.msra.mxu0 0
    %1043 = vmatprep.mubr.bf16.mxu0 0
    %1044 = vmatmul.mubr.bf16.gmra.mxu0 %v1009
    %v1045 = vpop.f32.mrf.mxu0
    %v1046 = vadd.f32 0.0, %v1045
    %v1047 = vpop.f32.mrf.mxu0
    %v1048 = vpop.f32.mrf.mxu0
    %v1049 = vadd.f32 0.0, %v1048
    %v1050 = vpop.f32.mrf.mxu0
    %1051 = vdwg.mxu0
    %v1052 = vpack.c.bf16 %v1005, %v1002
    %v1053 = vpack.c.bf16 %v1049, %v1046
    %v1070 = vunpack.c.l.b16 %v788
    %v1071 = vunpack.c.l.b16 %v789
    %v1072 = vunpack.c.l.b16 %v790
    %v1073 = vunpack.c.l.b16 %v791
    %v1074 = vunpack.c.l.b16 %v792
    %v1075 = vunpack.c.l.b16 %v793
    %v1076 = vunpack.c.l.b16 %v794
    %v1077 = vunpack.c.l.b16 %v795
    %v1078 = vunpack.c.l.b16 %v796
    %v1079 = vunpack.c.l.b16 %v797
    %v1080 = vunpack.c.l.b16 %v798
    %v1081 = vunpack.c.l.b16 %v799
    %v1082 = vunpack.c.l.b16 %v800
    %v1083 = vunpack.c.l.b16 %v801
    %v1084 = vunpack.c.l.b16 %v802
    %v1085 = vunpack.c.l.b16 %v803
    %v1086 = vpack.c.b16 %v1071, %v1070
    %v1087 = vpack.c.b16 %v1073, %v1072
    %v1088 = vpack.c.b16 %v1075, %v1074
    %v1089 = vpack.c.b16 %v1077, %v1076
    %v1090 = vpack.c.b16 %v1079, %v1078
    %v1091 = vpack.c.b16 %v1081, %v1080
    %v1092 = vpack.c.b16 %v1083, %v1082
    %v1093 = vpack.c.b16 %v1085, %v1084
    %1102 = vmatprep.subr.bf16.mxu0 0
    %1103 = vmatpush1.bf16.msra.mxu0 %v1093
    %1104 = vmatprep.subr.bf16.mxu0 0
    %1105 = vmatpush1.bf16.msra.mxu0 %v1092
    %1106 = vmatprep.subr.bf16.mxu0 0
    %1107 = vmatpush1.bf16.msra.mxu0 %v1091
    %1108 = vmatprep.subr.bf16.mxu0 0
    %1109 = vmatpush1.bf16.msra.mxu0 %v1090
    %1110 = vmatprep.subr.bf16.mxu0 0
    %1111 = vmatpush1.bf16.msra.mxu0 %v1089
    %1112 = vmatprep.subr.bf16.mxu0 0
    %1113 = vmatpush1.bf16.msra.mxu0 %v1088
    %1114 = vmatprep.subr.bf16.mxu0 0
    %1115 = vmatpush1.bf16.msra.mxu0 %v1087
    %1116 = vmatprep.subr.bf16.mxu0 0
    %1117 = vmatpush1.bf16.msra.mxu0 %v1086
    %1118 = vmatprep.subr.bf16.mxu0 0
    %1119 = vmatpush2.bf16.msra.mxu0 0
    %1120 = vmatprep.subr.bf16.mxu0 0
    %1121 = vmatpush2.bf16.msra.mxu0 0
    %1122 = vmatprep.subr.bf16.mxu0 0
    %1123 = vmatpush2.bf16.msra.mxu0 0
    %1124 = vmatprep.subr.bf16.mxu0 0
    %1125 = vmatpush2.bf16.msra.mxu0 0
    %1126 = vmatprep.subr.bf16.mxu0 0
    %1127 = vmatpush2.bf16.msra.mxu0 0
    %1128 = vmatprep.subr.bf16.mxu0 0
    %1129 = vmatpush2.bf16.msra.mxu0 0
    %1130 = vmatprep.subr.bf16.mxu0 0
    %1131 = vmatpush2.bf16.msra.mxu0 0
    %1132 = vmatprep.subr.bf16.mxu0 0
    %1133 = vmatpush2.bf16.msra.mxu0 0
    %1134 = vmatprep.mubr.bf16.mxu0 0
    %1135 = vmatmul.mubr.bf16.gmra.mxu0 %v1052
    %v1136 = vpop.f32.mrf.mxu0
    %v1137 = vadd.f32 0.0, %v1136
    %v1138 = vpop.f32.mrf.mxu0
    %v1139 = vpop.f32.mrf.mxu0
    %v1140 = vadd.f32 0.0, %v1139
    %v1141 = vpop.f32.mrf.mxu0
    %1142 = vmatprep.mubr.bf16.mxu0 0
    %1143 = vmatmul.mubr.bf16.gmra.mxu0 %v1053
    %v1144 = vpop.f32.mrf.mxu0
    %v1145 = vadd.f32 0.0, %v1144
    %v1146 = vpop.f32.mrf.mxu0
    %v1147 = vpop.f32.mrf.mxu0
    %v1148 = vadd.f32 0.0, %v1147
    %v1149 = vpop.f32.mrf.mxu0
    %1150 = vdwg.mxu0
    %v1152 = vlaneseq
    %v1153 = vshrl.u32 %v1152, 7
    %v1154 = vsub.s32 0, %v1153
    %v1155 = vrot.slane %v820, %v1154
    %v1157 = vadd.f32 %v1155, %v1137
    %v1158 = vadd.f32 %v1155, %v1140
    %v1159 = vadd.f32 %v1155, %v1145
    %v1160 = vadd.f32 %v1155, %v1148
    %v1161 = vpack.c.bf16 %v723, %v719
    %v1162 = vpack.c.bf16 %v733, %v729
    %v1163 = vpack.c.bf16 %v774, %v770
    %v1164 = vpack.c.bf16 %v784, %v780
    %v1165 = vpack.c.bf16 %v776, %v772
    %v1166 = vpack.c.bf16 %v786, %v782
    %1167 = vmatprep.subr.bf16.mxu0 0
    %1168 = vmatpush1.bf16.xpose.msra.mxu0 0
    %1169 = vmatprep.subr.bf16.mxu0 0
    %1170 = vmatpush1.bf16.xpose.msra.mxu0 0
    %1171 = vmatprep.subr.bf16.mxu0 0
    %1172 = vmatpush1.bf16.xpose.msra.mxu0 0
    %1173 = vmatprep.subr.bf16.mxu0 0
    %1174 = vmatpush1.bf16.xpose.msra.mxu0 0
    %1175 = vmatprep.subr.bf16.mxu0 0
    %1176 = vmatpush1.bf16.xpose.msra.mxu0 0
    %1177 = vmatprep.subr.bf16.mxu0 0
    %1178 = vmatpush1.bf16.xpose.msra.mxu0 0
    %1179 = vmatprep.subr.bf16.mxu0 0
    %1180 = vmatpush1.bf16.xpose.msra.mxu0 0
    %1181 = vmatprep.subr.bf16.mxu0 0
    %1182 = vmatpush1.bf16.xpose.msra.mxu0 %v1163
    %1183 = vmatprep.subr.bf16.mxu0 0
    %1184 = vmatpush2.bf16.xpose.msra.mxu0 0
    %1185 = vmatprep.subr.bf16.mxu0 0
    %1186 = vmatpush2.bf16.xpose.msra.mxu0 0
    %1187 = vmatprep.subr.bf16.mxu0 0
    %1188 = vmatpush2.bf16.xpose.msra.mxu0 0
    %1189 = vmatprep.subr.bf16.mxu0 0
    %1190 = vmatpush2.bf16.xpose.msra.mxu0 0
    %1191 = vmatprep.subr.bf16.mxu0 0
    %1192 = vmatpush2.bf16.xpose.msra.mxu0 0
    %1193 = vmatprep.subr.bf16.mxu0 0
    %1194 = vmatpush2.bf16.xpose.msra.mxu0 0
    %1195 = vmatprep.subr.bf16.mxu0 0
    %1196 = vmatpush2.bf16.xpose.msra.mxu0 0
    %1197 = vmatprep.subr.bf16.mxu0 0
    %1198 = vmatpush2.bf16.xpose.msra.mxu0 0
    %1199 = vmatprep.mubr.bf16.mxu0 0
    %1200 = vmatmul.mubr.bf16.gmra.mxu0 %v1161
    %v1201 = vpop.f32.mrf.mxu0
    %v1202 = vadd.f32 0.0, %v1201
    %v1203 = vpop.f32.mrf.mxu0
    %v1204 = vpop.f32.mrf.mxu0
    %v1205 = vadd.f32 0.0, %v1204
    %v1206 = vpop.f32.mrf.mxu0
    %1207 = vdwg.mxu0
    %1208 = vmatprep.subr.bf16.mxu0 0
    %1209 = vmatpush1.bf16.xpose.msra.mxu0 0
    %1210 = vmatprep.subr.bf16.mxu0 0
    %1211 = vmatpush1.bf16.xpose.msra.mxu0 0
    %1212 = vmatprep.subr.bf16.mxu0 0
    %1213 = vmatpush1.bf16.xpose.msra.mxu0 0
    %1214 = vmatprep.subr.bf16.mxu0 0
    %1215 = vmatpush1.bf16.xpose.msra.mxu0 0
    %1216 = vmatprep.subr.bf16.mxu0 0
    %1217 = vmatpush1.bf16.xpose.msra.mxu0 0
    %1218 = vmatprep.subr.bf16.mxu0 0
    %1219 = vmatpush1.bf16.xpose.msra.mxu0 0
    %1220 = vmatprep.subr.bf16.mxu0 0
    %1221 = vmatpush1.bf16.xpose.msra.mxu0 0
    %1222 = vmatprep.subr.bf16.mxu0 0
    %1223 = vmatpush1.bf16.xpose.msra.mxu0 %v1164
    %1224 = vmatprep.subr.bf16.mxu0 0
    %1225 = vmatpush2.bf16.xpose.msra.mxu0 0
    %1226 = vmatprep.subr.bf16.mxu0 0
    %1227 = vmatpush2.bf16.xpose.msra.mxu0 0
    %1228 = vmatprep.subr.bf16.mxu0 0
    %1229 = vmatpush2.bf16.xpose.msra.mxu0 0
    %1230 = vmatprep.subr.bf16.mxu0 0
    %1231 = vmatpush2.bf16.xpose.msra.mxu0 0
    %1232 = vmatprep.subr.bf16.mxu0 0
    %1233 = vmatpush2.bf16.xpose.msra.mxu0 0
    %1234 = vmatprep.subr.bf16.mxu0 0
    %1235 = vmatpush2.bf16.xpose.msra.mxu0 0
    %1236 = vmatprep.subr.bf16.mxu0 0
    %1237 = vmatpush2.bf16.xpose.msra.mxu0 0
    %1238 = vmatprep.subr.bf16.mxu0 0
    %1239 = vmatpush2.bf16.xpose.msra.mxu0 0
    %1240 = vmatprep.mubr.bf16.mxu0 0
    %1241 = vmatmul.mubr.bf16.gmra.mxu0 %v1162
    %v1242 = vpop.f32.mrf.mxu0
    %v1243 = vadd.f32 0.0, %v1242
    %v1244 = vpop.f32.mrf.mxu0
    %v1245 = vpop.f32.mrf.mxu0
    %v1246 = vadd.f32 0.0, %v1245
    %v1247 = vpop.f32.mrf.mxu0
    %1248 = vdwg.mxu0
    %v1249 = vsel %vm911, %v1202, -10000.0
    %v1250 = vsel %vm912, %v1205, -10000.0
    %v1251 = vsel %vm911, %v1243, -10000.0
    %v1252 = vsel %vm912, %v1246, -10000.0
    %v1253 = vsel %vm917, %v1249, -inf
    %1254 = vmax.xlane.f32.xlu0 %v1253
    %v1255 = vpop.xlane.xlu0 %1254
    %v1256 = vsel %vm917, %v1250, -inf
    %1257 = vmax.xlane.f32.xlu0 %v1256
    %v1258 = vpop.xlane.xlu0 %1257
    %v1259 = vsel %vm917, %v1251, -inf
    %1260 = vmax.xlane.f32.xlu0 %v1259
    %v1261 = vpop.xlane.xlu0 %1260
    %v1262 = vsel %vm917, %v1252, -inf
    %1263 = vmax.xlane.f32.xlu0 %v1262
    %v1264 = vpop.xlane.xlu0 %1263
    %v1265 = vsub.f32 %v1249, %v1255
    %v1266 = vsub.f32 %v1250, %v1258
    %v1267 = vsub.f32 %v1251, %v1261
    %v1268 = vsub.f32 %v1252, %v1264
    %v1269 = vmul.f32 %v1265, 1.442695
    %v1270 = vpow.pop %v1269
    %v1271 = vmul.f32 %v1266, 1.442695
    %v1272 = vpow.pop %v1271
    %v1273 = vmul.f32 %v1267, 1.442695
    %v1274 = vpow.pop %v1273
    %v1275 = vmul.f32 %v1268, 1.442695
    %v1276 = vpow.pop %v1275
    %v1277 = vsel %vm917, %v1270, 0.0
    %1278 = vadd.xlane.f32.xlu0 %v1277
    %v1279 = vpop.xlane.xlu0 %1278
    %v1280 = vsel %vm917, %v1272, 0.0
    %1281 = vadd.xlane.f32.xlu0 %v1280
    %v1282 = vpop.xlane.xlu0 %1281
    %v1283 = vsel %vm917, %v1274, 0.0
    %1284 = vadd.xlane.f32.xlu0 %v1283
    %v1285 = vpop.xlane.xlu0 %1284
    %v1286 = vsel %vm917, %v1276, 0.0
    %1287 = vadd.xlane.f32.xlu0 %v1286
    %v1288 = vpop.xlane.xlu0 %1287
    %v1289 = vrcp.pop %v1279
    %v1290 = vrcp.pop %v1282
    %v1291 = vrcp.pop %v1285
    %v1292 = vrcp.pop %v1288
    %v1293 = vmul.f32 %v1270, %v1289
    %v1294 = vmul.f32 %v1272, %v1290
    %v1295 = vmul.f32 %v1274, %v1291
    %v1296 = vmul.f32 %v1276, %v1292
    %v1297 = vpack.c.bf16 %v1294, %v1293
    %v1298 = vpack.c.bf16 %v1296, %v1295
    %v1300 = vsel %vm917, %v1297, 0
    %1302 = vmatprep.subr.bf16.mxu0 0
    %1303 = vmatpush1.bf16.msra.mxu0 0
    %1304 = vmatprep.subr.bf16.mxu0 0
    %1305 = vmatpush1.bf16.msra.mxu0 0
    %1306 = vmatprep.subr.bf16.mxu0 0
    %1307 = vmatpush1.bf16.msra.mxu0 0
    %1308 = vmatprep.subr.bf16.mxu0 0
    %1309 = vmatpush1.bf16.msra.mxu0 0
    %1310 = vmatprep.subr.bf16.mxu0 0
    %1311 = vmatpush1.bf16.msra.mxu0 0
    %1312 = vmatprep.subr.bf16.mxu0 0
    %1313 = vmatpush1.bf16.msra.mxu0 0
    %1314 = vmatprep.subr.bf16.mxu0 0
    %1315 = vmatpush1.bf16.msra.mxu0 0
    %1316 = vmatprep.subr.bf16.mxu0 0
    %1317 = vmatpush1.bf16.msra.mxu0 %v1165
    %1318 = vmatprep.subr.bf16.mxu0 0
    %1319 = vmatpush2.bf16.msra.mxu0 0
    %1320 = vmatprep.subr.bf16.mxu0 0
    %1321 = vmatpush2.bf16.msra.mxu0 0
    %1322 = vmatprep.subr.bf16.mxu0 0
    %1323 = vmatpush2.bf16.msra.mxu0 0
    %1324 = vmatprep.subr.bf16.mxu0 0
    %1325 = vmatpush2.bf16.msra.mxu0 0
    %1326 = vmatprep.subr.bf16.mxu0 0
    %1327 = vmatpush2.bf16.msra.mxu0 0
    %1328 = vmatprep.subr.bf16.mxu0 0
    %1329 = vmatpush2.bf16.msra.mxu0 0
    %1330 = vmatprep.subr.bf16.mxu0 0
    %1331 = vmatpush2.bf16.msra.mxu0 0
    %1332 = vmatprep.subr.bf16.mxu0 0
    %1333 = vmatpush2.bf16.msra.mxu0 0
    %1334 = vmatprep.mubr.bf16.mxu0 0
    %1335 = vmatmul.mubr.bf16.gmra.mxu0 %v1300
    %v1336 = vpop.f32.mrf.mxu0
    %v1337 = vadd.f32 0.0, %v1336
    %v1338 = vpop.f32.mrf.mxu0
    %v1339 = vpop.f32.mrf.mxu0
    %v1340 = vadd.f32 0.0, %v1339
    %v1341 = vpop.f32.mrf.mxu0
    %1342 = vdwg.mxu0
    %v1344 = vsel %vm917, %v1298, 0
    %1346 = vmatprep.subr.bf16.mxu0 0
    %1347 = vmatpush1.bf16.msra.mxu0 0
    %1348 = vmatprep.subr.bf16.mxu0 0
    %1349 = vmatpush1.bf16.msra.mxu0 0
    %1350 = vmatprep.subr.bf16.mxu0 0
    %1351 = vmatpush1.bf16.msra.mxu0 0
    %1352 = vmatprep.subr.bf16.mxu0 0
    %1353 = vmatpush1.bf16.msra.mxu0 0
    %1354 = vmatprep.subr.bf16.mxu0 0
    %1355 = vmatpush1.bf16.msra.mxu0 0
    %1356 = vmatprep.subr.bf16.mxu0 0
    %1357 = vmatpush1.bf16.msra.mxu0 0
    %1358 = vmatprep.subr.bf16.mxu0 0
    %1359 = vmatpush1.bf16.msra.mxu0 0
    %1360 = vmatprep.subr.bf16.mxu0 0
    %1361 = vmatpush1.bf16.msra.mxu0 %v1166
    %1362 = vmatprep.subr.bf16.mxu0 0
    %1363 = vmatpush2.bf16.msra.mxu0 0
    %1364 = vmatprep.subr.bf16.mxu0 0
    %1365 = vmatpush2.bf16.msra.mxu0 0
    %1366 = vmatprep.subr.bf16.mxu0 0
    %1367 = vmatpush2.bf16.msra.mxu0 0
    %1368 = vmatprep.subr.bf16.mxu0 0
    %1369 = vmatpush2.bf16.msra.mxu0 0
    %1370 = vmatprep.subr.bf16.mxu0 0
    %1371 = vmatpush2.bf16.msra.mxu0 0
    %1372 = vmatprep.subr.bf16.mxu0 0
    %1373 = vmatpush2.bf16.msra.mxu0 0
    %1374 = vmatprep.subr.bf16.mxu0 0
    %1375 = vmatpush2.bf16.msra.mxu0 0
    %1376 = vmatprep.subr.bf16.mxu0 0
    %1377 = vmatpush2.bf16.msra.mxu0 0
    %1378 = vmatprep.mubr.bf16.mxu0 0
    %1379 = vmatmul.mubr.bf16.gmra.mxu0 %v1344
    %v1380 = vpop.f32.mrf.mxu0
    %v1381 = vadd.f32 0.0, %v1380
    %v1382 = vpop.f32.mrf.mxu0
    %v1383 = vpop.f32.mrf.mxu0
    %v1384 = vadd.f32 0.0, %v1383
    %v1385 = vpop.f32.mrf.mxu0
    %1386 = vdwg.mxu0
    %v1387 = vpack.c.bf16 %v1340, %v1337
    %v1388 = vpack.c.bf16 %v1384, %v1381
    %v1405 = vunpack.c.l.b16 %v804
    %v1406 = vunpack.c.l.b16 %v805
    %v1407 = vunpack.c.l.b16 %v806
    %v1408 = vunpack.c.l.b16 %v807
    %v1409 = vunpack.c.l.b16 %v808
    %v1410 = vunpack.c.l.b16 %v809
    %v1411 = vunpack.c.l.b16 %v810
    %v1412 = vunpack.c.l.b16 %v811
    %v1413 = vunpack.c.l.b16 %v812
    %v1414 = vunpack.c.l.b16 %v813
    %v1415 = vunpack.c.l.b16 %v814
    %v1416 = vunpack.c.l.b16 %v815
    %v1417 = vunpack.c.l.b16 %v816
    %v1418 = vunpack.c.l.b16 %v817
    %v1419 = vunpack.c.l.b16 %v818
    %v1420 = vunpack.c.l.b16 %v819
    %v1421 = vpack.c.b16 %v1406, %v1405
    %v1422 = vpack.c.b16 %v1408, %v1407
    %v1423 = vpack.c.b16 %v1410, %v1409
    %v1424 = vpack.c.b16 %v1412, %v1411
    %v1425 = vpack.c.b16 %v1414, %v1413
    %v1426 = vpack.c.b16 %v1416, %v1415
    %v1427 = vpack.c.b16 %v1418, %v1417
    %v1428 = vpack.c.b16 %v1420, %v1419
    %1437 = vmatprep.subr.bf16.mxu0 0
    %1438 = vmatpush1.bf16.msra.mxu0 %v1428
    %1439 = vmatprep.subr.bf16.mxu0 0
    %1440 = vmatpush1.bf16.msra.mxu0 %v1427
    %1441 = vmatprep.subr.bf16.mxu0 0
    %1442 = vmatpush1.bf16.msra.mxu0 %v1426
    %1443 = vmatprep.subr.bf16.mxu0 0
    %1444 = vmatpush1.bf16.msra.mxu0 %v1425
    %1445 = vmatprep.subr.bf16.mxu0 0
    %1446 = vmatpush1.bf16.msra.mxu0 %v1424
    %1447 = vmatprep.subr.bf16.mxu0 0
    %1448 = vmatpush1.bf16.msra.mxu0 %v1423
    %1449 = vmatprep.subr.bf16.mxu0 0
    %1450 = vmatpush1.bf16.msra.mxu0 %v1422
    %1451 = vmatprep.subr.bf16.mxu0 0
    %1452 = vmatpush1.bf16.msra.mxu0 %v1421
    %1453 = vmatprep.subr.bf16.mxu0 0
    %1454 = vmatpush2.bf16.msra.mxu0 0
    %1455 = vmatprep.subr.bf16.mxu0 0
    %1456 = vmatpush2.bf16.msra.mxu0 0
    %1457 = vmatprep.subr.bf16.mxu0 0
    %1458 = vmatpush2.bf16.msra.mxu0 0
    %1459 = vmatprep.subr.bf16.mxu0 0
    %1460 = vmatpush2.bf16.msra.mxu0 0
    %1461 = vmatprep.subr.bf16.mxu0 0
    %1462 = vmatpush2.bf16.msra.mxu0 0
    %1463 = vmatprep.subr.bf16.mxu0 0
    %1464 = vmatpush2.bf16.msra.mxu0 0
    %1465 = vmatprep.subr.bf16.mxu0 0
    %1466 = vmatpush2.bf16.msra.mxu0 0
    %1467 = vmatprep.subr.bf16.mxu0 0
    %1468 = vmatpush2.bf16.msra.mxu0 0
    %1469 = vmatprep.mubr.bf16.mxu0 0
    %1470 = vmatmul.mubr.bf16.gmra.mxu0 %v1387
    %v1471 = vpop.f32.mrf.mxu0
    %v1472 = vadd.f32 0.0, %v1471
    %v1473 = vpop.f32.mrf.mxu0
    %v1474 = vpop.f32.mrf.mxu0
    %v1475 = vadd.f32 0.0, %v1474
    %v1476 = vpop.f32.mrf.mxu0
    %1477 = vmatprep.mubr.bf16.mxu0 0
    %1478 = vmatmul.mubr.bf16.gmra.mxu0 %v1388
    %v1479 = vpop.f32.mrf.mxu0
    %v1480 = vadd.f32 0.0, %v1479
    %v1481 = vpop.f32.mrf.mxu0
    %v1482 = vpop.f32.mrf.mxu0
    %v1483 = vadd.f32 0.0, %v1482
    %v1484 = vpop.f32.mrf.mxu0
    %1485 = vdwg.mxu0
    %v1486 = vadd.f32 %v1157, %v1472
    %v1487 = vadd.f32 %v1158, %v1475
    %v1488 = vadd.f32 %v1159, %v1480
    %v1489 = vadd.f32 %v1160, %v1483
    %v1490 = vld [vmem:[%s13] sm:$0x1]
    %v1491 = vld [vmem:[%s13 + $0x1] sm:$0x1]
    %v1492 = vld [vmem:[%s13 + $0x2] sm:$0x1]
    %v1493 = vld [vmem:[%s13 + $0x3] sm:$0x1]
    %v1494 = vadd.f32 %v513, %v1486
    %v1495 = vadd.f32 %v514, %v1487
    %v1496 = vadd.f32 %v515, %v1488
    %v1497 = vadd.f32 %v516, %v1489
    %v1498 = vsel %vm381, %v1494, 0.0
    %1499 = vadd.xlane.f32.xlu0 %v1498
    %v1500 = vpop.xlane.xlu0 %1499
    %v1501 = vsel %vm381, %v1495, 0.0
    %1502 = vadd.xlane.f32.xlu0 %v1501
    %v1503 = vpop.xlane.xlu0 %1502
    %v1504 = vsel %vm381, %v1496, 0.0
    %1505 = vadd.xlane.f32.xlu0 %v1504
    %v1506 = vpop.xlane.xlu0 %1505
    %v1507 = vsel %vm381, %v1497, 0.0
    %1508 = vadd.xlane.f32.xlu0 %v1507
    %v1509 = vpop.xlane.xlu0 %1508
    %v1510 = vrcp.pop 32.0
    %v1511 = vmul.f32 %v1500, %v1510
    %v1512 = vmul.f32 %v1503, %v1510
    %v1513 = vmul.f32 %v1506, %v1510
    %v1514 = vmul.f32 %v1509, %v1510
    %v1515 = vsub.f32 %v1494, %v1511
    %v1516 = vsub.f32 %v1495, %v1512
    %v1517 = vsub.f32 %v1496, %v1513
    %v1518 = vsub.f32 %v1497, %v1514
    %v1519 = vmul.f32 %v1515, %v1515
    %v1520 = vmul.f32 %v1516, %v1516
    %v1521 = vmul.f32 %v1517, %v1517
    %v1522 = vmul.f32 %v1518, %v1518
    %v1523 = vsel %vm381, %v1519, 0.0
    %1524 = vadd.xlane.f32.xlu0 %v1523
    %v1525 = vpop.xlane.xlu0 %1524
    %v1526 = vsel %vm381, %v1520, 0.0
    %1527 = vadd.xlane.f32.xlu0 %v1526
    %v1528 = vpop.xlane.xlu0 %1527
    %v1529 = vsel %vm381, %v1521, 0.0
    %1530 = vadd.xlane.f32.xlu0 %v1529
    %v1531 = vpop.xlane.xlu0 %1530
    %v1532 = vsel %vm381, %v1522, 0.0
    %1533 = vadd.xlane.f32.xlu0 %v1532
    %v1534 = vpop.xlane.xlu0 %1533
    %v1535 = vmul.f32 %v1525, %v1510
    %v1536 = vmul.f32 %v1528, %v1510
    %v1537 = vmul.f32 %v1531, %v1510
    %v1538 = vmul.f32 %v1534, %v1510
    %v1539 = vadd.f32 %v1535, 1e-05
    %v1540 = vadd.f32 %v1536, 1e-05
    %v1541 = vadd.f32 %v1537, 1e-05
    %v1542 = vadd.f32 %v1538, 1e-05
    %v1543 = vrsqrt.pop %v1539
    %v1544 = vrsqrt.pop %v1540
    %v1545 = vrsqrt.pop %v1541
    %v1546 = vrsqrt.pop %v1542
    %v1547 = vmul.f32 %v1515, %v1543
    %v1548 = vmul.f32 %v1516, %v1544
    %v1549 = vmul.f32 %v1517, %v1545
    %v1550 = vmul.f32 %v1518, %v1546
    %v1552 = vlaneseq
    %v1553 = vshrl.u32 %v1552, 7
    %v1554 = vsub.s32 0, %v1553
    %v1555 = vrot.slane %v1490, %v1554
    %v1557 = vmul.f32 %v1547, %v1555
    %v1558 = vmul.f32 %v1548, %v1555
    %v1559 = vmul.f32 %v1549, %v1555
    %v1560 = vmul.f32 %v1550, %v1555
    %v1562 = vlaneseq
    %v1563 = vshrl.u32 %v1562, 7
    %v1564 = vsub.s32 0, %v1563
    %v1565 = vrot.slane %v1491, %v1564
    %v1567 = vadd.f32 %v1557, %v1565
    %v1568 = vadd.f32 %v1558, %v1565
    %v1569 = vadd.f32 %v1559, %v1565
    %v1570 = vadd.f32 %v1560, %v1565
    %v1571 = vmul.f32 %v1567, %v492
    %v1572 = vmul.f32 %v1568, %v497
    %v1573 = vmul.f32 %v1569, %v502
    %v1574 = vmul.f32 %v1570, %v507
    %v1575 = vld [vmem:[%s14] sm:$0xf]
    %v1576 = vld [vmem:[%s14 + $0x4] sm:$0xf]
    %v1577 = vld [vmem:[%s14 + $0x8] sm:$0xf]
    %v1578 = vld [vmem:[%s14 + $0xc] sm:$0xf]
    %v1579 = vld [vmem:[%s14 + $0x10] sm:$0xf]
    %v1580 = vld [vmem:[%s14 + $0x14] sm:$0xf]
    %v1581 = vld [vmem:[%s14 + $0x18] sm:$0xf]
    %v1582 = vld [vmem:[%s14 + $0x1c] sm:$0xf]
    %v1583 = vld [vmem:[%s14 + $0x20] sm:$0xf]
    %v1584 = vld [vmem:[%s14 + $0x24] sm:$0xf]
    %v1585 = vld [vmem:[%s14 + $0x28] sm:$0xf]
    %v1586 = vld [vmem:[%s14 + $0x2c] sm:$0xf]
    %v1587 = vld [vmem:[%s15] sm:$0x1]
    %v1588 = vrot.slane %v1571, 6
    %v1589 = vrot.slane %v1572, 6
    %v1590 = vrot.slane %v1573, 6
    %v1591 = vrot.slane %v1574, 6
    %vm1592 = vcmp.lt.s32.totalorder %v84, 2
    %v1593 = vsel %vm1592, %v1590, %v1591
    %v1594 = vsel %vm1592, %v1589, %v1590
    %v1595 = vsel %vm1592, %v1588, %v1589
    %v1596 = vsel %vm1592, %v1591, %v1588
    %v1597 = vsel %vm94, 1, 0
    %v1598 = vsel %vm95, 1, 0
    %v1599 = vsel %vm96, 1, 0
    %v1600 = vsel %vm97, 1, 0
    %1601 = vset.pattern.permute.xlu0 0
    %1602 = vperm.xlu0 %1601, %v1597
    %v1603 = vpop.permute.xlu0 %1602
    %1604 = vset.pattern.permute.xlu0 0
    %1605 = vperm.xlu0 %1604, %v1598
    %v1606 = vpop.permute.xlu0 %1605
    %1607 = vset.pattern.permute.xlu0 0
    %1608 = vperm.xlu0 %1607, %v1599
    %v1609 = vpop.permute.xlu0 %1608
    %1610 = vset.pattern.permute.xlu0 0
    %1611 = vperm.xlu0 %1610, %v1600
    %v1612 = vpop.permute.xlu0 %1611
    %vm1613 = vcmp.eq.s32.totalorder %v1603, 1
    %vm1614 = vcmp.eq.s32.totalorder %v1606, 1
    %vm1615 = vcmp.eq.s32.totalorder %v1609, 1
    %vm1616 = vcmp.eq.s32.totalorder %v1612, 1
    %v1617 = vsel %vm1613, %v1596, 0.0
    %v1618 = vsel %vm1614, %v1595, 0.0
    %v1619 = vsel %vm1615, %v1594, 0.0
    %v1620 = vsel %vm1616, %v1593, 0.0
    %v1621 = vrot.slane %v1571, 7
    %v1622 = vrot.slane %v1572, 7
    %v1623 = vrot.slane %v1573, 7
    %v1624 = vrot.slane %v1574, 7
    %v1625 = vsel %vm215, %v1623, %v1624
    %v1626 = vsel %vm215, %v1622, %v1623
    %v1627 = vsel %vm215, %v1621, %v1622
    %v1628 = vsel %vm215, %v1624, %v1621
    %v1629 = vsel %vm236, %v1628, 0.0
    %v1630 = vsel %vm237, %v1627, 0.0
    %v1631 = vsel %vm238, %v1626, 0.0
    %v1632 = vsel %vm239, %v1625, 0.0
    %1637 = vrot.lane.b32.xlu0 %v1629, 32
    %v1638 = vpop.permute.xlu0 %1637
    %1639 = vrot.lane.b32.xlu0 %v1630, 32
    %v1640 = vpop.permute.xlu0 %1639
    %1641 = vrot.lane.b32.xlu0 %v1631, 32
    %v1642 = vpop.permute.xlu0 %1641
    %1643 = vrot.lane.b32.xlu0 %v1632, 32
    %v1644 = vpop.permute.xlu0 %1643
    %1653 = vrot.lane.b32.xlu0 %v1571, 64
    %v1654 = vpop.permute.xlu0 %1653
    %1655 = vrot.lane.b32.xlu0 %v1572, 64
    %v1656 = vpop.permute.xlu0 %1655
    %1657 = vrot.lane.b32.xlu0 %v1573, 64
    %v1658 = vpop.permute.xlu0 %1657
    %1659 = vrot.lane.b32.xlu0 %v1574, 64
    %v1660 = vpop.permute.xlu0 %1659
    %v1665 = vsel %vm381, %v1617, %v1638
    %v1666 = vsel %vm381, %v1618, %v1640
    %v1667 = vsel %vm381, %v1619, %v1642
    %v1668 = vsel %vm381, %v1620, %v1644
    %v1669 = vsel %vm386, %v1665, %v1654
    %v1670 = vsel %vm386, %v1666, %v1656
    %v1671 = vsel %vm386, %v1667, %v1658
    %v1672 = vsel %vm386, %v1668, %v1660
    %v1673 = vpack.c.bf16 %v1670, %v1669
    %v1674 = vpack.c.bf16 %v1672, %v1671
    %v1676 = vlaneseq
    %v1677 = vshrl.u32 %v1676, 7
    %v1678 = vsub.s32 0, %v1677
    %v1679 = vrot.slane %v1587, %v1678
    %v1693 = vunpack.c.l.b16 %v1575
    %v1694 = vunpack.c.l.b16 %v1576
    %v1695 = vunpack.c.l.b16 %v1577
    %v1696 = vunpack.c.l.b16 %v1578
    %v1697 = vunpack.c.l.b16 %v1579
    %v1698 = vunpack.c.l.b16 %v1580
    %v1699 = vunpack.c.l.b16 %v1581
    %v1700 = vunpack.c.l.b16 %v1582
    %v1701 = vunpack.c.l.b16 %v1583
    %v1702 = vunpack.c.l.b16 %v1584
    %v1703 = vunpack.c.l.b16 %v1585
    %v1704 = vunpack.c.l.b16 %v1586
    %v1705 = vpack.c.b16 %v1694, %v1693
    %v1706 = vpack.c.b16 %v1696, %v1695
    %v1707 = vpack.c.b16 %v1698, %v1697
    %v1708 = vpack.c.b16 %v1700, %v1699
    %v1709 = vpack.c.b16 %v1702, %v1701
    %v1710 = vpack.c.b16 %v1704, %v1703
    %v1718 = vsel %vm433, %v1673, 0
    %v1721 = vsel %vm433, %v1674, 0
    %1723 = vmatprep.subr.bf16.mxu0 0
    %1724 = vmatpush1.bf16.msra.mxu0 0
    %1725 = vmatprep.subr.bf16.mxu0 0
    %1726 = vmatpush1.bf16.msra.mxu0 0
    %1727 = vmatprep.subr.bf16.mxu0 0
    %1728 = vmatpush1.bf16.msra.mxu0 %v1710
    %1729 = vmatprep.subr.bf16.mxu0 0
    %1730 = vmatpush1.bf16.msra.mxu0 %v1709
    %1731 = vmatprep.subr.bf16.mxu0 0
    %1732 = vmatpush1.bf16.msra.mxu0 %v1708
    %1733 = vmatprep.subr.bf16.mxu0 0
    %1734 = vmatpush1.bf16.msra.mxu0 %v1707
    %1735 = vmatprep.subr.bf16.mxu0 0
    %1736 = vmatpush1.bf16.msra.mxu0 %v1706
    %1737 = vmatprep.subr.bf16.mxu0 0
    %1738 = vmatpush1.bf16.msra.mxu0 %v1705
    %1739 = vmatprep.subr.bf16.mxu0 0
    %1740 = vmatpush2.bf16.msra.mxu0 0
    %1741 = vmatprep.subr.bf16.mxu0 0
    %1742 = vmatpush2.bf16.msra.mxu0 0
    %1743 = vmatprep.subr.bf16.mxu0 0
    %1744 = vmatpush2.bf16.msra.mxu0 0
    %1745 = vmatprep.subr.bf16.mxu0 0
    %1746 = vmatpush2.bf16.msra.mxu0 0
    %1747 = vmatprep.subr.bf16.mxu0 0
    %1748 = vmatpush2.bf16.msra.mxu0 0
    %1749 = vmatprep.subr.bf16.mxu0 0
    %1750 = vmatpush2.bf16.msra.mxu0 0
    %1751 = vmatprep.subr.bf16.mxu0 0
    %1752 = vmatpush2.bf16.msra.mxu0 0
    %1753 = vmatprep.subr.bf16.mxu0 0
    %1754 = vmatpush2.bf16.msra.mxu0 0
    %1755 = vmatprep.mubr.bf16.mxu0 0
    %1756 = vmatmul.mubr.bf16.gmra.mxu0 %v1718
    %v1757 = vpop.f32.mrf.mxu0
    %v1758 = vadd.f32 %v1679, %v1757
    %v1759 = vpop.f32.mrf.mxu0
    %v1760 = vpop.f32.mrf.mxu0
    %v1761 = vadd.f32 %v1679, %v1760
    %v1762 = vpop.f32.mrf.mxu0
    %1763 = vmatprep.mubr.bf16.mxu0 0
    %1764 = vmatmul.mubr.bf16.gmra.mxu0 %v1721
    %v1765 = vpop.f32.mrf.mxu0
    %v1766 = vadd.f32 %v1679, %v1765
    %v1767 = vpop.f32.mrf.mxu0
    %v1768 = vpop.f32.mrf.mxu0
    %v1769 = vadd.f32 %v1679, %v1768
    %v1770 = vpop.f32.mrf.mxu0
    %1771 = vdwg.mxu0
    %v1772 = vmax.f32 %v1758, 0.0
    %v1773 = vmax.f32 %v1761, 0.0
    %v1774 = vmax.f32 %v1766, 0.0
    %v1775 = vmax.f32 %v1769, 0.0
    %v1776 = vmul.f32 %v1772, %v492
    %v1777 = vmul.f32 %v1773, %v497
    %v1778 = vmul.f32 %v1774, %v502
    %v1779 = vmul.f32 %v1775, %v507
    %v1780 = vld [vmem:[%s16] sm:$0xf]
    %v1781 = vld [vmem:[%s16 + $0x4] sm:$0xf]
    %v1782 = vld [vmem:[%s16 + $0x8] sm:$0xf]
    %v1783 = vld [vmem:[%s16 + $0xc] sm:$0xf]
    %v1784 = vld [vmem:[%s16 + $0x10] sm:$0xf]
    %v1785 = vld [vmem:[%s16 + $0x14] sm:$0xf]
    %v1786 = vld [vmem:[%s16 + $0x18] sm:$0xf]
    %v1787 = vld [vmem:[%s16 + $0x1c] sm:$0xf]
    %v1788 = vld [vmem:[%s16 + $0x20] sm:$0xf]
    %v1789 = vld [vmem:[%s16 + $0x24] sm:$0xf]
    %v1790 = vld [vmem:[%s16 + $0x28] sm:$0xf]
    %v1791 = vld [vmem:[%s16 + $0x2c] sm:$0xf]
    %v1792 = vld [vmem:[%s16 + $0x30] sm:$0xf]
    %v1793 = vld [vmem:[%s16 + $0x34] sm:$0xf]
    %v1794 = vld [vmem:[%s16 + $0x38] sm:$0xf]
    %v1795 = vld [vmem:[%s16 + $0x3c] sm:$0xf]
    %v1796 = vld [vmem:[%s16 + $0x40] sm:$0xf]
    %v1797 = vld [vmem:[%s16 + $0x44] sm:$0xf]
    %v1798 = vld [vmem:[%s16 + $0x48] sm:$0xf]
    %v1799 = vld [vmem:[%s16 + $0x4c] sm:$0xf]
    %v1800 = vld [vmem:[%s16 + $0x50] sm:$0xf]
    %v1801 = vld [vmem:[%s16 + $0x54] sm:$0xf]
    %v1802 = vld [vmem:[%s16 + $0x58] sm:$0xf]
    %v1803 = vld [vmem:[%s16 + $0x5c] sm:$0xf]
    %v1804 = vld [vmem:[%s17] sm:$0x1]
    %v1805 = vrot.slane %v1776, 6
    %v1806 = vrot.slane %v1777, 6
    %v1807 = vrot.slane %v1778, 6
    %v1808 = vrot.slane %v1779, 6
    %v1809 = vsel %vm1592, %v1807, %v1808
    %v1810 = vsel %vm1592, %v1806, %v1807
    %v1811 = vsel %vm1592, %v1805, %v1806
    %v1812 = vsel %vm1592, %v1808, %v1805
    %v1813 = vsel %vm1613, %v1812, 0.0
    %v1814 = vsel %vm1614, %v1811, 0.0
    %v1815 = vsel %vm1615, %v1810, 0.0
    %v1816 = vsel %vm1616, %v1809, 0.0
    %v1817 = vrot.slane %v1776, 7
    %v1818 = vrot.slane %v1777, 7
    %v1819 = vrot.slane %v1778, 7
    %v1820 = vrot.slane %v1779, 7
    %v1821 = vsel %vm215, %v1819, %v1820
    %v1822 = vsel %vm215, %v1818, %v1819
    %v1823 = vsel %vm215, %v1817, %v1818
    %v1824 = vsel %vm215, %v1820, %v1817
    %v1825 = vsel %vm236, %v1824, 0.0
    %v1826 = vsel %vm237, %v1823, 0.0
    %v1827 = vsel %vm238, %v1822, 0.0
    %v1828 = vsel %vm239, %v1821, 0.0
    %1833 = vrot.lane.b32.xlu0 %v1825, 64
    %v1834 = vpop.permute.xlu0 %1833
    %1835 = vrot.lane.b32.xlu0 %v1826, 64
    %v1836 = vpop.permute.xlu0 %1835
    %1837 = vrot.lane.b32.xlu0 %v1827, 64
    %v1838 = vpop.permute.xlu0 %1837
    %1839 = vrot.lane.b32.xlu0 %v1828, 64
    %v1840 = vpop.permute.xlu0 %1839
    %v1845 = vsel %vm386, %v1813, %v1834
    %v1846 = vsel %vm386, %v1814, %v1836
    %v1847 = vsel %vm386, %v1815, %v1838
    %v1848 = vsel %vm386, %v1816, %v1840
    %v1849 = vpack.c.bf16 %v1846, %v1845
    %v1850 = vpack.c.bf16 %v1777, %v1776
    %v1851 = vpack.c.bf16 %v1848, %v1847
    %v1852 = vpack.c.bf16 %v1779, %v1778
    %v1854 = vlaneseq
    %v1855 = vshrl.u32 %v1854, 7
    %v1856 = vsub.s32 0, %v1855
    %v1857 = vrot.slane %v1804, %v1856
    %v1883 = vunpack.c.l.b16 %v1780
    %v1884 = vunpack.c.l.b16 %v1781
    %v1885 = vunpack.c.l.b16 %v1782
    %v1886 = vunpack.c.l.b16 %v1783
    %v1887 = vunpack.c.l.b16 %v1784
    %v1888 = vunpack.c.l.b16 %v1785
    %v1889 = vunpack.c.l.b16 %v1786
    %v1890 = vunpack.c.l.b16 %v1787
    %v1891 = vunpack.c.l.b16 %v1788
    %v1892 = vunpack.c.l.b16 %v1789
    %v1893 = vunpack.c.l.b16 %v1790
    %v1894 = vunpack.c.l.b16 %v1791
    %v1895 = vunpack.c.l.b16 %v1792
    %v1896 = vunpack.c.l.b16 %v1793
    %v1897 = vunpack.c.l.b16 %v1794
    %v1898 = vunpack.c.l.b16 %v1795
    %v1899 = vunpack.c.l.b16 %v1796
    %v1900 = vunpack.c.l.b16 %v1797
    %v1901 = vunpack.c.l.b16 %v1798
    %v1902 = vunpack.c.l.b16 %v1799
    %v1903 = vunpack.c.l.b16 %v1800
    %v1904 = vunpack.c.l.b16 %v1801
    %v1905 = vunpack.c.l.b16 %v1802
    %v1906 = vunpack.c.l.b16 %v1803
    %v1907 = vpack.c.b16 %v1884, %v1883
    %v1908 = vpack.c.b16 %v1886, %v1885
    %v1909 = vpack.c.b16 %v1888, %v1887
    %v1910 = vpack.c.b16 %v1890, %v1889
    %v1911 = vpack.c.b16 %v1892, %v1891
    %v1912 = vpack.c.b16 %v1894, %v1893
    %v1913 = vpack.c.b16 %v1896, %v1895
    %v1914 = vpack.c.b16 %v1898, %v1897
    %v1915 = vpack.c.b16 %v1900, %v1899
    %v1916 = vpack.c.b16 %v1902, %v1901
    %v1917 = vpack.c.b16 %v1904, %v1903
    %v1918 = vpack.c.b16 %v1906, %v1905
    %v1932 = vsel %vm386, %v1850, 0
    %v1935 = vsel %vm386, %v1852, 0
    %1937 = vmatprep.subr.bf16.mxu0 0
    %1938 = vmatpush1.bf16.msra.mxu0 %v1914
    %1939 = vmatprep.subr.bf16.mxu0 0
    %1940 = vmatpush1.bf16.msra.mxu0 %v1913
    %1941 = vmatprep.subr.bf16.mxu0 0
    %1942 = vmatpush1.bf16.msra.mxu0 %v1912
    %1943 = vmatprep.subr.bf16.mxu0 0
    %1944 = vmatpush1.bf16.msra.mxu0 %v1911
    %1945 = vmatprep.subr.bf16.mxu0 0
    %1946 = vmatpush1.bf16.msra.mxu0 %v1910
    %1947 = vmatprep.subr.bf16.mxu0 0
    %1948 = vmatpush1.bf16.msra.mxu0 %v1909
    %1949 = vmatprep.subr.bf16.mxu0 0
    %1950 = vmatpush1.bf16.msra.mxu0 %v1908
    %1951 = vmatprep.subr.bf16.mxu0 0
    %1952 = vmatpush1.bf16.msra.mxu0 %v1907
    %1953 = vmatprep.subr.bf16.mxu0 0
    %1954 = vmatpush2.bf16.msra.mxu0 0
    %1955 = vmatprep.subr.bf16.mxu0 0
    %1956 = vmatpush2.bf16.msra.mxu0 0
    %1957 = vmatprep.subr.bf16.mxu0 0
    %1958 = vmatpush2.bf16.msra.mxu0 0
    %1959 = vmatprep.subr.bf16.mxu0 0
    %1960 = vmatpush2.bf16.msra.mxu0 0
    %1961 = vmatprep.subr.bf16.mxu0 0
    %1962 = vmatpush2.bf16.msra.mxu0 %v1918
    %1963 = vmatprep.subr.bf16.mxu0 0
    %1964 = vmatpush2.bf16.msra.mxu0 %v1917
    %1965 = vmatprep.subr.bf16.mxu0 0
    %1966 = vmatpush2.bf16.msra.mxu0 %v1916
    %1967 = vmatprep.subr.bf16.mxu0 0
    %1968 = vmatpush2.bf16.msra.mxu0 %v1915
    %1969 = vmatprep.mubr.bf16.mxu0 %v1932
    %1970 = vmatmul.mubr.bf16.gmra.mxu0 %v1849
    %v1971 = vpop.f32.mrf.mxu0
    %v1972 = vadd.f32 %v1857, %v1971
    %v1973 = vpop.f32.mrf.mxu0
    %v1974 = vpop.f32.mrf.mxu0
    %v1975 = vadd.f32 %v1857, %v1974
    %v1976 = vpop.f32.mrf.mxu0
    %1977 = vmatprep.mubr.bf16.mxu0 %v1935
    %1978 = vmatmul.mubr.bf16.gmra.mxu0 %v1851
    %v1979 = vpop.f32.mrf.mxu0
    %v1980 = vadd.f32 %v1857, %v1979
    %v1981 = vpop.f32.mrf.mxu0
    %v1982 = vpop.f32.mrf.mxu0
    %v1983 = vadd.f32 %v1857, %v1982
    %v1984 = vpop.f32.mrf.mxu0
    %1985 = vdwg.mxu0
    %v1986 = vmul.f32 %v1972, %v492
    %v1987 = vmul.f32 %v1975, %v497
    %v1988 = vmul.f32 %v1980, %v502
    %v1989 = vmul.f32 %v1983, %v507
    %v1990 = vadd.f32 %v1567, %v1986
    %v1991 = vadd.f32 %v1568, %v1987
    %v1992 = vadd.f32 %v1569, %v1988
    %v1993 = vadd.f32 %v1570, %v1989
    %v1994 = vsel %vm381, %v1990, 0.0
    %1995 = vadd.xlane.f32.xlu0 %v1994
    %v1996 = vpop.xlane.xlu0 %1995
    %v1997 = vsel %vm381, %v1991, 0.0
    %1998 = vadd.xlane.f32.xlu0 %v1997
    %v1999 = vpop.xlane.xlu0 %1998
    %v2000 = vsel %vm381, %v1992, 0.0
    %2001 = vadd.xlane.f32.xlu0 %v2000
    %v2002 = vpop.xlane.xlu0 %2001
    %v2003 = vsel %vm381, %v1993, 0.0
    %2004 = vadd.xlane.f32.xlu0 %v2003
    %v2005 = vpop.xlane.xlu0 %2004
    %v2006 = vmul.f32 %v1996, %v1510
    %v2007 = vmul.f32 %v1999, %v1510
    %v2008 = vmul.f32 %v2002, %v1510
    %v2009 = vmul.f32 %v2005, %v1510
    %v2010 = vsub.f32 %v1990, %v2006
    %v2011 = vsub.f32 %v1991, %v2007
    %v2012 = vsub.f32 %v1992, %v2008
    %v2013 = vsub.f32 %v1993, %v2009
    %v2014 = vmul.f32 %v2010, %v2010
    %v2015 = vmul.f32 %v2011, %v2011
    %v2016 = vmul.f32 %v2012, %v2012
    %v2017 = vmul.f32 %v2013, %v2013
    %v2018 = vsel %vm381, %v2014, 0.0
    %2019 = vadd.xlane.f32.xlu0 %v2018
    %v2020 = vpop.xlane.xlu0 %2019
    %v2021 = vsel %vm381, %v2015, 0.0
    %2022 = vadd.xlane.f32.xlu0 %v2021
    %v2023 = vpop.xlane.xlu0 %2022
    %v2024 = vsel %vm381, %v2016, 0.0
    %2025 = vadd.xlane.f32.xlu0 %v2024
    %v2026 = vpop.xlane.xlu0 %2025
    %v2027 = vsel %vm381, %v2017, 0.0
    %2028 = vadd.xlane.f32.xlu0 %v2027
    %v2029 = vpop.xlane.xlu0 %2028
    %v2030 = vmul.f32 %v2020, %v1510
    %v2031 = vmul.f32 %v2023, %v1510
    %v2032 = vmul.f32 %v2026, %v1510
    %v2033 = vmul.f32 %v2029, %v1510
    %v2034 = vadd.f32 %v2030, 1e-05
    %v2035 = vadd.f32 %v2031, 1e-05
    %v2036 = vadd.f32 %v2032, 1e-05
    %v2037 = vadd.f32 %v2033, 1e-05
    %v2038 = vrsqrt.pop %v2034
    %v2039 = vrsqrt.pop %v2035
    %v2040 = vrsqrt.pop %v2036
    %v2041 = vrsqrt.pop %v2037
    %v2042 = vmul.f32 %v2010, %v2038
    %v2043 = vmul.f32 %v2011, %v2039
    %v2044 = vmul.f32 %v2012, %v2040
    %v2045 = vmul.f32 %v2013, %v2041
    %v2047 = vlaneseq
    %v2048 = vshrl.u32 %v2047, 7
    %v2049 = vsub.s32 0, %v2048
    %v2050 = vrot.slane %v1492, %v2049
    %v2052 = vmul.f32 %v2042, %v2050
    %v2053 = vmul.f32 %v2043, %v2050
    %v2054 = vmul.f32 %v2044, %v2050
    %v2055 = vmul.f32 %v2045, %v2050
    %v2057 = vlaneseq
    %v2058 = vshrl.u32 %v2057, 7
    %v2059 = vsub.s32 0, %v2058
    %v2060 = vrot.slane %v1493, %v2059
    %v2062 = vadd.f32 %v2052, %v2060
    %v2063 = vadd.f32 %v2053, %v2060
    %v2064 = vadd.f32 %v2054, %v2060
    %v2065 = vadd.f32 %v2055, %v2060
    %v2066 = vpack.c.bf16 %v2063, %v2062
    %v2067 = vpack.c.bf16 %v2065, %v2064
    %s2068 = scalar_lea.vmem %s9, 96
    %v2069 = vld [vmem:[%s2068] sm:$0xff]
    %v2070 = vld [vmem:[%s2068 + $0x8] sm:$0xff]
    %v2071 = vld [vmem:[%s2068 + $0x10] sm:$0xff]
    %v2072 = vld [vmem:[%s2068 + $0x18] sm:$0xff]
    %v2073 = vld [vmem:[%s2068 + $0x20] sm:$0xff]
    %v2074 = vld [vmem:[%s2068 + $0x28] sm:$0xff]
    %v2075 = vld [vmem:[%s2068 + $0x30] sm:$0xff]
    %v2076 = vld [vmem:[%s2068 + $0x38] sm:$0xff]
    %v2077 = vld [vmem:[%s2068 + $0x40] sm:$0xff]
    %v2078 = vld [vmem:[%s2068 + $0x48] sm:$0xff]
    %v2079 = vld [vmem:[%s2068 + $0x50] sm:$0xff]
    %v2080 = vld [vmem:[%s2068 + $0x58] sm:$0xff]
    %s2081 = scalar_lea.vmem %s10, 6
    %v2082 = vld [vmem:[%s2081] sm:$0x3f]
    %v2084 = vlaneseq
    %v2085 = vshrl.u32 %v2084, 7
    %v2086 = vsub.s32 0, %v2085
    %v2087 = vrot.slane %v2082, %v2086
    %v2088 = vlaneseq
    %v2089 = vshrl.u32 %v2088, 7
    %v2090 = vsub.s32 1, %v2089
    %v2091 = vrot.slane %v2082, %v2090
    %v2092 = vlaneseq
    %v2093 = vshrl.u32 %v2092, 7
    %v2094 = vsub.s32 2, %v2093
    %v2095 = vrot.slane %v2082, %v2094
    %v2096 = vlaneseq
    %v2097 = vshrl.u32 %v2096, 7
    %v2098 = vsub.s32 3, %v2097
    %v2099 = vrot.slane %v2082, %v2098
    %v2100 = vlaneseq
    %v2101 = vshrl.u32 %v2100, 7
    %v2102 = vsub.s32 4, %v2101
    %v2103 = vrot.slane %v2082, %v2102
    %v2104 = vlaneseq
    %v2105 = vshrl.u32 %v2104, 7
    %v2106 = vsub.s32 5, %v2105
    %v2107 = vrot.slane %v2082, %v2106
    %v2126 = vunpack.c.l.b16 %v2069
    %v2127 = vunpack.c.h.b16 %v2069
    %v2128 = vunpack.c.l.b16 %v2070
    %v2129 = vunpack.c.h.b16 %v2070
    %v2130 = vunpack.c.l.b16 %v2071
    %v2131 = vunpack.c.h.b16 %v2071
    %v2132 = vunpack.c.l.b16 %v2072
    %v2133 = vunpack.c.h.b16 %v2072
    %v2134 = vunpack.c.l.b16 %v2073
    %v2135 = vunpack.c.h.b16 %v2073
    %v2136 = vunpack.c.l.b16 %v2074
    %v2137 = vunpack.c.h.b16 %v2074
    %v2138 = vunpack.c.l.b16 %v2075
    %v2139 = vunpack.c.h.b16 %v2075
    %v2140 = vunpack.c.l.b16 %v2076
    %v2141 = vunpack.c.h.b16 %v2076
    %v2142 = vunpack.c.l.b16 %v2077
    %v2143 = vunpack.c.h.b16 %v2077
    %v2144 = vunpack.c.l.b16 %v2078
    %v2145 = vunpack.c.h.b16 %v2078
    %v2146 = vunpack.c.l.b16 %v2079
    %v2147 = vunpack.c.h.b16 %v2079
    %v2148 = vunpack.c.l.b16 %v2080
    %v2149 = vunpack.c.h.b16 %v2080
    %v2150 = vpack.c.b16 %v2132, %v2126
    %v2151 = vpack.c.b16 %v2133, %v2127
    %v2152 = vpack.c.b16 %v2134, %v2128
    %v2153 = vpack.c.b16 %v2135, %v2129
    %v2154 = vpack.c.b16 %v2136, %v2130
    %v2155 = vpack.c.b16 %v2137, %v2131
    %v2156 = vpack.c.b16 %v2144, %v2138
    %v2157 = vpack.c.b16 %v2145, %v2139
    %v2158 = vpack.c.b16 %v2146, %v2140
    %v2159 = vpack.c.b16 %v2147, %v2141
    %v2160 = vpack.c.b16 %v2148, %v2142
    %v2161 = vpack.c.b16 %v2149, %v2143
    %v2175 = vsel %vm381, %v2066, 0
    %v2178 = vsel %vm381, %v2067, 0
    %2180 = vmatprep.subr.bf16.mxu0 0
    %2181 = vmatpush1.bf16.msra.mxu0 0
    %2182 = vmatprep.subr.bf16.mxu0 0
    %2183 = vmatpush1.bf16.msra.mxu0 0
    %2184 = vmatprep.subr.bf16.mxu0 0
    %2185 = vmatpush1.bf16.msra.mxu0 0
    %2186 = vmatprep.subr.bf16.mxu0 0
    %2187 = vmatpush1.bf16.msra.mxu0 0
    %2188 = vmatprep.subr.bf16.mxu0 0
    %2189 = vmatpush1.bf16.msra.mxu0 0
    %2190 = vmatprep.subr.bf16.mxu0 0
    %2191 = vmatpush1.bf16.msra.mxu0 0
    %2192 = vmatprep.subr.bf16.mxu0 %v2157
    %2193 = vmatpush1.bf16.msra.mxu0 %v2156
    %2194 = vmatprep.subr.bf16.mxu0 %v2151
    %2195 = vmatpush1.bf16.msra.mxu0 %v2150
    %2196 = vmatprep.subr.bf16.mxu0 0
    %2197 = vmatpush2.bf16.msra.mxu0 0
    %2198 = vmatprep.subr.bf16.mxu0 0
    %2199 = vmatpush2.bf16.msra.mxu0 0
    %2200 = vmatprep.subr.bf16.mxu0 0
    %2201 = vmatpush2.bf16.msra.mxu0 0
    %2202 = vmatprep.subr.bf16.mxu0 0
    %2203 = vmatpush2.bf16.msra.mxu0 0
    %2204 = vmatprep.subr.bf16.mxu0 0
    %2205 = vmatpush2.bf16.msra.mxu0 0
    %2206 = vmatprep.subr.bf16.mxu0 0
    %2207 = vmatpush2.bf16.msra.mxu0 0
    %2208 = vmatprep.subr.bf16.mxu0 0
    %2209 = vmatpush2.bf16.msra.mxu0 0
    %2210 = vmatprep.subr.bf16.mxu0 0
    %2211 = vmatpush2.bf16.msra.mxu0 0
    %2212 = vmatprep.mubr.bf16.mxu0 0
    %2213 = vmatmul.mubr.bf16.gmra.mxu0 %v2175
    %v2214 = vpop.f32.mrf.mxu0
    %v2215 = vadd.f32 %v2087, %v2214
    %v2216 = vpop.f32.mrf.mxu0
    %v2217 = vadd.f32 %v2091, %v2216
    %v2218 = vpop.f32.mrf.mxu0
    %v2219 = vadd.f32 %v2087, %v2218
    %v2220 = vpop.f32.mrf.mxu0
    %v2221 = vadd.f32 %v2091, %v2220
    %2222 = vmatprep.mubr.bf16.mxu0 0
    %2223 = vmatmul.mubr.bf16.gmra.mxu0 %v2178
    %v2224 = vpop.f32.mrf.mxu0
    %v2225 = vadd.f32 %v2087, %v2224
    %v2226 = vpop.f32.mrf.mxu0
    %v2227 = vadd.f32 %v2091, %v2226
    %v2228 = vpop.f32.mrf.mxu0
    %v2229 = vadd.f32 %v2087, %v2228
    %v2230 = vpop.f32.mrf.mxu0
    %v2231 = vadd.f32 %v2091, %v2230
    %2232 = vdwg.mxu0
    %2233 = vmatprep.subr.bf16.mxu0 0
    %2234 = vmatpush1.bf16.msra.mxu0 0
    %2235 = vmatprep.subr.bf16.mxu0 0
    %2236 = vmatpush1.bf16.msra.mxu0 0
    %2237 = vmatprep.subr.bf16.mxu0 0
    %2238 = vmatpush1.bf16.msra.mxu0 0
    %2239 = vmatprep.subr.bf16.mxu0 0
    %2240 = vmatpush1.bf16.msra.mxu0 0
    %2241 = vmatprep.subr.bf16.mxu0 0
    %2242 = vmatpush1.bf16.msra.mxu0 0
    %2243 = vmatprep.subr.bf16.mxu0 0
    %2244 = vmatpush1.bf16.msra.mxu0 0
    %2245 = vmatprep.subr.bf16.mxu0 %v2159
    %2246 = vmatpush1.bf16.msra.mxu0 %v2158
    %2247 = vmatprep.subr.bf16.mxu0 %v2153
    %2248 = vmatpush1.bf16.msra.mxu0 %v2152
    %2249 = vmatprep.subr.bf16.mxu0 0
    %2250 = vmatpush2.bf16.msra.mxu0 0
    %2251 = vmatprep.subr.bf16.mxu0 0
    %2252 = vmatpush2.bf16.msra.mxu0 0
    %2253 = vmatprep.subr.bf16.mxu0 0
    %2254 = vmatpush2.bf16.msra.mxu0 0
    %2255 = vmatprep.subr.bf16.mxu0 0
    %2256 = vmatpush2.bf16.msra.mxu0 0
    %2257 = vmatprep.subr.bf16.mxu0 0
    %2258 = vmatpush2.bf16.msra.mxu0 0
    %2259 = vmatprep.subr.bf16.mxu0 0
    %2260 = vmatpush2.bf16.msra.mxu0 0
    %2261 = vmatprep.subr.bf16.mxu0 0
    %2262 = vmatpush2.bf16.msra.mxu0 0
    %2263 = vmatprep.subr.bf16.mxu0 0
    %2264 = vmatpush2.bf16.msra.mxu0 0
    %2265 = vmatprep.mubr.bf16.mxu0 0
    %2266 = vmatmul.mubr.bf16.gmra.mxu0 %v2175
    %v2267 = vpop.f32.mrf.mxu0
    %v2268 = vadd.f32 %v2095, %v2267
    %v2269 = vpop.f32.mrf.mxu0
    %v2270 = vadd.f32 %v2099, %v2269
    %v2271 = vpop.f32.mrf.mxu0
    %v2272 = vadd.f32 %v2095, %v2271
    %v2273 = vpop.f32.mrf.mxu0
    %v2274 = vadd.f32 %v2099, %v2273
    %2275 = vmatprep.mubr.bf16.mxu0 0
    %2276 = vmatmul.mubr.bf16.gmra.mxu0 %v2178
    %v2277 = vpop.f32.mrf.mxu0
    %v2278 = vadd.f32 %v2095, %v2277
    %v2279 = vpop.f32.mrf.mxu0
    %v2280 = vadd.f32 %v2099, %v2279
    %v2281 = vpop.f32.mrf.mxu0
    %v2282 = vadd.f32 %v2095, %v2281
    %v2283 = vpop.f32.mrf.mxu0
    %v2284 = vadd.f32 %v2099, %v2283
    %2285 = vdwg.mxu0
    %2286 = vmatprep.subr.bf16.mxu0 0
    %2287 = vmatpush1.bf16.msra.mxu0 0
    %2288 = vmatprep.subr.bf16.mxu0 0
    %2289 = vmatpush1.bf16.msra.mxu0 0
    %2290 = vmatprep.subr.bf16.mxu0 0
    %2291 = vmatpush1.bf16.msra.mxu0 0
    %2292 = vmatprep.subr.bf16.mxu0 0
    %2293 = vmatpush1.bf16.msra.mxu0 0
    %2294 = vmatprep.subr.bf16.mxu0 0
    %2295 = vmatpush1.bf16.msra.mxu0 0
    %2296 = vmatprep.subr.bf16.mxu0 0
    %2297 = vmatpush1.bf16.msra.mxu0 0
    %2298 = vmatprep.subr.bf16.mxu0 %v2161
    %2299 = vmatpush1.bf16.msra.mxu0 %v2160
    %2300 = vmatprep.subr.bf16.mxu0 %v2155
    %2301 = vmatpush1.bf16.msra.mxu0 %v2154
    %2302 = vmatprep.subr.bf16.mxu0 0
    %2303 = vmatpush2.bf16.msra.mxu0 0
    %2304 = vmatprep.subr.bf16.mxu0 0
    %2305 = vmatpush2.bf16.msra.mxu0 0
    %2306 = vmatprep.subr.bf16.mxu0 0
    %2307 = vmatpush2.bf16.msra.mxu0 0
    %2308 = vmatprep.subr.bf16.mxu0 0
    %2309 = vmatpush2.bf16.msra.mxu0 0
    %2310 = vmatprep.subr.bf16.mxu0 0
    %2311 = vmatpush2.bf16.msra.mxu0 0
    %2312 = vmatprep.subr.bf16.mxu0 0
    %2313 = vmatpush2.bf16.msra.mxu0 0
    %2314 = vmatprep.subr.bf16.mxu0 0
    %2315 = vmatpush2.bf16.msra.mxu0 0
    %2316 = vmatprep.subr.bf16.mxu0 0
    %2317 = vmatpush2.bf16.msra.mxu0 0
    %2318 = vmatprep.mubr.bf16.mxu0 0
    %2319 = vmatmul.mubr.bf16.gmra.mxu0 %v2175
    %v2320 = vpop.f32.mrf.mxu0
    %v2321 = vadd.f32 %v2103, %v2320
    %v2322 = vpop.f32.mrf.mxu0
    %v2323 = vadd.f32 %v2107, %v2322
    %v2324 = vpop.f32.mrf.mxu0
    %v2325 = vadd.f32 %v2103, %v2324
    %v2326 = vpop.f32.mrf.mxu0
    %v2327 = vadd.f32 %v2107, %v2326
    %2328 = vmatprep.mubr.bf16.mxu0 0
    %2329 = vmatmul.mubr.bf16.gmra.mxu0 %v2178
    %v2330 = vpop.f32.mrf.mxu0
    %v2331 = vadd.f32 %v2103, %v2330
    %v2332 = vpop.f32.mrf.mxu0
    %v2333 = vadd.f32 %v2107, %v2332
    %v2334 = vpop.f32.mrf.mxu0
    %v2335 = vadd.f32 %v2103, %v2334
    %v2336 = vpop.f32.mrf.mxu0
    %v2337 = vadd.f32 %v2107, %v2336
    %2338 = vdwg.mxu0
    %s2339 = scalar_lea.vmem %s11, 128
    %v2340 = vld [vmem:[%s2339] sm:$0xf]
    %v2341 = vld [vmem:[%s2339 + $0x4] sm:$0xf]
    %v2342 = vld [vmem:[%s2339 + $0x8] sm:$0xf]
    %v2343 = vld [vmem:[%s2339 + $0xc] sm:$0xf]
    %v2344 = vld [vmem:[%s2339 + $0x10] sm:$0xf]
    %v2345 = vld [vmem:[%s2339 + $0x14] sm:$0xf]
    %v2346 = vld [vmem:[%s2339 + $0x18] sm:$0xf]
    %v2347 = vld [vmem:[%s2339 + $0x1c] sm:$0xf]
    %v2348 = vld [vmem:[%s2339 + $0x20] sm:$0xf]
    %v2349 = vld [vmem:[%s2339 + $0x24] sm:$0xf]
    %v2350 = vld [vmem:[%s2339 + $0x28] sm:$0xf]
    %v2351 = vld [vmem:[%s2339 + $0x2c] sm:$0xf]
    %v2352 = vld [vmem:[%s2339 + $0x30] sm:$0xf]
    %v2353 = vld [vmem:[%s2339 + $0x34] sm:$0xf]
    %v2354 = vld [vmem:[%s2339 + $0x38] sm:$0xf]
    %v2355 = vld [vmem:[%s2339 + $0x3c] sm:$0xf]
    %v2356 = vld [vmem:[%s2339 + $0x40] sm:$0xf]
    %v2357 = vld [vmem:[%s2339 + $0x44] sm:$0xf]
    %v2358 = vld [vmem:[%s2339 + $0x48] sm:$0xf]
    %v2359 = vld [vmem:[%s2339 + $0x4c] sm:$0xf]
    %v2360 = vld [vmem:[%s2339 + $0x50] sm:$0xf]
    %v2361 = vld [vmem:[%s2339 + $0x54] sm:$0xf]
    %v2362 = vld [vmem:[%s2339 + $0x58] sm:$0xf]
    %v2363 = vld [vmem:[%s2339 + $0x5c] sm:$0xf]
    %v2364 = vld [vmem:[%s2339 + $0x60] sm:$0xf]
    %v2365 = vld [vmem:[%s2339 + $0x64] sm:$0xf]
    %v2366 = vld [vmem:[%s2339 + $0x68] sm:$0xf]
    %v2367 = vld [vmem:[%s2339 + $0x6c] sm:$0xf]
    %v2368 = vld [vmem:[%s2339 + $0x70] sm:$0xf]
    %v2369 = vld [vmem:[%s2339 + $0x74] sm:$0xf]
    %v2370 = vld [vmem:[%s2339 + $0x78] sm:$0xf]
    %v2371 = vld [vmem:[%s2339 + $0x7c] sm:$0xf]
    %s2372 = scalar_lea.vmem %s12, 1
    %v2373 = vld [vmem:[%s2372] sm:$0x1]
    %v2374 = vpack.c.bf16 %v2219, %v2215
    %v2375 = vpack.c.bf16 %v2229, %v2225
    %v2376 = vpack.c.bf16 %v2221, %v2217
    %v2377 = vpack.c.bf16 %v2231, %v2227
    %v2378 = vpack.c.bf16 %v2272, %v2268
    %v2379 = vpack.c.bf16 %v2282, %v2278
    %2380 = vmatprep.subr.bf16.mxu0 0
    %2381 = vmatpush1.bf16.xpose.msra.mxu0 0
    %2382 = vmatprep.subr.bf16.mxu0 0
    %2383 = vmatpush1.bf16.xpose.msra.mxu0 0
    %2384 = vmatprep.subr.bf16.mxu0 0
    %2385 = vmatpush1.bf16.xpose.msra.mxu0 0
    %2386 = vmatprep.subr.bf16.mxu0 0
    %2387 = vmatpush1.bf16.xpose.msra.mxu0 0
    %2388 = vmatprep.subr.bf16.mxu0 0
    %2389 = vmatpush1.bf16.xpose.msra.mxu0 0
    %2390 = vmatprep.subr.bf16.mxu0 0
    %2391 = vmatpush1.bf16.xpose.msra.mxu0 0
    %2392 = vmatprep.subr.bf16.mxu0 0
    %2393 = vmatpush1.bf16.xpose.msra.mxu0 0
    %2394 = vmatprep.subr.bf16.mxu0 0
    %2395 = vmatpush1.bf16.xpose.msra.mxu0 %v2376
    %2396 = vmatprep.subr.bf16.mxu0 0
    %2397 = vmatpush2.bf16.xpose.msra.mxu0 0
    %2398 = vmatprep.subr.bf16.mxu0 0
    %2399 = vmatpush2.bf16.xpose.msra.mxu0 0
    %2400 = vmatprep.subr.bf16.mxu0 0
    %2401 = vmatpush2.bf16.xpose.msra.mxu0 0
    %2402 = vmatprep.subr.bf16.mxu0 0
    %2403 = vmatpush2.bf16.xpose.msra.mxu0 0
    %2404 = vmatprep.subr.bf16.mxu0 0
    %2405 = vmatpush2.bf16.xpose.msra.mxu0 0
    %2406 = vmatprep.subr.bf16.mxu0 0
    %2407 = vmatpush2.bf16.xpose.msra.mxu0 0
    %2408 = vmatprep.subr.bf16.mxu0 0
    %2409 = vmatpush2.bf16.xpose.msra.mxu0 0
    %2410 = vmatprep.subr.bf16.mxu0 0
    %2411 = vmatpush2.bf16.xpose.msra.mxu0 0
    %2412 = vmatprep.mubr.bf16.mxu0 0
    %2413 = vmatmul.mubr.bf16.gmra.mxu0 %v2374
    %v2414 = vpop.f32.mrf.mxu0
    %v2415 = vadd.f32 0.0, %v2414
    %v2416 = vpop.f32.mrf.mxu0
    %v2417 = vpop.f32.mrf.mxu0
    %v2418 = vadd.f32 0.0, %v2417
    %v2419 = vpop.f32.mrf.mxu0
    %2420 = vdwg.mxu0
    %2421 = vmatprep.subr.bf16.mxu0 0
    %2422 = vmatpush1.bf16.xpose.msra.mxu0 0
    %2423 = vmatprep.subr.bf16.mxu0 0
    %2424 = vmatpush1.bf16.xpose.msra.mxu0 0
    %2425 = vmatprep.subr.bf16.mxu0 0
    %2426 = vmatpush1.bf16.xpose.msra.mxu0 0
    %2427 = vmatprep.subr.bf16.mxu0 0
    %2428 = vmatpush1.bf16.xpose.msra.mxu0 0
    %2429 = vmatprep.subr.bf16.mxu0 0
    %2430 = vmatpush1.bf16.xpose.msra.mxu0 0
    %2431 = vmatprep.subr.bf16.mxu0 0
    %2432 = vmatpush1.bf16.xpose.msra.mxu0 0
    %2433 = vmatprep.subr.bf16.mxu0 0
    %2434 = vmatpush1.bf16.xpose.msra.mxu0 0
    %2435 = vmatprep.subr.bf16.mxu0 0
    %2436 = vmatpush1.bf16.xpose.msra.mxu0 %v2377
    %2437 = vmatprep.subr.bf16.mxu0 0
    %2438 = vmatpush2.bf16.xpose.msra.mxu0 0
    %2439 = vmatprep.subr.bf16.mxu0 0
    %2440 = vmatpush2.bf16.xpose.msra.mxu0 0
    %2441 = vmatprep.subr.bf16.mxu0 0
    %2442 = vmatpush2.bf16.xpose.msra.mxu0 0
    %2443 = vmatprep.subr.bf16.mxu0 0
    %2444 = vmatpush2.bf16.xpose.msra.mxu0 0
    %2445 = vmatprep.subr.bf16.mxu0 0
    %2446 = vmatpush2.bf16.xpose.msra.mxu0 0
    %2447 = vmatprep.subr.bf16.mxu0 0
    %2448 = vmatpush2.bf16.xpose.msra.mxu0 0
    %2449 = vmatprep.subr.bf16.mxu0 0
    %2450 = vmatpush2.bf16.xpose.msra.mxu0 0
    %2451 = vmatprep.subr.bf16.mxu0 0
    %2452 = vmatpush2.bf16.xpose.msra.mxu0 0
    %2453 = vmatprep.mubr.bf16.mxu0 0
    %2454 = vmatmul.mubr.bf16.gmra.mxu0 %v2375
    %v2455 = vpop.f32.mrf.mxu0
    %v2456 = vadd.f32 0.0, %v2455
    %v2457 = vpop.f32.mrf.mxu0
    %v2458 = vpop.f32.mrf.mxu0
    %v2459 = vadd.f32 0.0, %v2458
    %v2460 = vpop.f32.mrf.mxu0
    %2461 = vdwg.mxu0
    %v2462 = vsel %vm911, %v2415, -10000.0
    %v2463 = vsel %vm912, %v2418, -10000.0
    %v2464 = vsel %vm911, %v2456, -10000.0
    %v2465 = vsel %vm912, %v2459, -10000.0
    %v2466 = vsel %vm917, %v2462, -inf
    %2467 = vmax.xlane.f32.xlu0 %v2466
    %v2468 = vpop.xlane.xlu0 %2467
    %v2469 = vsel %vm917, %v2463, -inf
    %2470 = vmax.xlane.f32.xlu0 %v2469
    %v2471 = vpop.xlane.xlu0 %2470
    %v2472 = vsel %vm917, %v2464, -inf
    %2473 = vmax.xlane.f32.xlu0 %v2472
    %v2474 = vpop.xlane.xlu0 %2473
    %v2475 = vsel %vm917, %v2465, -inf
    %2476 = vmax.xlane.f32.xlu0 %v2475
    %v2477 = vpop.xlane.xlu0 %2476
    %v2478 = vsub.f32 %v2462, %v2468
    %v2479 = vsub.f32 %v2463, %v2471
    %v2480 = vsub.f32 %v2464, %v2474
    %v2481 = vsub.f32 %v2465, %v2477
    %v2482 = vmul.f32 %v2478, 1.442695
    %v2483 = vpow.pop %v2482
    %v2484 = vmul.f32 %v2479, 1.442695
    %v2485 = vpow.pop %v2484
    %v2486 = vmul.f32 %v2480, 1.442695
    %v2487 = vpow.pop %v2486
    %v2488 = vmul.f32 %v2481, 1.442695
    %v2489 = vpow.pop %v2488
    %v2490 = vsel %vm917, %v2483, 0.0
    %2491 = vadd.xlane.f32.xlu0 %v2490
    %v2492 = vpop.xlane.xlu0 %2491
    %v2493 = vsel %vm917, %v2485, 0.0
    %2494 = vadd.xlane.f32.xlu0 %v2493
    %v2495 = vpop.xlane.xlu0 %2494
    %v2496 = vsel %vm917, %v2487, 0.0
    %2497 = vadd.xlane.f32.xlu0 %v2496
    %v2498 = vpop.xlane.xlu0 %2497
    %v2499 = vsel %vm917, %v2489, 0.0
    %2500 = vadd.xlane.f32.xlu0 %v2499
    %v2501 = vpop.xlane.xlu0 %2500
    %v2502 = vrcp.pop %v2492
    %v2503 = vrcp.pop %v2495
    %v2504 = vrcp.pop %v2498
    %v2505 = vrcp.pop %v2501
    %v2506 = vmul.f32 %v2483, %v2502
    %v2507 = vmul.f32 %v2485, %v2503
    %v2508 = vmul.f32 %v2487, %v2504
    %v2509 = vmul.f32 %v2489, %v2505
    %v2510 = vpack.c.bf16 %v2507, %v2506
    %v2511 = vpack.c.bf16 %v2509, %v2508
    %v2513 = vsel %vm917, %v2510, 0
    %2515 = vmatprep.subr.bf16.mxu0 0
    %2516 = vmatpush1.bf16.msra.mxu0 0
    %2517 = vmatprep.subr.bf16.mxu0 0
    %2518 = vmatpush1.bf16.msra.mxu0 0
    %2519 = vmatprep.subr.bf16.mxu0 0
    %2520 = vmatpush1.bf16.msra.mxu0 0
    %2521 = vmatprep.subr.bf16.mxu0 0
    %2522 = vmatpush1.bf16.msra.mxu0 0
    %2523 = vmatprep.subr.bf16.mxu0 0
    %2524 = vmatpush1.bf16.msra.mxu0 0
    %2525 = vmatprep.subr.bf16.mxu0 0
    %2526 = vmatpush1.bf16.msra.mxu0 0
    %2527 = vmatprep.subr.bf16.mxu0 0
    %2528 = vmatpush1.bf16.msra.mxu0 0
    %2529 = vmatprep.subr.bf16.mxu0 0
    %2530 = vmatpush1.bf16.msra.mxu0 %v2378
    %2531 = vmatprep.subr.bf16.mxu0 0
    %2532 = vmatpush2.bf16.msra.mxu0 0
    %2533 = vmatprep.subr.bf16.mxu0 0
    %2534 = vmatpush2.bf16.msra.mxu0 0
    %2535 = vmatprep.subr.bf16.mxu0 0
    %2536 = vmatpush2.bf16.msra.mxu0 0
    %2537 = vmatprep.subr.bf16.mxu0 0
    %2538 = vmatpush2.bf16.msra.mxu0 0
    %2539 = vmatprep.subr.bf16.mxu0 0
    %2540 = vmatpush2.bf16.msra.mxu0 0
    %2541 = vmatprep.subr.bf16.mxu0 0
    %2542 = vmatpush2.bf16.msra.mxu0 0
    %2543 = vmatprep.subr.bf16.mxu0 0
    %2544 = vmatpush2.bf16.msra.mxu0 0
    %2545 = vmatprep.subr.bf16.mxu0 0
    %2546 = vmatpush2.bf16.msra.mxu0 0
    %2547 = vmatprep.mubr.bf16.mxu0 0
    %2548 = vmatmul.mubr.bf16.gmra.mxu0 %v2513
    %v2549 = vpop.f32.mrf.mxu0
    %v2550 = vadd.f32 0.0, %v2549
    %v2551 = vpop.f32.mrf.mxu0
    %v2552 = vpop.f32.mrf.mxu0
    %v2553 = vadd.f32 0.0, %v2552
    %v2554 = vpop.f32.mrf.mxu0
    %2555 = vdwg.mxu0
    %v2557 = vsel %vm917, %v2511, 0
    %2559 = vmatprep.subr.bf16.mxu0 0
    %2560 = vmatpush1.bf16.msra.mxu0 0
    %2561 = vmatprep.subr.bf16.mxu0 0
    %2562 = vmatpush1.bf16.msra.mxu0 0
    %2563 = vmatprep.subr.bf16.mxu0 0
    %2564 = vmatpush1.bf16.msra.mxu0 0
    %2565 = vmatprep.subr.bf16.mxu0 0
    %2566 = vmatpush1.bf16.msra.mxu0 0
    %2567 = vmatprep.subr.bf16.mxu0 0
    %2568 = vmatpush1.bf16.msra.mxu0 0
    %2569 = vmatprep.subr.bf16.mxu0 0
    %2570 = vmatpush1.bf16.msra.mxu0 0
    %2571 = vmatprep.subr.bf16.mxu0 0
    %2572 = vmatpush1.bf16.msra.mxu0 0
    %2573 = vmatprep.subr.bf16.mxu0 0
    %2574 = vmatpush1.bf16.msra.mxu0 %v2379
    %2575 = vmatprep.subr.bf16.mxu0 0
    %2576 = vmatpush2.bf16.msra.mxu0 0
    %2577 = vmatprep.subr.bf16.mxu0 0
    %2578 = vmatpush2.bf16.msra.mxu0 0
    %2579 = vmatprep.subr.bf16.mxu0 0
    %2580 = vmatpush2.bf16.msra.mxu0 0
    %2581 = vmatprep.subr.bf16.mxu0 0
    %2582 = vmatpush2.bf16.msra.mxu0 0
    %2583 = vmatprep.subr.bf16.mxu0 0
    %2584 = vmatpush2.bf16.msra.mxu0 0
    %2585 = vmatprep.subr.bf16.mxu0 0
    %2586 = vmatpush2.bf16.msra.mxu0 0
    %2587 = vmatprep.subr.bf16.mxu0 0
    %2588 = vmatpush2.bf16.msra.mxu0 0
    %2589 = vmatprep.subr.bf16.mxu0 0
    %2590 = vmatpush2.bf16.msra.mxu0 0
    %2591 = vmatprep.mubr.bf16.mxu0 0
    %2592 = vmatmul.mubr.bf16.gmra.mxu0 %v2557
    %v2593 = vpop.f32.mrf.mxu0
    %v2594 = vadd.f32 0.0, %v2593
    %v2595 = vpop.f32.mrf.mxu0
    %v2596 = vpop.f32.mrf.mxu0
    %v2597 = vadd.f32 0.0, %v2596
    %v2598 = vpop.f32.mrf.mxu0
    %2599 = vdwg.mxu0
    %v2600 = vpack.c.bf16 %v2553, %v2550
    %v2601 = vpack.c.bf16 %v2597, %v2594
    %v2618 = vunpack.c.l.b16 %v2340
    %v2619 = vunpack.c.l.b16 %v2341
    %v2620 = vunpack.c.l.b16 %v2342
    %v2621 = vunpack.c.l.b16 %v2343
    %v2622 = vunpack.c.l.b16 %v2344
    %v2623 = vunpack.c.l.b16 %v2345
    %v2624 = vunpack.c.l.b16 %v2346
    %v2625 = vunpack.c.l.b16 %v2347
    %v2626 = vunpack.c.l.b16 %v2348
    %v2627 = vunpack.c.l.b16 %v2349
    %v2628 = vunpack.c.l.b16 %v2350
    %v2629 = vunpack.c.l.b16 %v2351
    %v2630 = vunpack.c.l.b16 %v2352
    %v2631 = vunpack.c.l.b16 %v2353
    %v2632 = vunpack.c.l.b16 %v2354
    %v2633 = vunpack.c.l.b16 %v2355
    %v2634 = vpack.c.b16 %v2619, %v2618
    %v2635 = vpack.c.b16 %v2621, %v2620
    %v2636 = vpack.c.b16 %v2623, %v2622
    %v2637 = vpack.c.b16 %v2625, %v2624
    %v2638 = vpack.c.b16 %v2627, %v2626
    %v2639 = vpack.c.b16 %v2629, %v2628
    %v2640 = vpack.c.b16 %v2631, %v2630
    %v2641 = vpack.c.b16 %v2633, %v2632
    %2650 = vmatprep.subr.bf16.mxu0 0
    %2651 = vmatpush1.bf16.msra.mxu0 %v2641
    %2652 = vmatprep.subr.bf16.mxu0 0
    %2653 = vmatpush1.bf16.msra.mxu0 %v2640
    %2654 = vmatprep.subr.bf16.mxu0 0
    %2655 = vmatpush1.bf16.msra.mxu0 %v2639
    %2656 = vmatprep.subr.bf16.mxu0 0
    %2657 = vmatpush1.bf16.msra.mxu0 %v2638
    %2658 = vmatprep.subr.bf16.mxu0 0
    %2659 = vmatpush1.bf16.msra.mxu0 %v2637
    %2660 = vmatprep.subr.bf16.mxu0 0
    %2661 = vmatpush1.bf16.msra.mxu0 %v2636
    %2662 = vmatprep.subr.bf16.mxu0 0
    %2663 = vmatpush1.bf16.msra.mxu0 %v2635
    %2664 = vmatprep.subr.bf16.mxu0 0
    %2665 = vmatpush1.bf16.msra.mxu0 %v2634
    %2666 = vmatprep.subr.bf16.mxu0 0
    %2667 = vmatpush2.bf16.msra.mxu0 0
    %2668 = vmatprep.subr.bf16.mxu0 0
    %2669 = vmatpush2.bf16.msra.mxu0 0
    %2670 = vmatprep.subr.bf16.mxu0 0
    %2671 = vmatpush2.bf16.msra.mxu0 0
    %2672 = vmatprep.subr.bf16.mxu0 0
    %2673 = vmatpush2.bf16.msra.mxu0 0
    %2674 = vmatprep.subr.bf16.mxu0 0
    %2675 = vmatpush2.bf16.msra.mxu0 0
    %2676 = vmatprep.subr.bf16.mxu0 0
    %2677 = vmatpush2.bf16.msra.mxu0 0
    %2678 = vmatprep.subr.bf16.mxu0 0
    %2679 = vmatpush2.bf16.msra.mxu0 0
    %2680 = vmatprep.subr.bf16.mxu0 0
    %2681 = vmatpush2.bf16.msra.mxu0 0
    %2682 = vmatprep.mubr.bf16.mxu0 0
    %2683 = vmatmul.mubr.bf16.gmra.mxu0 %v2600
    %v2684 = vpop.f32.mrf.mxu0
    %v2685 = vadd.f32 0.0, %v2684
    %v2686 = vpop.f32.mrf.mxu0
    %v2687 = vpop.f32.mrf.mxu0
    %v2688 = vadd.f32 0.0, %v2687
    %v2689 = vpop.f32.mrf.mxu0
    %2690 = vmatprep.mubr.bf16.mxu0 0
    %2691 = vmatmul.mubr.bf16.gmra.mxu0 %v2601
    %v2692 = vpop.f32.mrf.mxu0
    %v2693 = vadd.f32 0.0, %v2692
    %v2694 = vpop.f32.mrf.mxu0
    %v2695 = vpop.f32.mrf.mxu0
    %v2696 = vadd.f32 0.0, %v2695
    %v2697 = vpop.f32.mrf.mxu0
    %2698 = vdwg.mxu0
    %v2700 = vlaneseq
    %v2701 = vshrl.u32 %v2700, 7
    %v2702 = vsub.s32 0, %v2701
    %v2703 = vrot.slane %v2373, %v2702
    %v2705 = vadd.f32 %v2703, %v2685
    %v2706 = vadd.f32 %v2703, %v2688
    %v2707 = vadd.f32 %v2703, %v2693
    %v2708 = vadd.f32 %v2703, %v2696
    %v2709 = vpack.c.bf16 %v2274, %v2270
    %v2710 = vpack.c.bf16 %v2284, %v2280
    %v2711 = vpack.c.bf16 %v2325, %v2321
    %v2712 = vpack.c.bf16 %v2335, %v2331
    %v2713 = vpack.c.bf16 %v2327, %v2323
    %v2714 = vpack.c.bf16 %v2337, %v2333
    %2715 = vmatprep.subr.bf16.mxu0 0
    %2716 = vmatpush1.bf16.xpose.msra.mxu0 0
    %2717 = vmatprep.subr.bf16.mxu0 0
    %2718 = vmatpush1.bf16.xpose.msra.mxu0 0
    %2719 = vmatprep.subr.bf16.mxu0 0
    %2720 = vmatpush1.bf16.xpose.msra.mxu0 0
    %2721 = vmatprep.subr.bf16.mxu0 0
    %2722 = vmatpush1.bf16.xpose.msra.mxu0 0
    %2723 = vmatprep.subr.bf16.mxu0 0
    %2724 = vmatpush1.bf16.xpose.msra.mxu0 0
    %2725 = vmatprep.subr.bf16.mxu0 0
    %2726 = vmatpush1.bf16.xpose.msra.mxu0 0
    %2727 = vmatprep.subr.bf16.mxu0 0
    %2728 = vmatpush1.bf16.xpose.msra.mxu0 0
    %2729 = vmatprep.subr.bf16.mxu0 0
    %2730 = vmatpush1.bf16.xpose.msra.mxu0 %v2711
    %2731 = vmatprep.subr.bf16.mxu0 0
    %2732 = vmatpush2.bf16.xpose.msra.mxu0 0
    %2733 = vmatprep.subr.bf16.mxu0 0
    %2734 = vmatpush2.bf16.xpose.msra.mxu0 0
    %2735 = vmatprep.subr.bf16.mxu0 0
    %2736 = vmatpush2.bf16.xpose.msra.mxu0 0
    %2737 = vmatprep.subr.bf16.mxu0 0
    %2738 = vmatpush2.bf16.xpose.msra.mxu0 0
    %2739 = vmatprep.subr.bf16.mxu0 0
    %2740 = vmatpush2.bf16.xpose.msra.mxu0 0
    %2741 = vmatprep.subr.bf16.mxu0 0
    %2742 = vmatpush2.bf16.xpose.msra.mxu0 0
    %2743 = vmatprep.subr.bf16.mxu0 0
    %2744 = vmatpush2.bf16.xpose.msra.mxu0 0
    %2745 = vmatprep.subr.bf16.mxu0 0
    %2746 = vmatpush2.bf16.xpose.msra.mxu0 0
    %2747 = vmatprep.mubr.bf16.mxu0 0
    %2748 = vmatmul.mubr.bf16.gmra.mxu0 %v2709
    %v2749 = vpop.f32.mrf.mxu0
    %v2750 = vadd.f32 0.0, %v2749
    %v2751 = vpop.f32.mrf.mxu0
    %v2752 = vpop.f32.mrf.mxu0
    %v2753 = vadd.f32 0.0, %v2752
    %v2754 = vpop.f32.mrf.mxu0
    %2755 = vdwg.mxu0
    %2756 = vmatprep.subr.bf16.mxu0 0
    %2757 = vmatpush1.bf16.xpose.msra.mxu0 0
    %2758 = vmatprep.subr.bf16.mxu0 0
    %2759 = vmatpush1.bf16.xpose.msra.mxu0 0
    %2760 = vmatprep.subr.bf16.mxu0 0
    %2761 = vmatpush1.bf16.xpose.msra.mxu0 0
    %2762 = vmatprep.subr.bf16.mxu0 0
    %2763 = vmatpush1.bf16.xpose.msra.mxu0 0
    %2764 = vmatprep.subr.bf16.mxu0 0
    %2765 = vmatpush1.bf16.xpose.msra.mxu0 0
    %2766 = vmatprep.subr.bf16.mxu0 0
    %2767 = vmatpush1.bf16.xpose.msra.mxu0 0
    %2768 = vmatprep.subr.bf16.mxu0 0
    %2769 = vmatpush1.bf16.xpose.msra.mxu0 0
    %2770 = vmatprep.subr.bf16.mxu0 0
    %2771 = vmatpush1.bf16.xpose.msra.mxu0 %v2712
    %2772 = vmatprep.subr.bf16.mxu0 0
    %2773 = vmatpush2.bf16.xpose.msra.mxu0 0
    %2774 = vmatprep.subr.bf16.mxu0 0
    %2775 = vmatpush2.bf16.xpose.msra.mxu0 0
    %2776 = vmatprep.subr.bf16.mxu0 0
    %2777 = vmatpush2.bf16.xpose.msra.mxu0 0
    %2778 = vmatprep.subr.bf16.mxu0 0
    %2779 = vmatpush2.bf16.xpose.msra.mxu0 0
    %2780 = vmatprep.subr.bf16.mxu0 0
    %2781 = vmatpush2.bf16.xpose.msra.mxu0 0
    %2782 = vmatprep.subr.bf16.mxu0 0
    %2783 = vmatpush2.bf16.xpose.msra.mxu0 0
    %2784 = vmatprep.subr.bf16.mxu0 0
    %2785 = vmatpush2.bf16.xpose.msra.mxu0 0
    %2786 = vmatprep.subr.bf16.mxu0 0
    %2787 = vmatpush2.bf16.xpose.msra.mxu0 0
    %2788 = vmatprep.mubr.bf16.mxu0 0
    %2789 = vmatmul.mubr.bf16.gmra.mxu0 %v2710
    %v2790 = vpop.f32.mrf.mxu0
    %v2791 = vadd.f32 0.0, %v2790
    %v2792 = vpop.f32.mrf.mxu0
    %v2793 = vpop.f32.mrf.mxu0
    %v2794 = vadd.f32 0.0, %v2793
    %v2795 = vpop.f32.mrf.mxu0
    %2796 = vdwg.mxu0
    %v2797 = vsel %vm911, %v2750, -10000.0
    %v2798 = vsel %vm912, %v2753, -10000.0
    %v2799 = vsel %vm911, %v2791, -10000.0
    %v2800 = vsel %vm912, %v2794, -10000.0
    %v2801 = vsel %vm917, %v2797, -inf
    %2802 = vmax.xlane.f32.xlu0 %v2801
    %v2803 = vpop.xlane.xlu0 %2802
    %v2804 = vsel %vm917, %v2798, -inf
    %2805 = vmax.xlane.f32.xlu0 %v2804
    %v2806 = vpop.xlane.xlu0 %2805
    %v2807 = vsel %vm917, %v2799, -inf
    %2808 = vmax.xlane.f32.xlu0 %v2807
    %v2809 = vpop.xlane.xlu0 %2808
    %v2810 = vsel %vm917, %v2800, -inf
    %2811 = vmax.xlane.f32.xlu0 %v2810
    %v2812 = vpop.xlane.xlu0 %2811
    %v2813 = vsub.f32 %v2797, %v2803
    %v2814 = vsub.f32 %v2798, %v2806
    %v2815 = vsub.f32 %v2799, %v2809
    %v2816 = vsub.f32 %v2800, %v2812
    %v2817 = vmul.f32 %v2813, 1.442695
    %v2818 = vpow.pop %v2817
    %v2819 = vmul.f32 %v2814, 1.442695
    %v2820 = vpow.pop %v2819
    %v2821 = vmul.f32 %v2815, 1.442695
    %v2822 = vpow.pop %v2821
    %v2823 = vmul.f32 %v2816, 1.442695
    %v2824 = vpow.pop %v2823
    %v2825 = vsel %vm917, %v2818, 0.0
    %2826 = vadd.xlane.f32.xlu0 %v2825
    %v2827 = vpop.xlane.xlu0 %2826
    %v2828 = vsel %vm917, %v2820, 0.0
    %2829 = vadd.xlane.f32.xlu0 %v2828
    %v2830 = vpop.xlane.xlu0 %2829
    %v2831 = vsel %vm917, %v2822, 0.0
    %2832 = vadd.xlane.f32.xlu0 %v2831
    %v2833 = vpop.xlane.xlu0 %2832
    %v2834 = vsel %vm917, %v2824, 0.0
    %2835 = vadd.xlane.f32.xlu0 %v2834
    %v2836 = vpop.xlane.xlu0 %2835
    %v2837 = vrcp.pop %v2827
    %v2838 = vrcp.pop %v2830
    %v2839 = vrcp.pop %v2833
    %v2840 = vrcp.pop %v2836
    %v2841 = vmul.f32 %v2818, %v2837
    %v2842 = vmul.f32 %v2820, %v2838
    %v2843 = vmul.f32 %v2822, %v2839
    %v2844 = vmul.f32 %v2824, %v2840
    %v2845 = vpack.c.bf16 %v2842, %v2841
    %v2846 = vpack.c.bf16 %v2844, %v2843
    %v2848 = vsel %vm917, %v2845, 0
    %2850 = vmatprep.subr.bf16.mxu0 0
    %2851 = vmatpush1.bf16.msra.mxu0 0
    %2852 = vmatprep.subr.bf16.mxu0 0
    %2853 = vmatpush1.bf16.msra.mxu0 0
    %2854 = vmatprep.subr.bf16.mxu0 0
    %2855 = vmatpush1.bf16.msra.mxu0 0
    %2856 = vmatprep.subr.bf16.mxu0 0
    %2857 = vmatpush1.bf16.msra.mxu0 0
    %2858 = vmatprep.subr.bf16.mxu0 0
    %2859 = vmatpush1.bf16.msra.mxu0 0
    %2860 = vmatprep.subr.bf16.mxu0 0
    %2861 = vmatpush1.bf16.msra.mxu0 0
    %2862 = vmatprep.subr.bf16.mxu0 0
    %2863 = vmatpush1.bf16.msra.mxu0 0
    %2864 = vmatprep.subr.bf16.mxu0 0
    %2865 = vmatpush1.bf16.msra.mxu0 %v2713
    %2866 = vmatprep.subr.bf16.mxu0 0
    %2867 = vmatpush2.bf16.msra.mxu0 0
    %2868 = vmatprep.subr.bf16.mxu0 0
    %2869 = vmatpush2.bf16.msra.mxu0 0
    %2870 = vmatprep.subr.bf16.mxu0 0
    %2871 = vmatpush2.bf16.msra.mxu0 0
    %2872 = vmatprep.subr.bf16.mxu0 0
    %2873 = vmatpush2.bf16.msra.mxu0 0
    %2874 = vmatprep.subr.bf16.mxu0 0
    %2875 = vmatpush2.bf16.msra.mxu0 0
    %2876 = vmatprep.subr.bf16.mxu0 0
    %2877 = vmatpush2.bf16.msra.mxu0 0
    %2878 = vmatprep.subr.bf16.mxu0 0
    %2879 = vmatpush2.bf16.msra.mxu0 0
    %2880 = vmatprep.subr.bf16.mxu0 0
    %2881 = vmatpush2.bf16.msra.mxu0 0
    %2882 = vmatprep.mubr.bf16.mxu0 0
    %2883 = vmatmul.mubr.bf16.gmra.mxu0 %v2848
    %v2884 = vpop.f32.mrf.mxu0
    %v2885 = vadd.f32 0.0, %v2884
    %v2886 = vpop.f32.mrf.mxu0
    %v2887 = vpop.f32.mrf.mxu0
    %v2888 = vadd.f32 0.0, %v2887
    %v2889 = vpop.f32.mrf.mxu0
    %2890 = vdwg.mxu0
    %v2892 = vsel %vm917, %v2846, 0
    %2894 = vmatprep.subr.bf16.mxu0 0
    %2895 = vmatpush1.bf16.msra.mxu0 0
    %2896 = vmatprep.subr.bf16.mxu0 0
    %2897 = vmatpush1.bf16.msra.mxu0 0
    %2898 = vmatprep.subr.bf16.mxu0 0
    %2899 = vmatpush1.bf16.msra.mxu0 0
    %2900 = vmatprep.subr.bf16.mxu0 0
    %2901 = vmatpush1.bf16.msra.mxu0 0
    %2902 = vmatprep.subr.bf16.mxu0 0
    %2903 = vmatpush1.bf16.msra.mxu0 0
    %2904 = vmatprep.subr.bf16.mxu0 0
    %2905 = vmatpush1.bf16.msra.mxu0 0
    %2906 = vmatprep.subr.bf16.mxu0 0
    %2907 = vmatpush1.bf16.msra.mxu0 0
    %2908 = vmatprep.subr.bf16.mxu0 0
    %2909 = vmatpush1.bf16.msra.mxu0 %v2714
    %2910 = vmatprep.subr.bf16.mxu0 0
    %2911 = vmatpush2.bf16.msra.mxu0 0
    %2912 = vmatprep.subr.bf16.mxu0 0
    %2913 = vmatpush2.bf16.msra.mxu0 0
    %2914 = vmatprep.subr.bf16.mxu0 0
    %2915 = vmatpush2.bf16.msra.mxu0 0
    %2916 = vmatprep.subr.bf16.mxu0 0
    %2917 = vmatpush2.bf16.msra.mxu0 0
    %2918 = vmatprep.subr.bf16.mxu0 0
    %2919 = vmatpush2.bf16.msra.mxu0 0
    %2920 = vmatprep.subr.bf16.mxu0 0
    %2921 = vmatpush2.bf16.msra.mxu0 0
    %2922 = vmatprep.subr.bf16.mxu0 0
    %2923 = vmatpush2.bf16.msra.mxu0 0
    %2924 = vmatprep.subr.bf16.mxu0 0
    %2925 = vmatpush2.bf16.msra.mxu0 0
    %2926 = vmatprep.mubr.bf16.mxu0 0
    %2927 = vmatmul.mubr.bf16.gmra.mxu0 %v2892
    %v2928 = vpop.f32.mrf.mxu0
    %v2929 = vadd.f32 0.0, %v2928
    %v2930 = vpop.f32.mrf.mxu0
    %v2931 = vpop.f32.mrf.mxu0
    %v2932 = vadd.f32 0.0, %v2931
    %v2933 = vpop.f32.mrf.mxu0
    %2934 = vdwg.mxu0
    %v2935 = vpack.c.bf16 %v2888, %v2885
    %v2936 = vpack.c.bf16 %v2932, %v2929
    %v2953 = vunpack.c.l.b16 %v2356
    %v2954 = vunpack.c.l.b16 %v2357
    %v2955 = vunpack.c.l.b16 %v2358
    %v2956 = vunpack.c.l.b16 %v2359
    %v2957 = vunpack.c.l.b16 %v2360
    %v2958 = vunpack.c.l.b16 %v2361
    %v2959 = vunpack.c.l.b16 %v2362
    %v2960 = vunpack.c.l.b16 %v2363
    %v2961 = vunpack.c.l.b16 %v2364
    %v2962 = vunpack.c.l.b16 %v2365
    %v2963 = vunpack.c.l.b16 %v2366
    %v2964 = vunpack.c.l.b16 %v2367
    %v2965 = vunpack.c.l.b16 %v2368
    %v2966 = vunpack.c.l.b16 %v2369
    %v2967 = vunpack.c.l.b16 %v2370
    %v2968 = vunpack.c.l.b16 %v2371
    %v2969 = vpack.c.b16 %v2954, %v2953
    %v2970 = vpack.c.b16 %v2956, %v2955
    %v2971 = vpack.c.b16 %v2958, %v2957
    %v2972 = vpack.c.b16 %v2960, %v2959
    %v2973 = vpack.c.b16 %v2962, %v2961
    %v2974 = vpack.c.b16 %v2964, %v2963
    %v2975 = vpack.c.b16 %v2966, %v2965
    %v2976 = vpack.c.b16 %v2968, %v2967
    %2985 = vmatprep.subr.bf16.mxu0 0
    %2986 = vmatpush1.bf16.msra.mxu0 %v2976
    %2987 = vmatprep.subr.bf16.mxu0 0
    %2988 = vmatpush1.bf16.msra.mxu0 %v2975
    %2989 = vmatprep.subr.bf16.mxu0 0
    %2990 = vmatpush1.bf16.msra.mxu0 %v2974
    %2991 = vmatprep.subr.bf16.mxu0 0
    %2992 = vmatpush1.bf16.msra.mxu0 %v2973
    %2993 = vmatprep.subr.bf16.mxu0 0
    %2994 = vmatpush1.bf16.msra.mxu0 %v2972
    %2995 = vmatprep.subr.bf16.mxu0 0
    %2996 = vmatpush1.bf16.msra.mxu0 %v2971
    %2997 = vmatprep.subr.bf16.mxu0 0
    %2998 = vmatpush1.bf16.msra.mxu0 %v2970
    %2999 = vmatprep.subr.bf16.mxu0 0
    %3000 = vmatpush1.bf16.msra.mxu0 %v2969
    %3001 = vmatprep.subr.bf16.mxu0 0
    %3002 = vmatpush2.bf16.msra.mxu0 0
    %3003 = vmatprep.subr.bf16.mxu0 0
    %3004 = vmatpush2.bf16.msra.mxu0 0
    %3005 = vmatprep.subr.bf16.mxu0 0
    %3006 = vmatpush2.bf16.msra.mxu0 0
    %3007 = vmatprep.subr.bf16.mxu0 0
    %3008 = vmatpush2.bf16.msra.mxu0 0
    %3009 = vmatprep.subr.bf16.mxu0 0
    %3010 = vmatpush2.bf16.msra.mxu0 0
    %3011 = vmatprep.subr.bf16.mxu0 0
    %3012 = vmatpush2.bf16.msra.mxu0 0
    %3013 = vmatprep.subr.bf16.mxu0 0
    %3014 = vmatpush2.bf16.msra.mxu0 0
    %3015 = vmatprep.subr.bf16.mxu0 0
    %3016 = vmatpush2.bf16.msra.mxu0 0
    %3017 = vmatprep.mubr.bf16.mxu0 0
    %3018 = vmatmul.mubr.bf16.gmra.mxu0 %v2935
    %v3019 = vpop.f32.mrf.mxu0
    %v3020 = vadd.f32 0.0, %v3019
    %v3021 = vpop.f32.mrf.mxu0
    %v3022 = vpop.f32.mrf.mxu0
    %v3023 = vadd.f32 0.0, %v3022
    %v3024 = vpop.f32.mrf.mxu0
    %3025 = vmatprep.mubr.bf16.mxu0 0
    %3026 = vmatmul.mubr.bf16.gmra.mxu0 %v2936
    %v3027 = vpop.f32.mrf.mxu0
    %v3028 = vadd.f32 0.0, %v3027
    %v3029 = vpop.f32.mrf.mxu0
    %v3030 = vpop.f32.mrf.mxu0
    %v3031 = vadd.f32 0.0, %v3030
    %v3032 = vpop.f32.mrf.mxu0
    %3033 = vdwg.mxu0
    %v3034 = vadd.f32 %v2705, %v3020
    %v3035 = vadd.f32 %v2706, %v3023
    %v3036 = vadd.f32 %v2707, %v3028
    %v3037 = vadd.f32 %v2708, %v3031
    %s3038 = scalar_lea.vmem %s13, 4
    %v3039 = vld [vmem:[%s3038] sm:$0x1]
    %v3040 = vld [vmem:[%s3038 + $0x1] sm:$0x1]
    %v3041 = vld [vmem:[%s3038 + $0x2] sm:$0x1]
    %v3042 = vld [vmem:[%s3038 + $0x3] sm:$0x1]
    %v3043 = vadd.f32 %v2062, %v3034
    %v3044 = vadd.f32 %v2063, %v3035
    %v3045 = vadd.f32 %v2064, %v3036
    %v3046 = vadd.f32 %v2065, %v3037
    %v3047 = vsel %vm381, %v3043, 0.0
    %3048 = vadd.xlane.f32.xlu0 %v3047
    %v3049 = vpop.xlane.xlu0 %3048
    %v3050 = vsel %vm381, %v3044, 0.0
    %3051 = vadd.xlane.f32.xlu0 %v3050
    %v3052 = vpop.xlane.xlu0 %3051
    %v3053 = vsel %vm381, %v3045, 0.0
    %3054 = vadd.xlane.f32.xlu0 %v3053
    %v3055 = vpop.xlane.xlu0 %3054
    %v3056 = vsel %vm381, %v3046, 0.0
    %3057 = vadd.xlane.f32.xlu0 %v3056
    %v3058 = vpop.xlane.xlu0 %3057
    %v3059 = vmul.f32 %v3049, %v1510
    %v3060 = vmul.f32 %v3052, %v1510
    %v3061 = vmul.f32 %v3055, %v1510
    %v3062 = vmul.f32 %v3058, %v1510
    %v3063 = vsub.f32 %v3043, %v3059
    %v3064 = vsub.f32 %v3044, %v3060
    %v3065 = vsub.f32 %v3045, %v3061
    %v3066 = vsub.f32 %v3046, %v3062
    %v3067 = vmul.f32 %v3063, %v3063
    %v3068 = vmul.f32 %v3064, %v3064
    %v3069 = vmul.f32 %v3065, %v3065
    %v3070 = vmul.f32 %v3066, %v3066
    %v3071 = vsel %vm381, %v3067, 0.0
    %3072 = vadd.xlane.f32.xlu0 %v3071
    %v3073 = vpop.xlane.xlu0 %3072
    %v3074 = vsel %vm381, %v3068, 0.0
    %3075 = vadd.xlane.f32.xlu0 %v3074
    %v3076 = vpop.xlane.xlu0 %3075
    %v3077 = vsel %vm381, %v3069, 0.0
    %3078 = vadd.xlane.f32.xlu0 %v3077
    %v3079 = vpop.xlane.xlu0 %3078
    %v3080 = vsel %vm381, %v3070, 0.0
    %3081 = vadd.xlane.f32.xlu0 %v3080
    %v3082 = vpop.xlane.xlu0 %3081
    %v3083 = vmul.f32 %v3073, %v1510
    %v3084 = vmul.f32 %v3076, %v1510
    %v3085 = vmul.f32 %v3079, %v1510
    %v3086 = vmul.f32 %v3082, %v1510
    %v3087 = vadd.f32 %v3083, 1e-05
    %v3088 = vadd.f32 %v3084, 1e-05
    %v3089 = vadd.f32 %v3085, 1e-05
    %v3090 = vadd.f32 %v3086, 1e-05
    %v3091 = vrsqrt.pop %v3087
    %v3092 = vrsqrt.pop %v3088
    %v3093 = vrsqrt.pop %v3089
    %v3094 = vrsqrt.pop %v3090
    %v3095 = vmul.f32 %v3063, %v3091
    %v3096 = vmul.f32 %v3064, %v3092
    %v3097 = vmul.f32 %v3065, %v3093
    %v3098 = vmul.f32 %v3066, %v3094
    %v3100 = vlaneseq
    %v3101 = vshrl.u32 %v3100, 7
    %v3102 = vsub.s32 0, %v3101
    %v3103 = vrot.slane %v3039, %v3102
    %v3105 = vmul.f32 %v3095, %v3103
    %v3106 = vmul.f32 %v3096, %v3103
    %v3107 = vmul.f32 %v3097, %v3103
    %v3108 = vmul.f32 %v3098, %v3103
    %v3110 = vlaneseq
    %v3111 = vshrl.u32 %v3110, 7
    %v3112 = vsub.s32 0, %v3111
    %v3113 = vrot.slane %v3040, %v3112
    %v3115 = vadd.f32 %v3105, %v3113
    %v3116 = vadd.f32 %v3106, %v3113
    %v3117 = vadd.f32 %v3107, %v3113
    %v3118 = vadd.f32 %v3108, %v3113
    %v3119 = vmul.f32 %v3115, %v492
    %v3120 = vmul.f32 %v3116, %v497
    %v3121 = vmul.f32 %v3117, %v502
    %v3122 = vmul.f32 %v3118, %v507
    %s3123 = scalar_lea.vmem %s14, 48
    %v3124 = vld [vmem:[%s3123] sm:$0xf]
    %v3125 = vld [vmem:[%s3123 + $0x4] sm:$0xf]
    %v3126 = vld [vmem:[%s3123 + $0x8] sm:$0xf]
    %v3127 = vld [vmem:[%s3123 + $0xc] sm:$0xf]
    %v3128 = vld [vmem:[%s3123 + $0x10] sm:$0xf]
    %v3129 = vld [vmem:[%s3123 + $0x14] sm:$0xf]
    %v3130 = vld [vmem:[%s3123 + $0x18] sm:$0xf]
    %v3131 = vld [vmem:[%s3123 + $0x1c] sm:$0xf]
    %v3132 = vld [vmem:[%s3123 + $0x20] sm:$0xf]
    %v3133 = vld [vmem:[%s3123 + $0x24] sm:$0xf]
    %v3134 = vld [vmem:[%s3123 + $0x28] sm:$0xf]
    %v3135 = vld [vmem:[%s3123 + $0x2c] sm:$0xf]
    %s3136 = scalar_lea.vmem %s15, 1
    %v3137 = vld [vmem:[%s3136] sm:$0x1]
    %v3138 = vrot.slane %v3119, 6
    %v3139 = vrot.slane %v3120, 6
    %v3140 = vrot.slane %v3121, 6
    %v3141 = vrot.slane %v3122, 6
    %v3142 = vsel %vm1592, %v3140, %v3141
    %v3143 = vsel %vm1592, %v3139, %v3140
    %v3144 = vsel %vm1592, %v3138, %v3139
    %v3145 = vsel %vm1592, %v3141, %v3138
    %v3146 = vsel %vm1613, %v3145, 0.0
    %v3147 = vsel %vm1614, %v3144, 0.0
    %v3148 = vsel %vm1615, %v3143, 0.0
    %v3149 = vsel %vm1616, %v3142, 0.0
    %v3150 = vrot.slane %v3119, 7
    %v3151 = vrot.slane %v3120, 7
    %v3152 = vrot.slane %v3121, 7
    %v3153 = vrot.slane %v3122, 7
    %v3154 = vsel %vm215, %v3152, %v3153
    %v3155 = vsel %vm215, %v3151, %v3152
    %v3156 = vsel %vm215, %v3150, %v3151
    %v3157 = vsel %vm215, %v3153, %v3150
    %v3158 = vsel %vm236, %v3157, 0.0
    %v3159 = vsel %vm237, %v3156, 0.0
    %v3160 = vsel %vm238, %v3155, 0.0
    %v3161 = vsel %vm239, %v3154, 0.0
    %3166 = vrot.lane.b32.xlu0 %v3158, 32
    %v3167 = vpop.permute.xlu0 %3166
    %3168 = vrot.lane.b32.xlu0 %v3159, 32
    %v3169 = vpop.permute.xlu0 %3168
    %3170 = vrot.lane.b32.xlu0 %v3160, 32
    %v3171 = vpop.permute.xlu0 %3170
    %3172 = vrot.lane.b32.xlu0 %v3161, 32
    %v3173 = vpop.permute.xlu0 %3172
    %3182 = vrot.lane.b32.xlu0 %v3119, 64
    %v3183 = vpop.permute.xlu0 %3182
    %3184 = vrot.lane.b32.xlu0 %v3120, 64
    %v3185 = vpop.permute.xlu0 %3184
    %3186 = vrot.lane.b32.xlu0 %v3121, 64
    %v3187 = vpop.permute.xlu0 %3186
    %3188 = vrot.lane.b32.xlu0 %v3122, 64
    %v3189 = vpop.permute.xlu0 %3188
    %v3194 = vsel %vm381, %v3146, %v3167
    %v3195 = vsel %vm381, %v3147, %v3169
    %v3196 = vsel %vm381, %v3148, %v3171
    %v3197 = vsel %vm381, %v3149, %v3173
    %v3198 = vsel %vm386, %v3194, %v3183
    %v3199 = vsel %vm386, %v3195, %v3185
    %v3200 = vsel %vm386, %v3196, %v3187
    %v3201 = vsel %vm386, %v3197, %v3189
    %v3202 = vpack.c.bf16 %v3199, %v3198
    %v3203 = vpack.c.bf16 %v3201, %v3200
    %v3205 = vlaneseq
    %v3206 = vshrl.u32 %v3205, 7
    %v3207 = vsub.s32 0, %v3206
    %v3208 = vrot.slane %v3137, %v3207
    %v3222 = vunpack.c.l.b16 %v3124
    %v3223 = vunpack.c.l.b16 %v3125
    %v3224 = vunpack.c.l.b16 %v3126
    %v3225 = vunpack.c.l.b16 %v3127
    %v3226 = vunpack.c.l.b16 %v3128
    %v3227 = vunpack.c.l.b16 %v3129
    %v3228 = vunpack.c.l.b16 %v3130
    %v3229 = vunpack.c.l.b16 %v3131
    %v3230 = vunpack.c.l.b16 %v3132
    %v3231 = vunpack.c.l.b16 %v3133
    %v3232 = vunpack.c.l.b16 %v3134
    %v3233 = vunpack.c.l.b16 %v3135
    %v3234 = vpack.c.b16 %v3223, %v3222
    %v3235 = vpack.c.b16 %v3225, %v3224
    %v3236 = vpack.c.b16 %v3227, %v3226
    %v3237 = vpack.c.b16 %v3229, %v3228
    %v3238 = vpack.c.b16 %v3231, %v3230
    %v3239 = vpack.c.b16 %v3233, %v3232
    %v3247 = vsel %vm433, %v3202, 0
    %v3250 = vsel %vm433, %v3203, 0
    %3252 = vmatprep.subr.bf16.mxu0 0
    %3253 = vmatpush1.bf16.msra.mxu0 0
    %3254 = vmatprep.subr.bf16.mxu0 0
    %3255 = vmatpush1.bf16.msra.mxu0 0
    %3256 = vmatprep.subr.bf16.mxu0 0
    %3257 = vmatpush1.bf16.msra.mxu0 %v3239
    %3258 = vmatprep.subr.bf16.mxu0 0
    %3259 = vmatpush1.bf16.msra.mxu0 %v3238
    %3260 = vmatprep.subr.bf16.mxu0 0
    %3261 = vmatpush1.bf16.msra.mxu0 %v3237
    %3262 = vmatprep.subr.bf16.mxu0 0
    %3263 = vmatpush1.bf16.msra.mxu0 %v3236
    %3264 = vmatprep.subr.bf16.mxu0 0
    %3265 = vmatpush1.bf16.msra.mxu0 %v3235
    %3266 = vmatprep.subr.bf16.mxu0 0
    %3267 = vmatpush1.bf16.msra.mxu0 %v3234
    %3268 = vmatprep.subr.bf16.mxu0 0
    %3269 = vmatpush2.bf16.msra.mxu0 0
    %3270 = vmatprep.subr.bf16.mxu0 0
    %3271 = vmatpush2.bf16.msra.mxu0 0
    %3272 = vmatprep.subr.bf16.mxu0 0
    %3273 = vmatpush2.bf16.msra.mxu0 0
    %3274 = vmatprep.subr.bf16.mxu0 0
    %3275 = vmatpush2.bf16.msra.mxu0 0
    %3276 = vmatprep.subr.bf16.mxu0 0
    %3277 = vmatpush2.bf16.msra.mxu0 0
    %3278 = vmatprep.subr.bf16.mxu0 0
    %3279 = vmatpush2.bf16.msra.mxu0 0
    %3280 = vmatprep.subr.bf16.mxu0 0
    %3281 = vmatpush2.bf16.msra.mxu0 0
    %3282 = vmatprep.subr.bf16.mxu0 0
    %3283 = vmatpush2.bf16.msra.mxu0 0
    %3284 = vmatprep.mubr.bf16.mxu0 0
    %3285 = vmatmul.mubr.bf16.gmra.mxu0 %v3247
    %v3286 = vpop.f32.mrf.mxu0
    %v3287 = vadd.f32 %v3208, %v3286
    %v3288 = vpop.f32.mrf.mxu0
    %v3289 = vpop.f32.mrf.mxu0
    %v3290 = vadd.f32 %v3208, %v3289
    %v3291 = vpop.f32.mrf.mxu0
    %3292 = vmatprep.mubr.bf16.mxu0 0
    %3293 = vmatmul.mubr.bf16.gmra.mxu0 %v3250
    %v3294 = vpop.f32.mrf.mxu0
    %v3295 = vadd.f32 %v3208, %v3294
    %v3296 = vpop.f32.mrf.mxu0
    %v3297 = vpop.f32.mrf.mxu0
    %v3298 = vadd.f32 %v3208, %v3297
    %v3299 = vpop.f32.mrf.mxu0
    %3300 = vdwg.mxu0
    %v3301 = vmax.f32 %v3287, 0.0
    %v3302 = vmax.f32 %v3290, 0.0
    %v3303 = vmax.f32 %v3295, 0.0
    %v3304 = vmax.f32 %v3298, 0.0
    %v3305 = vmul.f32 %v3301, %v492
    %v3306 = vmul.f32 %v3302, %v497
    %v3307 = vmul.f32 %v3303, %v502
    %v3308 = vmul.f32 %v3304, %v507
    %s3309 = scalar_lea.vmem %s16, 96
    %v3310 = vld [vmem:[%s3309] sm:$0xf]
    %v3311 = vld [vmem:[%s3309 + $0x4] sm:$0xf]
    %v3312 = vld [vmem:[%s3309 + $0x8] sm:$0xf]
    %v3313 = vld [vmem:[%s3309 + $0xc] sm:$0xf]
    %v3314 = vld [vmem:[%s3309 + $0x10] sm:$0xf]
    %v3315 = vld [vmem:[%s3309 + $0x14] sm:$0xf]
    %v3316 = vld [vmem:[%s3309 + $0x18] sm:$0xf]
    %v3317 = vld [vmem:[%s3309 + $0x1c] sm:$0xf]
    %v3318 = vld [vmem:[%s3309 + $0x20] sm:$0xf]
    %v3319 = vld [vmem:[%s3309 + $0x24] sm:$0xf]
    %v3320 = vld [vmem:[%s3309 + $0x28] sm:$0xf]
    %v3321 = vld [vmem:[%s3309 + $0x2c] sm:$0xf]
    %v3322 = vld [vmem:[%s3309 + $0x30] sm:$0xf]
    %v3323 = vld [vmem:[%s3309 + $0x34] sm:$0xf]
    %v3324 = vld [vmem:[%s3309 + $0x38] sm:$0xf]
    %v3325 = vld [vmem:[%s3309 + $0x3c] sm:$0xf]
    %v3326 = vld [vmem:[%s3309 + $0x40] sm:$0xf]
    %v3327 = vld [vmem:[%s3309 + $0x44] sm:$0xf]
    %v3328 = vld [vmem:[%s3309 + $0x48] sm:$0xf]
    %v3329 = vld [vmem:[%s3309 + $0x4c] sm:$0xf]
    %v3330 = vld [vmem:[%s3309 + $0x50] sm:$0xf]
    %v3331 = vld [vmem:[%s3309 + $0x54] sm:$0xf]
    %v3332 = vld [vmem:[%s3309 + $0x58] sm:$0xf]
    %v3333 = vld [vmem:[%s3309 + $0x5c] sm:$0xf]
    %s3334 = scalar_lea.vmem %s17, 1
    %v3335 = vld [vmem:[%s3334] sm:$0x1]
    %v3336 = vrot.slane %v3305, 6
    %v3337 = vrot.slane %v3306, 6
    %v3338 = vrot.slane %v3307, 6
    %v3339 = vrot.slane %v3308, 6
    %v3340 = vsel %vm1592, %v3338, %v3339
    %v3341 = vsel %vm1592, %v3337, %v3338
    %v3342 = vsel %vm1592, %v3336, %v3337
    %v3343 = vsel %vm1592, %v3339, %v3336
    %v3344 = vsel %vm1613, %v3343, 0.0
    %v3345 = vsel %vm1614, %v3342, 0.0
    %v3346 = vsel %vm1615, %v3341, 0.0
    %v3347 = vsel %vm1616, %v3340, 0.0
    %v3348 = vrot.slane %v3305, 7
    %v3349 = vrot.slane %v3306, 7
    %v3350 = vrot.slane %v3307, 7
    %v3351 = vrot.slane %v3308, 7
    %v3352 = vsel %vm215, %v3350, %v3351
    %v3353 = vsel %vm215, %v3349, %v3350
    %v3354 = vsel %vm215, %v3348, %v3349
    %v3355 = vsel %vm215, %v3351, %v3348
    %v3356 = vsel %vm236, %v3355, 0.0
    %v3357 = vsel %vm237, %v3354, 0.0
    %v3358 = vsel %vm238, %v3353, 0.0
    %v3359 = vsel %vm239, %v3352, 0.0
    %3364 = vrot.lane.b32.xlu0 %v3356, 64
    %v3365 = vpop.permute.xlu0 %3364
    %3366 = vrot.lane.b32.xlu0 %v3357, 64
    %v3367 = vpop.permute.xlu0 %3366
    %3368 = vrot.lane.b32.xlu0 %v3358, 64
    %v3369 = vpop.permute.xlu0 %3368
    %3370 = vrot.lane.b32.xlu0 %v3359, 64
    %v3371 = vpop.permute.xlu0 %3370
    %v3376 = vsel %vm386, %v3344, %v3365
    %v3377 = vsel %vm386, %v3345, %v3367
    %v3378 = vsel %vm386, %v3346, %v3369
    %v3379 = vsel %vm386, %v3347, %v3371
    %v3380 = vpack.c.bf16 %v3377, %v3376
    %v3381 = vpack.c.bf16 %v3306, %v3305
    %v3382 = vpack.c.bf16 %v3379, %v3378
    %v3383 = vpack.c.bf16 %v3308, %v3307
    %v3385 = vlaneseq
    %v3386 = vshrl.u32 %v3385, 7
    %v3387 = vsub.s32 0, %v3386
    %v3388 = vrot.slane %v3335, %v3387
    %v3414 = vunpack.c.l.b16 %v3310
    %v3415 = vunpack.c.l.b16 %v3311
    %v3416 = vunpack.c.l.b16 %v3312
    %v3417 = vunpack.c.l.b16 %v3313
    %v3418 = vunpack.c.l.b16 %v3314
    %v3419 = vunpack.c.l.b16 %v3315
    %v3420 = vunpack.c.l.b16 %v3316
    %v3421 = vunpack.c.l.b16 %v3317
    %v3422 = vunpack.c.l.b16 %v3318
    %v3423 = vunpack.c.l.b16 %v3319
    %v3424 = vunpack.c.l.b16 %v3320
    %v3425 = vunpack.c.l.b16 %v3321
    %v3426 = vunpack.c.l.b16 %v3322
    %v3427 = vunpack.c.l.b16 %v3323
    %v3428 = vunpack.c.l.b16 %v3324
    %v3429 = vunpack.c.l.b16 %v3325
    %v3430 = vunpack.c.l.b16 %v3326
    %v3431 = vunpack.c.l.b16 %v3327
    %v3432 = vunpack.c.l.b16 %v3328
    %v3433 = vunpack.c.l.b16 %v3329
    %v3434 = vunpack.c.l.b16 %v3330
    %v3435 = vunpack.c.l.b16 %v3331
    %v3436 = vunpack.c.l.b16 %v3332
    %v3437 = vunpack.c.l.b16 %v3333
    %v3438 = vpack.c.b16 %v3415, %v3414
    %v3439 = vpack.c.b16 %v3417, %v3416
    %v3440 = vpack.c.b16 %v3419, %v3418
    %v3441 = vpack.c.b16 %v3421, %v3420
    %v3442 = vpack.c.b16 %v3423, %v3422
    %v3443 = vpack.c.b16 %v3425, %v3424
    %v3444 = vpack.c.b16 %v3427, %v3426
    %v3445 = vpack.c.b16 %v3429, %v3428
    %v3446 = vpack.c.b16 %v3431, %v3430
    %v3447 = vpack.c.b16 %v3433, %v3432
    %v3448 = vpack.c.b16 %v3435, %v3434
    %v3449 = vpack.c.b16 %v3437, %v3436
    %v3463 = vsel %vm386, %v3381, 0
    %v3466 = vsel %vm386, %v3383, 0
    %3468 = vmatprep.subr.bf16.mxu0 0
    %3469 = vmatpush1.bf16.msra.mxu0 %v3445
    %3470 = vmatprep.subr.bf16.mxu0 0
    %3471 = vmatpush1.bf16.msra.mxu0 %v3444
    %3472 = vmatprep.subr.bf16.mxu0 0
    %3473 = vmatpush1.bf16.msra.mxu0 %v3443
    %3474 = vmatprep.subr.bf16.mxu0 0
    %3475 = vmatpush1.bf16.msra.mxu0 %v3442
    %3476 = vmatprep.subr.bf16.mxu0 0
    %3477 = vmatpush1.bf16.msra.mxu0 %v3441
    %3478 = vmatprep.subr.bf16.mxu0 0
    %3479 = vmatpush1.bf16.msra.mxu0 %v3440
    %3480 = vmatprep.subr.bf16.mxu0 0
    %3481 = vmatpush1.bf16.msra.mxu0 %v3439
    %3482 = vmatprep.subr.bf16.mxu0 0
    %3483 = vmatpush1.bf16.msra.mxu0 %v3438
    %3484 = vmatprep.subr.bf16.mxu0 0
    %3485 = vmatpush2.bf16.msra.mxu0 0
    %3486 = vmatprep.subr.bf16.mxu0 0
    %3487 = vmatpush2.bf16.msra.mxu0 0
    %3488 = vmatprep.subr.bf16.mxu0 0
    %3489 = vmatpush2.bf16.msra.mxu0 0
    %3490 = vmatprep.subr.bf16.mxu0 0
    %3491 = vmatpush2.bf16.msra.mxu0 0
    %3492 = vmatprep.subr.bf16.mxu0 0
    %3493 = vmatpush2.bf16.msra.mxu0 %v3449
    %3494 = vmatprep.subr.bf16.mxu0 0
    %3495 = vmatpush2.bf16.msra.mxu0 %v3448
    %3496 = vmatprep.subr.bf16.mxu0 0
    %3497 = vmatpush2.bf16.msra.mxu0 %v3447
    %3498 = vmatprep.subr.bf16.mxu0 0
    %3499 = vmatpush2.bf16.msra.mxu0 %v3446
    %3500 = vmatprep.mubr.bf16.mxu0 %v3463
    %3501 = vmatmul.mubr.bf16.gmra.mxu0 %v3380
    %v3502 = vpop.f32.mrf.mxu0
    %v3503 = vadd.f32 %v3388, %v3502
    %v3504 = vpop.f32.mrf.mxu0
    %v3505 = vpop.f32.mrf.mxu0
    %v3506 = vadd.f32 %v3388, %v3505
    %v3507 = vpop.f32.mrf.mxu0
    %3508 = vmatprep.mubr.bf16.mxu0 %v3466
    %3509 = vmatmul.mubr.bf16.gmra.mxu0 %v3382
    %v3510 = vpop.f32.mrf.mxu0
    %v3511 = vadd.f32 %v3388, %v3510
    %v3512 = vpop.f32.mrf.mxu0
    %v3513 = vpop.f32.mrf.mxu0
    %v3514 = vadd.f32 %v3388, %v3513
    %v3515 = vpop.f32.mrf.mxu0
    %3516 = vdwg.mxu0
    %v3517 = vmul.f32 %v3503, %v492
    %v3518 = vmul.f32 %v3506, %v497
    %v3519 = vmul.f32 %v3511, %v502
    %v3520 = vmul.f32 %v3514, %v507
    %v3521 = vadd.f32 %v3115, %v3517
    %v3522 = vadd.f32 %v3116, %v3518
    %v3523 = vadd.f32 %v3117, %v3519
    %v3524 = vadd.f32 %v3118, %v3520
    %v3525 = vsel %vm381, %v3521, 0.0
    %3526 = vadd.xlane.f32.xlu0 %v3525
    %v3527 = vpop.xlane.xlu0 %3526
    %v3528 = vsel %vm381, %v3522, 0.0
    %3529 = vadd.xlane.f32.xlu0 %v3528
    %v3530 = vpop.xlane.xlu0 %3529
    %v3531 = vsel %vm381, %v3523, 0.0
    %3532 = vadd.xlane.f32.xlu0 %v3531
    %v3533 = vpop.xlane.xlu0 %3532
    %v3534 = vsel %vm381, %v3524, 0.0
    %3535 = vadd.xlane.f32.xlu0 %v3534
    %v3536 = vpop.xlane.xlu0 %3535
    %v3537 = vmul.f32 %v3527, %v1510
    %v3538 = vmul.f32 %v3530, %v1510
    %v3539 = vmul.f32 %v3533, %v1510
    %v3540 = vmul.f32 %v3536, %v1510
    %v3541 = vsub.f32 %v3521, %v3537
    %v3542 = vsub.f32 %v3522, %v3538
    %v3543 = vsub.f32 %v3523, %v3539
    %v3544 = vsub.f32 %v3524, %v3540
    %v3545 = vmul.f32 %v3541, %v3541
    %v3546 = vmul.f32 %v3542, %v3542
    %v3547 = vmul.f32 %v3543, %v3543
    %v3548 = vmul.f32 %v3544, %v3544
    %v3549 = vsel %vm381, %v3545, 0.0
    %3550 = vadd.xlane.f32.xlu0 %v3549
    %v3551 = vpop.xlane.xlu0 %3550
    %v3552 = vsel %vm381, %v3546, 0.0
    %3553 = vadd.xlane.f32.xlu0 %v3552
    %v3554 = vpop.xlane.xlu0 %3553
    %v3555 = vsel %vm381, %v3547, 0.0
    %3556 = vadd.xlane.f32.xlu0 %v3555
    %v3557 = vpop.xlane.xlu0 %3556
    %v3558 = vsel %vm381, %v3548, 0.0
    %3559 = vadd.xlane.f32.xlu0 %v3558
    %v3560 = vpop.xlane.xlu0 %3559
    %v3561 = vmul.f32 %v3551, %v1510
    %v3562 = vmul.f32 %v3554, %v1510
    %v3563 = vmul.f32 %v3557, %v1510
    %v3564 = vmul.f32 %v3560, %v1510
    %v3565 = vadd.f32 %v3561, 1e-05
    %v3566 = vadd.f32 %v3562, 1e-05
    %v3567 = vadd.f32 %v3563, 1e-05
    %v3568 = vadd.f32 %v3564, 1e-05
    %v3569 = vrsqrt.pop %v3565
    %v3570 = vrsqrt.pop %v3566
    %v3571 = vrsqrt.pop %v3567
    %v3572 = vrsqrt.pop %v3568
    %v3573 = vmul.f32 %v3541, %v3569
    %v3574 = vmul.f32 %v3542, %v3570
    %v3575 = vmul.f32 %v3543, %v3571
    %v3576 = vmul.f32 %v3544, %v3572
    %v3578 = vlaneseq
    %v3579 = vshrl.u32 %v3578, 7
    %v3580 = vsub.s32 0, %v3579
    %v3581 = vrot.slane %v3041, %v3580
    %v3583 = vmul.f32 %v3573, %v3581
    %v3584 = vmul.f32 %v3574, %v3581
    %v3585 = vmul.f32 %v3575, %v3581
    %v3586 = vmul.f32 %v3576, %v3581
    %v3588 = vlaneseq
    %v3589 = vshrl.u32 %v3588, 7
    %v3590 = vsub.s32 0, %v3589
    %v3591 = vrot.slane %v3042, %v3590
    %v3593 = vadd.f32 %v3583, %v3591
    %v3594 = vadd.f32 %v3584, %v3591
    %v3595 = vadd.f32 %v3585, %v3591
    %v3596 = vadd.f32 %v3586, %v3591
    %v3597 = vmul.f32 %v3593, %v492
    %v3598 = vmul.f32 %v3594, %v497
    %v3599 = vmul.f32 %v3595, %v502
    %v3600 = vmul.f32 %v3596, %v507
    %v3601 = vpack.c.bf16 %v3598, %v3597
    %v3602 = vpack.c.bf16 %v3600, %v3599
    %v3603 = vld [vmem:[%s18] sm:$0xf]
    %v3604 = vld [vmem:[%s18 + $0x4] sm:$0xf]
    %v3605 = vld [vmem:[%s18 + $0x8] sm:$0xf]
    %v3606 = vld [vmem:[%s18 + $0xc] sm:$0xf]
    %v3607 = vld [vmem:[%s19] sm:$0x1]
    %v3609 = vlaneseq
    %v3610 = vshrl.u32 %v3609, 7
    %v3611 = vsub.s32 0, %v3610
    %v3612 = vrot.slane %v3607, %v3611
    %v3618 = vunpack.c.l.b16 %v3603
    %v3619 = vunpack.c.l.b16 %v3604
    %v3620 = vunpack.c.l.b16 %v3605
    %v3621 = vunpack.c.l.b16 %v3606
    %v3622 = vpack.c.b16 %v3619, %v3618
    %v3623 = vpack.c.b16 %v3621, %v3620
    %v3627 = vsel %vm381, %v3601, 0
    %v3630 = vsel %vm381, %v3602, 0
    %3632 = vmatprep.subr.bf16.mxu0 0
    %3633 = vmatpush1.bf16.msra.mxu0 0
    %3634 = vmatprep.subr.bf16.mxu0 0
    %3635 = vmatpush1.bf16.msra.mxu0 0
    %3636 = vmatprep.subr.bf16.mxu0 0
    %3637 = vmatpush1.bf16.msra.mxu0 0
    %3638 = vmatprep.subr.bf16.mxu0 0
    %3639 = vmatpush1.bf16.msra.mxu0 0
    %3640 = vmatprep.subr.bf16.mxu0 0
    %3641 = vmatpush1.bf16.msra.mxu0 0
    %3642 = vmatprep.subr.bf16.mxu0 0
    %3643 = vmatpush1.bf16.msra.mxu0 0
    %3644 = vmatprep.subr.bf16.mxu0 0
    %3645 = vmatpush1.bf16.msra.mxu0 %v3623
    %3646 = vmatprep.subr.bf16.mxu0 0
    %3647 = vmatpush1.bf16.msra.mxu0 %v3622
    %3648 = vmatprep.subr.bf16.mxu0 0
    %3649 = vmatpush2.bf16.msra.mxu0 0
    %3650 = vmatprep.subr.bf16.mxu0 0
    %3651 = vmatpush2.bf16.msra.mxu0 0
    %3652 = vmatprep.subr.bf16.mxu0 0
    %3653 = vmatpush2.bf16.msra.mxu0 0
    %3654 = vmatprep.subr.bf16.mxu0 0
    %3655 = vmatpush2.bf16.msra.mxu0 0
    %3656 = vmatprep.subr.bf16.mxu0 0
    %3657 = vmatpush2.bf16.msra.mxu0 0
    %3658 = vmatprep.subr.bf16.mxu0 0
    %3659 = vmatpush2.bf16.msra.mxu0 0
    %3660 = vmatprep.subr.bf16.mxu0 0
    %3661 = vmatpush2.bf16.msra.mxu0 0
    %3662 = vmatprep.subr.bf16.mxu0 0
    %3663 = vmatpush2.bf16.msra.mxu0 0
    %3664 = vmatprep.mubr.bf16.mxu0 0
    %3665 = vmatmul.mubr.bf16.gmra.mxu0 %v3627
    %v3666 = vpop.f32.mrf.mxu0
    %v3667 = vadd.f32 %v3612, %v3666
    %v3668 = vpop.f32.mrf.mxu0
    %v3669 = vpop.f32.mrf.mxu0
    %v3670 = vadd.f32 %v3612, %v3669
    %v3671 = vpop.f32.mrf.mxu0
    %3672 = vmatprep.mubr.bf16.mxu0 0
    %3673 = vmatmul.mubr.bf16.gmra.mxu0 %v3630
    %v3674 = vpop.f32.mrf.mxu0
    %v3675 = vadd.f32 %v3612, %v3674
    %v3676 = vpop.f32.mrf.mxu0
    %v3677 = vpop.f32.mrf.mxu0
    %v3678 = vadd.f32 %v3612, %v3677
    %v3679 = vpop.f32.mrf.mxu0
    %3680 = vdwg.mxu0
    %v3681 = vmul.f32 %v3667, %v492
    %v3682 = vmul.f32 %v3670, %v497
    %v3683 = vmul.f32 %v3675, %v502
    %v3684 = vmul.f32 %v3678, %v507
    %v3685 = vpack.c.bf16 %v3682, %v3681
    %v3686 = vpack.c.bf16 %v3684, %v3683
    %v3689 = vunpack.c.l.b16 %v3685
    %v3690 = vunpack.c.h.b16 %v3685
    %v3691 = vunpack.c.l.b16 %v3686
    %v3692 = vunpack.c.h.b16 %v3686
    %v3693 = vpack.c.b16 %v3689, %v3689
    %v3694 = vpack.c.b16 %v3690, %v3690
    %v3695 = vpack.c.b16 %v3691, %v3691
    %v3696 = vpack.c.b16 %v3692, %v3692
    %3701 = vst [vmem:[#allocation2] sm:$0xf] %v3693
    %3702 = vst [vmem:[#allocation2 + $0x4] sm:$0xf] %v3694
    %3703 = vst [vmem:[#allocation2 + $0x8] sm:$0xf] %v3695
    %3704 = vst [vmem:[#allocation2 + $0xc] sm:$0xf] %v3696
    // Predicated region
    $region82: #{tpu_custom_call.1} parent=1 // pred_check
      _
    $region83: #{tpu_custom_call.1} parent=1 // pred_check_branch
      %3706 = sbr.rel (0) target = $region85
    $region84: #{tpu_custom_call.1} parent=1 // pred_region
      %s3708 = ssub.s32 256, 256
      %3709 = vsyncadd [#allocation3], %s3708
      %s3710 = sshll.u32 [#allocation2], 4
      %s3711 = int_to_ptr.vmem [resolvable:$true] %s3710
      %3716 = dma.vmem_to_hbm [thread:$0]  %s3711, 256, %s20, [#allocation3], 64, 64, 4
    $region85: #{tpu_custom_call.1} parent=1 // pred_fallthru
      _
    // Predicated region
    $region86: #{tpu_custom_call.1} parent=1 // pred_check
      _
    $region87: #{tpu_custom_call.1} parent=1 // pred_check_branch
      %3718 = sbr.rel (0) target = $region89
    $region88: #{tpu_custom_call.1} parent=1 // pred_region
      %3719 = dma.done [#allocation3], 256
    $region89: #{tpu_custom_call.1} parent=1 // pred_fallthru
      _
    %3720 = vsyncpa [#allocation3], 1

// kernel: tpu_custom_call.1
$region0: #{tpu_custom_call.1}
  #allocation0 [shape = 'u32[]', space=smem, size = 0x4, offset = 0x4, fixed_abs, tag = 'smem constant byte address 0x4 - core index']
  #allocation1 [shape = 'u32[144,128]{1,0:T(1,128)}', space=vmem, size = 0x12000, scoped, tag = 'internal scratch']
  %s0 = inlined_call_operand.vmem [shape: f32[32,32], index: 0, kind: input, shape index: {}]
  %s1 = inlined_call_operand.vmem [shape: f32[32,1], index: 1, kind: input, shape index: {}]
  %s2 = inlined_call_operand.vmem [shape: f32[32,1], index: 2, kind: input, shape index: {}]
  %s3 = inlined_call_operand.vmem [shape: f32[32,8], index: 3, kind: input, shape index: {}]
  %s4 = inlined_call_operand.vmem [shape: s32[32,1], index: 4, kind: input, shape index: {}]
  %s5 = inlined_call_operand.vmem [shape: bf16[8,32], index: 5, kind: input, shape index: {}]
  %s6 = inlined_call_operand.vmem [shape: f32[3,32], index: 6, kind: input, shape index: {}]
  %s7 = inlined_call_operand.vmem [shape: bf16[96,32], index: 7, kind: input, shape index: {}]
  %s8 = inlined_call_operand.vmem [shape: f32[3,32], index: 8, kind: input, shape index: {}]
  %s9 = inlined_call_operand.vmem [shape: bf16[2,32,768], index: 9, kind: input, shape index: {}]
  %s10 = inlined_call_operand.vmem [shape: f32[2,1,768], index: 10, kind: input, shape index: {}]
  %s11 = inlined_call_operand.vmem [shape: bf16[2,256,32], index: 11, kind: input, shape index: {}]
  %s12 = inlined_call_operand.vmem [shape: f32[2,1,32], index: 12, kind: input, shape index: {}]
  %s13 = inlined_call_operand.vmem [shape: f32[2,4,1,32], index: 13, kind: input, shape index: {}]
  %s14 = inlined_call_operand.vmem [shape: bf16[2,96,64], index: 14, kind: input, shape index: {}]
  %s15 = inlined_call_operand.vmem [shape: f32[2,1,64], index: 15, kind: input, shape index: {}]
  %s16 = inlined_call_operand.vmem [shape: bf16[2,192,32], index: 16, kind: input, shape index: {}]
  %s17 = inlined_call_operand.vmem [shape: f32[2,1,32], index: 17, kind: input, shape index: {}]
  %s18 = inlined_call_operand.vmem [shape: bf16[32,128], index: 18, kind: input, shape index: {}]
  %s19 = inlined_call_operand.vmem [shape: f32[1,128], index: 19, kind: input, shape index: {}]
  %s20 = inlined_call_operand.hbm [shape: bf16[32,128], index: 20, kind: output, shape index: {}]
  %s21 = sld [smem:[#allocation0]]
  $region90: #{tpu_custom_call.1} parent=0
    _
  %s23 = ssub.s32 1, %s21
  %s24 = scalar_select 0, %s23, %s21
  $region1: #{tpu_custom_call.1} parent=0
    #allocation2 [shape = 'u8[8192]{0}', space=vmem, size = 0x2000, scoped, tag = 'output window, operand 0, single buffered']
    #allocation3 [shape = 's32[1]{0}', space=sflag, size = 0x4, scoped, tag = 'scoped memory for tpu_custom_call.1']
    %25 = vsyncpa [#allocation3], 0
    // Predicated region
    $region2: #{tpu_custom_call.1} parent=1 // pred_check
      _
    $region3: #{tpu_custom_call.1} parent=1 // pred_check_branch
      %27 = sbr.rel (0) target = $region5
    $region4: #{tpu_custom_call.1} parent=1 // pred_region
      _
    $region5: #{tpu_custom_call.1} parent=1 // pred_fallthru
      _
    // Predicated region
    $region6: #{tpu_custom_call.1} parent=1 // pred_check
      _
    $region7: #{tpu_custom_call.1} parent=1 // pred_check_branch
      %29 = sbr.rel (0) target = $region9
    $region8: #{tpu_custom_call.1} parent=1 // pred_region
      _
    $region9: #{tpu_custom_call.1} parent=1 // pred_fallthru
      _
    // Predicated region
    $region10: #{tpu_custom_call.1} parent=1 // pred_check
      _
    $region11: #{tpu_custom_call.1} parent=1 // pred_check_branch
      %31 = sbr.rel (0) target = $region13
    $region12: #{tpu_custom_call.1} parent=1 // pred_region
      _
    $region13: #{tpu_custom_call.1} parent=1 // pred_fallthru
      _
    // Predicated region
    $region14: #{tpu_custom_call.1} parent=1 // pred_check
      _
    $region15: #{tpu_custom_call.1} parent=1 // pred_check_branch
      %33 = sbr.rel (0) target = $region17
    $region16: #{tpu_custom_call.1} parent=1 // pred_region
      _
    $region17: #{tpu_custom_call.1} parent=1 // pred_fallthru
      _
    // Predicated region
    $region18: #{tpu_custom_call.1} parent=1 // pred_check
      _
    $region19: #{tpu_custom_call.1} parent=1 // pred_check_branch
      %35 = sbr.rel (0) target = $region21
    $region20: #{tpu_custom_call.1} parent=1 // pred_region
      _
    $region21: #{tpu_custom_call.1} parent=1 // pred_fallthru
      _
    // Predicated region
    $region22: #{tpu_custom_call.1} parent=1 // pred_check
      _
    $region23: #{tpu_custom_call.1} parent=1 // pred_check_branch
      %37 = sbr.rel (0) target = $region25
    $region24: #{tpu_custom_call.1} parent=1 // pred_region
      _
    $region25: #{tpu_custom_call.1} parent=1 // pred_fallthru
      _
    // Predicated region
    $region26: #{tpu_custom_call.1} parent=1 // pred_check
      _
    $region27: #{tpu_custom_call.1} parent=1 // pred_check_branch
      %39 = sbr.rel (0) target = $region29
    $region28: #{tpu_custom_call.1} parent=1 // pred_region
      _
    $region29: #{tpu_custom_call.1} parent=1 // pred_fallthru
      _
    // Predicated region
    $region30: #{tpu_custom_call.1} parent=1 // pred_check
      _
    $region31: #{tpu_custom_call.1} parent=1 // pred_check_branch
      %41 = sbr.rel (0) target = $region33
    $region32: #{tpu_custom_call.1} parent=1 // pred_region
      _
    $region33: #{tpu_custom_call.1} parent=1 // pred_fallthru
      _
    // Predicated region
    $region34: #{tpu_custom_call.1} parent=1 // pred_check
      _
    $region35: #{tpu_custom_call.1} parent=1 // pred_check_branch
      %43 = sbr.rel (0) target = $region37
    $region36: #{tpu_custom_call.1} parent=1 // pred_region
      _
    $region37: #{tpu_custom_call.1} parent=1 // pred_fallthru
      _
    // Predicated region
    $region38: #{tpu_custom_call.1} parent=1 // pred_check
      _
    $region39: #{tpu_custom_call.1} parent=1 // pred_check_branch
      %45 = sbr.rel (0) target = $region41
    $region40: #{tpu_custom_call.1} parent=1 // pred_region
      _
    $region41: #{tpu_custom_call.1} parent=1 // pred_fallthru
      _
    // Predicated region
    $region42: #{tpu_custom_call.1} parent=1 // pred_check
      _
    $region43: #{tpu_custom_call.1} parent=1 // pred_check_branch
      %47 = sbr.rel (0) target = $region45
    $region44: #{tpu_custom_call.1} parent=1 // pred_region
      _
    $region45: #{tpu_custom_call.1} parent=1 // pred_fallthru
      _
    // Predicated region
    $region46: #{tpu_custom_call.1} parent=1 // pred_check
      _
    $region47: #{tpu_custom_call.1} parent=1 // pred_check_branch
      %49 = sbr.rel (0) target = $region49
    $region48: #{tpu_custom_call.1} parent=1 // pred_region
      _
    $region49: #{tpu_custom_call.1} parent=1 // pred_fallthru
      _
    // Predicated region
    $region50: #{tpu_custom_call.1} parent=1 // pred_check
      _
    $region51: #{tpu_custom_call.1} parent=1 // pred_check_branch
      %51 = sbr.rel (0) target = $region53
    $region52: #{tpu_custom_call.1} parent=1 // pred_region
      _
    $region53: #{tpu_custom_call.1} parent=1 // pred_fallthru
      _
    // Predicated region
    $region54: #{tpu_custom_call.1} parent=1 // pred_check
      _
    $region55: #{tpu_custom_call.1} parent=1 // pred_check_branch
      %53 = sbr.rel (0) target = $region57
    $region56: #{tpu_custom_call.1} parent=1 // pred_region
      _
    $region57: #{tpu_custom_call.1} parent=1 // pred_fallthru
      _
    // Predicated region
    $region58: #{tpu_custom_call.1} parent=1 // pred_check
      _
    $region59: #{tpu_custom_call.1} parent=1 // pred_check_branch
      %55 = sbr.rel (0) target = $region61
    $region60: #{tpu_custom_call.1} parent=1 // pred_region
      _
    $region61: #{tpu_custom_call.1} parent=1 // pred_fallthru
      _
    // Predicated region
    $region62: #{tpu_custom_call.1} parent=1 // pred_check
      _
    $region63: #{tpu_custom_call.1} parent=1 // pred_check_branch
      %57 = sbr.rel (0) target = $region65
    $region64: #{tpu_custom_call.1} parent=1 // pred_region
      _
    $region65: #{tpu_custom_call.1} parent=1 // pred_fallthru
      _
    // Predicated region
    $region66: #{tpu_custom_call.1} parent=1 // pred_check
      _
    $region67: #{tpu_custom_call.1} parent=1 // pred_check_branch
      %59 = sbr.rel (0) target = $region69
    $region68: #{tpu_custom_call.1} parent=1 // pred_region
      _
    $region69: #{tpu_custom_call.1} parent=1 // pred_fallthru
      _
    // Predicated region
    $region70: #{tpu_custom_call.1} parent=1 // pred_check
      _
    $region71: #{tpu_custom_call.1} parent=1 // pred_check_branch
      %61 = sbr.rel (0) target = $region73
    $region72: #{tpu_custom_call.1} parent=1 // pred_region
      _
    $region73: #{tpu_custom_call.1} parent=1 // pred_fallthru
      _
    // Predicated region
    $region74: #{tpu_custom_call.1} parent=1 // pred_check
      _
    $region75: #{tpu_custom_call.1} parent=1 // pred_check_branch
      %63 = sbr.rel (0) target = $region77
    $region76: #{tpu_custom_call.1} parent=1 // pred_region
      _
    $region77: #{tpu_custom_call.1} parent=1 // pred_fallthru
      _
    // Predicated region
    $region78: #{tpu_custom_call.1} parent=1 // pred_check
      _
    $region79: #{tpu_custom_call.1} parent=1 // pred_check_branch
      %65 = sbr.rel (0) target = $region81
    $region80: #{tpu_custom_call.1} parent=1 // pred_region
      _
    $region81: #{tpu_custom_call.1} parent=1 // pred_fallthru
      _
    %v67 = vld [vmem:[%s0] sm:$0xff]
    %v68 = vld [vmem:[%s0 + $0x8] sm:$0xff]
    %v69 = vld [vmem:[%s0 + $0x10] sm:$0xff]
    %v70 = vld [vmem:[%s0 + $0x18] sm:$0xff]
    %v71 = vld [vmem:[%s2] sm:$0xff]
    %v72 = vld [vmem:[%s2 + $0x8] sm:$0xff]
    %v73 = vld [vmem:[%s2 + $0x10] sm:$0xff]
    %v74 = vld [vmem:[%s2 + $0x18] sm:$0xff]
    %v75 = vld [vmem:[%s1] sm:$0xff]
    %v76 = vld [vmem:[%s1 + $0x8] sm:$0xff]
    %v77 = vld [vmem:[%s1 + $0x10] sm:$0xff]
    %v78 = vld [vmem:[%s1 + $0x18] sm:$0xff]
    %v79 = vld [vmem:[%s4] sm:$0xff]
    %v80 = vld [vmem:[%s4 + $0x8] sm:$0xff]
    %v81 = vld [vmem:[%s4 + $0x10] sm:$0xff]
    %v82 = vld [vmem:[%s4 + $0x18] sm:$0xff]
    %v83 = vlaneseq
    %v84 = vshrl.u32 %v83, 7
    %v85 = vadd.s32 %v84, 8
    %v86 = vlaneseq
    %v87 = vand.u32 %v86, 127
    %vm88 = vcmp.ge.s32.totalorder %v84, %v87
    %vm89 = vcmp.ge.s32.totalorder %v85, %v87
    %vm90 = vcmp.ge.s32.totalorder %v79, 1
    %vm91 = vcmp.ge.s32.totalorder %v80, 1
    %vm92 = vcmp.ge.s32.totalorder %v81, 1
    %vm93 = vcmp.ge.s32.totalorder %v82, 1
    %vm94 = vcmp.ge.s32.totalorder %v79, 2
    %vm95 = vcmp.ge.s32.totalorder %v80, 2
    %vm96 = vcmp.ge.s32.totalorder %v81, 2
    %vm97 = vcmp.ge.s32.totalorder %v82, 2
    %vm98 = vcmp.lt.s32.totalorder %v79, 15
    %vm99 = vcmp.lt.s32.totalorder %v80, 15
    %vm100 = vcmp.lt.s32.totalorder %v81, 15
    %vm101 = vcmp.lt.s32.totalorder %v82, 15
    %v102 = vld [vmem:[%s8] sm:$0x7]
    %v103 = vld [vmem:[%s6] sm:$0x7]
    %v104 = vld [vmem:[%s3] sm:$0xff]
    %v105 = vld [vmem:[%s3 + $0x8] sm:$0xff]
    %v106 = vld [vmem:[%s3 + $0x10] sm:$0xff]
    %v107 = vld [vmem:[%s3 + $0x18] sm:$0xff]
    %v108 = vpack.c.bf16 %v105, %v104
    %v109 = vpack.c.bf16 %v107, %v106
    %v110 = vld [vmem:[%s5] sm:$0xf]
    %vm111 = vcmask 64512
    %v113 = vsel %vm111, %v108, 0
    %v116 = vsel %vm111, %v109, 0
    %vm118 = vcmask 1043456
    %v120 = vsel %vm118, %v110, 0
    %122 = vmatprep.subr.bf16.mxu0 0
    %123 = vmatpush1.bf16.msra.mxu0 0
    %124 = vmatprep.subr.bf16.mxu0 0
    %125 = vmatpush1.bf16.msra.mxu0 0
    %126 = vmatprep.subr.bf16.mxu0 0
    %127 = vmatpush1.bf16.msra.mxu0 0
    %128 = vmatprep.subr.bf16.mxu0 0
    %129 = vmatpush1.bf16.msra.mxu0 0
    %130 = vmatprep.subr.bf16.mxu0 0
    %131 = vmatpush1.bf16.msra.mxu0 0
    %132 = vmatprep.subr.bf16.mxu0 0
    %133 = vmatpush1.bf16.msra.mxu0 0
    %134 = vmatprep.subr.bf16.mxu0 0
    %135 = vmatpush1.bf16.msra.mxu0 0
    %136 = vmatprep.subr.bf16.mxu0 0
    %137 = vmatpush1.bf16.msra.mxu0 %v120
    %138 = vmatprep.subr.bf16.mxu0 0
    %139 = vmatpush2.bf16.msra.mxu0 0
    %140 = vmatprep.subr.bf16.mxu0 0
    %141 = vmatpush2.bf16.msra.mxu0 0
    %142 = vmatprep.subr.bf16.mxu0 0
    %143 = vmatpush2.bf16.msra.mxu0 0
    %144 = vmatprep.subr.bf16.mxu0 0
    %145 = vmatpush2.bf16.msra.mxu0 0
    %146 = vmatprep.subr.bf16.mxu0 0
    %147 = vmatpush2.bf16.msra.mxu0 0
    %148 = vmatprep.subr.bf16.mxu0 0
    %149 = vmatpush2.bf16.msra.mxu0 0
    %150 = vmatprep.subr.bf16.mxu0 0
    %151 = vmatpush2.bf16.msra.mxu0 0
    %152 = vmatprep.subr.bf16.mxu0 0
    %153 = vmatpush2.bf16.msra.mxu0 0
    %154 = vmatprep.mubr.bf16.mxu0 0
    %155 = vmatmul.mubr.bf16.gmra.mxu0 %v113
    %v156 = vpop.f32.mrf.mxu0
    %v157 = vadd.f32 0.0, %v156
    %v158 = vpop.f32.mrf.mxu0
    %v159 = vpop.f32.mrf.mxu0
    %v160 = vadd.f32 0.0, %v159
    %v161 = vpop.f32.mrf.mxu0
    %162 = vmatprep.mubr.bf16.mxu0 0
    %163 = vmatmul.mubr.bf16.gmra.mxu0 %v116
    %v164 = vpop.f32.mrf.mxu0
    %v165 = vadd.f32 0.0, %v164
    %v166 = vpop.f32.mrf.mxu0
    %v167 = vpop.f32.mrf.mxu0
    %v168 = vadd.f32 0.0, %v167
    %v169 = vpop.f32.mrf.mxu0
    %170 = vdwg.mxu0
    %v171 = vadd.f32 %v67, %v157
    %v172 = vadd.f32 %v68, %v160
    %v173 = vadd.f32 %v69, %v165
    %v174 = vadd.f32 %v70, %v168
    %v175 = vlaneseq
    %v176 = vshrl.u32 %v175, 7
    %v177 = vsub.s32 0, %v176
    %v178 = vrot.slane %v102, %v177
    %v179 = vadd.f32 %v171, %v178
    %v180 = vadd.f32 %v172, %v178
    %v181 = vadd.f32 %v173, %v178
    %v182 = vadd.f32 %v174, %v178
    %184 = vset.pattern.permute.xlu0 0
    %185 = vperm.xlu0 %184, %v75
    %v186 = vpop.permute.xlu0 %185
    %189 = vset.pattern.permute.xlu0 0
    %190 = vperm.xlu0 %189, %v76
    %v191 = vpop.permute.xlu0 %190
    %194 = vset.pattern.permute.xlu0 0
    %195 = vperm.xlu0 %194, %v77
    %v196 = vpop.permute.xlu0 %195
    %199 = vset.pattern.permute.xlu0 0
    %200 = vperm.xlu0 %199, %v78
    %v201 = vpop.permute.xlu0 %200
    %v203 = vlaneseq
    %v204 = vshrl.u32 %v203, 7
    %v205 = vsub.s32 0, %v204
    %v206 = vrot.slane %v103, %v205
    %v207 = vmul.f32 %v186, %v206
    %v208 = vmul.f32 %v191, %v206
    %v209 = vmul.f32 %v196, %v206
    %v210 = vmul.f32 %v201, %v206
    %v211 = vrot.slane %v207, 7
    %v212 = vrot.slane %v208, 7
    %v213 = vrot.slane %v209, 7
    %v214 = vrot.slane %v210, 7
    %vm215 = vcmp.lt.s32.totalorder %v84, 1
    %v216 = vsel %vm215, %v213, %v214
    %v217 = vsel %vm215, %v212, %v213
    %v218 = vsel %vm215, %v211, %v212
    %v219 = vsel %vm215, %v214, %v211
    %v220 = vsel %vm90, 1, 0
    %v221 = vsel %vm91, 1, 0
    %v222 = vsel %vm92, 1, 0
    %v223 = vsel %vm93, 1, 0
    %224 = vset.pattern.permute.xlu0 0
    %225 = vperm.xlu0 %224, %v220
    %v226 = vpop.permute.xlu0 %225
    %227 = vset.pattern.permute.xlu0 0
    %228 = vperm.xlu0 %227, %v221
    %v229 = vpop.permute.xlu0 %228
    %230 = vset.pattern.permute.xlu0 0
    %231 = vperm.xlu0 %230, %v222
    %v232 = vpop.permute.xlu0 %231
    %233 = vset.pattern.permute.xlu0 0
    %234 = vperm.xlu0 %233, %v223
    %v235 = vpop.permute.xlu0 %234
    %vm236 = vcmp.eq.s32.totalorder %v226, 1
    %vm237 = vcmp.eq.s32.totalorder %v229, 1
    %vm238 = vcmp.eq.s32.totalorder %v232, 1
    %vm239 = vcmp.eq.s32.totalorder %v235, 1
    %v240 = vsel %vm236, %v219, 0.0
    %v241 = vsel %vm237, %v218, 0.0
    %v242 = vsel %vm238, %v217, 0.0
    %v243 = vsel %vm239, %v216, 0.0
    %v244 = vlaneseq
    %v245 = vshrl.u32 %v244, 7
    %v246 = vsub.s32 1, %v245
    %v247 = vrot.slane %v103, %v246
    %v248 = vmul.f32 %v186, %v247
    %v249 = vmul.f32 %v191, %v247
    %v250 = vmul.f32 %v196, %v247
    %v251 = vmul.f32 %v201, %v247
    %v252 = vadd.f32 %v240, %v248
    %v253 = vadd.f32 %v241, %v249
    %v254 = vadd.f32 %v242, %v250
    %v255 = vadd.f32 %v243, %v251
    %v256 = vlaneseq
    %v257 = vshrl.u32 %v256, 7
    %v258 = vsub.s32 2, %v257
    %v259 = vrot.slane %v103, %v258
    %v260 = vmul.f32 %v186, %v259
    %v261 = vmul.f32 %v191, %v259
    %v262 = vmul.f32 %v196, %v259
    %v263 = vmul.f32 %v201, %v259
    %v264 = vrot.slane %v260, 1
    %v265 = vrot.slane %v261, 1
    %v266 = vrot.slane %v262, 1
    %v267 = vrot.slane %v263, 1
    %vm268 = vcmp.lt.s32.totalorder %v84, 7
    %v269 = vsel %vm268, %v266, %v267
    %v270 = vsel %vm268, %v265, %v266
    %v271 = vsel %vm268, %v264, %v265
    %v272 = vsel %vm268, %v267, %v264
    %v273 = vsel %vm98, 1, 0
    %v274 = vsel %vm99, 1, 0
    %v275 = vsel %vm100, 1, 0
    %v276 = vsel %vm101, 1, 0
    %277 = vset.pattern.permute.xlu0 0
    %278 = vperm.xlu0 %277, %v273
    %v279 = vpop.permute.xlu0 %278
    %280 = vset.pattern.permute.xlu0 0
    %281 = vperm.xlu0 %280, %v274
    %v282 = vpop.permute.xlu0 %281
    %283 = vset.pattern.permute.xlu0 0
    %284 = vperm.xlu0 %283, %v275
    %v285 = vpop.permute.xlu0 %284
    %286 = vset.pattern.permute.xlu0 0
    %287 = vperm.xlu0 %286, %v276
    %v288 = vpop.permute.xlu0 %287
    %vm289 = vcmp.eq.s32.totalorder %v279, 1
    %vm290 = vcmp.eq.s32.totalorder %v282, 1
    %vm291 = vcmp.eq.s32.totalorder %v285, 1
    %vm292 = vcmp.eq.s32.totalorder %v288, 1
    %v293 = vsel %vm289, %v271, 0.0
    %v294 = vsel %vm290, %v270, 0.0
    %v295 = vsel %vm291, %v269, 0.0
    %v296 = vsel %vm292, %v272, 0.0
    %v297 = vadd.f32 %v252, %v293
    %v298 = vadd.f32 %v253, %v294
    %v299 = vadd.f32 %v254, %v295
    %v300 = vadd.f32 %v255, %v296
    %v301 = vlaneseq
    %v302 = vshrl.u32 %v301, 7
    %v303 = vsub.s32 1, %v302
    %v304 = vrot.slane %v102, %v303
    %v305 = vadd.f32 %v297, %v304
    %v306 = vadd.f32 %v298, %v304
    %v307 = vadd.f32 %v299, %v304
    %v308 = vadd.f32 %v300, %v304
    %v309 = vadd.f32 %v179, %v305
    %v310 = vadd.f32 %v180, %v306
    %v311 = vadd.f32 %v181, %v307
    %v312 = vadd.f32 %v182, %v308
    %v313 = vld [vmem:[%s7] sm:$0xf]
    %v314 = vld [vmem:[%s7 + $0x4] sm:$0xf]
    %v315 = vld [vmem:[%s7 + $0x8] sm:$0xf]
    %v316 = vld [vmem:[%s7 + $0xc] sm:$0xf]
    %v317 = vld [vmem:[%s7 + $0x10] sm:$0xf]
    %v318 = vld [vmem:[%s7 + $0x14] sm:$0xf]
    %v319 = vld [vmem:[%s7 + $0x18] sm:$0xf]
    %v320 = vld [vmem:[%s7 + $0x1c] sm:$0xf]
    %v321 = vld [vmem:[%s7 + $0x20] sm:$0xf]
    %v322 = vld [vmem:[%s7 + $0x24] sm:$0xf]
    %v323 = vld [vmem:[%s7 + $0x28] sm:$0xf]
    %v324 = vld [vmem:[%s7 + $0x2c] sm:$0xf]
    %v325 = vrot.slane %v309, 7
    %v326 = vrot.slane %v310, 7
    %v327 = vrot.slane %v311, 7
    %v328 = vrot.slane %v312, 7
    %v329 = vsel %vm215, %v327, %v328
    %v330 = vsel %vm215, %v326, %v327
    %v331 = vsel %vm215, %v325, %v326
    %v332 = vsel %vm215, %v328, %v325
    %v333 = vsel %vm236, %v332, 0.0
    %v334 = vsel %vm237, %v331, 0.0
    %v335 = vsel %vm238, %v330, 0.0
    %v336 = vsel %vm239, %v329, 0.0
    %v337 = vrot.slane %v309, 1
    %v338 = vrot.slane %v310, 1
    %v339 = vrot.slane %v311, 1
    %v340 = vrot.slane %v312, 1
    %v341 = vsel %vm268, %v339, %v340
    %v342 = vsel %vm268, %v338, %v339
    %v343 = vsel %vm268, %v337, %v338
    %v344 = vsel %vm268, %v340, %v337
    %v345 = vsel %vm289, %v343, 0.0
    %v346 = vsel %vm290, %v342, 0.0
    %v347 = vsel %vm291, %v341, 0.0
    %v348 = vsel %vm292, %v344, 0.0
    %353 = vrot.lane.b32.xlu0 %v309, 32
    %v354 = vpop.permute.xlu0 %353
    %355 = vrot.lane.b32.xlu0 %v310, 32
    %v356 = vpop.permute.xlu0 %355
    %357 = vrot.lane.b32.xlu0 %v311, 32
    %v358 = vpop.permute.xlu0 %357
    %359 = vrot.lane.b32.xlu0 %v312, 32
    %v360 = vpop.permute.xlu0 %359
    %369 = vrot.lane.b32.xlu0 %v345, 64
    %v370 = vpop.permute.xlu0 %369
    %371 = vrot.lane.b32.xlu0 %v346, 64
    %v372 = vpop.permute.xlu0 %371
    %373 = vrot.lane.b32.xlu0 %v347, 64
    %v374 = vpop.permute.xlu0 %373
    %375 = vrot.lane.b32.xlu0 %v348, 64
    %v376 = vpop.permute.xlu0 %375
    %vm381 = vcmask 261120
    %v382 = vsel %vm381, %v333, %v354
    %v383 = vsel %vm381, %v334, %v356
    %v384 = vsel %vm381, %v335, %v358
    %v385 = vsel %vm381, %v336, %v360
    %vm386 = vcmask 523264
    %v387 = vsel %vm386, %v382, %v370
    %v388 = vsel %vm386, %v383, %v372
    %v389 = vsel %vm386, %v384, %v374
    %v390 = vsel %vm386, %v385, %v376
    %v391 = vpack.c.bf16 %v388, %v387
    %v392 = vpack.c.bf16 %v390, %v389
    %v393 = vlaneseq
    %v394 = vshrl.u32 %v393, 7
    %v395 = vsub.s32 2, %v394
    %v396 = vrot.slane %v102, %v395
    %v409 = vunpack.c.l.b16 %v313
    %v410 = vunpack.c.l.b16 %v314
    %v411 = vunpack.c.l.b16 %v315
    %v412 = vunpack.c.l.b16 %v316
    %v413 = vunpack.c.l.b16 %v317
    %v414 = vunpack.c.l.b16 %v318
    %v415 = vunpack.c.l.b16 %v319
    %v416 = vunpack.c.l.b16 %v320
    %v417 = vunpack.c.l.b16 %v321
    %v418 = vunpack.c.l.b16 %v322
    %v419 = vunpack.c.l.b16 %v323
    %v420 = vunpack.c.l.b16 %v324
    %v421 = vpack.c.b16 %v410, %v409
    %v422 = vpack.c.b16 %v412, %v411
    %v423 = vpack.c.b16 %v414, %v413
    %v424 = vpack.c.b16 %v416, %v415
    %v425 = vpack.c.b16 %v418, %v417
    %v426 = vpack.c.b16 %v420, %v419
    %vm433 = vcmask 785408
    %v435 = vsel %vm433, %v391, 0
    %v438 = vsel %vm433, %v392, 0
    %440 = vmatprep.subr.bf16.mxu0 0
    %441 = vmatpush1.bf16.msra.mxu0 0
    %442 = vmatprep.subr.bf16.mxu0 0
    %443 = vmatpush1.bf16.msra.mxu0 0
    %444 = vmatprep.subr.bf16.mxu0 0
    %445 = vmatpush1.bf16.msra.mxu0 %v426
    %446 = vmatprep.subr.bf16.mxu0 0
    %447 = vmatpush1.bf16.msra.mxu0 %v425
    %448 = vmatprep.subr.bf16.mxu0 0
    %449 = vmatpush1.bf16.msra.mxu0 %v424
    %450 = vmatprep.subr.bf16.mxu0 0
    %451 = vmatpush1.bf16.msra.mxu0 %v423
    %452 = vmatprep.subr.bf16.mxu0 0
    %453 = vmatpush1.bf16.msra.mxu0 %v422
    %454 = vmatprep.subr.bf16.mxu0 0
    %455 = vmatpush1.bf16.msra.mxu0 %v421
    %456 = vmatprep.subr.bf16.mxu0 0
    %457 = vmatpush2.bf16.msra.mxu0 0
    %458 = vmatprep.subr.bf16.mxu0 0
    %459 = vmatpush2.bf16.msra.mxu0 0
    %460 = vmatprep.subr.bf16.mxu0 0
    %461 = vmatpush2.bf16.msra.mxu0 0
    %462 = vmatprep.subr.bf16.mxu0 0
    %463 = vmatpush2.bf16.msra.mxu0 0
    %464 = vmatprep.subr.bf16.mxu0 0
    %465 = vmatpush2.bf16.msra.mxu0 0
    %466 = vmatprep.subr.bf16.mxu0 0
    %467 = vmatpush2.bf16.msra.mxu0 0
    %468 = vmatprep.subr.bf16.mxu0 0
    %469 = vmatpush2.bf16.msra.mxu0 0
    %470 = vmatprep.subr.bf16.mxu0 0
    %471 = vmatpush2.bf16.msra.mxu0 0
    %472 = vmatprep.mubr.bf16.mxu0 0
    %473 = vmatmul.mubr.bf16.gmra.mxu0 %v435
    %v474 = vpop.f32.mrf.mxu0
    %v475 = vadd.f32 %v396, %v474
    %v476 = vpop.f32.mrf.mxu0
    %v477 = vpop.f32.mrf.mxu0
    %v478 = vadd.f32 %v396, %v477
    %v479 = vpop.f32.mrf.mxu0
    %480 = vmatprep.mubr.bf16.mxu0 0
    %481 = vmatmul.mubr.bf16.gmra.mxu0 %v438
    %v482 = vpop.f32.mrf.mxu0
    %v483 = vadd.f32 %v396, %v482
    %v484 = vpop.f32.mrf.mxu0
    %v485 = vpop.f32.mrf.mxu0
    %v486 = vadd.f32 %v396, %v485
    %v487 = vpop.f32.mrf.mxu0
    %488 = vdwg.mxu0
    %490 = vset.pattern.permute.xlu0 0
    %491 = vperm.xlu0 %490, %v71
    %v492 = vpop.permute.xlu0 %491
    %495 = vset.pattern.permute.xlu0 0
    %496 = vperm.xlu0 %495, %v72
    %v497 = vpop.permute.xlu0 %496
    %500 = vset.pattern.permute.xlu0 0
    %501 = vperm.xlu0 %500, %v73
    %v502 = vpop.permute.xlu0 %501
    %505 = vset.pattern.permute.xlu0 0
    %506 = vperm.xlu0 %505, %v74
    %v507 = vpop.permute.xlu0 %506
    %v509 = vmul.f32 %v475, %v492
    %v510 = vmul.f32 %v478, %v497
    %v511 = vmul.f32 %v483, %v502
    %v512 = vmul.f32 %v486, %v507
    %v513 = vmul.f32 %v509, %v492
    %v514 = vmul.f32 %v510, %v497
    %v515 = vmul.f32 %v511, %v502
    %v516 = vmul.f32 %v512, %v507
    %v517 = vpack.c.bf16 %v514, %v513
    %v518 = vpack.c.bf16 %v516, %v515
    %v519 = vld [vmem:[%s9] sm:$0xff]
    %v520 = vld [vmem:[%s9 + $0x8] sm:$0xff]
    %v521 = vld [vmem:[%s9 + $0x10] sm:$0xff]
    %v522 = vld [vmem:[%s9 + $0x18] sm:$0xff]
    %v523 = vld [vmem:[%s9 + $0x20] sm:$0xff]
    %v524 = vld [vmem:[%s9 + $0x28] sm:$0xff]
    %v525 = vld [vmem:[%s9 + $0x30] sm:$0xff]
    %v526 = vld [vmem:[%s9 + $0x38] sm:$0xff]
    %v527 = vld [vmem:[%s9 + $0x40] sm:$0xff]
    %v528 = vld [vmem:[%s9 + $0x48] sm:$0xff]
    %v529 = vld [vmem:[%s9 + $0x50] sm:$0xff]
    %v530 = vld [vmem:[%s9 + $0x58] sm:$0xff]
    %v531 = vld [vmem:[%s10] sm:$0x3f]
    %v533 = vlaneseq
    %v534 = vshrl.u32 %v533, 7
    %v535 = vsub.s32 0, %v534
    %v536 = vrot.slane %v531, %v535
    %v537 = vlaneseq
    %v538 = vshrl.u32 %v537, 7
    %v539 = vsub.s32 1, %v538
    %v540 = vrot.slane %v531, %v539
    %v541 = vlaneseq
    %v542 = vshrl.u32 %v541, 7
    %v543 = vsub.s32 2, %v542
    %v544 = vrot.slane %v531, %v543
    %v545 = vlaneseq
    %v546 = vshrl.u32 %v545, 7
    %v547 = vsub.s32 3, %v546
    %v548 = vrot.slane %v531, %v547
    %v549 = vlaneseq
    %v550 = vshrl.u32 %v549, 7
    %v551 = vsub.s32 4, %v550
    %v552 = vrot.slane %v531, %v551
    %v553 = vlaneseq
    %v554 = vshrl.u32 %v553, 7
    %v555 = vsub.s32 5, %v554
    %v556 = vrot.slane %v531, %v555
    %v575 = vunpack.c.l.b16 %v519
    %v576 = vunpack.c.h.b16 %v519
    %v577 = vunpack.c.l.b16 %v520
    %v578 = vunpack.c.h.b16 %v520
    %v579 = vunpack.c.l.b16 %v521
    %v580 = vunpack.c.h.b16 %v521
    %v581 = vunpack.c.l.b16 %v522
    %v582 = vunpack.c.h.b16 %v522
    %v583 = vunpack.c.l.b16 %v523
    %v584 = vunpack.c.h.b16 %v523
    %v585 = vunpack.c.l.b16 %v524
    %v586 = vunpack.c.h.b16 %v524
    %v587 = vunpack.c.l.b16 %v525
    %v588 = vunpack.c.h.b16 %v525
    %v589 = vunpack.c.l.b16 %v526
    %v590 = vunpack.c.h.b16 %v526
    %v591 = vunpack.c.l.b16 %v527
    %v592 = vunpack.c.h.b16 %v527
    %v593 = vunpack.c.l.b16 %v528
    %v594 = vunpack.c.h.b16 %v528
    %v595 = vunpack.c.l.b16 %v529
    %v596 = vunpack.c.h.b16 %v529
    %v597 = vunpack.c.l.b16 %v530
    %v598 = vunpack.c.h.b16 %v530
    %v599 = vpack.c.b16 %v581, %v575
    %v600 = vpack.c.b16 %v582, %v576
    %v601 = vpack.c.b16 %v583, %v577
    %v602 = vpack.c.b16 %v584, %v578
    %v603 = vpack.c.b16 %v585, %v579
    %v604 = vpack.c.b16 %v586, %v580
    %v605 = vpack.c.b16 %v593, %v587
    %v606 = vpack.c.b16 %v594, %v588
    %v607 = vpack.c.b16 %v595, %v589
    %v608 = vpack.c.b16 %v596, %v590
    %v609 = vpack.c.b16 %v597, %v591
    %v610 = vpack.c.b16 %v598, %v592
    %v624 = vsel %vm381, %v517, 0
    %v627 = vsel %vm381, %v518, 0
    %629 = vmatprep.subr.bf16.mxu0 0
    %630 = vmatpush1.bf16.msra.mxu0 0
    %631 = vmatprep.subr.bf16.mxu0 0
    %632 = vmatpush1.bf16.msra.mxu0 0
    %633 = vmatprep.subr.bf16.mxu0 0
    %634 = vmatpush1.bf16.msra.mxu0 0
    %635 = vmatprep.subr.bf16.mxu0 0
    %636 = vmatpush1.bf16.msra.mxu0 0
    %637 = vmatprep.subr.bf16.mxu0 0
    %638 = vmatpush1.bf16.msra.mxu0 0
    %639 = vmatprep.subr.bf16.mxu0 0
    %640 = vmatpush1.bf16.msra.mxu0 0
    %641 = vmatprep.subr.bf16.mxu0 %v606
    %642 = vmatpush1.bf16.msra.mxu0 %v605
    %643 = vmatprep.subr.bf16.mxu0 %v600
    %644 = vmatpush1.bf16.msra.mxu0 %v599
    %645 = vmatprep.subr.bf16.mxu0 0
    %646 = vmatpush2.bf16.msra.mxu0 0
    %647 = vmatprep.subr.bf16.mxu0 0
    %648 = vmatpush2.bf16.msra.mxu0 0
    %649 = vmatprep.subr.bf16.mxu0 0
    %650 = vmatpush2.bf16.msra.mxu0 0
    %651 = vmatprep.subr.bf16.mxu0 0
    %652 = vmatpush2.bf16.msra.mxu0 0
    %653 = vmatprep.subr.bf16.mxu0 0
    %654 = vmatpush2.bf16.msra.mxu0 0
    %655 = vmatprep.subr.bf16.mxu0 0
    %656 = vmatpush2.bf16.msra.mxu0 0
    %657 = vmatprep.subr.bf16.mxu0 0
    %658 = vmatpush2.bf16.msra.mxu0 0
    %659 = vmatprep.subr.bf16.mxu0 0
    %660 = vmatpush2.bf16.msra.mxu0 0
    %661 = vmatprep.mubr.bf16.mxu0 0
    %662 = vmatmul.mubr.bf16.gmra.mxu0 %v624
    %v663 = vpop.f32.mrf.mxu0
    %v664 = vadd.f32 %v536, %v663
    %v665 = vpop.f32.mrf.mxu0
    %v666 = vadd.f32 %v540, %v665
    %v667 = vpop.f32.mrf.mxu0
    %v668 = vadd.f32 %v536, %v667
    %v669 = vpop.f32.mrf.mxu0
    %v670 = vadd.f32 %v540, %v669
    %671 = vmatprep.mubr.bf16.mxu0 0
    %672 = vmatmul.mubr.bf16.gmra.mxu0 %v627
    %v673 = vpop.f32.mrf.mxu0
    %v674 = vadd.f32 %v536, %v673
    %v675 = vpop.f32.mrf.mxu0
    %v676 = vadd.f32 %v540, %v675
    %v677 = vpop.f32.mrf.mxu0
    %v678 = vadd.f32 %v536, %v677
    %v679 = vpop.f32.mrf.mxu0
    %v680 = vadd.f32 %v540, %v679
    %681 = vdwg.mxu0
    %682 = vmatprep.subr.bf16.mxu0 0
    %683 = vmatpush1.bf16.msra.mxu0 0
    %684 = vmatprep.subr.bf16.mxu0 0
    %685 = vmatpush1.bf16.msra.mxu0 0
    %686 = vmatprep.subr.bf16.mxu0 0
    %687 = vmatpush1.bf16.msra.mxu0 0
    %688 = vmatprep.subr.bf16.mxu0 0
    %689 = vmatpush1.bf16.msra.mxu0 0
    %690 = vmatprep.subr.bf16.mxu0 0
    %691 = vmatpush1.bf16.msra.mxu0 0
    %692 = vmatprep.subr.bf16.mxu0 0
    %693 = vmatpush1.bf16.msra.mxu0 0
    %694 = vmatprep.subr.bf16.mxu0 %v608
    %695 = vmatpush1.bf16.msra.mxu0 %v607
    %696 = vmatprep.subr.bf16.mxu0 %v602
    %697 = vmatpush1.bf16.msra.mxu0 %v601
    %698 = vmatprep.subr.bf16.mxu0 0
    %699 = vmatpush2.bf16.msra.mxu0 0
    %700 = vmatprep.subr.bf16.mxu0 0
    %701 = vmatpush2.bf16.msra.mxu0 0
    %702 = vmatprep.subr.bf16.mxu0 0
    %703 = vmatpush2.bf16.msra.mxu0 0
    %704 = vmatprep.subr.bf16.mxu0 0
    %705 = vmatpush2.bf16.msra.mxu0 0
    %706 = vmatprep.subr.bf16.mxu0 0
    %707 = vmatpush2.bf16.msra.mxu0 0
    %708 = vmatprep.subr.bf16.mxu0 0
    %709 = vmatpush2.bf16.msra.mxu0 0
    %710 = vmatprep.subr.bf16.mxu0 0
    %711 = vmatpush2.bf16.msra.mxu0 0
    %712 = vmatprep.subr.bf16.mxu0 0
    %713 = vmatpush2.bf16.msra.mxu0 0
    %714 = vmatprep.mubr.bf16.mxu0 0
    %715 = vmatmul.mubr.bf16.gmra.mxu0 %v624
    %v716 = vpop.f32.mrf.mxu0
    %v717 = vadd.f32 %v544, %v716
    %v718 = vpop.f32.mrf.mxu0
    %v719 = vadd.f32 %v548, %v718
    %v720 = vpop.f32.mrf.mxu0
    %v721 = vadd.f32 %v544, %v720
    %v722 = vpop.f32.mrf.mxu0
    %v723 = vadd.f32 %v548, %v722
    %724 = vmatprep.mubr.bf16.mxu0 0
    %725 = vmatmul.mubr.bf16.gmra.mxu0 %v627
    %v726 = vpop.f32.mrf.mxu0
    %v727 = vadd.f32 %v544, %v726
    %v728 = vpop.f32.mrf.mxu0
    %v729 = vadd.f32 %v548, %v728
    %v730 = vpop.f32.mrf.mxu0
    %v731 = vadd.f32 %v544, %v730
    %v732 = vpop.f32.mrf.mxu0
    %v733 = vadd.f32 %v548, %v732
    %734 = vdwg.mxu0
    %735 = vmatprep.subr.bf16.mxu0 0
    %736 = vmatpush1.bf16.msra.mxu0 0
    %737 = vmatprep.subr.bf16.mxu0 0
    %738 = vmatpush1.bf16.msra.mxu0 0
    %739 = vmatprep.subr.bf16.mxu0 0
    %740 = vmatpush1.bf16.msra.mxu0 0
    %741 = vmatprep.subr.bf16.mxu0 0
    %742 = vmatpush1.bf16.msra.mxu0 0
    %743 = vmatprep.subr.bf16.mxu0 0
    %744 = vmatpush1.bf16.msra.mxu0 0
    %745 = vmatprep.subr.bf16.mxu0 0
    %746 = vmatpush1.bf16.msra.mxu0 0
    %747 = vmatprep.subr.bf16.mxu0 %v610
    %748 = vmatpush1.bf16.msra.mxu0 %v609
    %749 = vmatprep.subr.bf16.mxu0 %v604
    %750 = vmatpush1.bf16.msra.mxu0 %v603
    %751 = vmatprep.subr.bf16.mxu0 0
    %752 = vmatpush2.bf16.msra.mxu0 0
    %753 = vmatprep.subr.bf16.mxu0 0
    %754 = vmatpush2.bf16.msra.mxu0 0
    %755 = vmatprep.subr.bf16.mxu0 0
    %756 = vmatpush2.bf16.msra.mxu0 0
    %757 = vmatprep.subr.bf16.mxu0 0
    %758 = vmatpush2.bf16.msra.mxu0 0
    %759 = vmatprep.subr.bf16.mxu0 0
    %760 = vmatpush2.bf16.msra.mxu0 0
    %761 = vmatprep.subr.bf16.mxu0 0
    %762 = vmatpush2.bf16.msra.mxu0 0
    %763 = vmatprep.subr.bf16.mxu0 0
    %764 = vmatpush2.bf16.msra.mxu0 0
    %765 = vmatprep.subr.bf16.mxu0 0
    %766 = vmatpush2.bf16.msra.mxu0 0
    %767 = vmatprep.mubr.bf16.mxu0 0
    %768 = vmatmul.mubr.bf16.gmra.mxu0 %v624
    %v769 = vpop.f32.mrf.mxu0
    %v770 = vadd.f32 %v552, %v769
    %v771 = vpop.f32.mrf.mxu0
    %v772 = vadd.f32 %v556, %v771
    %v773 = vpop.f32.mrf.mxu0
    %v774 = vadd.f32 %v552, %v773
    %v775 = vpop.f32.mrf.mxu0
    %v776 = vadd.f32 %v556, %v775
    %777 = vmatprep.mubr.bf16.mxu0 0
    %778 = vmatmul.mubr.bf16.gmra.mxu0 %v627
    %v779 = vpop.f32.mrf.mxu0
    %v780 = vadd.f32 %v552, %v779
    %v781 = vpop.f32.mrf.mxu0
    %v782 = vadd.f32 %v556, %v781
    %v783 = vpop.f32.mrf.mxu0
    %v784 = vadd.f32 %v552, %v783
    %v785 = vpop.f32.mrf.mxu0
    %v786 = vadd.f32 %v556, %v785
    %787 = vdwg.mxu0
    %v788 = vld [vmem:[%s11] sm:$0xf]
    %v789 = vld [vmem:[%s11 + $0x4] sm:$0xf]
    %v790 = vld [vmem:[%s11 + $0x8] sm:$0xf]
    %v791 = vld [vmem:[%s11 + $0xc] sm:$0xf]
    %v792 = vld [vmem:[%s11 + $0x10] sm:$0xf]
    %v793 = vld [vmem:[%s11 + $0x14] sm:$0xf]
    %v794 = vld [vmem:[%s11 + $0x18] sm:$0xf]
    %v795 = vld [vmem:[%s11 + $0x1c] sm:$0xf]
    %v796 = vld [vmem:[%s11 + $0x20] sm:$0xf]
    %v797 = vld [vmem:[%s11 + $0x24] sm:$0xf]
    %v798 = vld [vmem:[%s11 + $0x28] sm:$0xf]
    %v799 = vld [vmem:[%s11 + $0x2c] sm:$0xf]
    %v800 = vld [vmem:[%s11 + $0x30] sm:$0xf]
    %v801 = vld [vmem:[%s11 + $0x34] sm:$0xf]
    %v802 = vld [vmem:[%s11 + $0x38] sm:$0xf]
    %v803 = vld [vmem:[%s11 + $0x3c] sm:$0xf]
    %v804 = vld [vmem:[%s11 + $0x40] sm:$0xf]
    %v805 = vld [vmem:[%s11 + $0x44] sm:$0xf]
    %v806 = vld [vmem:[%s11 + $0x48] sm:$0xf]
    %v807 = vld [vmem:[%s11 + $0x4c] sm:$0xf]
    %v808 = vld [vmem:[%s11 + $0x50] sm:$0xf]
    %v809 = vld [vmem:[%s11 + $0x54] sm:$0xf]
    %v810 = vld [vmem:[%s11 + $0x58] sm:$0xf]
    %v811 = vld [vmem:[%s11 + $0x5c] sm:$0xf]
    %v812 = vld [vmem:[%s11 + $0x60] sm:$0xf]
    %v813 = vld [vmem:[%s11 + $0x64] sm:$0xf]
    %v814 = vld [vmem:[%s11 + $0x68] sm:$0xf]
    %v815 = vld [vmem:[%s11 + $0x6c] sm:$0xf]
    %v816 = vld [vmem:[%s11 + $0x70] sm:$0xf]
    %v817 = vld [vmem:[%s11 + $0x74] sm:$0xf]
    %v818 = vld [vmem:[%s11 + $0x78] sm:$0xf]
    %v819 = vld [vmem:[%s11 + $0x7c] sm:$0xf]
    %v820 = vld [vmem:[%s12] sm:$0x1]
    %v821 = vpack.c.bf16 %v668, %v664
    %v822 = vpack.c.bf16 %v678, %v674
    %v823 = vpack.c.bf16 %v670, %v666
    %v824 = vpack.c.bf16 %v680, %v676
    %v825 = vpack.c.bf16 %v721, %v717
    %v826 = vpack.c.bf16 %v731, %v727
    %827 = vmatprep.subr.bf16.mxu0 0
    %828 = vmatpush1.bf16.xpose.msra.mxu0 0
    %829 = vmatprep.subr.bf16.mxu0 0
    %830 = vmatpush1.bf16.xpose.msra.mxu0 0
    %831 = vmatprep.subr.bf16.mxu0 0
    %832 = vmatpush1.bf16.xpose.msra.mxu0 0
    %833 = vmatprep.subr.bf16.mxu0 0
    %834 = vmatpush1.bf16.xpose.msra.mxu0 0
    %835 = vmatprep.subr.bf16.mxu0 0
    %836 = vmatpush1.bf16.xpose.msra.mxu0 0
    %837 = vmatprep.subr.bf16.mxu0 0
    %838 = vmatpush1.bf16.xpose.msra.mxu0 0
    %839 = vmatprep.subr.bf16.mxu0 0
    %840 = vmatpush1.bf16.xpose.msra.mxu0 0
    %841 = vmatprep.subr.bf16.mxu0 0
    %842 = vmatpush1.bf16.xpose.msra.mxu0 %v823
    %843 = vmatprep.subr.bf16.mxu0 0
    %844 = vmatpush2.bf16.xpose.msra.mxu0 0
    %845 = vmatprep.subr.bf16.mxu0 0
    %846 = vmatpush2.bf16.xpose.msra.mxu0 0
    %847 = vmatprep.subr.bf16.mxu0 0
    %848 = vmatpush2.bf16.xpose.msra.mxu0 0
    %849 = vmatprep.subr.bf16.mxu0 0
    %850 = vmatpush2.bf16.xpose.msra.mxu0 0
    %851 = vmatprep.subr.bf16.mxu0 0
    %852 = vmatpush2.bf16.xpose.msra.mxu0 0
    %853 = vmatprep.subr.bf16.mxu0 0
    %854 = vmatpush2.bf16.xpose.msra.mxu0 0
    %855 = vmatprep.subr.bf16.mxu0 0
    %856 = vmatpush2.bf16.xpose.msra.mxu0 0
    %857 = vmatprep.subr.bf16.mxu0 0
    %858 = vmatpush2.bf16.xpose.msra.mxu0 0
    %859 = vmatprep.mubr.bf16.mxu0 0
    %860 = vmatmul.mubr.bf16.gmra.mxu0 %v821
    %v861 = vpop.f32.mrf.mxu0
    %v862 = vadd.f32 0.0, %v861
    %v863 = vpop.f32.mrf.mxu0
    %v864 = vpop.f32.mrf.mxu0
    %v865 = vadd.f32 0.0, %v864
    %v866 = vpop.f32.mrf.mxu0
    %867 = vdwg.mxu0
    %868 = vmatprep.subr.bf16.mxu0 0
    %869 = vmatpush1.bf16.xpose.msra.mxu0 0
    %870 = vmatprep.subr.bf16.mxu0 0
    %871 = vmatpush1.bf16.xpose.msra.mxu0 0
    %872 = vmatprep.subr.bf16.mxu0 0
    %873 = vmatpush1.bf16.xpose.msra.mxu0 0
    %874 = vmatprep.subr.bf16.mxu0 0
    %875 = vmatpush1.bf16.xpose.msra.mxu0 0
    %876 = vmatprep.subr.bf16.mxu0 0
    %877 = vmatpush1.bf16.xpose.msra.mxu0 0
    %878 = vmatprep.subr.bf16.mxu0 0
    %879 = vmatpush1.bf16.xpose.msra.mxu0 0
    %880 = vmatprep.subr.bf16.mxu0 0
    %881 = vmatpush1.bf16.xpose.msra.mxu0 0
    %882 = vmatprep.subr.bf16.mxu0 0
    %883 = vmatpush1.bf16.xpose.msra.mxu0 %v824
    %884 = vmatprep.subr.bf16.mxu0 0
    %885 = vmatpush2.bf16.xpose.msra.mxu0 0
    %886 = vmatprep.subr.bf16.mxu0 0
    %887 = vmatpush2.bf16.xpose.msra.mxu0 0
    %888 = vmatprep.subr.bf16.mxu0 0
    %889 = vmatpush2.bf16.xpose.msra.mxu0 0
    %890 = vmatprep.subr.bf16.mxu0 0
    %891 = vmatpush2.bf16.xpose.msra.mxu0 0
    %892 = vmatprep.subr.bf16.mxu0 0
    %893 = vmatpush2.bf16.xpose.msra.mxu0 0
    %894 = vmatprep.subr.bf16.mxu0 0
    %895 = vmatpush2.bf16.xpose.msra.mxu0 0
    %896 = vmatprep.subr.bf16.mxu0 0
    %897 = vmatpush2.bf16.xpose.msra.mxu0 0
    %898 = vmatprep.subr.bf16.mxu0 0
    %899 = vmatpush2.bf16.xpose.msra.mxu0 0
    %900 = vmatprep.mubr.bf16.mxu0 0
    %901 = vmatmul.mubr.bf16.gmra.mxu0 %v822
    %v902 = vpop.f32.mrf.mxu0
    %v903 = vadd.f32 0.0, %v902
    %v904 = vpop.f32.mrf.mxu0
    %v905 = vpop.f32.mrf.mxu0
    %v906 = vadd.f32 0.0, %v905
    %v907 = vpop.f32.mrf.mxu0
    %908 = vdwg.mxu0
    %v909 = vsel %vm88, 1, 0
    %v910 = vsel %vm89, 1, 0
    %vm911 = vcmp.eq.s32.totalorder %v909, 1
    %vm912 = vcmp.eq.s32.totalorder %v910, 1
    %v913 = vsel %vm911, %v862, -10000.0
    %v914 = vsel %vm912, %v865, -10000.0
    %v915 = vsel %vm911, %v903, -10000.0
    %v916 = vsel %vm912, %v906, -10000.0
    %vm917 = vcmask 130048
    %v918 = vsel %vm917, %v913, -inf
    %919 = vmax.xlane.f32.xlu0 %v918
    %v920 = vpop.xlane.xlu0 %919
    %v921 = vsel %vm917, %v914, -inf
    %922 = vmax.xlane.f32.xlu0 %v921
    %v923 = vpop.xlane.xlu0 %922
    %v924 = vsel %vm917, %v915, -inf
    %925 = vmax.xlane.f32.xlu0 %v924
    %v926 = vpop.xlane.xlu0 %925
    %v927 = vsel %vm917, %v916, -inf
    %928 = vmax.xlane.f32.xlu0 %v927
    %v929 = vpop.xlane.xlu0 %928
    %v930 = vsub.f32 %v913, %v920
    %v931 = vsub.f32 %v914, %v923
    %v932 = vsub.f32 %v915, %v926
    %v933 = vsub.f32 %v916, %v929
    %v934 = vmul.f32 %v930, 1.442695
    %v935 = vpow.pop %v934
    %v936 = vmul.f32 %v931, 1.442695
    %v937 = vpow.pop %v936
    %v938 = vmul.f32 %v932, 1.442695
    %v939 = vpow.pop %v938
    %v940 = vmul.f32 %v933, 1.442695
    %v941 = vpow.pop %v940
    %v942 = vsel %vm917, %v935, 0.0
    %943 = vadd.xlane.f32.xlu0 %v942
    %v944 = vpop.xlane.xlu0 %943
    %v945 = vsel %vm917, %v937, 0.0
    %946 = vadd.xlane.f32.xlu0 %v945
    %v947 = vpop.xlane.xlu0 %946
    %v948 = vsel %vm917, %v939, 0.0
    %949 = vadd.xlane.f32.xlu0 %v948
    %v950 = vpop.xlane.xlu0 %949
    %v951 = vsel %vm917, %v941, 0.0
    %952 = vadd.xlane.f32.xlu0 %v951
    %v953 = vpop.xlane.xlu0 %952
    %v954 = vrcp.pop %v944
    %v955 = vrcp.pop %v947
    %v956 = vrcp.pop %v950
    %v957 = vrcp.pop %v953
    %v958 = vmul.f32 %v935, %v954
    %v959 = vmul.f32 %v937, %v955
    %v960 = vmul.f32 %v939, %v956
    %v961 = vmul.f32 %v941, %v957
    %v962 = vpack.c.bf16 %v959, %v958
    %v963 = vpack.c.bf16 %v961, %v960
    %v965 = vsel %vm917, %v962, 0
    %967 = vmatprep.subr.bf16.mxu0 0
    %968 = vmatpush1.bf16.msra.mxu0 0
    %969 = vmatprep.subr.bf16.mxu0 0
    %970 = vmatpush1.bf16.msra.mxu0 0
    %971 = vmatprep.subr.bf16.mxu0 0
    %972 = vmatpush1.bf16.msra.mxu0 0
    %973 = vmatprep.subr.bf16.mxu0 0
    %974 = vmatpush1.bf16.msra.mxu0 0
    %975 = vmatprep.subr.bf16.mxu0 0
    %976 = vmatpush1.bf16.msra.mxu0 0
    %977 = vmatprep.subr.bf16.mxu0 0
    %978 = vmatpush1.bf16.msra.mxu0 0
    %979 = vmatprep.subr.bf16.mxu0 0
    %980 = vmatpush1.bf16.msra.mxu0 0
    %981 = vmatprep.subr.bf16.mxu0 0
    %982 = vmatpush1.bf16.msra.mxu0 %v825
    %983 = vmatprep.subr.bf16.mxu0 0
    %984 = vmatpush2.bf16.msra.mxu0 0
    %985 = vmatprep.subr.bf16.mxu0 0
    %986 = vmatpush2.bf16.msra.mxu0 0
    %987 = vmatprep.subr.bf16.mxu0 0
    %988 = vmatpush2.bf16.msra.mxu0 0
    %989 = vmatprep.subr.bf16.mxu0 0
    %990 = vmatpush2.bf16.msra.mxu0 0
    %991 = vmatprep.subr.bf16.mxu0 0
    %992 = vmatpush2.bf16.msra.mxu0 0
    %993 = vmatprep.subr.bf16.mxu0 0
    %994 = vmatpush2.bf16.msra.mxu0 0
    %995 = vmatprep.subr.bf16.mxu0 0
    %996 = vmatpush2.bf16.msra.mxu0 0
    %997 = vmatprep.subr.bf16.mxu0 0
    %998 = vmatpush2.bf16.msra.mxu0 0
    %999 = vmatprep.mubr.bf16.mxu0 0
    %1000 = vmatmul.mubr.bf16.gmra.mxu0 %v965
    %v1001 = vpop.f32.mrf.mxu0
    %v1002 = vadd.f32 0.0, %v1001
    %v1003 = vpop.f32.mrf.mxu0
    %v1004 = vpop.f32.mrf.mxu0
    %v1005 = vadd.f32 0.0, %v1004
    %v1006 = vpop.f32.mrf.mxu0
    %1007 = vdwg.mxu0
    %v1009 = vsel %vm917, %v963, 0
    %1011 = vmatprep.subr.bf16.mxu0 0
    %1012 = vmatpush1.bf16.msra.mxu0 0
    %1013 = vmatprep.subr.bf16.mxu0 0
    %1014 = vmatpush1.bf16.msra.mxu0 0
    %1015 = vmatprep.subr.bf16.mxu0 0
    %1016 = vmatpush1.bf16.msra.mxu0 0
    %1017 = vmatprep.subr.bf16.mxu0 0
    %1018 = vmatpush1.bf16.msra.mxu0 0
    %1019 = vmatprep.subr.bf16.mxu0 0
    %1020 = vmatpush1.bf16.msra.mxu0 0
    %1021 = vmatprep.subr.bf16.mxu0 0
    %1022 = vmatpush1.bf16.msra.mxu0 0
    %1023 = vmatprep.subr.bf16.mxu0 0
    %1024 = vmatpush1.bf16.msra.mxu0 0
    %1025 = vmatprep.subr.bf16.mxu0 0
    %1026 = vmatpush1.bf16.msra.mxu0 %v826
    %1027 = vmatprep.subr.bf16.mxu0 0
    %1028 = vmatpush2.bf16.msra.mxu0 0
    %1029 = vmatprep.subr.bf16.mxu0 0
    %1030 = vmatpush2.bf16.msra.mxu0 0
    %1031 = vmatprep.subr.bf16.mxu0 0
    %1032 = vmatpush2.bf16.msra.mxu0 0
    %1033 = vmatprep.subr.bf16.mxu0 0
    %1034 = vmatpush2.bf16.msra.mxu0 0
    %1035 = vmatprep.subr.bf16.mxu0 0
    %1036 = vmatpush2.bf16.msra.mxu0 0
    %1037 = vmatprep.subr.bf16.mxu0 0
    %1038 = vmatpush2.bf16.msra.mxu0 0
    %1039 = vmatprep.subr.bf16.mxu0 0
    %1040 = vmatpush2.bf16.msra.mxu0 0
    %1041 = vmatprep.subr.bf16.mxu0 0
    %1042 = vmatpush2.bf16.msra.mxu0 0
    %1043 = vmatprep.mubr.bf16.mxu0 0
    %1044 = vmatmul.mubr.bf16.gmra.mxu0 %v1009
    %v1045 = vpop.f32.mrf.mxu0
    %v1046 = vadd.f32 0.0, %v1045
    %v1047 = vpop.f32.mrf.mxu0
    %v1048 = vpop.f32.mrf.mxu0
    %v1049 = vadd.f32 0.0, %v1048
    %v1050 = vpop.f32.mrf.mxu0
    %1051 = vdwg.mxu0
    %v1052 = vpack.c.bf16 %v1005, %v1002
    %v1053 = vpack.c.bf16 %v1049, %v1046
    %v1070 = vunpack.c.l.b16 %v788
    %v1071 = vunpack.c.l.b16 %v789
    %v1072 = vunpack.c.l.b16 %v790
    %v1073 = vunpack.c.l.b16 %v791
    %v1074 = vunpack.c.l.b16 %v792
    %v1075 = vunpack.c.l.b16 %v793
    %v1076 = vunpack.c.l.b16 %v794
    %v1077 = vunpack.c.l.b16 %v795
    %v1078 = vunpack.c.l.b16 %v796
    %v1079 = vunpack.c.l.b16 %v797
    %v1080 = vunpack.c.l.b16 %v798
    %v1081 = vunpack.c.l.b16 %v799
    %v1082 = vunpack.c.l.b16 %v800
    %v1083 = vunpack.c.l.b16 %v801
    %v1084 = vunpack.c.l.b16 %v802
    %v1085 = vunpack.c.l.b16 %v803
    %v1086 = vpack.c.b16 %v1071, %v1070
    %v1087 = vpack.c.b16 %v1073, %v1072
    %v1088 = vpack.c.b16 %v1075, %v1074
    %v1089 = vpack.c.b16 %v1077, %v1076
    %v1090 = vpack.c.b16 %v1079, %v1078
    %v1091 = vpack.c.b16 %v1081, %v1080
    %v1092 = vpack.c.b16 %v1083, %v1082
    %v1093 = vpack.c.b16 %v1085, %v1084
    %1102 = vmatprep.subr.bf16.mxu0 0
    %1103 = vmatpush1.bf16.msra.mxu0 %v1093
    %1104 = vmatprep.subr.bf16.mxu0 0
    %1105 = vmatpush1.bf16.msra.mxu0 %v1092
    %1106 = vmatprep.subr.bf16.mxu0 0
    %1107 = vmatpush1.bf16.msra.mxu0 %v1091
    %1108 = vmatprep.subr.bf16.mxu0 0
    %1109 = vmatpush1.bf16.msra.mxu0 %v1090
    %1110 = vmatprep.subr.bf16.mxu0 0
    %1111 = vmatpush1.bf16.msra.mxu0 %v1089
    %1112 = vmatprep.subr.bf16.mxu0 0
    %1113 = vmatpush1.bf16.msra.mxu0 %v1088
    %1114 = vmatprep.subr.bf16.mxu0 0
    %1115 = vmatpush1.bf16.msra.mxu0 %v1087
    %1116 = vmatprep.subr.bf16.mxu0 0
    %1117 = vmatpush1.bf16.msra.mxu0 %v1086
    %1118 = vmatprep.subr.bf16.mxu0 0
    %1119 = vmatpush2.bf16.msra.mxu0 0
    %1120 = vmatprep.subr.bf16.mxu0 0
    %1121 = vmatpush2.bf16.msra.mxu0 0
    %1122 = vmatprep.subr.bf16.mxu0 0
    %1123 = vmatpush2.bf16.msra.mxu0 0
    %1124 = vmatprep.subr.bf16.mxu0 0
    %1125 = vmatpush2.bf16.msra.mxu0 0
    %1126 = vmatprep.subr.bf16.mxu0 0
    %1127 = vmatpush2.bf16.msra.mxu0 0
    %1128 = vmatprep.subr.bf16.mxu0 0
    %1129 = vmatpush2.bf16.msra.mxu0 0
    %1130 = vmatprep.subr.bf16.mxu0 0
    %1131 = vmatpush2.bf16.msra.mxu0 0
    %1132 = vmatprep.subr.bf16.mxu0 0
    %1133 = vmatpush2.bf16.msra.mxu0 0
    %1134 = vmatprep.mubr.bf16.mxu0 0
    %1135 = vmatmul.mubr.bf16.gmra.mxu0 %v1052
    %v1136 = vpop.f32.mrf.mxu0
    %v1137 = vadd.f32 0.0, %v1136
    %v1138 = vpop.f32.mrf.mxu0
    %v1139 = vpop.f32.mrf.mxu0
    %v1140 = vadd.f32 0.0, %v1139
    %v1141 = vpop.f32.mrf.mxu0
    %1142 = vmatprep.mubr.bf16.mxu0 0
    %1143 = vmatmul.mubr.bf16.gmra.mxu0 %v1053
    %v1144 = vpop.f32.mrf.mxu0
    %v1145 = vadd.f32 0.0, %v1144
    %v1146 = vpop.f32.mrf.mxu0
    %v1147 = vpop.f32.mrf.mxu0
    %v1148 = vadd.f32 0.0, %v1147
    %v1149 = vpop.f32.mrf.mxu0
    %1150 = vdwg.mxu0
    %v1152 = vlaneseq
    %v1153 = vshrl.u32 %v1152, 7
    %v1154 = vsub.s32 0, %v1153
    %v1155 = vrot.slane %v820, %v1154
    %v1157 = vadd.f32 %v1155, %v1137
    %v1158 = vadd.f32 %v1155, %v1140
    %v1159 = vadd.f32 %v1155, %v1145
    %v1160 = vadd.f32 %v1155, %v1148
    %v1161 = vpack.c.bf16 %v723, %v719
    %v1162 = vpack.c.bf16 %v733, %v729
    %v1163 = vpack.c.bf16 %v774, %v770
    %v1164 = vpack.c.bf16 %v784, %v780
    %v1165 = vpack.c.bf16 %v776, %v772
    %v1166 = vpack.c.bf16 %v786, %v782
    %1167 = vmatprep.subr.bf16.mxu0 0
    %1168 = vmatpush1.bf16.xpose.msra.mxu0 0
    %1169 = vmatprep.subr.bf16.mxu0 0
    %1170 = vmatpush1.bf16.xpose.msra.mxu0 0
    %1171 = vmatprep.subr.bf16.mxu0 0
    %1172 = vmatpush1.bf16.xpose.msra.mxu0 0
    %1173 = vmatprep.subr.bf16.mxu0 0
    %1174 = vmatpush1.bf16.xpose.msra.mxu0 0
    %1175 = vmatprep.subr.bf16.mxu0 0
    %1176 = vmatpush1.bf16.xpose.msra.mxu0 0
    %1177 = vmatprep.subr.bf16.mxu0 0
    %1178 = vmatpush1.bf16.xpose.msra.mxu0 0
    %1179 = vmatprep.subr.bf16.mxu0 0
    %1180 = vmatpush1.bf16.xpose.msra.mxu0 0
    %1181 = vmatprep.subr.bf16.mxu0 0
    %1182 = vmatpush1.bf16.xpose.msra.mxu0 %v1163
    %1183 = vmatprep.subr.bf16.mxu0 0
    %1184 = vmatpush2.bf16.xpose.msra.mxu0 0
    %1185 = vmatprep.subr.bf16.mxu0 0
    %1186 = vmatpush2.bf16.xpose.msra.mxu0 0
    %1187 = vmatprep.subr.bf16.mxu0 0
    %1188 = vmatpush2.bf16.xpose.msra.mxu0 0
    %1189 = vmatprep.subr.bf16.mxu0 0
    %1190 = vmatpush2.bf16.xpose.msra.mxu0 0
    %1191 = vmatprep.subr.bf16.mxu0 0
    %1192 = vmatpush2.bf16.xpose.msra.mxu0 0
    %1193 = vmatprep.subr.bf16.mxu0 0
    %1194 = vmatpush2.bf16.xpose.msra.mxu0 0
    %1195 = vmatprep.subr.bf16.mxu0 0
    %1196 = vmatpush2.bf16.xpose.msra.mxu0 0
    %1197 = vmatprep.subr.bf16.mxu0 0
    %1198 = vmatpush2.bf16.xpose.msra.mxu0 0
    %1199 = vmatprep.mubr.bf16.mxu0 0
    %1200 = vmatmul.mubr.bf16.gmra.mxu0 %v1161
    %v1201 = vpop.f32.mrf.mxu0
    %v1202 = vadd.f32 0.0, %v1201
    %v1203 = vpop.f32.mrf.mxu0
    %v1204 = vpop.f32.mrf.mxu0
    %v1205 = vadd.f32 0.0, %v1204
    %v1206 = vpop.f32.mrf.mxu0
    %1207 = vdwg.mxu0
    %1208 = vmatprep.subr.bf16.mxu0 0
    %1209 = vmatpush1.bf16.xpose.msra.mxu0 0
    %1210 = vmatprep.subr.bf16.mxu0 0
    %1211 = vmatpush1.bf16.xpose.msra.mxu0 0
    %1212 = vmatprep.subr.bf16.mxu0 0
    %1213 = vmatpush1.bf16.xpose.msra.mxu0 0
    %1214 = vmatprep.subr.bf16.mxu0 0
    %1215 = vmatpush1.bf16.xpose.msra.mxu0 0
    %1216 = vmatprep.subr.bf16.mxu0 0
    %1217 = vmatpush1.bf16.xpose.msra.mxu0 0
    %1218 = vmatprep.subr.bf16.mxu0 0
    %1219 = vmatpush1.bf16.xpose.msra.mxu0 0
    %1220 = vmatprep.subr.bf16.mxu0 0
    %1221 = vmatpush1.bf16.xpose.msra.mxu0 0
    %1222 = vmatprep.subr.bf16.mxu0 0
    %1223 = vmatpush1.bf16.xpose.msra.mxu0 %v1164
    %1224 = vmatprep.subr.bf16.mxu0 0
    %1225 = vmatpush2.bf16.xpose.msra.mxu0 0
    %1226 = vmatprep.subr.bf16.mxu0 0
    %1227 = vmatpush2.bf16.xpose.msra.mxu0 0
    %1228 = vmatprep.subr.bf16.mxu0 0
    %1229 = vmatpush2.bf16.xpose.msra.mxu0 0
    %1230 = vmatprep.subr.bf16.mxu0 0
    %1231 = vmatpush2.bf16.xpose.msra.mxu0 0
    %1232 = vmatprep.subr.bf16.mxu0 0
    %1233 = vmatpush2.bf16.xpose.msra.mxu0 0
    %1234 = vmatprep.subr.bf16.mxu0 0
    %1235 = vmatpush2.bf16.xpose.msra.mxu0 0
    %1236 = vmatprep.subr.bf16.mxu0 0
    %1237 = vmatpush2.bf16.xpose.msra.mxu0 0
    %1238 = vmatprep.subr.bf16.mxu0 0
    %1239 = vmatpush2.bf16.xpose.msra.mxu0 0
    %1240 = vmatprep.mubr.bf16.mxu0 0
    %1241 = vmatmul.mubr.bf16.gmra.mxu0 %v1162
    %v1242 = vpop.f32.mrf.mxu0
    %v1243 = vadd.f32 0.0, %v1242
    %v1244 = vpop.f32.mrf.mxu0
    %v1245 = vpop.f32.mrf.mxu0
    %v1246 = vadd.f32 0.0, %v1245
    %v1247 = vpop.f32.mrf.mxu0
    %1248 = vdwg.mxu0
    %v1249 = vsel %vm911, %v1202, -10000.0
    %v1250 = vsel %vm912, %v1205, -10000.0
    %v1251 = vsel %vm911, %v1243, -10000.0
    %v1252 = vsel %vm912, %v1246, -10000.0
    %v1253 = vsel %vm917, %v1249, -inf
    %1254 = vmax.xlane.f32.xlu0 %v1253
    %v1255 = vpop.xlane.xlu0 %1254
    %v1256 = vsel %vm917, %v1250, -inf
    %1257 = vmax.xlane.f32.xlu0 %v1256
    %v1258 = vpop.xlane.xlu0 %1257
    %v1259 = vsel %vm917, %v1251, -inf
    %1260 = vmax.xlane.f32.xlu0 %v1259
    %v1261 = vpop.xlane.xlu0 %1260
    %v1262 = vsel %vm917, %v1252, -inf
    %1263 = vmax.xlane.f32.xlu0 %v1262
    %v1264 = vpop.xlane.xlu0 %1263
    %v1265 = vsub.f32 %v1249, %v1255
    %v1266 = vsub.f32 %v1250, %v1258
    %v1267 = vsub.f32 %v1251, %v1261
    %v1268 = vsub.f32 %v1252, %v1264
    %v1269 = vmul.f32 %v1265, 1.442695
    %v1270 = vpow.pop %v1269
    %v1271 = vmul.f32 %v1266, 1.442695
    %v1272 = vpow.pop %v1271
    %v1273 = vmul.f32 %v1267, 1.442695
    %v1274 = vpow.pop %v1273
    %v1275 = vmul.f32 %v1268, 1.442695
    %v1276 = vpow.pop %v1275
    %v1277 = vsel %vm917, %v1270, 0.0
    %1278 = vadd.xlane.f32.xlu0 %v1277
    %v1279 = vpop.xlane.xlu0 %1278
    %v1280 = vsel %vm917, %v1272, 0.0
    %1281 = vadd.xlane.f32.xlu0 %v1280
    %v1282 = vpop.xlane.xlu0 %1281
    %v1283 = vsel %vm917, %v1274, 0.0
    %1284 = vadd.xlane.f32.xlu0 %v1283
    %v1285 = vpop.xlane.xlu0 %1284
    %v1286 = vsel %vm917, %v1276, 0.0
    %1287 = vadd.xlane.f32.xlu0 %v1286
    %v1288 = vpop.xlane.xlu0 %1287
    %v1289 = vrcp.pop %v1279
    %v1290 = vrcp.pop %v1282
    %v1291 = vrcp.pop %v1285
    %v1292 = vrcp.pop %v1288
    %v1293 = vmul.f32 %v1270, %v1289
    %v1294 = vmul.f32 %v1272, %v1290
    %v1295 = vmul.f32 %v1274, %v1291
    %v1296 = vmul.f32 %v1276, %v1292
    %v1297 = vpack.c.bf16 %v1294, %v1293
    %v1298 = vpack.c.bf16 %v1296, %v1295
    %v1300 = vsel %vm917, %v1297, 0
    %1302 = vmatprep.subr.bf16.mxu0 0
    %1303 = vmatpush1.bf16.msra.mxu0 0
    %1304 = vmatprep.subr.bf16.mxu0 0
    %1305 = vmatpush1.bf16.msra.mxu0 0
    %1306 = vmatprep.subr.bf16.mxu0 0
    %1307 = vmatpush1.bf16.msra.mxu0 0
    %1308 = vmatprep.subr.bf16.mxu0 0
    %1309 = vmatpush1.bf16.msra.mxu0 0
    %1310 = vmatprep.subr.bf16.mxu0 0
    %1311 = vmatpush1.bf16.msra.mxu0 0
    %1312 = vmatprep.subr.bf16.mxu0 0
    %1313 = vmatpush1.bf16.msra.mxu0 0
    %1314 = vmatprep.subr.bf16.mxu0 0
    %1315 = vmatpush1.bf16.msra.mxu0 0
    %1316 = vmatprep.subr.bf16.mxu0 0
    %1317 = vmatpush1.bf16.msra.mxu0 %v1165
    %1318 = vmatprep.subr.bf16.mxu0 0
    %1319 = vmatpush2.bf16.msra.mxu0 0
    %1320 = vmatprep.subr.bf16.mxu0 0
    %1321 = vmatpush2.bf16.msra.mxu0 0
    %1322 = vmatprep.subr.bf16.mxu0 0
    %1323 = vmatpush2.bf16.msra.mxu0 0
    %1324 = vmatprep.subr.bf16.mxu0 0
    %1325 = vmatpush2.bf16.msra.mxu0 0
    %1326 = vmatprep.subr.bf16.mxu0 0
    %1327 = vmatpush2.bf16.msra.mxu0 0
    %1328 = vmatprep.subr.bf16.mxu0 0
    %1329 = vmatpush2.bf16.msra.mxu0 0
    %1330 = vmatprep.subr.bf16.mxu0 0
    %1331 = vmatpush2.bf16.msra.mxu0 0
    %1332 = vmatprep.subr.bf16.mxu0 0
    %1333 = vmatpush2.bf16.msra.mxu0 0
    %1334 = vmatprep.mubr.bf16.mxu0 0
    %1335 = vmatmul.mubr.bf16.gmra.mxu0 %v1300
    %v1336 = vpop.f32.mrf.mxu0
    %v1337 = vadd.f32 0.0, %v1336
    %v1338 = vpop.f32.mrf.mxu0
    %v1339 = vpop.f32.mrf.mxu0
    %v1340 = vadd.f32 0.0, %v1339
    %v1341 = vpop.f32.mrf.mxu0
    %1342 = vdwg.mxu0
    %v1344 = vsel %vm917, %v1298, 0
    %1346 = vmatprep.subr.bf16.mxu0 0
    %1347 = vmatpush1.bf16.msra.mxu0 0
    %1348 = vmatprep.subr.bf16.mxu0 0
    %1349 = vmatpush1.bf16.msra.mxu0 0
    %1350 = vmatprep.subr.bf16.mxu0 0
    %1351 = vmatpush1.bf16.msra.mxu0 0
    %1352 = vmatprep.subr.bf16.mxu0 0
    %1353 = vmatpush1.bf16.msra.mxu0 0
    %1354 = vmatprep.subr.bf16.mxu0 0
    %1355 = vmatpush1.bf16.msra.mxu0 0
    %1356 = vmatprep.subr.bf16.mxu0 0
    %1357 = vmatpush1.bf16.msra.mxu0 0
    %1358 = vmatprep.subr.bf16.mxu0 0
    %1359 = vmatpush1.bf16.msra.mxu0 0
    %1360 = vmatprep.subr.bf16.mxu0 0
    %1361 = vmatpush1.bf16.msra.mxu0 %v1166
    %1362 = vmatprep.subr.bf16.mxu0 0
    %1363 = vmatpush2.bf16.msra.mxu0 0
    %1364 = vmatprep.subr.bf16.mxu0 0
    %1365 = vmatpush2.bf16.msra.mxu0 0
    %1366 = vmatprep.subr.bf16.mxu0 0
    %1367 = vmatpush2.bf16.msra.mxu0 0
    %1368 = vmatprep.subr.bf16.mxu0 0
    %1369 = vmatpush2.bf16.msra.mxu0 0
    %1370 = vmatprep.subr.bf16.mxu0 0
    %1371 = vmatpush2.bf16.msra.mxu0 0
    %1372 = vmatprep.subr.bf16.mxu0 0
    %1373 = vmatpush2.bf16.msra.mxu0 0
    %1374 = vmatprep.subr.bf16.mxu0 0
    %1375 = vmatpush2.bf16.msra.mxu0 0
    %1376 = vmatprep.subr.bf16.mxu0 0
    %1377 = vmatpush2.bf16.msra.mxu0 0
    %1378 = vmatprep.mubr.bf16.mxu0 0
    %1379 = vmatmul.mubr.bf16.gmra.mxu0 %v1344
    %v1380 = vpop.f32.mrf.mxu0
    %v1381 = vadd.f32 0.0, %v1380
    %v1382 = vpop.f32.mrf.mxu0
    %v1383 = vpop.f32.mrf.mxu0
    %v1384 = vadd.f32 0.0, %v1383
    %v1385 = vpop.f32.mrf.mxu0
    %1386 = vdwg.mxu0
    %v1387 = vpack.c.bf16 %v1340, %v1337
    %v1388 = vpack.c.bf16 %v1384, %v1381
    %v1405 = vunpack.c.l.b16 %v804
    %v1406 = vunpack.c.l.b16 %v805
    %v1407 = vunpack.c.l.b16 %v806
    %v1408 = vunpack.c.l.b16 %v807
    %v1409 = vunpack.c.l.b16 %v808
    %v1410 = vunpack.c.l.b16 %v809
    %v1411 = vunpack.c.l.b16 %v810
    %v1412 = vunpack.c.l.b16 %v811
    %v1413 = vunpack.c.l.b16 %v812
    %v1414 = vunpack.c.l.b16 %v813
    %v1415 = vunpack.c.l.b16 %v814
    %v1416 = vunpack.c.l.b16 %v815
    %v1417 = vunpack.c.l.b16 %v816
    %v1418 = vunpack.c.l.b16 %v817
    %v1419 = vunpack.c.l.b16 %v818
    %v1420 = vunpack.c.l.b16 %v819
    %v1421 = vpack.c.b16 %v1406, %v1405
    %v1422 = vpack.c.b16 %v1408, %v1407
    %v1423 = vpack.c.b16 %v1410, %v1409
    %v1424 = vpack.c.b16 %v1412, %v1411
    %v1425 = vpack.c.b16 %v1414, %v1413
    %v1426 = vpack.c.b16 %v1416, %v1415
    %v1427 = vpack.c.b16 %v1418, %v1417
    %v1428 = vpack.c.b16 %v1420, %v1419
    %1437 = vmatprep.subr.bf16.mxu0 0
    %1438 = vmatpush1.bf16.msra.mxu0 %v1428
    %1439 = vmatprep.subr.bf16.mxu0 0
    %1440 = vmatpush1.bf16.msra.mxu0 %v1427
    %1441 = vmatprep.subr.bf16.mxu0 0
    %1442 = vmatpush1.bf16.msra.mxu0 %v1426
    %1443 = vmatprep.subr.bf16.mxu0 0
    %1444 = vmatpush1.bf16.msra.mxu0 %v1425
    %1445 = vmatprep.subr.bf16.mxu0 0
    %1446 = vmatpush1.bf16.msra.mxu0 %v1424
    %1447 = vmatprep.subr.bf16.mxu0 0
    %1448 = vmatpush1.bf16.msra.mxu0 %v1423
    %1449 = vmatprep.subr.bf16.mxu0 0
    %1450 = vmatpush1.bf16.msra.mxu0 %v1422
    %1451 = vmatprep.subr.bf16.mxu0 0
    %1452 = vmatpush1.bf16.msra.mxu0 %v1421
    %1453 = vmatprep.subr.bf16.mxu0 0
    %1454 = vmatpush2.bf16.msra.mxu0 0
    %1455 = vmatprep.subr.bf16.mxu0 0
    %1456 = vmatpush2.bf16.msra.mxu0 0
    %1457 = vmatprep.subr.bf16.mxu0 0
    %1458 = vmatpush2.bf16.msra.mxu0 0
    %1459 = vmatprep.subr.bf16.mxu0 0
    %1460 = vmatpush2.bf16.msra.mxu0 0
    %1461 = vmatprep.subr.bf16.mxu0 0
    %1462 = vmatpush2.bf16.msra.mxu0 0
    %1463 = vmatprep.subr.bf16.mxu0 0
    %1464 = vmatpush2.bf16.msra.mxu0 0
    %1465 = vmatprep.subr.bf16.mxu0 0
    %1466 = vmatpush2.bf16.msra.mxu0 0
    %1467 = vmatprep.subr.bf16.mxu0 0
    %1468 = vmatpush2.bf16.msra.mxu0 0
    %1469 = vmatprep.mubr.bf16.mxu0 0
    %1470 = vmatmul.mubr.bf16.gmra.mxu0 %v1387
    %v1471 = vpop.f32.mrf.mxu0
    %v1472 = vadd.f32 0.0, %v1471
    %v1473 = vpop.f32.mrf.mxu0
    %v1474 = vpop.f32.mrf.mxu0
    %v1475 = vadd.f32 0.0, %v1474
    %v1476 = vpop.f32.mrf.mxu0
    %1477 = vmatprep.mubr.bf16.mxu0 0
    %1478 = vmatmul.mubr.bf16.gmra.mxu0 %v1388
    %v1479 = vpop.f32.mrf.mxu0
    %v1480 = vadd.f32 0.0, %v1479
    %v1481 = vpop.f32.mrf.mxu0
    %v1482 = vpop.f32.mrf.mxu0
    %v1483 = vadd.f32 0.0, %v1482
    %v1484 = vpop.f32.mrf.mxu0
    %1485 = vdwg.mxu0
    %v1486 = vadd.f32 %v1157, %v1472
    %v1487 = vadd.f32 %v1158, %v1475
    %v1488 = vadd.f32 %v1159, %v1480
    %v1489 = vadd.f32 %v1160, %v1483
    %v1490 = vld [vmem:[%s13] sm:$0x1]
    %v1491 = vld [vmem:[%s13 + $0x1] sm:$0x1]
    %v1492 = vld [vmem:[%s13 + $0x2] sm:$0x1]
    %v1493 = vld [vmem:[%s13 + $0x3] sm:$0x1]
    %v1494 = vadd.f32 %v513, %v1486
    %v1495 = vadd.f32 %v514, %v1487
    %v1496 = vadd.f32 %v515, %v1488
    %v1497 = vadd.f32 %v516, %v1489
    %v1498 = vsel %vm381, %v1494, 0.0
    %1499 = vadd.xlane.f32.xlu0 %v1498
    %v1500 = vpop.xlane.xlu0 %1499
    %v1501 = vsel %vm381, %v1495, 0.0
    %1502 = vadd.xlane.f32.xlu0 %v1501
    %v1503 = vpop.xlane.xlu0 %1502
    %v1504 = vsel %vm381, %v1496, 0.0
    %1505 = vadd.xlane.f32.xlu0 %v1504
    %v1506 = vpop.xlane.xlu0 %1505
    %v1507 = vsel %vm381, %v1497, 0.0
    %1508 = vadd.xlane.f32.xlu0 %v1507
    %v1509 = vpop.xlane.xlu0 %1508
    %v1510 = vrcp.pop 32.0
    %v1511 = vmul.f32 %v1500, %v1510
    %v1512 = vmul.f32 %v1503, %v1510
    %v1513 = vmul.f32 %v1506, %v1510
    %v1514 = vmul.f32 %v1509, %v1510
    %v1515 = vsub.f32 %v1494, %v1511
    %v1516 = vsub.f32 %v1495, %v1512
    %v1517 = vsub.f32 %v1496, %v1513
    %v1518 = vsub.f32 %v1497, %v1514
    %v1519 = vmul.f32 %v1515, %v1515
    %v1520 = vmul.f32 %v1516, %v1516
    %v1521 = vmul.f32 %v1517, %v1517
    %v1522 = vmul.f32 %v1518, %v1518
    %v1523 = vsel %vm381, %v1519, 0.0
    %1524 = vadd.xlane.f32.xlu0 %v1523
    %v1525 = vpop.xlane.xlu0 %1524
    %v1526 = vsel %vm381, %v1520, 0.0
    %1527 = vadd.xlane.f32.xlu0 %v1526
    %v1528 = vpop.xlane.xlu0 %1527
    %v1529 = vsel %vm381, %v1521, 0.0
    %1530 = vadd.xlane.f32.xlu0 %v1529
    %v1531 = vpop.xlane.xlu0 %1530
    %v1532 = vsel %vm381, %v1522, 0.0
    %1533 = vadd.xlane.f32.xlu0 %v1532
    %v1534 = vpop.xlane.xlu0 %1533
    %v1535 = vmul.f32 %v1525, %v1510
    %v1536 = vmul.f32 %v1528, %v1510
    %v1537 = vmul.f32 %v1531, %v1510
    %v1538 = vmul.f32 %v1534, %v1510
    %v1539 = vadd.f32 %v1535, 1e-05
    %v1540 = vadd.f32 %v1536, 1e-05
    %v1541 = vadd.f32 %v1537, 1e-05
    %v1542 = vadd.f32 %v1538, 1e-05
    %v1543 = vrsqrt.pop %v1539
    %v1544 = vrsqrt.pop %v1540
    %v1545 = vrsqrt.pop %v1541
    %v1546 = vrsqrt.pop %v1542
    %v1547 = vmul.f32 %v1515, %v1543
    %v1548 = vmul.f32 %v1516, %v1544
    %v1549 = vmul.f32 %v1517, %v1545
    %v1550 = vmul.f32 %v1518, %v1546
    %v1552 = vlaneseq
    %v1553 = vshrl.u32 %v1552, 7
    %v1554 = vsub.s32 0, %v1553
    %v1555 = vrot.slane %v1490, %v1554
    %v1557 = vmul.f32 %v1547, %v1555
    %v1558 = vmul.f32 %v1548, %v1555
    %v1559 = vmul.f32 %v1549, %v1555
    %v1560 = vmul.f32 %v1550, %v1555
    %v1562 = vlaneseq
    %v1563 = vshrl.u32 %v1562, 7
    %v1564 = vsub.s32 0, %v1563
    %v1565 = vrot.slane %v1491, %v1564
    %v1567 = vadd.f32 %v1557, %v1565
    %v1568 = vadd.f32 %v1558, %v1565
    %v1569 = vadd.f32 %v1559, %v1565
    %v1570 = vadd.f32 %v1560, %v1565
    %v1571 = vmul.f32 %v1567, %v492
    %v1572 = vmul.f32 %v1568, %v497
    %v1573 = vmul.f32 %v1569, %v502
    %v1574 = vmul.f32 %v1570, %v507
    %v1575 = vld [vmem:[%s14] sm:$0xf]
    %v1576 = vld [vmem:[%s14 + $0x4] sm:$0xf]
    %v1577 = vld [vmem:[%s14 + $0x8] sm:$0xf]
    %v1578 = vld [vmem:[%s14 + $0xc] sm:$0xf]
    %v1579 = vld [vmem:[%s14 + $0x10] sm:$0xf]
    %v1580 = vld [vmem:[%s14 + $0x14] sm:$0xf]
    %v1581 = vld [vmem:[%s14 + $0x18] sm:$0xf]
    %v1582 = vld [vmem:[%s14 + $0x1c] sm:$0xf]
    %v1583 = vld [vmem:[%s14 + $0x20] sm:$0xf]
    %v1584 = vld [vmem:[%s14 + $0x24] sm:$0xf]
    %v1585 = vld [vmem:[%s14 + $0x28] sm:$0xf]
    %v1586 = vld [vmem:[%s14 + $0x2c] sm:$0xf]
    %v1587 = vld [vmem:[%s15] sm:$0x1]
    %v1588 = vrot.slane %v1571, 6
    %v1589 = vrot.slane %v1572, 6
    %v1590 = vrot.slane %v1573, 6
    %v1591 = vrot.slane %v1574, 6
    %vm1592 = vcmp.lt.s32.totalorder %v84, 2
    %v1593 = vsel %vm1592, %v1590, %v1591
    %v1594 = vsel %vm1592, %v1589, %v1590
    %v1595 = vsel %vm1592, %v1588, %v1589
    %v1596 = vsel %vm1592, %v1591, %v1588
    %v1597 = vsel %vm94, 1, 0
    %v1598 = vsel %vm95, 1, 0
    %v1599 = vsel %vm96, 1, 0
    %v1600 = vsel %vm97, 1, 0
    %1601 = vset.pattern.permute.xlu0 0
    %1602 = vperm.xlu0 %1601, %v1597
    %v1603 = vpop.permute.xlu0 %1602
    %1604 = vset.pattern.permute.xlu0 0
    %1605 = vperm.xlu0 %1604, %v1598
    %v1606 = vpop.permute.xlu0 %1605
    %1607 = vset.pattern.permute.xlu0 0
    %1608 = vperm.xlu0 %1607, %v1599
    %v1609 = vpop.permute.xlu0 %1608
    %1610 = vset.pattern.permute.xlu0 0
    %1611 = vperm.xlu0 %1610, %v1600
    %v1612 = vpop.permute.xlu0 %1611
    %vm1613 = vcmp.eq.s32.totalorder %v1603, 1
    %vm1614 = vcmp.eq.s32.totalorder %v1606, 1
    %vm1615 = vcmp.eq.s32.totalorder %v1609, 1
    %vm1616 = vcmp.eq.s32.totalorder %v1612, 1
    %v1617 = vsel %vm1613, %v1596, 0.0
    %v1618 = vsel %vm1614, %v1595, 0.0
    %v1619 = vsel %vm1615, %v1594, 0.0
    %v1620 = vsel %vm1616, %v1593, 0.0
    %v1621 = vrot.slane %v1571, 7
    %v1622 = vrot.slane %v1572, 7
    %v1623 = vrot.slane %v1573, 7
    %v1624 = vrot.slane %v1574, 7
    %v1625 = vsel %vm215, %v1623, %v1624
    %v1626 = vsel %vm215, %v1622, %v1623
    %v1627 = vsel %vm215, %v1621, %v1622
    %v1628 = vsel %vm215, %v1624, %v1621
    %v1629 = vsel %vm236, %v1628, 0.0
    %v1630 = vsel %vm237, %v1627, 0.0
    %v1631 = vsel %vm238, %v1626, 0.0
    %v1632 = vsel %vm239, %v1625, 0.0
    %1637 = vrot.lane.b32.xlu0 %v1629, 32
    %v1638 = vpop.permute.xlu0 %1637
    %1639 = vrot.lane.b32.xlu0 %v1630, 32
    %v1640 = vpop.permute.xlu0 %1639
    %1641 = vrot.lane.b32.xlu0 %v1631, 32
    %v1642 = vpop.permute.xlu0 %1641
    %1643 = vrot.lane.b32.xlu0 %v1632, 32
    %v1644 = vpop.permute.xlu0 %1643
    %1653 = vrot.lane.b32.xlu0 %v1571, 64
    %v1654 = vpop.permute.xlu0 %1653
    %1655 = vrot.lane.b32.xlu0 %v1572, 64
    %v1656 = vpop.permute.xlu0 %1655
    %1657 = vrot.lane.b32.xlu0 %v1573, 64
    %v1658 = vpop.permute.xlu0 %1657
    %1659 = vrot.lane.b32.xlu0 %v1574, 64
    %v1660 = vpop.permute.xlu0 %1659
    %v1665 = vsel %vm381, %v1617, %v1638
    %v1666 = vsel %vm381, %v1618, %v1640
    %v1667 = vsel %vm381, %v1619, %v1642
    %v1668 = vsel %vm381, %v1620, %v1644
    %v1669 = vsel %vm386, %v1665, %v1654
    %v1670 = vsel %vm386, %v1666, %v1656
    %v1671 = vsel %vm386, %v1667, %v1658
    %v1672 = vsel %vm386, %v1668, %v1660
    %v1673 = vpack.c.bf16 %v1670, %v1669
    %v1674 = vpack.c.bf16 %v1672, %v1671
    %v1676 = vlaneseq
    %v1677 = vshrl.u32 %v1676, 7
    %v1678 = vsub.s32 0, %v1677
    %v1679 = vrot.slane %v1587, %v1678
    %v1693 = vunpack.c.l.b16 %v1575
    %v1694 = vunpack.c.l.b16 %v1576
    %v1695 = vunpack.c.l.b16 %v1577
    %v1696 = vunpack.c.l.b16 %v1578
    %v1697 = vunpack.c.l.b16 %v1579
    %v1698 = vunpack.c.l.b16 %v1580
    %v1699 = vunpack.c.l.b16 %v1581
    %v1700 = vunpack.c.l.b16 %v1582
    %v1701 = vunpack.c.l.b16 %v1583
    %v1702 = vunpack.c.l.b16 %v1584
    %v1703 = vunpack.c.l.b16 %v1585
    %v1704 = vunpack.c.l.b16 %v1586
    %v1705 = vpack.c.b16 %v1694, %v1693
    %v1706 = vpack.c.b16 %v1696, %v1695
    %v1707 = vpack.c.b16 %v1698, %v1697
    %v1708 = vpack.c.b16 %v1700, %v1699
    %v1709 = vpack.c.b16 %v1702, %v1701
    %v1710 = vpack.c.b16 %v1704, %v1703
    %v1718 = vsel %vm433, %v1673, 0
    %v1721 = vsel %vm433, %v1674, 0
    %1723 = vmatprep.subr.bf16.mxu0 0
    %1724 = vmatpush1.bf16.msra.mxu0 0
    %1725 = vmatprep.subr.bf16.mxu0 0
    %1726 = vmatpush1.bf16.msra.mxu0 0
    %1727 = vmatprep.subr.bf16.mxu0 0
    %1728 = vmatpush1.bf16.msra.mxu0 %v1710
    %1729 = vmatprep.subr.bf16.mxu0 0
    %1730 = vmatpush1.bf16.msra.mxu0 %v1709
    %1731 = vmatprep.subr.bf16.mxu0 0
    %1732 = vmatpush1.bf16.msra.mxu0 %v1708
    %1733 = vmatprep.subr.bf16.mxu0 0
    %1734 = vmatpush1.bf16.msra.mxu0 %v1707
    %1735 = vmatprep.subr.bf16.mxu0 0
    %1736 = vmatpush1.bf16.msra.mxu0 %v1706
    %1737 = vmatprep.subr.bf16.mxu0 0
    %1738 = vmatpush1.bf16.msra.mxu0 %v1705
    %1739 = vmatprep.subr.bf16.mxu0 0
    %1740 = vmatpush2.bf16.msra.mxu0 0
    %1741 = vmatprep.subr.bf16.mxu0 0
    %1742 = vmatpush2.bf16.msra.mxu0 0
    %1743 = vmatprep.subr.bf16.mxu0 0
    %1744 = vmatpush2.bf16.msra.mxu0 0
    %1745 = vmatprep.subr.bf16.mxu0 0
    %1746 = vmatpush2.bf16.msra.mxu0 0
    %1747 = vmatprep.subr.bf16.mxu0 0
    %1748 = vmatpush2.bf16.msra.mxu0 0
    %1749 = vmatprep.subr.bf16.mxu0 0
    %1750 = vmatpush2.bf16.msra.mxu0 0
    %1751 = vmatprep.subr.bf16.mxu0 0
    %1752 = vmatpush2.bf16.msra.mxu0 0
    %1753 = vmatprep.subr.bf16.mxu0 0
    %1754 = vmatpush2.bf16.msra.mxu0 0
    %1755 = vmatprep.mubr.bf16.mxu0 0
    %1756 = vmatmul.mubr.bf16.gmra.mxu0 %v1718
    %v1757 = vpop.f32.mrf.mxu0
    %v1758 = vadd.f32 %v1679, %v1757
    %v1759 = vpop.f32.mrf.mxu0
    %v1760 = vpop.f32.mrf.mxu0
    %v1761 = vadd.f32 %v1679, %v1760
    %v1762 = vpop.f32.mrf.mxu0
    %1763 = vmatprep.mubr.bf16.mxu0 0
    %1764 = vmatmul.mubr.bf16.gmra.mxu0 %v1721
    %v1765 = vpop.f32.mrf.mxu0
    %v1766 = vadd.f32 %v1679, %v1765
    %v1767 = vpop.f32.mrf.mxu0
    %v1768 = vpop.f32.mrf.mxu0
    %v1769 = vadd.f32 %v1679, %v1768
    %v1770 = vpop.f32.mrf.mxu0
    %1771 = vdwg.mxu0
    %v1772 = vmax.f32 %v1758, 0.0
    %v1773 = vmax.f32 %v1761, 0.0
    %v1774 = vmax.f32 %v1766, 0.0
    %v1775 = vmax.f32 %v1769, 0.0
    %v1776 = vmul.f32 %v1772, %v492
    %v1777 = vmul.f32 %v1773, %v497
    %v1778 = vmul.f32 %v1774, %v502
    %v1779 = vmul.f32 %v1775, %v507
    %v1780 = vld [vmem:[%s16] sm:$0xf]
    %v1781 = vld [vmem:[%s16 + $0x4] sm:$0xf]
    %v1782 = vld [vmem:[%s16 + $0x8] sm:$0xf]
    %v1783 = vld [vmem:[%s16 + $0xc] sm:$0xf]
    %v1784 = vld [vmem:[%s16 + $0x10] sm:$0xf]
    %v1785 = vld [vmem:[%s16 + $0x14] sm:$0xf]
    %v1786 = vld [vmem:[%s16 + $0x18] sm:$0xf]
    %v1787 = vld [vmem:[%s16 + $0x1c] sm:$0xf]
    %v1788 = vld [vmem:[%s16 + $0x20] sm:$0xf]
    %v1789 = vld [vmem:[%s16 + $0x24] sm:$0xf]
    %v1790 = vld [vmem:[%s16 + $0x28] sm:$0xf]
    %v1791 = vld [vmem:[%s16 + $0x2c] sm:$0xf]
    %v1792 = vld [vmem:[%s16 + $0x30] sm:$0xf]
    %v1793 = vld [vmem:[%s16 + $0x34] sm:$0xf]
    %v1794 = vld [vmem:[%s16 + $0x38] sm:$0xf]
    %v1795 = vld [vmem:[%s16 + $0x3c] sm:$0xf]
    %v1796 = vld [vmem:[%s16 + $0x40] sm:$0xf]
    %v1797 = vld [vmem:[%s16 + $0x44] sm:$0xf]
    %v1798 = vld [vmem:[%s16 + $0x48] sm:$0xf]
    %v1799 = vld [vmem:[%s16 + $0x4c] sm:$0xf]
    %v1800 = vld [vmem:[%s16 + $0x50] sm:$0xf]
    %v1801 = vld [vmem:[%s16 + $0x54] sm:$0xf]
    %v1802 = vld [vmem:[%s16 + $0x58] sm:$0xf]
    %v1803 = vld [vmem:[%s16 + $0x5c] sm:$0xf]
    %v1804 = vld [vmem:[%s17] sm:$0x1]
    %v1805 = vrot.slane %v1776, 6
    %v1806 = vrot.slane %v1777, 6
    %v1807 = vrot.slane %v1778, 6
    %v1808 = vrot.slane %v1779, 6
    %v1809 = vsel %vm1592, %v1807, %v1808
    %v1810 = vsel %vm1592, %v1806, %v1807
    %v1811 = vsel %vm1592, %v1805, %v1806
    %v1812 = vsel %vm1592, %v1808, %v1805
    %v1813 = vsel %vm1613, %v1812, 0.0
    %v1814 = vsel %vm1614, %v1811, 0.0
    %v1815 = vsel %vm1615, %v1810, 0.0
    %v1816 = vsel %vm1616, %v1809, 0.0
    %v1817 = vrot.slane %v1776, 7
    %v1818 = vrot.slane %v1777, 7
    %v1819 = vrot.slane %v1778, 7
    %v1820 = vrot.slane %v1779, 7
    %v1821 = vsel %vm215, %v1819, %v1820
    %v1822 = vsel %vm215, %v1818, %v1819
    %v1823 = vsel %vm215, %v1817, %v1818
    %v1824 = vsel %vm215, %v1820, %v1817
    %v1825 = vsel %vm236, %v1824, 0.0
    %v1826 = vsel %vm237, %v1823, 0.0
    %v1827 = vsel %vm238, %v1822, 0.0
    %v1828 = vsel %vm239, %v1821, 0.0
    %1833 = vrot.lane.b32.xlu0 %v1825, 64
    %v1834 = vpop.permute.xlu0 %1833
    %1835 = vrot.lane.b32.xlu0 %v1826, 64
    %v1836 = vpop.permute.xlu0 %1835
    %1837 = vrot.lane.b32.xlu0 %v1827, 64
    %v1838 = vpop.permute.xlu0 %1837
    %1839 = vrot.lane.b32.xlu0 %v1828, 64
    %v1840 = vpop.permute.xlu0 %1839
    %v1845 = vsel %vm386, %v1813, %v1834
    %v1846 = vsel %vm386, %v1814, %v1836
    %v1847 = vsel %vm386, %v1815, %v1838
    %v1848 = vsel %vm386, %v1816, %v1840
    %v1849 = vpack.c.bf16 %v1846, %v1845
    %v1850 = vpack.c.bf16 %v1777, %v1776
    %v1851 = vpack.c.bf16 %v1848, %v1847
    %v1852 = vpack.c.bf16 %v1779, %v1778
    %v1854 = vlaneseq
    %v1855 = vshrl.u32 %v1854, 7
    %v1856 = vsub.s32 0, %v1855
    %v1857 = vrot.slane %v1804, %v1856
    %v1883 = vunpack.c.l.b16 %v1780
    %v1884 = vunpack.c.l.b16 %v1781
    %v1885 = vunpack.c.l.b16 %v1782
    %v1886 = vunpack.c.l.b16 %v1783
    %v1887 = vunpack.c.l.b16 %v1784
    %v1888 = vunpack.c.l.b16 %v1785
    %v1889 = vunpack.c.l.b16 %v1786
    %v1890 = vunpack.c.l.b16 %v1787
    %v1891 = vunpack.c.l.b16 %v1788
    %v1892 = vunpack.c.l.b16 %v1789
    %v1893 = vunpack.c.l.b16 %v1790
    %v1894 = vunpack.c.l.b16 %v1791
    %v1895 = vunpack.c.l.b16 %v1792
    %v1896 = vunpack.c.l.b16 %v1793
    %v1897 = vunpack.c.l.b16 %v1794
    %v1898 = vunpack.c.l.b16 %v1795
    %v1899 = vunpack.c.l.b16 %v1796
    %v1900 = vunpack.c.l.b16 %v1797
    %v1901 = vunpack.c.l.b16 %v1798
    %v1902 = vunpack.c.l.b16 %v1799
    %v1903 = vunpack.c.l.b16 %v1800
    %v1904 = vunpack.c.l.b16 %v1801
    %v1905 = vunpack.c.l.b16 %v1802
    %v1906 = vunpack.c.l.b16 %v1803
    %v1907 = vpack.c.b16 %v1884, %v1883
    %v1908 = vpack.c.b16 %v1886, %v1885
    %v1909 = vpack.c.b16 %v1888, %v1887
    %v1910 = vpack.c.b16 %v1890, %v1889
    %v1911 = vpack.c.b16 %v1892, %v1891
    %v1912 = vpack.c.b16 %v1894, %v1893
    %v1913 = vpack.c.b16 %v1896, %v1895
    %v1914 = vpack.c.b16 %v1898, %v1897
    %v1915 = vpack.c.b16 %v1900, %v1899
    %v1916 = vpack.c.b16 %v1902, %v1901
    %v1917 = vpack.c.b16 %v1904, %v1903
    %v1918 = vpack.c.b16 %v1906, %v1905
    %v1932 = vsel %vm386, %v1850, 0
    %v1935 = vsel %vm386, %v1852, 0
    %1937 = vmatprep.subr.bf16.mxu0 0
    %1938 = vmatpush1.bf16.msra.mxu0 %v1914
    %1939 = vmatprep.subr.bf16.mxu0 0
    %1940 = vmatpush1.bf16.msra.mxu0 %v1913
    %1941 = vmatprep.subr.bf16.mxu0 0
    %1942 = vmatpush1.bf16.msra.mxu0 %v1912
    %1943 = vmatprep.subr.bf16.mxu0 0
    %1944 = vmatpush1.bf16.msra.mxu0 %v1911
    %1945 = vmatprep.subr.bf16.mxu0 0
    %1946 = vmatpush1.bf16.msra.mxu0 %v1910
    %1947 = vmatprep.subr.bf16.mxu0 0
    %1948 = vmatpush1.bf16.msra.mxu0 %v1909
    %1949 = vmatprep.subr.bf16.mxu0 0
    %1950 = vmatpush1.bf16.msra.mxu0 %v1908
    %1951 = vmatprep.subr.bf16.mxu0 0
    %1952 = vmatpush1.bf16.msra.mxu0 %v1907
    %1953 = vmatprep.subr.bf16.mxu0 0
    %1954 = vmatpush2.bf16.msra.mxu0 0
    %1955 = vmatprep.subr.bf16.mxu0 0
    %1956 = vmatpush2.bf16.msra.mxu0 0
    %1957 = vmatprep.subr.bf16.mxu0 0
    %1958 = vmatpush2.bf16.msra.mxu0 0
    %1959 = vmatprep.subr.bf16.mxu0 0
    %1960 = vmatpush2.bf16.msra.mxu0 0
    %1961 = vmatprep.subr.bf16.mxu0 0
    %1962 = vmatpush2.bf16.msra.mxu0 %v1918
    %1963 = vmatprep.subr.bf16.mxu0 0
    %1964 = vmatpush2.bf16.msra.mxu0 %v1917
    %1965 = vmatprep.subr.bf16.mxu0 0
    %1966 = vmatpush2.bf16.msra.mxu0 %v1916
    %1967 = vmatprep.subr.bf16.mxu0 0
    %1968 = vmatpush2.bf16.msra.mxu0 %v1915
    %1969 = vmatprep.mubr.bf16.mxu0 %v1932
    %1970 = vmatmul.mubr.bf16.gmra.mxu0 %v1849
    %v1971 = vpop.f32.mrf.mxu0
    %v1972 = vadd.f32 %v1857, %v1971
    %v1973 = vpop.f32.mrf.mxu0
    %v1974 = vpop.f32.mrf.mxu0
    %v1975 = vadd.f32 %v1857, %v1974
    %v1976 = vpop.f32.mrf.mxu0
    %1977 = vmatprep.mubr.bf16.mxu0 %v1935
    %1978 = vmatmul.mubr.bf16.gmra.mxu0 %v1851
    %v1979 = vpop.f32.mrf.mxu0
    %v1980 = vadd.f32 %v1857, %v1979
    %v1981 = vpop.f32.mrf.mxu0
    %v1982 = vpop.f32.mrf.mxu0
    %v1983 = vadd.f32 %v1857, %v1982
    %v1984 = vpop.f32.mrf.mxu0
    %1985 = vdwg.mxu0
    %v1986 = vmul.f32 %v1972, %v492
    %v1987 = vmul.f32 %v1975, %v497
    %v1988 = vmul.f32 %v1980, %v502
    %v1989 = vmul.f32 %v1983, %v507
    %v1990 = vadd.f32 %v1567, %v1986
    %v1991 = vadd.f32 %v1568, %v1987
    %v1992 = vadd.f32 %v1569, %v1988
    %v1993 = vadd.f32 %v1570, %v1989
    %v1994 = vsel %vm381, %v1990, 0.0
    %1995 = vadd.xlane.f32.xlu0 %v1994
    %v1996 = vpop.xlane.xlu0 %1995
    %v1997 = vsel %vm381, %v1991, 0.0
    %1998 = vadd.xlane.f32.xlu0 %v1997
    %v1999 = vpop.xlane.xlu0 %1998
    %v2000 = vsel %vm381, %v1992, 0.0
    %2001 = vadd.xlane.f32.xlu0 %v2000
    %v2002 = vpop.xlane.xlu0 %2001
    %v2003 = vsel %vm381, %v1993, 0.0
    %2004 = vadd.xlane.f32.xlu0 %v2003
    %v2005 = vpop.xlane.xlu0 %2004
    %v2006 = vmul.f32 %v1996, %v1510
    %v2007 = vmul.f32 %v1999, %v1510
    %v2008 = vmul.f32 %v2002, %v1510
    %v2009 = vmul.f32 %v2005, %v1510
    %v2010 = vsub.f32 %v1990, %v2006
    %v2011 = vsub.f32 %v1991, %v2007
    %v2012 = vsub.f32 %v1992, %v2008
    %v2013 = vsub.f32 %v1993, %v2009
    %v2014 = vmul.f32 %v2010, %v2010
    %v2015 = vmul.f32 %v2011, %v2011
    %v2016 = vmul.f32 %v2012, %v2012
    %v2017 = vmul.f32 %v2013, %v2013
    %v2018 = vsel %vm381, %v2014, 0.0
    %2019 = vadd.xlane.f32.xlu0 %v2018
    %v2020 = vpop.xlane.xlu0 %2019
    %v2021 = vsel %vm381, %v2015, 0.0
    %2022 = vadd.xlane.f32.xlu0 %v2021
    %v2023 = vpop.xlane.xlu0 %2022
    %v2024 = vsel %vm381, %v2016, 0.0
    %2025 = vadd.xlane.f32.xlu0 %v2024
    %v2026 = vpop.xlane.xlu0 %2025
    %v2027 = vsel %vm381, %v2017, 0.0
    %2028 = vadd.xlane.f32.xlu0 %v2027
    %v2029 = vpop.xlane.xlu0 %2028
    %v2030 = vmul.f32 %v2020, %v1510
    %v2031 = vmul.f32 %v2023, %v1510
    %v2032 = vmul.f32 %v2026, %v1510
    %v2033 = vmul.f32 %v2029, %v1510
    %v2034 = vadd.f32 %v2030, 1e-05
    %v2035 = vadd.f32 %v2031, 1e-05
    %v2036 = vadd.f32 %v2032, 1e-05
    %v2037 = vadd.f32 %v2033, 1e-05
    %v2038 = vrsqrt.pop %v2034
    %v2039 = vrsqrt.pop %v2035
    %v2040 = vrsqrt.pop %v2036
    %v2041 = vrsqrt.pop %v2037
    %v2042 = vmul.f32 %v2010, %v2038
    %v2043 = vmul.f32 %v2011, %v2039
    %v2044 = vmul.f32 %v2012, %v2040
    %v2045 = vmul.f32 %v2013, %v2041
    %v2047 = vlaneseq
    %v2048 = vshrl.u32 %v2047, 7
    %v2049 = vsub.s32 0, %v2048
    %v2050 = vrot.slane %v1492, %v2049
    %v2052 = vmul.f32 %v2042, %v2050
    %v2053 = vmul.f32 %v2043, %v2050
    %v2054 = vmul.f32 %v2044, %v2050
    %v2055 = vmul.f32 %v2045, %v2050
    %v2057 = vlaneseq
    %v2058 = vshrl.u32 %v2057, 7
    %v2059 = vsub.s32 0, %v2058
    %v2060 = vrot.slane %v1493, %v2059
    %v2062 = vadd.f32 %v2052, %v2060
    %v2063 = vadd.f32 %v2053, %v2060
    %v2064 = vadd.f32 %v2054, %v2060
    %v2065 = vadd.f32 %v2055, %v2060
    %v2066 = vpack.c.bf16 %v2063, %v2062
    %v2067 = vpack.c.bf16 %v2065, %v2064
    %s2068 = scalar_lea.vmem %s9, 96
    %v2069 = vld [vmem:[%s2068] sm:$0xff]
    %v2070 = vld [vmem:[%s2068 + $0x8] sm:$0xff]
    %v2071 = vld [vmem:[%s2068 + $0x10] sm:$0xff]
    %v2072 = vld [vmem:[%s2068 + $0x18] sm:$0xff]
    %v2073 = vld [vmem:[%s2068 + $0x20] sm:$0xff]
    %v2074 = vld [vmem:[%s2068 + $0x28] sm:$0xff]
    %v2075 = vld [vmem:[%s2068 + $0x30] sm:$0xff]
    %v2076 = vld [vmem:[%s2068 + $0x38] sm:$0xff]
    %v2077 = vld [vmem:[%s2068 + $0x40] sm:$0xff]
    %v2078 = vld [vmem:[%s2068 + $0x48] sm:$0xff]
    %v2079 = vld [vmem:[%s2068 + $0x50] sm:$0xff]
    %v2080 = vld [vmem:[%s2068 + $0x58] sm:$0xff]
    %s2081 = scalar_lea.vmem %s10, 6
    %v2082 = vld [vmem:[%s2081] sm:$0x3f]
    %v2084 = vlaneseq
    %v2085 = vshrl.u32 %v2084, 7
    %v2086 = vsub.s32 0, %v2085
    %v2087 = vrot.slane %v2082, %v2086
    %v2088 = vlaneseq
    %v2089 = vshrl.u32 %v2088, 7
    %v2090 = vsub.s32 1, %v2089
    %v2091 = vrot.slane %v2082, %v2090
    %v2092 = vlaneseq
    %v2093 = vshrl.u32 %v2092, 7
    %v2094 = vsub.s32 2, %v2093
    %v2095 = vrot.slane %v2082, %v2094
    %v2096 = vlaneseq
    %v2097 = vshrl.u32 %v2096, 7
    %v2098 = vsub.s32 3, %v2097
    %v2099 = vrot.slane %v2082, %v2098
    %v2100 = vlaneseq
    %v2101 = vshrl.u32 %v2100, 7
    %v2102 = vsub.s32 4, %v2101
    %v2103 = vrot.slane %v2082, %v2102
    %v2104 = vlaneseq
    %v2105 = vshrl.u32 %v2104, 7
    %v2106 = vsub.s32 5, %v2105
    %v2107 = vrot.slane %v2082, %v2106
    %v2126 = vunpack.c.l.b16 %v2069
    %v2127 = vunpack.c.h.b16 %v2069
    %v2128 = vunpack.c.l.b16 %v2070
    %v2129 = vunpack.c.h.b16 %v2070
    %v2130 = vunpack.c.l.b16 %v2071
    %v2131 = vunpack.c.h.b16 %v2071
    %v2132 = vunpack.c.l.b16 %v2072
    %v2133 = vunpack.c.h.b16 %v2072
    %v2134 = vunpack.c.l.b16 %v2073
    %v2135 = vunpack.c.h.b16 %v2073
    %v2136 = vunpack.c.l.b16 %v2074
    %v2137 = vunpack.c.h.b16 %v2074
    %v2138 = vunpack.c.l.b16 %v2075
    %v2139 = vunpack.c.h.b16 %v2075
    %v2140 = vunpack.c.l.b16 %v2076
    %v2141 = vunpack.c.h.b16 %v2076
    %v2142 = vunpack.c.l.b16 %v2077
    %v2143 = vunpack.c.h.b16 %v2077
    %v2144 = vunpack.c.l.b16 %v2078
    %v2145 = vunpack.c.h.b16 %v2078
    %v2146 = vunpack.c.l.b16 %v2079
    %v2147 = vunpack.c.h.b16 %v2079
    %v2148 = vunpack.c.l.b16 %v2080
    %v2149 = vunpack.c.h.b16 %v2080
    %v2150 = vpack.c.b16 %v2132, %v2126
    %v2151 = vpack.c.b16 %v2133, %v2127
    %v2152 = vpack.c.b16 %v2134, %v2128
    %v2153 = vpack.c.b16 %v2135, %v2129
    %v2154 = vpack.c.b16 %v2136, %v2130
    %v2155 = vpack.c.b16 %v2137, %v2131
    %v2156 = vpack.c.b16 %v2144, %v2138
    %v2157 = vpack.c.b16 %v2145, %v2139
    %v2158 = vpack.c.b16 %v2146, %v2140
    %v2159 = vpack.c.b16 %v2147, %v2141
    %v2160 = vpack.c.b16 %v2148, %v2142
    %v2161 = vpack.c.b16 %v2149, %v2143
    %v2175 = vsel %vm381, %v2066, 0
    %v2178 = vsel %vm381, %v2067, 0
    %2180 = vmatprep.subr.bf16.mxu0 0
    %2181 = vmatpush1.bf16.msra.mxu0 0
    %2182 = vmatprep.subr.bf16.mxu0 0
    %2183 = vmatpush1.bf16.msra.mxu0 0
    %2184 = vmatprep.subr.bf16.mxu0 0
    %2185 = vmatpush1.bf16.msra.mxu0 0
    %2186 = vmatprep.subr.bf16.mxu0 0
    %2187 = vmatpush1.bf16.msra.mxu0 0
    %2188 = vmatprep.subr.bf16.mxu0 0
    %2189 = vmatpush1.bf16.msra.mxu0 0
    %2190 = vmatprep.subr.bf16.mxu0 0
    %2191 = vmatpush1.bf16.msra.mxu0 0
    %2192 = vmatprep.subr.bf16.mxu0 %v2157
    %2193 = vmatpush1.bf16.msra.mxu0 %v2156
    %2194 = vmatprep.subr.bf16.mxu0 %v2151
    %2195 = vmatpush1.bf16.msra.mxu0 %v2150
    %2196 = vmatprep.subr.bf16.mxu0 0
    %2197 = vmatpush2.bf16.msra.mxu0 0
    %2198 = vmatprep.subr.bf16.mxu0 0
    %2199 = vmatpush2.bf16.msra.mxu0 0
    %2200 = vmatprep.subr.bf16.mxu0 0
    %2201 = vmatpush2.bf16.msra.mxu0 0
    %2202 = vmatprep.subr.bf16.mxu0 0
    %2203 = vmatpush2.bf16.msra.mxu0 0
    %2204 = vmatprep.subr.bf16.mxu0 0
    %2205 = vmatpush2.bf16.msra.mxu0 0
    %2206 = vmatprep.subr.bf16.mxu0 0
    %2207 = vmatpush2.bf16.msra.mxu0 0
    %2208 = vmatprep.subr.bf16.mxu0 0
    %2209 = vmatpush2.bf16.msra.mxu0 0
    %2210 = vmatprep.subr.bf16.mxu0 0
    %2211 = vmatpush2.bf16.msra.mxu0 0
    %2212 = vmatprep.mubr.bf16.mxu0 0
    %2213 = vmatmul.mubr.bf16.gmra.mxu0 %v2175
    %v2214 = vpop.f32.mrf.mxu0
    %v2215 = vadd.f32 %v2087, %v2214
    %v2216 = vpop.f32.mrf.mxu0
    %v2217 = vadd.f32 %v2091, %v2216
    %v2218 = vpop.f32.mrf.mxu0
    %v2219 = vadd.f32 %v2087, %v2218
    %v2220 = vpop.f32.mrf.mxu0
    %v2221 = vadd.f32 %v2091, %v2220
    %2222 = vmatprep.mubr.bf16.mxu0 0
    %2223 = vmatmul.mubr.bf16.gmra.mxu0 %v2178
    %v2224 = vpop.f32.mrf.mxu0
    %v2225 = vadd.f32 %v2087, %v2224
    %v2226 = vpop.f32.mrf.mxu0
    %v2227 = vadd.f32 %v2091, %v2226
    %v2228 = vpop.f32.mrf.mxu0
    %v2229 = vadd.f32 %v2087, %v2228
    %v2230 = vpop.f32.mrf.mxu0
    %v2231 = vadd.f32 %v2091, %v2230
    %2232 = vdwg.mxu0
    %2233 = vmatprep.subr.bf16.mxu0 0
    %2234 = vmatpush1.bf16.msra.mxu0 0
    %2235 = vmatprep.subr.bf16.mxu0 0
    %2236 = vmatpush1.bf16.msra.mxu0 0
    %2237 = vmatprep.subr.bf16.mxu0 0
    %2238 = vmatpush1.bf16.msra.mxu0 0
    %2239 = vmatprep.subr.bf16.mxu0 0
    %2240 = vmatpush1.bf16.msra.mxu0 0
    %2241 = vmatprep.subr.bf16.mxu0 0
    %2242 = vmatpush1.bf16.msra.mxu0 0
    %2243 = vmatprep.subr.bf16.mxu0 0
    %2244 = vmatpush1.bf16.msra.mxu0 0
    %2245 = vmatprep.subr.bf16.mxu0 %v2159
    %2246 = vmatpush1.bf16.msra.mxu0 %v2158
    %2247 = vmatprep.subr.bf16.mxu0 %v2153
    %2248 = vmatpush1.bf16.msra.mxu0 %v2152
    %2249 = vmatprep.subr.bf16.mxu0 0
    %2250 = vmatpush2.bf16.msra.mxu0 0
    %2251 = vmatprep.subr.bf16.mxu0 0
    %2252 = vmatpush2.bf16.msra.mxu0 0
    %2253 = vmatprep.subr.bf16.mxu0 0
    %2254 = vmatpush2.bf16.msra.mxu0 0
    %2255 = vmatprep.subr.bf16.mxu0 0
    %2256 = vmatpush2.bf16.msra.mxu0 0
    %2257 = vmatprep.subr.bf16.mxu0 0
    %2258 = vmatpush2.bf16.msra.mxu0 0
    %2259 = vmatprep.subr.bf16.mxu0 0
    %2260 = vmatpush2.bf16.msra.mxu0 0
    %2261 = vmatprep.subr.bf16.mxu0 0
    %2262 = vmatpush2.bf16.msra.mxu0 0
    %2263 = vmatprep.subr.bf16.mxu0 0
    %2264 = vmatpush2.bf16.msra.mxu0 0
    %2265 = vmatprep.mubr.bf16.mxu0 0
    %2266 = vmatmul.mubr.bf16.gmra.mxu0 %v2175
    %v2267 = vpop.f32.mrf.mxu0
    %v2268 = vadd.f32 %v2095, %v2267
    %v2269 = vpop.f32.mrf.mxu0
    %v2270 = vadd.f32 %v2099, %v2269
    %v2271 = vpop.f32.mrf.mxu0
    %v2272 = vadd.f32 %v2095, %v2271
    %v2273 = vpop.f32.mrf.mxu0
    %v2274 = vadd.f32 %v2099, %v2273
    %2275 = vmatprep.mubr.bf16.mxu0 0
    %2276 = vmatmul.mubr.bf16.gmra.mxu0 %v2178
    %v2277 = vpop.f32.mrf.mxu0
    %v2278 = vadd.f32 %v2095, %v2277
    %v2279 = vpop.f32.mrf.mxu0
    %v2280 = vadd.f32 %v2099, %v2279
    %v2281 = vpop.f32.mrf.mxu0
    %v2282 = vadd.f32 %v2095, %v2281
    %v2283 = vpop.f32.mrf.mxu0
    %v2284 = vadd.f32 %v2099, %v2283
    %2285 = vdwg.mxu0
    %2286 = vmatprep.subr.bf16.mxu0 0
    %2287 = vmatpush1.bf16.msra.mxu0 0
    %2288 = vmatprep.subr.bf16.mxu0 0
    %2289 = vmatpush1.bf16.msra.mxu0 0
    %2290 = vmatprep.subr.bf16.mxu0 0
    %2291 = vmatpush1.bf16.msra.mxu0 0
    %2292 = vmatprep.subr.bf16.mxu0 0
    %2293 = vmatpush1.bf16.msra.mxu0 0
    %2294 = vmatprep.subr.bf16.mxu0 0
    %2295 = vmatpush1.bf16.msra.mxu0 0
    %2296 = vmatprep.subr.bf16.mxu0 0
    %2297 = vmatpush1.bf16.msra.mxu0 0
    %2298 = vmatprep.subr.bf16.mxu0 %v2161
    %2299 = vmatpush1.bf16.msra.mxu0 %v2160
    %2300 = vmatprep.subr.bf16.mxu0 %v2155
    %2301 = vmatpush1.bf16.msra.mxu0 %v2154
    %2302 = vmatprep.subr.bf16.mxu0 0
    %2303 = vmatpush2.bf16.msra.mxu0 0
    %2304 = vmatprep.subr.bf16.mxu0 0
    %2305 = vmatpush2.bf16.msra.mxu0 0
    %2306 = vmatprep.subr.bf16.mxu0 0
    %2307 = vmatpush2.bf16.msra.mxu0 0
    %2308 = vmatprep.subr.bf16.mxu0 0
    %2309 = vmatpush2.bf16.msra.mxu0 0
    %2310 = vmatprep.subr.bf16.mxu0 0
    %2311 = vmatpush2.bf16.msra.mxu0 0
    %2312 = vmatprep.subr.bf16.mxu0 0
    %2313 = vmatpush2.bf16.msra.mxu0 0
    %2314 = vmatprep.subr.bf16.mxu0 0
    %2315 = vmatpush2.bf16.msra.mxu0 0
    %2316 = vmatprep.subr.bf16.mxu0 0
    %2317 = vmatpush2.bf16.msra.mxu0 0
    %2318 = vmatprep.mubr.bf16.mxu0 0
    %2319 = vmatmul.mubr.bf16.gmra.mxu0 %v2175
    %v2320 = vpop.f32.mrf.mxu0
    %v2321 = vadd.f32 %v2103, %v2320
    %v2322 = vpop.f32.mrf.mxu0
    %v2323 = vadd.f32 %v2107, %v2322
    %v2324 = vpop.f32.mrf.mxu0
    %v2325 = vadd.f32 %v2103, %v2324
    %v2326 = vpop.f32.mrf.mxu0
    %v2327 = vadd.f32 %v2107, %v2326
    %2328 = vmatprep.mubr.bf16.mxu0 0
    %2329 = vmatmul.mubr.bf16.gmra.mxu0 %v2178
    %v2330 = vpop.f32.mrf.mxu0
    %v2331 = vadd.f32 %v2103, %v2330
    %v2332 = vpop.f32.mrf.mxu0
    %v2333 = vadd.f32 %v2107, %v2332
    %v2334 = vpop.f32.mrf.mxu0
    %v2335 = vadd.f32 %v2103, %v2334
    %v2336 = vpop.f32.mrf.mxu0
    %v2337 = vadd.f32 %v2107, %v2336
    %2338 = vdwg.mxu0
    %s2339 = scalar_lea.vmem %s11, 128
    %v2340 = vld [vmem:[%s2339] sm:$0xf]
    %v2341 = vld [vmem:[%s2339 + $0x4] sm:$0xf]
    %v2342 = vld [vmem:[%s2339 + $0x8] sm:$0xf]
    %v2343 = vld [vmem:[%s2339 + $0xc] sm:$0xf]
    %v2344 = vld [vmem:[%s2339 + $0x10] sm:$0xf]
    %v2345 = vld [vmem:[%s2339 + $0x14] sm:$0xf]
    %v2346 = vld [vmem:[%s2339 + $0x18] sm:$0xf]
    %v2347 = vld [vmem:[%s2339 + $0x1c] sm:$0xf]
    %v2348 = vld [vmem:[%s2339 + $0x20] sm:$0xf]
    %v2349 = vld [vmem:[%s2339 + $0x24] sm:$0xf]
    %v2350 = vld [vmem:[%s2339 + $0x28] sm:$0xf]
    %v2351 = vld [vmem:[%s2339 + $0x2c] sm:$0xf]
    %v2352 = vld [vmem:[%s2339 + $0x30] sm:$0xf]
    %v2353 = vld [vmem:[%s2339 + $0x34] sm:$0xf]
    %v2354 = vld [vmem:[%s2339 + $0x38] sm:$0xf]
    %v2355 = vld [vmem:[%s2339 + $0x3c] sm:$0xf]
    %v2356 = vld [vmem:[%s2339 + $0x40] sm:$0xf]
    %v2357 = vld [vmem:[%s2339 + $0x44] sm:$0xf]
    %v2358 = vld [vmem:[%s2339 + $0x48] sm:$0xf]
    %v2359 = vld [vmem:[%s2339 + $0x4c] sm:$0xf]
    %v2360 = vld [vmem:[%s2339 + $0x50] sm:$0xf]
    %v2361 = vld [vmem:[%s2339 + $0x54] sm:$0xf]
    %v2362 = vld [vmem:[%s2339 + $0x58] sm:$0xf]
    %v2363 = vld [vmem:[%s2339 + $0x5c] sm:$0xf]
    %v2364 = vld [vmem:[%s2339 + $0x60] sm:$0xf]
    %v2365 = vld [vmem:[%s2339 + $0x64] sm:$0xf]
    %v2366 = vld [vmem:[%s2339 + $0x68] sm:$0xf]
    %v2367 = vld [vmem:[%s2339 + $0x6c] sm:$0xf]
    %v2368 = vld [vmem:[%s2339 + $0x70] sm:$0xf]
    %v2369 = vld [vmem:[%s2339 + $0x74] sm:$0xf]
    %v2370 = vld [vmem:[%s2339 + $0x78] sm:$0xf]
    %v2371 = vld [vmem:[%s2339 + $0x7c] sm:$0xf]
    %s2372 = scalar_lea.vmem %s12, 1
    %v2373 = vld [vmem:[%s2372] sm:$0x1]
    %v2374 = vpack.c.bf16 %v2219, %v2215
    %v2375 = vpack.c.bf16 %v2229, %v2225
    %v2376 = vpack.c.bf16 %v2221, %v2217
    %v2377 = vpack.c.bf16 %v2231, %v2227
    %v2378 = vpack.c.bf16 %v2272, %v2268
    %v2379 = vpack.c.bf16 %v2282, %v2278
    %2380 = vmatprep.subr.bf16.mxu0 0
    %2381 = vmatpush1.bf16.xpose.msra.mxu0 0
    %2382 = vmatprep.subr.bf16.mxu0 0
    %2383 = vmatpush1.bf16.xpose.msra.mxu0 0
    %2384 = vmatprep.subr.bf16.mxu0 0
    %2385 = vmatpush1.bf16.xpose.msra.mxu0 0
    %2386 = vmatprep.subr.bf16.mxu0 0
    %2387 = vmatpush1.bf16.xpose.msra.mxu0 0
    %2388 = vmatprep.subr.bf16.mxu0 0
    %2389 = vmatpush1.bf16.xpose.msra.mxu0 0
    %2390 = vmatprep.subr.bf16.mxu0 0
    %2391 = vmatpush1.bf16.xpose.msra.mxu0 0
    %2392 = vmatprep.subr.bf16.mxu0 0
    %2393 = vmatpush1.bf16.xpose.msra.mxu0 0
    %2394 = vmatprep.subr.bf16.mxu0 0
    %2395 = vmatpush1.bf16.xpose.msra.mxu0 %v2376
    %2396 = vmatprep.subr.bf16.mxu0 0
    %2397 = vmatpush2.bf16.xpose.msra.mxu0 0
    %2398 = vmatprep.subr.bf16.mxu0 0
    %2399 = vmatpush2.bf16.xpose.msra.mxu0 0
    %2400 = vmatprep.subr.bf16.mxu0 0
    %2401 = vmatpush2.bf16.xpose.msra.mxu0 0
    %2402 = vmatprep.subr.bf16.mxu0 0
    %2403 = vmatpush2.bf16.xpose.msra.mxu0 0
    %2404 = vmatprep.subr.bf16.mxu0 0
    %2405 = vmatpush2.bf16.xpose.msra.mxu0 0
    %2406 = vmatprep.subr.bf16.mxu0 0
    %2407 = vmatpush2.bf16.xpose.msra.mxu0 0
    %2408 = vmatprep.subr.bf16.mxu0 0
    %2409 = vmatpush2.bf16.xpose.msra.mxu0 0
    %2410 = vmatprep.subr.bf16.mxu0 0
    %2411 = vmatpush2.bf16.xpose.msra.mxu0 0
    %2412 = vmatprep.mubr.bf16.mxu0 0
    %2413 = vmatmul.mubr.bf16.gmra.mxu0 %v2374
    %v2414 = vpop.f32.mrf.mxu0
    %v2415 = vadd.f32 0.0, %v2414
    %v2416 = vpop.f32.mrf.mxu0
    %v2417 = vpop.f32.mrf.mxu0
    %v2418 = vadd.f32 0.0, %v2417
    %v2419 = vpop.f32.mrf.mxu0
    %2420 = vdwg.mxu0
    %2421 = vmatprep.subr.bf16.mxu0 0
    %2422 = vmatpush1.bf16.xpose.msra.mxu0 0
    %2423 = vmatprep.subr.bf16.mxu0 0
    %2424 = vmatpush1.bf16.xpose.msra.mxu0 0
    %2425 = vmatprep.subr.bf16.mxu0 0
    %2426 = vmatpush1.bf16.xpose.msra.mxu0 0
    %2427 = vmatprep.subr.bf16.mxu0 0
    %2428 = vmatpush1.bf16.xpose.msra.mxu0 0
    %2429 = vmatprep.subr.bf16.mxu0 0
    %2430 = vmatpush1.bf16.xpose.msra.mxu0 0
    %2431 = vmatprep.subr.bf16.mxu0 0
    %2432 = vmatpush1.bf16.xpose.msra.mxu0 0
    %2433 = vmatprep.subr.bf16.mxu0 0
    %2434 = vmatpush1.bf16.xpose.msra.mxu0 0
    %2435 = vmatprep.subr.bf16.mxu0 0
    %2436 = vmatpush1.bf16.xpose.msra.mxu0 %v2377
    %2437 = vmatprep.subr.bf16.mxu0 0
    %2438 = vmatpush2.bf16.xpose.msra.mxu0 0
    %2439 = vmatprep.subr.bf16.mxu0 0
    %2440 = vmatpush2.bf16.xpose.msra.mxu0 0
    %2441 = vmatprep.subr.bf16.mxu0 0
    %2442 = vmatpush2.bf16.xpose.msra.mxu0 0
    %2443 = vmatprep.subr.bf16.mxu0 0
    %2444 = vmatpush2.bf16.xpose.msra.mxu0 0
    %2445 = vmatprep.subr.bf16.mxu0 0
    %2446 = vmatpush2.bf16.xpose.msra.mxu0 0
    %2447 = vmatprep.subr.bf16.mxu0 0
    %2448 = vmatpush2.bf16.xpose.msra.mxu0 0
    %2449 = vmatprep.subr.bf16.mxu0 0
    %2450 = vmatpush2.bf16.xpose.msra.mxu0 0
    %2451 = vmatprep.subr.bf16.mxu0 0
    %2452 = vmatpush2.bf16.xpose.msra.mxu0 0
    %2453 = vmatprep.mubr.bf16.mxu0 0
    %2454 = vmatmul.mubr.bf16.gmra.mxu0 %v2375
    %v2455 = vpop.f32.mrf.mxu0
    %v2456 = vadd.f32 0.0, %v2455
    %v2457 = vpop.f32.mrf.mxu0
    %v2458 = vpop.f32.mrf.mxu0
    %v2459 = vadd.f32 0.0, %v2458
    %v2460 = vpop.f32.mrf.mxu0
    %2461 = vdwg.mxu0
    %v2462 = vsel %vm911, %v2415, -10000.0
    %v2463 = vsel %vm912, %v2418, -10000.0
    %v2464 = vsel %vm911, %v2456, -10000.0
    %v2465 = vsel %vm912, %v2459, -10000.0
    %v2466 = vsel %vm917, %v2462, -inf
    %2467 = vmax.xlane.f32.xlu0 %v2466
    %v2468 = vpop.xlane.xlu0 %2467
    %v2469 = vsel %vm917, %v2463, -inf
    %2470 = vmax.xlane.f32.xlu0 %v2469
    %v2471 = vpop.xlane.xlu0 %2470
    %v2472 = vsel %vm917, %v2464, -inf
    %2473 = vmax.xlane.f32.xlu0 %v2472
    %v2474 = vpop.xlane.xlu0 %2473
    %v2475 = vsel %vm917, %v2465, -inf
    %2476 = vmax.xlane.f32.xlu0 %v2475
    %v2477 = vpop.xlane.xlu0 %2476
    %v2478 = vsub.f32 %v2462, %v2468
    %v2479 = vsub.f32 %v2463, %v2471
    %v2480 = vsub.f32 %v2464, %v2474
    %v2481 = vsub.f32 %v2465, %v2477
    %v2482 = vmul.f32 %v2478, 1.442695
    %v2483 = vpow.pop %v2482
    %v2484 = vmul.f32 %v2479, 1.442695
    %v2485 = vpow.pop %v2484
    %v2486 = vmul.f32 %v2480, 1.442695
    %v2487 = vpow.pop %v2486
    %v2488 = vmul.f32 %v2481, 1.442695
    %v2489 = vpow.pop %v2488
    %v2490 = vsel %vm917, %v2483, 0.0
    %2491 = vadd.xlane.f32.xlu0 %v2490
    %v2492 = vpop.xlane.xlu0 %2491
    %v2493 = vsel %vm917, %v2485, 0.0
    %2494 = vadd.xlane.f32.xlu0 %v2493
    %v2495 = vpop.xlane.xlu0 %2494
    %v2496 = vsel %vm917, %v2487, 0.0
    %2497 = vadd.xlane.f32.xlu0 %v2496
    %v2498 = vpop.xlane.xlu0 %2497
    %v2499 = vsel %vm917, %v2489, 0.0
    %2500 = vadd.xlane.f32.xlu0 %v2499
    %v2501 = vpop.xlane.xlu0 %2500
    %v2502 = vrcp.pop %v2492
    %v2503 = vrcp.pop %v2495
    %v2504 = vrcp.pop %v2498
    %v2505 = vrcp.pop %v2501
    %v2506 = vmul.f32 %v2483, %v2502
    %v2507 = vmul.f32 %v2485, %v2503
    %v2508 = vmul.f32 %v2487, %v2504
    %v2509 = vmul.f32 %v2489, %v2505
    %v2510 = vpack.c.bf16 %v2507, %v2506
    %v2511 = vpack.c.bf16 %v2509, %v2508
    %v2513 = vsel %vm917, %v2510, 0
    %2515 = vmatprep.subr.bf16.mxu0 0
    %2516 = vmatpush1.bf16.msra.mxu0 0
    %2517 = vmatprep.subr.bf16.mxu0 0
    %2518 = vmatpush1.bf16.msra.mxu0 0
    %2519 = vmatprep.subr.bf16.mxu0 0
    %2520 = vmatpush1.bf16.msra.mxu0 0
    %2521 = vmatprep.subr.bf16.mxu0 0
    %2522 = vmatpush1.bf16.msra.mxu0 0
    %2523 = vmatprep.subr.bf16.mxu0 0
    %2524 = vmatpush1.bf16.msra.mxu0 0
    %2525 = vmatprep.subr.bf16.mxu0 0
    %2526 = vmatpush1.bf16.msra.mxu0 0
    %2527 = vmatprep.subr.bf16.mxu0 0
    %2528 = vmatpush1.bf16.msra.mxu0 0
    %2529 = vmatprep.subr.bf16.mxu0 0
    %2530 = vmatpush1.bf16.msra.mxu0 %v2378
    %2531 = vmatprep.subr.bf16.mxu0 0
    %2532 = vmatpush2.bf16.msra.mxu0 0
    %2533 = vmatprep.subr.bf16.mxu0 0
    %2534 = vmatpush2.bf16.msra.mxu0 0
    %2535 = vmatprep.subr.bf16.mxu0 0
    %2536 = vmatpush2.bf16.msra.mxu0 0
    %2537 = vmatprep.subr.bf16.mxu0 0
    %2538 = vmatpush2.bf16.msra.mxu0 0
    %2539 = vmatprep.subr.bf16.mxu0 0
    %2540 = vmatpush2.bf16.msra.mxu0 0
    %2541 = vmatprep.subr.bf16.mxu0 0
    %2542 = vmatpush2.bf16.msra.mxu0 0
    %2543 = vmatprep.subr.bf16.mxu0 0
    %2544 = vmatpush2.bf16.msra.mxu0 0
    %2545 = vmatprep.subr.bf16.mxu0 0
    %2546 = vmatpush2.bf16.msra.mxu0 0
    %2547 = vmatprep.mubr.bf16.mxu0 0
    %2548 = vmatmul.mubr.bf16.gmra.mxu0 %v2513
    %v2549 = vpop.f32.mrf.mxu0
    %v2550 = vadd.f32 0.0, %v2549
    %v2551 = vpop.f32.mrf.mxu0
    %v2552 = vpop.f32.mrf.mxu0
    %v2553 = vadd.f32 0.0, %v2552
    %v2554 = vpop.f32.mrf.mxu0
    %2555 = vdwg.mxu0
    %v2557 = vsel %vm917, %v2511, 0
    %2559 = vmatprep.subr.bf16.mxu0 0
    %2560 = vmatpush1.bf16.msra.mxu0 0
    %2561 = vmatprep.subr.bf16.mxu0 0
    %2562 = vmatpush1.bf16.msra.mxu0 0
    %2563 = vmatprep.subr.bf16.mxu0 0
    %2564 = vmatpush1.bf16.msra.mxu0 0
    %2565 = vmatprep.subr.bf16.mxu0 0
    %2566 = vmatpush1.bf16.msra.mxu0 0
    %2567 = vmatprep.subr.bf16.mxu0 0
    %2568 = vmatpush1.bf16.msra.mxu0 0
    %2569 = vmatprep.subr.bf16.mxu0 0
    %2570 = vmatpush1.bf16.msra.mxu0 0
    %2571 = vmatprep.subr.bf16.mxu0 0
    %2572 = vmatpush1.bf16.msra.mxu0 0
    %2573 = vmatprep.subr.bf16.mxu0 0
    %2574 = vmatpush1.bf16.msra.mxu0 %v2379
    %2575 = vmatprep.subr.bf16.mxu0 0
    %2576 = vmatpush2.bf16.msra.mxu0 0
    %2577 = vmatprep.subr.bf16.mxu0 0
    %2578 = vmatpush2.bf16.msra.mxu0 0
    %2579 = vmatprep.subr.bf16.mxu0 0
    %2580 = vmatpush2.bf16.msra.mxu0 0
    %2581 = vmatprep.subr.bf16.mxu0 0
    %2582 = vmatpush2.bf16.msra.mxu0 0
    %2583 = vmatprep.subr.bf16.mxu0 0
    %2584 = vmatpush2.bf16.msra.mxu0 0
    %2585 = vmatprep.subr.bf16.mxu0 0
    %2586 = vmatpush2.bf16.msra.mxu0 0
    %2587 = vmatprep.subr.bf16.mxu0 0
    %2588 = vmatpush2.bf16.msra.mxu0 0
    %2589 = vmatprep.subr.bf16.mxu0 0
    %2590 = vmatpush2.bf16.msra.mxu0 0
    %2591 = vmatprep.mubr.bf16.mxu0 0
    %2592 = vmatmul.mubr.bf16.gmra.mxu0 %v2557
    %v2593 = vpop.f32.mrf.mxu0
    %v2594 = vadd.f32 0.0, %v2593
    %v2595 = vpop.f32.mrf.mxu0
    %v2596 = vpop.f32.mrf.mxu0
    %v2597 = vadd.f32 0.0, %v2596
    %v2598 = vpop.f32.mrf.mxu0
    %2599 = vdwg.mxu0
    %v2600 = vpack.c.bf16 %v2553, %v2550
    %v2601 = vpack.c.bf16 %v2597, %v2594
    %v2618 = vunpack.c.l.b16 %v2340
    %v2619 = vunpack.c.l.b16 %v2341
    %v2620 = vunpack.c.l.b16 %v2342
    %v2621 = vunpack.c.l.b16 %v2343
    %v2622 = vunpack.c.l.b16 %v2344
    %v2623 = vunpack.c.l.b16 %v2345
    %v2624 = vunpack.c.l.b16 %v2346
    %v2625 = vunpack.c.l.b16 %v2347
    %v2626 = vunpack.c.l.b16 %v2348
    %v2627 = vunpack.c.l.b16 %v2349
    %v2628 = vunpack.c.l.b16 %v2350
    %v2629 = vunpack.c.l.b16 %v2351
    %v2630 = vunpack.c.l.b16 %v2352
    %v2631 = vunpack.c.l.b16 %v2353
    %v2632 = vunpack.c.l.b16 %v2354
    %v2633 = vunpack.c.l.b16 %v2355
    %v2634 = vpack.c.b16 %v2619, %v2618
    %v2635 = vpack.c.b16 %v2621, %v2620
    %v2636 = vpack.c.b16 %v2623, %v2622
    %v2637 = vpack.c.b16 %v2625, %v2624
    %v2638 = vpack.c.b16 %v2627, %v2626
    %v2639 = vpack.c.b16 %v2629, %v2628
    %v2640 = vpack.c.b16 %v2631, %v2630
    %v2641 = vpack.c.b16 %v2633, %v2632
    %2650 = vmatprep.subr.bf16.mxu0 0
    %2651 = vmatpush1.bf16.msra.mxu0 %v2641
    %2652 = vmatprep.subr.bf16.mxu0 0
    %2653 = vmatpush1.bf16.msra.mxu0 %v2640
    %2654 = vmatprep.subr.bf16.mxu0 0
    %2655 = vmatpush1.bf16.msra.mxu0 %v2639
    %2656 = vmatprep.subr.bf16.mxu0 0
    %2657 = vmatpush1.bf16.msra.mxu0 %v2638
    %2658 = vmatprep.subr.bf16.mxu0 0
    %2659 = vmatpush1.bf16.msra.mxu0 %v2637
    %2660 = vmatprep.subr.bf16.mxu0 0
    %2661 = vmatpush1.bf16.msra.mxu0 %v2636
    %2662 = vmatprep.subr.bf16.mxu0 0
    %2663 = vmatpush1.bf16.msra.mxu0 %v2635
    %2664 = vmatprep.subr.bf16.mxu0 0
    %2665 = vmatpush1.bf16.msra.mxu0 %v2634
    %2666 = vmatprep.subr.bf16.mxu0 0
    %2667 = vmatpush2.bf16.msra.mxu0 0
    %2668 = vmatprep.subr.bf16.mxu0 0
    %2669 = vmatpush2.bf16.msra.mxu0 0
    %2670 = vmatprep.subr.bf16.mxu0 0
    %2671 = vmatpush2.bf16.msra.mxu0 0
    %2672 = vmatprep.subr.bf16.mxu0 0
    %2673 = vmatpush2.bf16.msra.mxu0 0
    %2674 = vmatprep.subr.bf16.mxu0 0
    %2675 = vmatpush2.bf16.msra.mxu0 0
    %2676 = vmatprep.subr.bf16.mxu0 0
    %2677 = vmatpush2.bf16.msra.mxu0 0
    %2678 = vmatprep.subr.bf16.mxu0 0
    %2679 = vmatpush2.bf16.msra.mxu0 0
    %2680 = vmatprep.subr.bf16.mxu0 0
    %2681 = vmatpush2.bf16.msra.mxu0 0
    %2682 = vmatprep.mubr.bf16.mxu0 0
    %2683 = vmatmul.mubr.bf16.gmra.mxu0 %v2600
    %v2684 = vpop.f32.mrf.mxu0
    %v2685 = vadd.f32 0.0, %v2684
    %v2686 = vpop.f32.mrf.mxu0
    %v2687 = vpop.f32.mrf.mxu0
    %v2688 = vadd.f32 0.0, %v2687
    %v2689 = vpop.f32.mrf.mxu0
    %2690 = vmatprep.mubr.bf16.mxu0 0
    %2691 = vmatmul.mubr.bf16.gmra.mxu0 %v2601
    %v2692 = vpop.f32.mrf.mxu0
    %v2693 = vadd.f32 0.0, %v2692
    %v2694 = vpop.f32.mrf.mxu0
    %v2695 = vpop.f32.mrf.mxu0
    %v2696 = vadd.f32 0.0, %v2695
    %v2697 = vpop.f32.mrf.mxu0
    %2698 = vdwg.mxu0
    %v2700 = vlaneseq
    %v2701 = vshrl.u32 %v2700, 7
    %v2702 = vsub.s32 0, %v2701
    %v2703 = vrot.slane %v2373, %v2702
    %v2705 = vadd.f32 %v2703, %v2685
    %v2706 = vadd.f32 %v2703, %v2688
    %v2707 = vadd.f32 %v2703, %v2693
    %v2708 = vadd.f32 %v2703, %v2696
    %v2709 = vpack.c.bf16 %v2274, %v2270
    %v2710 = vpack.c.bf16 %v2284, %v2280
    %v2711 = vpack.c.bf16 %v2325, %v2321
    %v2712 = vpack.c.bf16 %v2335, %v2331
    %v2713 = vpack.c.bf16 %v2327, %v2323
    %v2714 = vpack.c.bf16 %v2337, %v2333
    %2715 = vmatprep.subr.bf16.mxu0 0
    %2716 = vmatpush1.bf16.xpose.msra.mxu0 0
    %2717 = vmatprep.subr.bf16.mxu0 0
    %2718 = vmatpush1.bf16.xpose.msra.mxu0 0
    %2719 = vmatprep.subr.bf16.mxu0 0
    %2720 = vmatpush1.bf16.xpose.msra.mxu0 0
    %2721 = vmatprep.subr.bf16.mxu0 0
    %2722 = vmatpush1.bf16.xpose.msra.mxu0 0
    %2723 = vmatprep.subr.bf16.mxu0 0
    %2724 = vmatpush1.bf16.xpose.msra.mxu0 0
    %2725 = vmatprep.subr.bf16.mxu0 0
    %2726 = vmatpush1.bf16.xpose.msra.mxu0 0
    %2727 = vmatprep.subr.bf16.mxu0 0
    %2728 = vmatpush1.bf16.xpose.msra.mxu0 0
    %2729 = vmatprep.subr.bf16.mxu0 0
    %2730 = vmatpush1.bf16.xpose.msra.mxu0 %v2711
    %2731 = vmatprep.subr.bf16.mxu0 0
    %2732 = vmatpush2.bf16.xpose.msra.mxu0 0
    %2733 = vmatprep.subr.bf16.mxu0 0
    %2734 = vmatpush2.bf16.xpose.msra.mxu0 0
    %2735 = vmatprep.subr.bf16.mxu0 0
    %2736 = vmatpush2.bf16.xpose.msra.mxu0 0
    %2737 = vmatprep.subr.bf16.mxu0 0
    %2738 = vmatpush2.bf16.xpose.msra.mxu0 0
    %2739 = vmatprep.subr.bf16.mxu0 0
    %2740 = vmatpush2.bf16.xpose.msra.mxu0 0
    %2741 = vmatprep.subr.bf16.mxu0 0
    %2742 = vmatpush2.bf16.xpose.msra.mxu0 0
    %2743 = vmatprep.subr.bf16.mxu0 0
    %2744 = vmatpush2.bf16.xpose.msra.mxu0 0
    %2745 = vmatprep.subr.bf16.mxu0 0
    %2746 = vmatpush2.bf16.xpose.msra.mxu0 0
    %2747 = vmatprep.mubr.bf16.mxu0 0
    %2748 = vmatmul.mubr.bf16.gmra.mxu0 %v2709
    %v2749 = vpop.f32.mrf.mxu0
    %v2750 = vadd.f32 0.0, %v2749
    %v2751 = vpop.f32.mrf.mxu0
    %v2752 = vpop.f32.mrf.mxu0
    %v2753 = vadd.f32 0.0, %v2752
    %v2754 = vpop.f32.mrf.mxu0
    %2755 = vdwg.mxu0
    %2756 = vmatprep.subr.bf16.mxu0 0
    %2757 = vmatpush1.bf16.xpose.msra.mxu0 0
    %2758 = vmatprep.subr.bf16.mxu0 0
    %2759 = vmatpush1.bf16.xpose.msra.mxu0 0
    %2760 = vmatprep.subr.bf16.mxu0 0
    %2761 = vmatpush1.bf16.xpose.msra.mxu0 0
    %2762 = vmatprep.subr.bf16.mxu0 0
    %2763 = vmatpush1.bf16.xpose.msra.mxu0 0
    %2764 = vmatprep.subr.bf16.mxu0 0
    %2765 = vmatpush1.bf16.xpose.msra.mxu0 0
    %2766 = vmatprep.subr.bf16.mxu0 0
    %2767 = vmatpush1.bf16.xpose.msra.mxu0 0
    %2768 = vmatprep.subr.bf16.mxu0 0
    %2769 = vmatpush1.bf16.xpose.msra.mxu0 0
    %2770 = vmatprep.subr.bf16.mxu0 0
    %2771 = vmatpush1.bf16.xpose.msra.mxu0 %v2712
    %2772 = vmatprep.subr.bf16.mxu0 0
    %2773 = vmatpush2.bf16.xpose.msra.mxu0 0
    %2774 = vmatprep.subr.bf16.mxu0 0
    %2775 = vmatpush2.bf16.xpose.msra.mxu0 0
    %2776 = vmatprep.subr.bf16.mxu0 0
    %2777 = vmatpush2.bf16.xpose.msra.mxu0 0
    %2778 = vmatprep.subr.bf16.mxu0 0
    %2779 = vmatpush2.bf16.xpose.msra.mxu0 0
    %2780 = vmatprep.subr.bf16.mxu0 0
    %2781 = vmatpush2.bf16.xpose.msra.mxu0 0
    %2782 = vmatprep.subr.bf16.mxu0 0
    %2783 = vmatpush2.bf16.xpose.msra.mxu0 0
    %2784 = vmatprep.subr.bf16.mxu0 0
    %2785 = vmatpush2.bf16.xpose.msra.mxu0 0
    %2786 = vmatprep.subr.bf16.mxu0 0
    %2787 = vmatpush2.bf16.xpose.msra.mxu0 0
    %2788 = vmatprep.mubr.bf16.mxu0 0
    %2789 = vmatmul.mubr.bf16.gmra.mxu0 %v2710
    %v2790 = vpop.f32.mrf.mxu0
    %v2791 = vadd.f32 0.0, %v2790
    %v2792 = vpop.f32.mrf.mxu0
    %v2793 = vpop.f32.mrf.mxu0
    %v2794 = vadd.f32 0.0, %v2793
    %v2795 = vpop.f32.mrf.mxu0
    %2796 = vdwg.mxu0
    %v2797 = vsel %vm911, %v2750, -10000.0
    %v2798 = vsel %vm912, %v2753, -10000.0
    %v2799 = vsel %vm911, %v2791, -10000.0
    %v2800 = vsel %vm912, %v2794, -10000.0
    %v2801 = vsel %vm917, %v2797, -inf
    %2802 = vmax.xlane.f32.xlu0 %v2801
    %v2803 = vpop.xlane.xlu0 %2802
    %v2804 = vsel %vm917, %v2798, -inf
    %2805 = vmax.xlane.f32.xlu0 %v2804
    %v2806 = vpop.xlane.xlu0 %2805
    %v2807 = vsel %vm917, %v2799, -inf
    %2808 = vmax.xlane.f32.xlu0 %v2807
    %v2809 = vpop.xlane.xlu0 %2808
    %v2810 = vsel %vm917, %v2800, -inf
    %2811 = vmax.xlane.f32.xlu0 %v2810
    %v2812 = vpop.xlane.xlu0 %2811
    %v2813 = vsub.f32 %v2797, %v2803
    %v2814 = vsub.f32 %v2798, %v2806
    %v2815 = vsub.f32 %v2799, %v2809
    %v2816 = vsub.f32 %v2800, %v2812
    %v2817 = vmul.f32 %v2813, 1.442695
    %v2818 = vpow.pop %v2817
    %v2819 = vmul.f32 %v2814, 1.442695
    %v2820 = vpow.pop %v2819
    %v2821 = vmul.f32 %v2815, 1.442695
    %v2822 = vpow.pop %v2821
    %v2823 = vmul.f32 %v2816, 1.442695
    %v2824 = vpow.pop %v2823
    %v2825 = vsel %vm917, %v2818, 0.0
    %2826 = vadd.xlane.f32.xlu0 %v2825
    %v2827 = vpop.xlane.xlu0 %2826
    %v2828 = vsel %vm917, %v2820, 0.0
    %2829 = vadd.xlane.f32.xlu0 %v2828
    %v2830 = vpop.xlane.xlu0 %2829
    %v2831 = vsel %vm917, %v2822, 0.0
    %2832 = vadd.xlane.f32.xlu0 %v2831
    %v2833 = vpop.xlane.xlu0 %2832
    %v2834 = vsel %vm917, %v2824, 0.0
    %2835 = vadd.xlane.f32.xlu0 %v2834
    %v2836 = vpop.xlane.xlu0 %2835
    %v2837 = vrcp.pop %v2827
    %v2838 = vrcp.pop %v2830
    %v2839 = vrcp.pop %v2833
    %v2840 = vrcp.pop %v2836
    %v2841 = vmul.f32 %v2818, %v2837
    %v2842 = vmul.f32 %v2820, %v2838
    %v2843 = vmul.f32 %v2822, %v2839
    %v2844 = vmul.f32 %v2824, %v2840
    %v2845 = vpack.c.bf16 %v2842, %v2841
    %v2846 = vpack.c.bf16 %v2844, %v2843
    %v2848 = vsel %vm917, %v2845, 0
    %2850 = vmatprep.subr.bf16.mxu0 0
    %2851 = vmatpush1.bf16.msra.mxu0 0
    %2852 = vmatprep.subr.bf16.mxu0 0
    %2853 = vmatpush1.bf16.msra.mxu0 0
    %2854 = vmatprep.subr.bf16.mxu0 0
    %2855 = vmatpush1.bf16.msra.mxu0 0
    %2856 = vmatprep.subr.bf16.mxu0 0
    %2857 = vmatpush1.bf16.msra.mxu0 0
    %2858 = vmatprep.subr.bf16.mxu0 0
    %2859 = vmatpush1.bf16.msra.mxu0 0
    %2860 = vmatprep.subr.bf16.mxu0 0
    %2861 = vmatpush1.bf16.msra.mxu0 0
    %2862 = vmatprep.subr.bf16.mxu0 0
    %2863 = vmatpush1.bf16.msra.mxu0 0
    %2864 = vmatprep.subr.bf16.mxu0 0
    %2865 = vmatpush1.bf16.msra.mxu0 %v2713
    %2866 = vmatprep.subr.bf16.mxu0 0
    %2867 = vmatpush2.bf16.msra.mxu0 0
    %2868 = vmatprep.subr.bf16.mxu0 0
    %2869 = vmatpush2.bf16.msra.mxu0 0
    %2870 = vmatprep.subr.bf16.mxu0 0
    %2871 = vmatpush2.bf16.msra.mxu0 0
    %2872 = vmatprep.subr.bf16.mxu0 0
    %2873 = vmatpush2.bf16.msra.mxu0 0
    %2874 = vmatprep.subr.bf16.mxu0 0
    %2875 = vmatpush2.bf16.msra.mxu0 0
    %2876 = vmatprep.subr.bf16.mxu0 0
    %2877 = vmatpush2.bf16.msra.mxu0 0
    %2878 = vmatprep.subr.bf16.mxu0 0
    %2879 = vmatpush2.bf16.msra.mxu0 0
    %2880 = vmatprep.subr.bf16.mxu0 0
    %2881 = vmatpush2.bf16.msra.mxu0 0
    %2882 = vmatprep.mubr.bf16.mxu0 0
    %2883 = vmatmul.mubr.bf16.gmra.mxu0 %v2848
    %v2884 = vpop.f32.mrf.mxu0
    %v2885 = vadd.f32 0.0, %v2884
    %v2886 = vpop.f32.mrf.mxu0
    %v2887 = vpop.f32.mrf.mxu0
    %v2888 = vadd.f32 0.0, %v2887
    %v2889 = vpop.f32.mrf.mxu0
    %2890 = vdwg.mxu0
    %v2892 = vsel %vm917, %v2846, 0
    %2894 = vmatprep.subr.bf16.mxu0 0
    %2895 = vmatpush1.bf16.msra.mxu0 0
    %2896 = vmatprep.subr.bf16.mxu0 0
    %2897 = vmatpush1.bf16.msra.mxu0 0
    %2898 = vmatprep.subr.bf16.mxu0 0
    %2899 = vmatpush1.bf16.msra.mxu0 0
    %2900 = vmatprep.subr.bf16.mxu0 0
    %2901 = vmatpush1.bf16.msra.mxu0 0
    %2902 = vmatprep.subr.bf16.mxu0 0
    %2903 = vmatpush1.bf16.msra.mxu0 0
    %2904 = vmatprep.subr.bf16.mxu0 0
    %2905 = vmatpush1.bf16.msra.mxu0 0
    %2906 = vmatprep.subr.bf16.mxu0 0
    %2907 = vmatpush1.bf16.msra.mxu0 0
    %2908 = vmatprep.subr.bf16.mxu0 0
    %2909 = vmatpush1.bf16.msra.mxu0 %v2714
    %2910 = vmatprep.subr.bf16.mxu0 0
    %2911 = vmatpush2.bf16.msra.mxu0 0
    %2912 = vmatprep.subr.bf16.mxu0 0
    %2913 = vmatpush2.bf16.msra.mxu0 0
    %2914 = vmatprep.subr.bf16.mxu0 0
    %2915 = vmatpush2.bf16.msra.mxu0 0
    %2916 = vmatprep.subr.bf16.mxu0 0
    %2917 = vmatpush2.bf16.msra.mxu0 0
    %2918 = vmatprep.subr.bf16.mxu0 0
    %2919 = vmatpush2.bf16.msra.mxu0 0
    %2920 = vmatprep.subr.bf16.mxu0 0
    %2921 = vmatpush2.bf16.msra.mxu0 0
    %2922 = vmatprep.subr.bf16.mxu0 0
    %2923 = vmatpush2.bf16.msra.mxu0 0
    %2924 = vmatprep.subr.bf16.mxu0 0
    %2925 = vmatpush2.bf16.msra.mxu0 0
    %2926 = vmatprep.mubr.bf16.mxu0 0
    %2927 = vmatmul.mubr.bf16.gmra.mxu0 %v2892
    %v2928 = vpop.f32.mrf.mxu0
    %v2929 = vadd.f32 0.0, %v2928
    %v2930 = vpop.f32.mrf.mxu0
    %v2931 = vpop.f32.mrf.mxu0
    %v2932 = vadd.f32 0.0, %v2931
    %v2933 = vpop.f32.mrf.mxu0
    %2934 = vdwg.mxu0
    %v2935 = vpack.c.bf16 %v2888, %v2885
    %v2936 = vpack.c.bf16 %v2932, %v2929
    %v2953 = vunpack.c.l.b16 %v2356
    %v2954 = vunpack.c.l.b16 %v2357
    %v2955 = vunpack.c.l.b16 %v2358
    %v2956 = vunpack.c.l.b16 %v2359
    %v2957 = vunpack.c.l.b16 %v2360
    %v2958 = vunpack.c.l.b16 %v2361
    %v2959 = vunpack.c.l.b16 %v2362
    %v2960 = vunpack.c.l.b16 %v2363
    %v2961 = vunpack.c.l.b16 %v2364
    %v2962 = vunpack.c.l.b16 %v2365
    %v2963 = vunpack.c.l.b16 %v2366
    %v2964 = vunpack.c.l.b16 %v2367
    %v2965 = vunpack.c.l.b16 %v2368
    %v2966 = vunpack.c.l.b16 %v2369
    %v2967 = vunpack.c.l.b16 %v2370
    %v2968 = vunpack.c.l.b16 %v2371
    %v2969 = vpack.c.b16 %v2954, %v2953
    %v2970 = vpack.c.b16 %v2956, %v2955
    %v2971 = vpack.c.b16 %v2958, %v2957
    %v2972 = vpack.c.b16 %v2960, %v2959
    %v2973 = vpack.c.b16 %v2962, %v2961
    %v2974 = vpack.c.b16 %v2964, %v2963
    %v2975 = vpack.c.b16 %v2966, %v2965
    %v2976 = vpack.c.b16 %v2968, %v2967
    %2985 = vmatprep.subr.bf16.mxu0 0
    %2986 = vmatpush1.bf16.msra.mxu0 %v2976
    %2987 = vmatprep.subr.bf16.mxu0 0
    %2988 = vmatpush1.bf16.msra.mxu0 %v2975
    %2989 = vmatprep.subr.bf16.mxu0 0
    %2990 = vmatpush1.bf16.msra.mxu0 %v2974
    %2991 = vmatprep.subr.bf16.mxu0 0
    %2992 = vmatpush1.bf16.msra.mxu0 %v2973
    %2993 = vmatprep.subr.bf16.mxu0 0
    %2994 = vmatpush1.bf16.msra.mxu0 %v2972
    %2995 = vmatprep.subr.bf16.mxu0 0
    %2996 = vmatpush1.bf16.msra.mxu0 %v2971
    %2997 = vmatprep.subr.bf16.mxu0 0
    %2998 = vmatpush1.bf16.msra.mxu0 %v2970
    %2999 = vmatprep.subr.bf16.mxu0 0
    %3000 = vmatpush1.bf16.msra.mxu0 %v2969
    %3001 = vmatprep.subr.bf16.mxu0 0
    %3002 = vmatpush2.bf16.msra.mxu0 0
    %3003 = vmatprep.subr.bf16.mxu0 0
    %3004 = vmatpush2.bf16.msra.mxu0 0
    %3005 = vmatprep.subr.bf16.mxu0 0
    %3006 = vmatpush2.bf16.msra.mxu0 0
    %3007 = vmatprep.subr.bf16.mxu0 0
    %3008 = vmatpush2.bf16.msra.mxu0 0
    %3009 = vmatprep.subr.bf16.mxu0 0
    %3010 = vmatpush2.bf16.msra.mxu0 0
    %3011 = vmatprep.subr.bf16.mxu0 0
    %3012 = vmatpush2.bf16.msra.mxu0 0
    %3013 = vmatprep.subr.bf16.mxu0 0
    %3014 = vmatpush2.bf16.msra.mxu0 0
    %3015 = vmatprep.subr.bf16.mxu0 0
    %3016 = vmatpush2.bf16.msra.mxu0 0
    %3017 = vmatprep.mubr.bf16.mxu0 0
    %3018 = vmatmul.mubr.bf16.gmra.mxu0 %v2935
    %v3019 = vpop.f32.mrf.mxu0
    %v3020 = vadd.f32 0.0, %v3019
    %v3021 = vpop.f32.mrf.mxu0
    %v3022 = vpop.f32.mrf.mxu0
    %v3023 = vadd.f32 0.0, %v3022
    %v3024 = vpop.f32.mrf.mxu0
    %3025 = vmatprep.mubr.bf16.mxu0 0
    %3026 = vmatmul.mubr.bf16.gmra.mxu0 %v2936
    %v3027 = vpop.f32.mrf.mxu0
    %v3028 = vadd.f32 0.0, %v3027
    %v3029 = vpop.f32.mrf.mxu0
    %v3030 = vpop.f32.mrf.mxu0
    %v3031 = vadd.f32 0.0, %v3030
    %v3032 = vpop.f32.mrf.mxu0
    %3033 = vdwg.mxu0
    %v3034 = vadd.f32 %v2705, %v3020
    %v3035 = vadd.f32 %v2706, %v3023
    %v3036 = vadd.f32 %v2707, %v3028
    %v3037 = vadd.f32 %v2708, %v3031
    %s3038 = scalar_lea.vmem %s13, 4
    %v3039 = vld [vmem:[%s3038] sm:$0x1]
    %v3040 = vld [vmem:[%s3038 + $0x1] sm:$0x1]
    %v3041 = vld [vmem:[%s3038 + $0x2] sm:$0x1]
    %v3042 = vld [vmem:[%s3038 + $0x3] sm:$0x1]
    %v3043 = vadd.f32 %v2062, %v3034
    %v3044 = vadd.f32 %v2063, %v3035
    %v3045 = vadd.f32 %v2064, %v3036
    %v3046 = vadd.f32 %v2065, %v3037
    %v3047 = vsel %vm381, %v3043, 0.0
    %3048 = vadd.xlane.f32.xlu0 %v3047
    %v3049 = vpop.xlane.xlu0 %3048
    %v3050 = vsel %vm381, %v3044, 0.0
    %3051 = vadd.xlane.f32.xlu0 %v3050
    %v3052 = vpop.xlane.xlu0 %3051
    %v3053 = vsel %vm381, %v3045, 0.0
    %3054 = vadd.xlane.f32.xlu0 %v3053
    %v3055 = vpop.xlane.xlu0 %3054
    %v3056 = vsel %vm381, %v3046, 0.0
    %3057 = vadd.xlane.f32.xlu0 %v3056
    %v3058 = vpop.xlane.xlu0 %3057
    %v3059 = vmul.f32 %v3049, %v1510
    %v3060 = vmul.f32 %v3052, %v1510
    %v3061 = vmul.f32 %v3055, %v1510
    %v3062 = vmul.f32 %v3058, %v1510
    %v3063 = vsub.f32 %v3043, %v3059
    %v3064 = vsub.f32 %v3044, %v3060
    %v3065 = vsub.f32 %v3045, %v3061
    %v3066 = vsub.f32 %v3046, %v3062
    %v3067 = vmul.f32 %v3063, %v3063
    %v3068 = vmul.f32 %v3064, %v3064
    %v3069 = vmul.f32 %v3065, %v3065
    %v3070 = vmul.f32 %v3066, %v3066
    %v3071 = vsel %vm381, %v3067, 0.0
    %3072 = vadd.xlane.f32.xlu0 %v3071
    %v3073 = vpop.xlane.xlu0 %3072
    %v3074 = vsel %vm381, %v3068, 0.0
    %3075 = vadd.xlane.f32.xlu0 %v3074
    %v3076 = vpop.xlane.xlu0 %3075
    %v3077 = vsel %vm381, %v3069, 0.0
    %3078 = vadd.xlane.f32.xlu0 %v3077
    %v3079 = vpop.xlane.xlu0 %3078
    %v3080 = vsel %vm381, %v3070, 0.0
    %3081 = vadd.xlane.f32.xlu0 %v3080
    %v3082 = vpop.xlane.xlu0 %3081
    %v3083 = vmul.f32 %v3073, %v1510
    %v3084 = vmul.f32 %v3076, %v1510
    %v3085 = vmul.f32 %v3079, %v1510
    %v3086 = vmul.f32 %v3082, %v1510
    %v3087 = vadd.f32 %v3083, 1e-05
    %v3088 = vadd.f32 %v3084, 1e-05
    %v3089 = vadd.f32 %v3085, 1e-05
    %v3090 = vadd.f32 %v3086, 1e-05
    %v3091 = vrsqrt.pop %v3087
    %v3092 = vrsqrt.pop %v3088
    %v3093 = vrsqrt.pop %v3089
    %v3094 = vrsqrt.pop %v3090
    %v3095 = vmul.f32 %v3063, %v3091
    %v3096 = vmul.f32 %v3064, %v3092
    %v3097 = vmul.f32 %v3065, %v3093
    %v3098 = vmul.f32 %v3066, %v3094
    %v3100 = vlaneseq
    %v3101 = vshrl.u32 %v3100, 7
    %v3102 = vsub.s32 0, %v3101
    %v3103 = vrot.slane %v3039, %v3102
    %v3105 = vmul.f32 %v3095, %v3103
    %v3106 = vmul.f32 %v3096, %v3103
    %v3107 = vmul.f32 %v3097, %v3103
    %v3108 = vmul.f32 %v3098, %v3103
    %v3110 = vlaneseq
    %v3111 = vshrl.u32 %v3110, 7
    %v3112 = vsub.s32 0, %v3111
    %v3113 = vrot.slane %v3040, %v3112
    %v3115 = vadd.f32 %v3105, %v3113
    %v3116 = vadd.f32 %v3106, %v3113
    %v3117 = vadd.f32 %v3107, %v3113
    %v3118 = vadd.f32 %v3108, %v3113
    %v3119 = vmul.f32 %v3115, %v492
    %v3120 = vmul.f32 %v3116, %v497
    %v3121 = vmul.f32 %v3117, %v502
    %v3122 = vmul.f32 %v3118, %v507
    %s3123 = scalar_lea.vmem %s14, 48
    %v3124 = vld [vmem:[%s3123] sm:$0xf]
    %v3125 = vld [vmem:[%s3123 + $0x4] sm:$0xf]
    %v3126 = vld [vmem:[%s3123 + $0x8] sm:$0xf]
    %v3127 = vld [vmem:[%s3123 + $0xc] sm:$0xf]
    %v3128 = vld [vmem:[%s3123 + $0x10] sm:$0xf]
    %v3129 = vld [vmem:[%s3123 + $0x14] sm:$0xf]
    %v3130 = vld [vmem:[%s3123 + $0x18] sm:$0xf]
    %v3131 = vld [vmem:[%s3123 + $0x1c] sm:$0xf]
    %v3132 = vld [vmem:[%s3123 + $0x20] sm:$0xf]
    %v3133 = vld [vmem:[%s3123 + $0x24] sm:$0xf]
    %v3134 = vld [vmem:[%s3123 + $0x28] sm:$0xf]
    %v3135 = vld [vmem:[%s3123 + $0x2c] sm:$0xf]
    %s3136 = scalar_lea.vmem %s15, 1
    %v3137 = vld [vmem:[%s3136] sm:$0x1]
    %v3138 = vrot.slane %v3119, 6
    %v3139 = vrot.slane %v3120, 6
    %v3140 = vrot.slane %v3121, 6
    %v3141 = vrot.slane %v3122, 6
    %v3142 = vsel %vm1592, %v3140, %v3141
    %v3143 = vsel %vm1592, %v3139, %v3140
    %v3144 = vsel %vm1592, %v3138, %v3139
    %v3145 = vsel %vm1592, %v3141, %v3138
    %v3146 = vsel %vm1613, %v3145, 0.0
    %v3147 = vsel %vm1614, %v3144, 0.0
    %v3148 = vsel %vm1615, %v3143, 0.0
    %v3149 = vsel %vm1616, %v3142, 0.0
    %v3150 = vrot.slane %v3119, 7
    %v3151 = vrot.slane %v3120, 7
    %v3152 = vrot.slane %v3121, 7
    %v3153 = vrot.slane %v3122, 7
    %v3154 = vsel %vm215, %v3152, %v3153
    %v3155 = vsel %vm215, %v3151, %v3152
    %v3156 = vsel %vm215, %v3150, %v3151
    %v3157 = vsel %vm215, %v3153, %v3150
    %v3158 = vsel %vm236, %v3157, 0.0
    %v3159 = vsel %vm237, %v3156, 0.0
    %v3160 = vsel %vm238, %v3155, 0.0
    %v3161 = vsel %vm239, %v3154, 0.0
    %3166 = vrot.lane.b32.xlu0 %v3158, 32
    %v3167 = vpop.permute.xlu0 %3166
    %3168 = vrot.lane.b32.xlu0 %v3159, 32
    %v3169 = vpop.permute.xlu0 %3168
    %3170 = vrot.lane.b32.xlu0 %v3160, 32
    %v3171 = vpop.permute.xlu0 %3170
    %3172 = vrot.lane.b32.xlu0 %v3161, 32
    %v3173 = vpop.permute.xlu0 %3172
    %3182 = vrot.lane.b32.xlu0 %v3119, 64
    %v3183 = vpop.permute.xlu0 %3182
    %3184 = vrot.lane.b32.xlu0 %v3120, 64
    %v3185 = vpop.permute.xlu0 %3184
    %3186 = vrot.lane.b32.xlu0 %v3121, 64
    %v3187 = vpop.permute.xlu0 %3186
    %3188 = vrot.lane.b32.xlu0 %v3122, 64
    %v3189 = vpop.permute.xlu0 %3188
    %v3194 = vsel %vm381, %v3146, %v3167
    %v3195 = vsel %vm381, %v3147, %v3169
    %v3196 = vsel %vm381, %v3148, %v3171
    %v3197 = vsel %vm381, %v3149, %v3173
    %v3198 = vsel %vm386, %v3194, %v3183
    %v3199 = vsel %vm386, %v3195, %v3185
    %v3200 = vsel %vm386, %v3196, %v3187
    %v3201 = vsel %vm386, %v3197, %v3189
    %v3202 = vpack.c.bf16 %v3199, %v3198
    %v3203 = vpack.c.bf16 %v3201, %v3200
    %v3205 = vlaneseq
    %v3206 = vshrl.u32 %v3205, 7
    %v3207 = vsub.s32 0, %v3206
    %v3208 = vrot.slane %v3137, %v3207
    %v3222 = vunpack.c.l.b16 %v3124
    %v3223 = vunpack.c.l.b16 %v3125
    %v3224 = vunpack.c.l.b16 %v3126
    %v3225 = vunpack.c.l.b16 %v3127
    %v3226 = vunpack.c.l.b16 %v3128
    %v3227 = vunpack.c.l.b16 %v3129
    %v3228 = vunpack.c.l.b16 %v3130
    %v3229 = vunpack.c.l.b16 %v3131
    %v3230 = vunpack.c.l.b16 %v3132
    %v3231 = vunpack.c.l.b16 %v3133
    %v3232 = vunpack.c.l.b16 %v3134
    %v3233 = vunpack.c.l.b16 %v3135
    %v3234 = vpack.c.b16 %v3223, %v3222
    %v3235 = vpack.c.b16 %v3225, %v3224
    %v3236 = vpack.c.b16 %v3227, %v3226
    %v3237 = vpack.c.b16 %v3229, %v3228
    %v3238 = vpack.c.b16 %v3231, %v3230
    %v3239 = vpack.c.b16 %v3233, %v3232
    %v3247 = vsel %vm433, %v3202, 0
    %v3250 = vsel %vm433, %v3203, 0
    %3252 = vmatprep.subr.bf16.mxu0 0
    %3253 = vmatpush1.bf16.msra.mxu0 0
    %3254 = vmatprep.subr.bf16.mxu0 0
    %3255 = vmatpush1.bf16.msra.mxu0 0
    %3256 = vmatprep.subr.bf16.mxu0 0
    %3257 = vmatpush1.bf16.msra.mxu0 %v3239
    %3258 = vmatprep.subr.bf16.mxu0 0
    %3259 = vmatpush1.bf16.msra.mxu0 %v3238
    %3260 = vmatprep.subr.bf16.mxu0 0
    %3261 = vmatpush1.bf16.msra.mxu0 %v3237
    %3262 = vmatprep.subr.bf16.mxu0 0
    %3263 = vmatpush1.bf16.msra.mxu0 %v3236
    %3264 = vmatprep.subr.bf16.mxu0 0
    %3265 = vmatpush1.bf16.msra.mxu0 %v3235
    %3266 = vmatprep.subr.bf16.mxu0 0
    %3267 = vmatpush1.bf16.msra.mxu0 %v3234
    %3268 = vmatprep.subr.bf16.mxu0 0
    %3269 = vmatpush2.bf16.msra.mxu0 0
    %3270 = vmatprep.subr.bf16.mxu0 0
    %3271 = vmatpush2.bf16.msra.mxu0 0
    %3272 = vmatprep.subr.bf16.mxu0 0
    %3273 = vmatpush2.bf16.msra.mxu0 0
    %3274 = vmatprep.subr.bf16.mxu0 0
    %3275 = vmatpush2.bf16.msra.mxu0 0
    %3276 = vmatprep.subr.bf16.mxu0 0
    %3277 = vmatpush2.bf16.msra.mxu0 0
    %3278 = vmatprep.subr.bf16.mxu0 0
    %3279 = vmatpush2.bf16.msra.mxu0 0
    %3280 = vmatprep.subr.bf16.mxu0 0
    %3281 = vmatpush2.bf16.msra.mxu0 0
    %3282 = vmatprep.subr.bf16.mxu0 0
    %3283 = vmatpush2.bf16.msra.mxu0 0
    %3284 = vmatprep.mubr.bf16.mxu0 0
    %3285 = vmatmul.mubr.bf16.gmra.mxu0 %v3247
    %v3286 = vpop.f32.mrf.mxu0
    %v3287 = vadd.f32 %v3208, %v3286
    %v3288 = vpop.f32.mrf.mxu0
    %v3289 = vpop.f32.mrf.mxu0
    %v3290 = vadd.f32 %v3208, %v3289
    %v3291 = vpop.f32.mrf.mxu0
    %3292 = vmatprep.mubr.bf16.mxu0 0
    %3293 = vmatmul.mubr.bf16.gmra.mxu0 %v3250
    %v3294 = vpop.f32.mrf.mxu0
    %v3295 = vadd.f32 %v3208, %v3294
    %v3296 = vpop.f32.mrf.mxu0
    %v3297 = vpop.f32.mrf.mxu0
    %v3298 = vadd.f32 %v3208, %v3297
    %v3299 = vpop.f32.mrf.mxu0
    %3300 = vdwg.mxu0
    %v3301 = vmax.f32 %v3287, 0.0
    %v3302 = vmax.f32 %v3290, 0.0
    %v3303 = vmax.f32 %v3295, 0.0
    %v3304 = vmax.f32 %v3298, 0.0
    %v3305 = vmul.f32 %v3301, %v492
    %v3306 = vmul.f32 %v3302, %v497
    %v3307 = vmul.f32 %v3303, %v502
    %v3308 = vmul.f32 %v3304, %v507
    %s3309 = scalar_lea.vmem %s16, 96
    %v3310 = vld [vmem:[%s3309] sm:$0xf]
    %v3311 = vld [vmem:[%s3309 + $0x4] sm:$0xf]
    %v3312 = vld [vmem:[%s3309 + $0x8] sm:$0xf]
    %v3313 = vld [vmem:[%s3309 + $0xc] sm:$0xf]
    %v3314 = vld [vmem:[%s3309 + $0x10] sm:$0xf]
    %v3315 = vld [vmem:[%s3309 + $0x14] sm:$0xf]
    %v3316 = vld [vmem:[%s3309 + $0x18] sm:$0xf]
    %v3317 = vld [vmem:[%s3309 + $0x1c] sm:$0xf]
    %v3318 = vld [vmem:[%s3309 + $0x20] sm:$0xf]
    %v3319 = vld [vmem:[%s3309 + $0x24] sm:$0xf]
    %v3320 = vld [vmem:[%s3309 + $0x28] sm:$0xf]
    %v3321 = vld [vmem:[%s3309 + $0x2c] sm:$0xf]
    %v3322 = vld [vmem:[%s3309 + $0x30] sm:$0xf]
    %v3323 = vld [vmem:[%s3309 + $0x34] sm:$0xf]
    %v3324 = vld [vmem:[%s3309 + $0x38] sm:$0xf]
    %v3325 = vld [vmem:[%s3309 + $0x3c] sm:$0xf]
    %v3326 = vld [vmem:[%s3309 + $0x40] sm:$0xf]
    %v3327 = vld [vmem:[%s3309 + $0x44] sm:$0xf]
    %v3328 = vld [vmem:[%s3309 + $0x48] sm:$0xf]
    %v3329 = vld [vmem:[%s3309 + $0x4c] sm:$0xf]
    %v3330 = vld [vmem:[%s3309 + $0x50] sm:$0xf]
    %v3331 = vld [vmem:[%s3309 + $0x54] sm:$0xf]
    %v3332 = vld [vmem:[%s3309 + $0x58] sm:$0xf]
    %v3333 = vld [vmem:[%s3309 + $0x5c] sm:$0xf]
    %s3334 = scalar_lea.vmem %s17, 1
    %v3335 = vld [vmem:[%s3334] sm:$0x1]
    %v3336 = vrot.slane %v3305, 6
    %v3337 = vrot.slane %v3306, 6
    %v3338 = vrot.slane %v3307, 6
    %v3339 = vrot.slane %v3308, 6
    %v3340 = vsel %vm1592, %v3338, %v3339
    %v3341 = vsel %vm1592, %v3337, %v3338
    %v3342 = vsel %vm1592, %v3336, %v3337
    %v3343 = vsel %vm1592, %v3339, %v3336
    %v3344 = vsel %vm1613, %v3343, 0.0
    %v3345 = vsel %vm1614, %v3342, 0.0
    %v3346 = vsel %vm1615, %v3341, 0.0
    %v3347 = vsel %vm1616, %v3340, 0.0
    %v3348 = vrot.slane %v3305, 7
    %v3349 = vrot.slane %v3306, 7
    %v3350 = vrot.slane %v3307, 7
    %v3351 = vrot.slane %v3308, 7
    %v3352 = vsel %vm215, %v3350, %v3351
    %v3353 = vsel %vm215, %v3349, %v3350
    %v3354 = vsel %vm215, %v3348, %v3349
    %v3355 = vsel %vm215, %v3351, %v3348
    %v3356 = vsel %vm236, %v3355, 0.0
    %v3357 = vsel %vm237, %v3354, 0.0
    %v3358 = vsel %vm238, %v3353, 0.0
    %v3359 = vsel %vm239, %v3352, 0.0
    %3364 = vrot.lane.b32.xlu0 %v3356, 64
    %v3365 = vpop.permute.xlu0 %3364
    %3366 = vrot.lane.b32.xlu0 %v3357, 64
    %v3367 = vpop.permute.xlu0 %3366
    %3368 = vrot.lane.b32.xlu0 %v3358, 64
    %v3369 = vpop.permute.xlu0 %3368
    %3370 = vrot.lane.b32.xlu0 %v3359, 64
    %v3371 = vpop.permute.xlu0 %3370
    %v3376 = vsel %vm386, %v3344, %v3365
    %v3377 = vsel %vm386, %v3345, %v3367
    %v3378 = vsel %vm386, %v3346, %v3369
    %v3379 = vsel %vm386, %v3347, %v3371
    %v3380 = vpack.c.bf16 %v3377, %v3376
    %v3381 = vpack.c.bf16 %v3306, %v3305
    %v3382 = vpack.c.bf16 %v3379, %v3378
    %v3383 = vpack.c.bf16 %v3308, %v3307
    %v3385 = vlaneseq
    %v3386 = vshrl.u32 %v3385, 7
    %v3387 = vsub.s32 0, %v3386
    %v3388 = vrot.slane %v3335, %v3387
    %v3414 = vunpack.c.l.b16 %v3310
    %v3415 = vunpack.c.l.b16 %v3311
    %v3416 = vunpack.c.l.b16 %v3312
    %v3417 = vunpack.c.l.b16 %v3313
    %v3418 = vunpack.c.l.b16 %v3314
    %v3419 = vunpack.c.l.b16 %v3315
    %v3420 = vunpack.c.l.b16 %v3316
    %v3421 = vunpack.c.l.b16 %v3317
    %v3422 = vunpack.c.l.b16 %v3318
    %v3423 = vunpack.c.l.b16 %v3319
    %v3424 = vunpack.c.l.b16 %v3320
    %v3425 = vunpack.c.l.b16 %v3321
    %v3426 = vunpack.c.l.b16 %v3322
    %v3427 = vunpack.c.l.b16 %v3323
    %v3428 = vunpack.c.l.b16 %v3324
    %v3429 = vunpack.c.l.b16 %v3325
    %v3430 = vunpack.c.l.b16 %v3326
    %v3431 = vunpack.c.l.b16 %v3327
    %v3432 = vunpack.c.l.b16 %v3328
    %v3433 = vunpack.c.l.b16 %v3329
    %v3434 = vunpack.c.l.b16 %v3330
    %v3435 = vunpack.c.l.b16 %v3331
    %v3436 = vunpack.c.l.b16 %v3332
    %v3437 = vunpack.c.l.b16 %v3333
    %v3438 = vpack.c.b16 %v3415, %v3414
    %v3439 = vpack.c.b16 %v3417, %v3416
    %v3440 = vpack.c.b16 %v3419, %v3418
    %v3441 = vpack.c.b16 %v3421, %v3420
    %v3442 = vpack.c.b16 %v3423, %v3422
    %v3443 = vpack.c.b16 %v3425, %v3424
    %v3444 = vpack.c.b16 %v3427, %v3426
    %v3445 = vpack.c.b16 %v3429, %v3428
    %v3446 = vpack.c.b16 %v3431, %v3430
    %v3447 = vpack.c.b16 %v3433, %v3432
    %v3448 = vpack.c.b16 %v3435, %v3434
    %v3449 = vpack.c.b16 %v3437, %v3436
    %v3463 = vsel %vm386, %v3381, 0
    %v3466 = vsel %vm386, %v3383, 0
    %3468 = vmatprep.subr.bf16.mxu0 0
    %3469 = vmatpush1.bf16.msra.mxu0 %v3445
    %3470 = vmatprep.subr.bf16.mxu0 0
    %3471 = vmatpush1.bf16.msra.mxu0 %v3444
    %3472 = vmatprep.subr.bf16.mxu0 0
    %3473 = vmatpush1.bf16.msra.mxu0 %v3443
    %3474 = vmatprep.subr.bf16.mxu0 0
    %3475 = vmatpush1.bf16.msra.mxu0 %v3442
    %3476 = vmatprep.subr.bf16.mxu0 0
    %3477 = vmatpush1.bf16.msra.mxu0 %v3441
    %3478 = vmatprep.subr.bf16.mxu0 0
    %3479 = vmatpush1.bf16.msra.mxu0 %v3440
    %3480 = vmatprep.subr.bf16.mxu0 0
    %3481 = vmatpush1.bf16.msra.mxu0 %v3439
    %3482 = vmatprep.subr.bf16.mxu0 0
    %3483 = vmatpush1.bf16.msra.mxu0 %v3438
    %3484 = vmatprep.subr.bf16.mxu0 0
    %3485 = vmatpush2.bf16.msra.mxu0 0
    %3486 = vmatprep.subr.bf16.mxu0 0
    %3487 = vmatpush2.bf16.msra.mxu0 0
    %3488 = vmatprep.subr.bf16.mxu0 0
    %3489 = vmatpush2.bf16.msra.mxu0 0
    %3490 = vmatprep.subr.bf16.mxu0 0
    %3491 = vmatpush2.bf16.msra.mxu0 0
    %3492 = vmatprep.subr.bf16.mxu0 0
    %3493 = vmatpush2.bf16.msra.mxu0 %v3449
    %3494 = vmatprep.subr.bf16.mxu0 0
    %3495 = vmatpush2.bf16.msra.mxu0 %v3448
    %3496 = vmatprep.subr.bf16.mxu0 0
    %3497 = vmatpush2.bf16.msra.mxu0 %v3447
    %3498 = vmatprep.subr.bf16.mxu0 0
    %3499 = vmatpush2.bf16.msra.mxu0 %v3446
    %3500 = vmatprep.mubr.bf16.mxu0 %v3463
    %3501 = vmatmul.mubr.bf16.gmra.mxu0 %v3380
    %v3502 = vpop.f32.mrf.mxu0
    %v3503 = vadd.f32 %v3388, %v3502
    %v3504 = vpop.f32.mrf.mxu0
    %v3505 = vpop.f32.mrf.mxu0
    %v3506 = vadd.f32 %v3388, %v3505
    %v3507 = vpop.f32.mrf.mxu0
    %3508 = vmatprep.mubr.bf16.mxu0 %v3466
    %3509 = vmatmul.mubr.bf16.gmra.mxu0 %v3382
    %v3510 = vpop.f32.mrf.mxu0
    %v3511 = vadd.f32 %v3388, %v3510
    %v3512 = vpop.f32.mrf.mxu0
    %v3513 = vpop.f32.mrf.mxu0
    %v3514 = vadd.f32 %v3388, %v3513
    %v3515 = vpop.f32.mrf.mxu0
    %3516 = vdwg.mxu0
    %v3517 = vmul.f32 %v3503, %v492
    %v3518 = vmul.f32 %v3506, %v497
    %v3519 = vmul.f32 %v3511, %v502
    %v3520 = vmul.f32 %v3514, %v507
    %v3521 = vadd.f32 %v3115, %v3517
    %v3522 = vadd.f32 %v3116, %v3518
    %v3523 = vadd.f32 %v3117, %v3519
    %v3524 = vadd.f32 %v3118, %v3520
    %v3525 = vsel %vm381, %v3521, 0.0
    %3526 = vadd.xlane.f32.xlu0 %v3525
    %v3527 = vpop.xlane.xlu0 %3526
    %v3528 = vsel %vm381, %v3522, 0.0
    %3529 = vadd.xlane.f32.xlu0 %v3528
    %v3530 = vpop.xlane.xlu0 %3529
    %v3531 = vsel %vm381, %v3523, 0.0
    %3532 = vadd.xlane.f32.xlu0 %v3531
    %v3533 = vpop.xlane.xlu0 %3532
    %v3534 = vsel %vm381, %v3524, 0.0
    %3535 = vadd.xlane.f32.xlu0 %v3534
    %v3536 = vpop.xlane.xlu0 %3535
    %v3537 = vmul.f32 %v3527, %v1510
    %v3538 = vmul.f32 %v3530, %v1510
    %v3539 = vmul.f32 %v3533, %v1510
    %v3540 = vmul.f32 %v3536, %v1510
    %v3541 = vsub.f32 %v3521, %v3537
    %v3542 = vsub.f32 %v3522, %v3538
    %v3543 = vsub.f32 %v3523, %v3539
    %v3544 = vsub.f32 %v3524, %v3540
    %v3545 = vmul.f32 %v3541, %v3541
    %v3546 = vmul.f32 %v3542, %v3542
    %v3547 = vmul.f32 %v3543, %v3543
    %v3548 = vmul.f32 %v3544, %v3544
    %v3549 = vsel %vm381, %v3545, 0.0
    %3550 = vadd.xlane.f32.xlu0 %v3549
    %v3551 = vpop.xlane.xlu0 %3550
    %v3552 = vsel %vm381, %v3546, 0.0
    %3553 = vadd.xlane.f32.xlu0 %v3552
    %v3554 = vpop.xlane.xlu0 %3553
    %v3555 = vsel %vm381, %v3547, 0.0
    %3556 = vadd.xlane.f32.xlu0 %v3555
    %v3557 = vpop.xlane.xlu0 %3556
    %v3558 = vsel %vm381, %v3548, 0.0
    %3559 = vadd.xlane.f32.xlu0 %v3558
    %v3560 = vpop.xlane.xlu0 %3559
    %v3561 = vmul.f32 %v3551, %v1510
    %v3562 = vmul.f32 %v3554, %v1510
    %v3563 = vmul.f32 %v3557, %v1510
    %v3564 = vmul.f32 %v3560, %v1510
    %v3565 = vadd.f32 %v3561, 1e-05
    %v3566 = vadd.f32 %v3562, 1e-05
    %v3567 = vadd.f32 %v3563, 1e-05
    %v3568 = vadd.f32 %v3564, 1e-05
    %v3569 = vrsqrt.pop %v3565
    %v3570 = vrsqrt.pop %v3566
    %v3571 = vrsqrt.pop %v3567
    %v3572 = vrsqrt.pop %v3568
    %v3573 = vmul.f32 %v3541, %v3569
    %v3574 = vmul.f32 %v3542, %v3570
    %v3575 = vmul.f32 %v3543, %v3571
    %v3576 = vmul.f32 %v3544, %v3572
    %v3578 = vlaneseq
    %v3579 = vshrl.u32 %v3578, 7
    %v3580 = vsub.s32 0, %v3579
    %v3581 = vrot.slane %v3041, %v3580
    %v3583 = vmul.f32 %v3573, %v3581
    %v3584 = vmul.f32 %v3574, %v3581
    %v3585 = vmul.f32 %v3575, %v3581
    %v3586 = vmul.f32 %v3576, %v3581
    %v3588 = vlaneseq
    %v3589 = vshrl.u32 %v3588, 7
    %v3590 = vsub.s32 0, %v3589
    %v3591 = vrot.slane %v3042, %v3590
    %v3593 = vadd.f32 %v3583, %v3591
    %v3594 = vadd.f32 %v3584, %v3591
    %v3595 = vadd.f32 %v3585, %v3591
    %v3596 = vadd.f32 %v3586, %v3591
    %v3597 = vmul.f32 %v3593, %v492
    %v3598 = vmul.f32 %v3594, %v497
    %v3599 = vmul.f32 %v3595, %v502
    %v3600 = vmul.f32 %v3596, %v507
    %v3601 = vpack.c.bf16 %v3598, %v3597
    %v3602 = vpack.c.bf16 %v3600, %v3599
    %v3603 = vld [vmem:[%s18] sm:$0xf]
    %v3604 = vld [vmem:[%s18 + $0x4] sm:$0xf]
    %v3605 = vld [vmem:[%s18 + $0x8] sm:$0xf]
    %v3606 = vld [vmem:[%s18 + $0xc] sm:$0xf]
    %v3607 = vld [vmem:[%s19] sm:$0x1]
    %v3609 = vlaneseq
    %v3610 = vshrl.u32 %v3609, 7
    %v3611 = vsub.s32 0, %v3610
    %v3612 = vrot.slane %v3607, %v3611
    %v3618 = vunpack.c.l.b16 %v3603
    %v3619 = vunpack.c.l.b16 %v3604
    %v3620 = vunpack.c.l.b16 %v3605
    %v3621 = vunpack.c.l.b16 %v3606
    %v3622 = vpack.c.b16 %v3619, %v3618
    %v3623 = vpack.c.b16 %v3621, %v3620
    %v3627 = vsel %vm381, %v3601, 0
    %v3630 = vsel %vm381, %v3602, 0
    %3632 = vmatprep.subr.bf16.mxu0 0
    %3633 = vmatpush1.bf16.msra.mxu0 0
    %3634 = vmatprep.subr.bf16.mxu0 0
    %3635 = vmatpush1.bf16.msra.mxu0 0
    %3636 = vmatprep.subr.bf16.mxu0 0
    %3637 = vmatpush1.bf16.msra.mxu0 0
    %3638 = vmatprep.subr.bf16.mxu0 0
    %3639 = vmatpush1.bf16.msra.mxu0 0
    %3640 = vmatprep.subr.bf16.mxu0 0
    %3641 = vmatpush1.bf16.msra.mxu0 0
    %3642 = vmatprep.subr.bf16.mxu0 0
    %3643 = vmatpush1.bf16.msra.mxu0 0
    %3644 = vmatprep.subr.bf16.mxu0 0
    %3645 = vmatpush1.bf16.msra.mxu0 %v3623
    %3646 = vmatprep.subr.bf16.mxu0 0
    %3647 = vmatpush1.bf16.msra.mxu0 %v3622
    %3648 = vmatprep.subr.bf16.mxu0 0
    %3649 = vmatpush2.bf16.msra.mxu0 0
    %3650 = vmatprep.subr.bf16.mxu0 0
    %3651 = vmatpush2.bf16.msra.mxu0 0
    %3652 = vmatprep.subr.bf16.mxu0 0
    %3653 = vmatpush2.bf16.msra.mxu0 0
    %3654 = vmatprep.subr.bf16.mxu0 0
    %3655 = vmatpush2.bf16.msra.mxu0 0
    %3656 = vmatprep.subr.bf16.mxu0 0
    %3657 = vmatpush2.bf16.msra.mxu0 0
    %3658 = vmatprep.subr.bf16.mxu0 0
    %3659 = vmatpush2.bf16.msra.mxu0 0
    %3660 = vmatprep.subr.bf16.mxu0 0
    %3661 = vmatpush2.bf16.msra.mxu0 0
    %3662 = vmatprep.subr.bf16.mxu0 0
    %3663 = vmatpush2.bf16.msra.mxu0 0
    %3664 = vmatprep.mubr.bf16.mxu0 0
    %3665 = vmatmul.mubr.bf16.gmra.mxu0 %v3627
    %v3666 = vpop.f32.mrf.mxu0
    %v3667 = vadd.f32 %v3612, %v3666
    %v3668 = vpop.f32.mrf.mxu0
    %v3669 = vpop.f32.mrf.mxu0
    %v3670 = vadd.f32 %v3612, %v3669
    %v3671 = vpop.f32.mrf.mxu0
    %3672 = vmatprep.mubr.bf16.mxu0 0
    %3673 = vmatmul.mubr.bf16.gmra.mxu0 %v3630
    %v3674 = vpop.f32.mrf.mxu0
    %v3675 = vadd.f32 %v3612, %v3674
    %v3676 = vpop.f32.mrf.mxu0
    %v3677 = vpop.f32.mrf.mxu0
    %v3678 = vadd.f32 %v3612, %v3677
    %v3679 = vpop.f32.mrf.mxu0
    %3680 = vdwg.mxu0
    %v3681 = vmul.f32 %v3667, %v492
    %v3682 = vmul.f32 %v3670, %v497
    %v3683 = vmul.f32 %v3675, %v502
    %v3684 = vmul.f32 %v3678, %v507
    %v3685 = vpack.c.bf16 %v3682, %v3681
    %v3686 = vpack.c.bf16 %v3684, %v3683
    %v3689 = vunpack.c.l.b16 %v3685
    %v3690 = vunpack.c.h.b16 %v3685
    %v3691 = vunpack.c.l.b16 %v3686
    %v3692 = vunpack.c.h.b16 %v3686
    %v3693 = vpack.c.b16 %v3689, %v3689
    %v3694 = vpack.c.b16 %v3690, %v3690
    %v3695 = vpack.c.b16 %v3691, %v3691
    %v3696 = vpack.c.b16 %v3692, %v3692
    %3701 = vst [vmem:[#allocation2] sm:$0xf] %v3693
    %3702 = vst [vmem:[#allocation2 + $0x4] sm:$0xf] %v3694
    %3703 = vst [vmem:[#allocation2 + $0x8] sm:$0xf] %v3695
    %3704 = vst [vmem:[#allocation2 + $0xc] sm:$0xf] %v3696
    // Predicated region
    $region82: #{tpu_custom_call.1} parent=1 // pred_check
      _
    $region83: #{tpu_custom_call.1} parent=1 // pred_check_branch
      %3706 = sbr.rel (0) target = $region85
    $region84: #{tpu_custom_call.1} parent=1 // pred_region
      %s3708 = ssub.s32 256, 256
      %3709 = vsyncadd [#allocation3], %s3708
      %s3710 = sshll.u32 [#allocation2], 4
      %s3711 = int_to_ptr.vmem [resolvable:$true] %s3710
      %3716 = dma.vmem_to_hbm [thread:$0]  %s3711, 256, %s20, [#allocation3], 64, 64, 4
    $region85: #{tpu_custom_call.1} parent=1 // pred_fallthru
      _
    // Predicated region
    $region86: #{tpu_custom_call.1} parent=1 // pred_check
      _
    $region87: #{tpu_custom_call.1} parent=1 // pred_check_branch
      %3718 = sbr.rel (0) target = $region89
    $region88: #{tpu_custom_call.1} parent=1 // pred_region
      %3719 = dma.done [#allocation3], 256
    $region89: #{tpu_custom_call.1} parent=1 // pred_fallthru
      _
    %3720 = vsyncpa [#allocation3], 1

</llo_original>
